<compile_context>
chip_gen: v5e
topology: v5e:2x2
jax: 0.10.0
libtpu: 0.0.40
codegen_flags: <defaults>
</compile_context>

<pallas_src>
import jax
import jax.numpy as jnp
from jax.experimental import pallas as pl
from jax.experimental.pallas import tpu as pltpu

LRELU_SLOPE = 0.01
BN_EPS = 1e-5
VEL_CAP = 10.0
THETA_CAP = 3.14159  # the PyTorch module uses the literal 3.14159


# ----------------------------- Pallas kernel factory -----------------------------

def _make_layer_kernel(*, s, P, PW, OH, OW, M, PADF, C, F, slope, head):
    """Implicit-GEMM conv kernel for one batch element.

    Input block  : (1, P, PADF, C) bf16  -- P = s*s flattened, padded planes of the
                                            raw (pre-BN) input activation.
    The prologue applies z = x*scale + shift ; leaky_relu ; * interior-mask and the
    9 taps are accumulated as (M, C) @ (C, F) MXU dots into an f32 VMEM accumulator.
    M = OH*PW rows; columns t >= OW of each output row are garbage (flat-window
    trick) and are sliced off in the wrapper / masked out of the BN statistics.
    """
    taps = []
    for p in range(P):
        ph, pw = p // s, p % s
        tp = []
        for kh in range(ph, 3, s):
            for kw in range(pw, 3, s):
                dh, dw = (kh - ph) // s, (kw - pw) // s
                tp.append((kh * 3 + kw, dh * PW + dw))
        taps.append(tp)

    def _accumulate(x_ref, m_ref, w_ref, sc_ref, sh_ref, act_ref, acc_ref):
        sc = sc_ref[...]                      # (1, C) f32, resident
        sh = sh_ref[...]                      # (1, C) f32
        first = True
        for p in range(P):
            # prologue: BN(scale/shift) + leaky_relu + zero the padded border
            z = x_ref[0, p].astype(jnp.float32) * sc + sh        # (PADF, C)
            a = jnp.where(z > 0, z, slope * z) * m_ref[p]        # (PADF,C)*(PADF,1)
            act_ref[...] = a.astype(act_ref.dtype)               # bf16 MXU operand
            for widx, start in taps[p]:
                contrib = jnp.dot(act_ref[pl.ds(start, M), :], w_ref[widx],
                                  preferred_element_type=jnp.float32)
                if first:
                    acc_ref[...] = contrib
                    first = False
                else:
                    acc_ref[...] += contrib

    if head:
        def kernel(x_ref, m_ref, w_ref, b_ref, sc_ref, sh_ref, sel_ref, cap_ref,
                   o_ref, act_ref, acc_ref):
            _accumulate(x_ref, m_ref, w_ref, sc_ref, sh_ref, act_ref, acc_ref)
            y = acc_ref[...] + b_ref[...]
            sel = sel_ref[...]
            cap = cap_ref[...]
            # single tanh: sel=1 -> sigmoid(y) = 0.5*(tanh(0.5*y)+1); sel=0 -> tanh(y)*cap
            t = jnp.tanh(y * (1.0 - 0.5 * sel))
            o_ref[0] = sel * (0.5 * (t + 1.0)) + (1.0 - sel) * (cap * t)
        return kernel

    def kernel(x_ref, m_ref, w_ref, b_ref, sc_ref, sh_ref, cm_ref,
               y_ref, sum_ref, ssq_ref, act_ref, acc_ref):
        _accumulate(x_ref, m_ref, w_ref, sc_ref, sh_ref, act_ref, acc_ref)
        acc = acc_ref[...] + b_ref[...]
        y_ref[0] = acc.astype(y_ref.dtype)                       # raw pre-BN output
        av = acc * cm_ref[...]                                   # mask garbage columns
        sum_ref[0] = jnp.sum(av, axis=0, keepdims=True)
        ssq_ref[0] = jnp.sum(av * av, axis=0, keepdims=True)
    return kernel


# ----------------------------- layer wrapper -----------------------------

def _conv_block(x, w_taps, bias, scale_c, shift_c, *, stride, slope, head=None):
    """One fused layer: prologue BN+LReLU of the previous layer, implicit-GEMM 3x3
    conv (stride 1 or 2), bias, and either BN-statistics outputs or the output head.

    x       : (N, H, W, C) bf16 raw (pre-BN) activation.
    w_taps  : (9, C, F) bf16 per-tap weight.
    Returns (y_raw (N,OH,OW,F) bf16, sum (F,), ssq (F,), count) or (N,OH,OW,F) f32.
    """
    N, H, W, C = x.shape
    F = w_taps.shape[-1]
    s = stride
    if s == 2:
        assert H % 2 == 0 and W % 2 == 0, (H, W)
        OH, OW = H // 2, W // 2
        PH, PW = OH + 1, OW + 1
    else:
        OH, OW = H, W
        PH, PW = H + 2, W + 2
    P = s * s
    M = OH * PW
    PADF = PH * PW + 2          # +2 flat rows so the largest tap slice stays in bounds

    # zero pad, (optionally) parity-split, flatten each plane -> (N, P, PADF, C)
    xpad = jnp.pad(x, ((0, 0), (1, 1), (1, 1), (0, 0)))
    if s == 2:
        xpad = xpad.reshape(N, PH, 2, PW, 2, C).transpose(0, 2, 4, 1, 3, 5)
    xpad = xpad.reshape(N, P, PH * PW, C)
    xpad = jnp.pad(xpad, ((0, 0), (0, 0), (0, PADF - PH * PW), (0, 0)))

    # interior mask per plane (zero-pad positions must map to 0 *after* BN+LReLU)
    fi = jnp.arange(PADF)
    row, col = fi // PW, fi % PW
    planes = []
    for p in range(P):
        ph, pw = p // s, p % s
        r, c = s * row + ph, s * col + pw
        planes.append((fi < PH * PW) & (r >= 1) & (r <= H) & (c >= 1) & (c <= W))
    mask = jnp.stack(planes, 0).astype(jnp.float32)[:, :, None]        # (P, PADF, 1)
    cmask = ((jnp.arange(M) % PW) < OW).astype(jnp.float32)[:, None]   # (M, 1)

    kernel = _make_layer_kernel(s=s, P=P, PW=PW, OH=OH, OW=OW, M=M, PADF=PADF,
                                C=C, F=F, slope=slope, head=head is not None)

    in_specs = [
        pl.BlockSpec((1, P, PADF, C), lambda b: (b, 0, 0, 0)),
        pl.BlockSpec((P, PADF, 1), lambda b: (0, 0, 0)),      # resident
        pl.BlockSpec((9, C, F), lambda b: (0, 0, 0)),         # resident weights
        pl.BlockSpec((1, F), lambda b: (0, 0)),
        pl.BlockSpec((1, C), lambda b: (0, 0)),
        pl.BlockSpec((1, C), lambda b: (0, 0)),
    ]
    scratch = [pltpu.VMEM((PADF, C), jnp.bfloat16),           # activated plane
               pltpu.VMEM((M, F), jnp.float32)]               # f32 accumulator
    args = [xpad, mask, w_taps,
            bias.reshape(1, F).astype(jnp.float32),
            scale_c.reshape(1, C).astype(jnp.float32),
            shift_c.reshape(1, C).astype(jnp.float32)]
    cp = pltpu.CompilerParams(dimension_semantics=("parallel",))   # both v7x TCs

    if head is None:
        y, ssum, ssq = pl.pallas_call(
            kernel,
            out_shape=(jax.ShapeDtypeStruct((N, M, F), jnp.bfloat16),
                       jax.ShapeDtypeStruct((N, 1, F), jnp.float32),
                       jax.ShapeDtypeStruct((N, 1, F), jnp.float32)),
            grid=(N,),
            in_specs=in_specs + [pl.BlockSpec((M, 1), lambda b: (0, 0))],
            out_specs=(pl.BlockSpec((1, M, F), lambda b: (b, 0, 0)),
                       pl.BlockSpec((1, 1, F), lambda b: (b, 0, 0)),
                       pl.BlockSpec((1, 1, F), lambda b: (b, 0, 0))),
            scratch_shapes=scratch,
            compiler_params=cp,
        )(*args, cmask)
        y = y.reshape(N, OH, PW, F)[:, :, :OW, :]             # drop garbage columns
        return y, jnp.sum(ssum, axis=(0, 1)), jnp.sum(ssq, axis=(0, 1)), N * OH * OW

    sel, cap = head
    o = pl.pallas_call(
        kernel,
        out_shape=jax.ShapeDtypeStruct((N, M, F), jnp.float32),
        grid=(N,),
        in_specs=in_specs + [pl.BlockSpec((1, F), lambda b: (0, 0)),
                             pl.BlockSpec((1, F), lambda b: (0, 0))],
        out_specs=pl.BlockSpec((1, M, F), lambda b: (b, 0, 0)),
        scratch_shapes=scratch,
        compiler_params=cp,
    )(*args, sel.reshape(1, F).astype(jnp.float32), cap.reshape(1, F).astype(jnp.float32))
    return o.reshape(N, OH, PW, F)[:, :, :OW, :]


# ----------------------- weight prep / glue (plain JAX) -----------------------

def _conv_taps(w):
    """Conv2d weight [Cout, Cin, 3, 3] -> per-tap GEMM weight [9, Cin, Cout]."""
    return jnp.transpose(w, (2, 3, 1, 0)).reshape(9, w.shape[1], w.shape[0])


def _deconv_taps(wt):
    """ConvTranspose2d(k=4,s=2,p=1) weight [Cin, Cout, 4, 4] -> sub-pixel conv taps
    [9, Cin, 4*Cout]; feature = (py*2+px)*Cout + co ; ky = py + 3 - 2*dh."""
    cin, cout = wt.shape[0], wt.shape[1]
    zero = jnp.zeros((cin, cout), wt.dtype)
    taps = []
    for dh in range(3):
        for dw in range(3):
            blocks = []
            for py in range(2):
                for px in range(2):
                    ky, kx = py + 3 - 2 * dh, px + 3 - 2 * dw
                    blocks.append(wt[:, :, ky, kx] if (0 <= ky < 4 and 0 <= kx < 4) else zero)
            taps.append(jnp.concatenate(blocks, axis=1))     # (cin, 4*cout)
    return jnp.stack(taps, axis=0)                            # (9, cin, 4*cout)


def _pixel_shuffle(y, c):
    """[n, h, w, 4c] with feature = (py*2+px)*c + co -> [n, 2h, 2w, c]."""
    n, h, w, _ = y.shape
    y = y.reshape(n, h, w, 2, 2, c)
    return jnp.transpose(y, (0, 1, 3, 2, 4, 5)).reshape(n, 2 * h, 2 * w, c)


def _bn_scale_shift(ssum, ssq, count, gamma, beta, fold=1):
    """Training-mode BatchNorm scale/shift from exact f32 sums over all pixels.
    (E[x^2]-E[x]^2 with a >=0 guard; per-image partial sums keep magnitudes modest.)"""
    C = gamma.shape[0]
    s1 = ssum.reshape(fold, C).sum(axis=0)
    s2 = ssq.reshape(fold, C).sum(axis=0)
    n = float(count * fold)
    mean = s1 / n
    var = jnp.maximum(s2 / n - mean * mean, 0.0)
    scale = gamma * jax.lax.rsqrt(var + BN_EPS)
    shift = beta - mean * scale
    return scale, shift


# ------------------------------- full forward -------------------------------

def center_speed_forward(x, params):
    """x: [N, Cin, H, W] float32 (NCHW).  Returns [N, 4, H, W] float32."""
    bf = jnp.bfloat16
    xh = jnp.transpose(x, (0, 2, 3, 1)).astype(bf)           # NHWC bf16
    cin = xh.shape[-1]
    c1 = params["w1"].shape[0]

    # conv1 (3x3, s2, p1): identity prologue (raw network input)
    y1, s1, q1, n1 = _conv_block(
        xh, _conv_taps(params["w1"]).astype(bf), params["b1"],
        jnp.ones((cin,), jnp.float32), jnp.zeros((cin,), jnp.float32),
        stride=2, slope=1.0)
    sc1, sh1 = _bn_scale_shift(s1, q1, n1, params["g1"], params["be1"])

    # conv2 (3x3, s2, p1): prologue = bn1 + leaky_relu
    y2, s2, q2, n2 = _conv_block(
        y1, _conv_taps(params["w2"]).astype(bf), params["b2"], sc1, sh1,
        stride=2, slope=LRELU_SLOPE)
    sc2, sh2 = _bn_scale_shift(s2, q2, n2, params["g2"], params["be2"])

    # deconv1 (4x4, s2, p1) as sub-pixel 3x3/s1 conv: prologue = bn2 + leaky_relu
    y3, s3, q3, n3 = _conv_block(
        y2, _deconv_taps(params["dw1"]).astype(bf), jnp.tile(params["db1"], 4),
        sc2, sh2, stride=1, slope=LRELU_SLOPE)
    sc3, sh3 = _bn_scale_shift(s3, q3, n3, params["g3"], params["be3"], fold=4)
    y3 = _pixel_shuffle(y3, c1)                               # (N, H/2, W/2, C1) raw bf16

    # deconv2 (4x4, s2, p1) sub-pixel conv: prologue = bn3 + leaky_relu, fused head
    sel = jnp.tile(jnp.array([1.0, 0.0, 0.0, 0.0], jnp.float32), 4)
    cap = jnp.tile(jnp.array([1.0, VEL_CAP, VEL_CAP, THETA_CAP], jnp.float32), 4)
    o = _conv_block(
        y3, _deconv_taps(params["dw2"]).astype(bf), jnp.tile(params["db2"], 4),
        sc3, sh3, stride=1, slope=LRELU_SLOPE, head=(sel, cap))
    out = _pixel_shuffle(o, 4)                                # (N, H, W, 4) f32
    return jnp.transpose(out, (0, 3, 1, 2))                   # NCHW


# --------------------------- pure-XLA reference ---------------------------

def _reference_forward(x, params):
    """Reference via lax convolutions with matched bf16 rounding of activations."""
    bf, f32 = jnp.bfloat16, jnp.float32

    def conv(h, w_oihw, b, stride, pad):
        w_hwio = jnp.transpose(w_oihw, (2, 3, 1, 0)).astype(bf)
        y = jax.lax.conv_general_dilated(
            h.astype(bf), w_hwio, (stride, stride), ((pad, pad), (pad, pad)),
            dimension_numbers=("NHWC", "HWIO", "NHWC"),
            preferred_element_type=f32)
        return y + b.reshape(1, 1, 1, -1)

    def deconv(h, wt_iohw, b):
        # ConvTranspose2d(4,2,1) == conv(lhs_dilation=2, pad=2, flipped kernel, I/O swapped)
        w_hwio = jnp.transpose(jnp.flip(wt_iohw, (2, 3)), (2, 3, 0, 1)).astype(bf)
        y = jax.lax.conv_general_dilated(
            h.astype(bf), w_hwio, (1, 1), ((2, 2), (2, 2)), lhs_dilation=(2, 2),
            dimension_numbers=("NHWC", "HWIO", "NHWC"),
            preferred_element_type=f32)
        return y + b.reshape(1, 1, 1, -1)

    def bn_lrelu(y, gamma, beta):
        mean = jnp.mean(y, axis=(0, 1, 2))
        var = jnp.var(y, axis=(0, 1, 2))
        scale = gamma / jnp.sqrt(var + BN_EPS)
        shift = beta - mean * scale
        z = y.astype(bf).astype(f32) * scale + shift          # matches kernel's bf16 y
        return jnp.where(z > 0, z, LRELU_SLOPE * z).astype(bf)

    h = jnp.transpose(x, (0, 2, 3, 1))
    h = bn_lrelu(conv(h, params["w1"], params["b1"], 2, 1), params["g1"], params["be1"])
    h = bn_lrelu(conv(h, params["w2"], params["b2"], 2, 1), params["g2"], params["be2"])
    h = bn_lrelu(deconv(h, params["dw1"], params["db1"]), params["g3"], params["be3"])
    y = deconv(h, params["dw2"], params["db2"])
    return jnp.stack([jax.nn.sigmoid(y[..., 0]),
                      jnp.tanh(y[..., 1]) * VEL_CAP,
                      jnp.tanh(y[..., 2]) * VEL_CAP,
                      jnp.tanh(y[..., 3]) * THETA_CAP], axis=1)


# --------------------------------- harness ---------------------------------

def init_params(key, input_channels=6, channel_one=32, channel_two=64):
    ks = jax.random.split(key, 14)
    n = lambda k, s, scale=0.1: (scale * jax.random.normal(k, s)).astype(jnp.float32)
    return {
        "w1": n(ks[0], (channel_one, input_channels, 3, 3)),
        "b1": n(ks[1], (channel_one,)),
        "g1": 1.0 + n(ks[2], (channel_one,)),
        "be1": n(ks[3], (channel_one,)),
        "w2": n(ks[4], (channel_two, channel_one, 3, 3)),
        "b2": n(ks[5], (channel_two,)),
        "g2": 1.0 + n(ks[6], (channel_two,)),
        "be2": n(ks[7], (channel_two,)),
        "dw1": n(ks[8], (channel_two, channel_one, 4, 4)),    # ConvTranspose2d weight layout
        "db1": n(ks[9], (channel_one,)),
        "g3": 1.0 + n(ks[10], (channel_one,)),
        "be3": n(ks[11], (channel_one,)),
        "dw2": n(ks[12], (channel_one, 4, 4, 4)),
        "db2": n(ks[13], (4,)),
    }


if __name__ == "__main__":
    key = jax.random.PRNGKey(0)
    kx, kp = jax.random.split(key)
    x = jax.random.normal(kx, (2, 6, 16, 16), dtype=jnp.float32)
    params = init_params(kp, input_channels=6, channel_one=32, channel_two=64)

    fwd = jax.jit(center_speed_forward)
    out = jax.block_until_ready(fwd(x, params))

    assert out.shape == (2, 4, 16, 16), out.shape
    assert out.dtype == jnp.float32

    # correctness vs pure-XLA reference (loose tolerance: bf16 rounding noise only)
    ref = jax.block_until_ready(jax.jit(_reference_forward)(x, params))
    max_err = float(jnp.max(jnp.abs(out - ref)))
    mean_err = float(jnp.mean(jnp.abs(out - ref)))
    assert max_err < 0.35 and mean_err < 0.03, (max_err, mean_err)

    # range sanity: heatmap in [0,1], velocities in [-10,10], theta in [-pi,pi]
    assert bool(jnp.all((out[:, 0] >= 0.0) & (out[:, 0] <= 1.0)))
    assert bool(jnp.all(jnp.abs(out[:, 1:3]) <= VEL_CAP))
    assert bool(jnp.all(jnp.abs(out[:, 3]) <= THETA_CAP + 1e-6))
    print("KERNEL_OK")
</pallas_src>

<mosaic_0001>
module attributes {stable_mosaic.version = 11 : i64} {
  func.func @kernel(%arg0: i32, %arg1: memref<1x4x83x6xbf16, #tpu.memory_space<vmem>>, %arg2: memref<4x83x1xf32, #tpu.memory_space<vmem>>, %arg3: memref<9x6x32xbf16, #tpu.memory_space<vmem>>, %arg4: memref<1x32xf32, #tpu.memory_space<vmem>>, %arg5: memref<1x6xf32, #tpu.memory_space<vmem>>, %arg6: memref<1x6xf32, #tpu.memory_space<vmem>>, %arg7: memref<72x1xf32, #tpu.memory_space<vmem>>, %arg8: memref<1x72x32xbf16, #tpu.memory_space<vmem>>, %arg9: memref<1x1x32xf32, #tpu.memory_space<vmem>>, %arg10: memref<1x1x32xf32, #tpu.memory_space<vmem>>, %arg11: memref<83x6xbf16, #tpu.memory_space<vmem>>, %arg12: memref<72x32xf32, #tpu.memory_space<vmem>>) attributes {dimension_semantics = [#tpu.dimension_semantics<parallel>], iteration_bounds = array<i64: 2>, scalar_prefetch = 0 : i64, scratch_operands = 2 : i64, tpu.core_type = #tpu.core_type<tc>, window_params = [{transform_indices = @transform_0, window_bounds = array<i64: 1, 4, 83, 6>}, {pipeline_mode = #tpu.pipeline_mode<synchronous>, transform_indices = @transform_1, window_bounds = array<i64: 4, 83, 1>}, {pipeline_mode = #tpu.pipeline_mode<synchronous>, transform_indices = @transform_2, window_bounds = array<i64: 9, 6, 32>}, {pipeline_mode = #tpu.pipeline_mode<synchronous>, transform_indices = @transform_3, window_bounds = array<i64: 1, 32>}, {pipeline_mode = #tpu.pipeline_mode<synchronous>, transform_indices = @transform_4, window_bounds = array<i64: 1, 6>}, {pipeline_mode = #tpu.pipeline_mode<synchronous>, transform_indices = @transform_5, window_bounds = array<i64: 1, 6>}, {pipeline_mode = #tpu.pipeline_mode<synchronous>, transform_indices = @transform_6, window_bounds = array<i64: 72, 1>}, {transform_indices = @transform_7, window_bounds = array<i64: 1, 72, 32>}, {transform_indices = @transform_8, window_bounds = array<i64: 1, 1, 32>}, {transform_indices = @transform_9, window_bounds = array<i64: 1, 1, 32>}]} {
    %c0 = arith.constant 0 : index
    %c0_0 = arith.constant 0 : index
    %0 = vector.load %arg5[%c0, %c0_0] : memref<1x6xf32, #tpu.memory_space<vmem>>, vector<1x6xf32>
    %c0_1 = arith.constant 0 : index
    %c0_2 = arith.constant 0 : index
    %1 = vector.load %arg6[%c0_1, %c0_2] : memref<1x6xf32, #tpu.memory_space<vmem>>, vector<1x6xf32>
    %c0_3 = arith.constant 0 : index
    %c0_4 = arith.constant 0 : index
    %c0_5 = arith.constant 0 : index
    %c0_6 = arith.constant 0 : index
    %2 = vector.load %arg1[%c0_3, %c0_4, %c0_5, %c0_6] : memref<1x4x83x6xbf16, #tpu.memory_space<vmem>>, vector<1x1x83x6xbf16>
    %3 = vector.shape_cast %2 : vector<1x1x83x6xbf16> to vector<83x6xbf16>
    %4 = arith.extf %3 : vector<83x6xbf16> to vector<83x6xf32>
    %5 = vector.broadcast %0 : vector<1x6xf32> to vector<83x6xf32>
    %6 = arith.mulf %4, %5 : vector<83x6xf32>
    %7 = vector.broadcast %1 : vector<1x6xf32> to vector<83x6xf32>
    %8 = arith.addf %6, %7 : vector<83x6xf32>
    %cst = arith.constant 0.000000e+00 : f32
    %9 = vector.broadcast %cst : f32 to vector<83x6xf32>
    %10 = arith.cmpf ogt, %8, %9 : vector<83x6xf32>
    %cst_7 = arith.constant 1.000000e+00 : f32
    %11 = vector.broadcast %cst_7 : f32 to vector<83x6xf32>
    %12 = arith.mulf %11, %8 : vector<83x6xf32>
    %13 = arith.select %10, %8, %12 : vector<83x6xi1>, vector<83x6xf32>
    %c0_8 = arith.constant 0 : index
    %c0_9 = arith.constant 0 : index
    %c0_10 = arith.constant 0 : index
    %14 = vector.load %arg2[%c0_8, %c0_9, %c0_10] : memref<4x83x1xf32, #tpu.memory_space<vmem>>, vector<1x83x1xf32>
    %15 = vector.shape_cast %14 : vector<1x83x1xf32> to vector<83x1xf32>
    %16 = vector.broadcast %15 : vector<83x1xf32> to vector<83x6xf32>
    %17 = arith.mulf %13, %16 : vector<83x6xf32>
    %18 = arith.truncf %17 : vector<83x6xf32> to vector<83x6xbf16>
    %c0_11 = arith.constant 0 : index
    %c0_12 = arith.constant 0 : index
    %19 = vector.load %arg11[%c0_11, %c0_12] : memref<83x6xbf16, #tpu.memory_space<vmem>>, vector<83x6xbf16>
    tpu.vector_store %arg11[%c0_11, %c0_12], %18 {strides = array<i32>} : memref<83x6xbf16, #tpu.memory_space<vmem>>, vector<83x6xbf16>,
    %c0_13 = arith.constant 0 : index
    %c0_14 = arith.constant 0 : index
    %20 = vector.load %arg11[%c0_13, %c0_14] : memref<83x6xbf16, #tpu.memory_space<vmem>>, vector<72x6xbf16>
    %c0_15 = arith.constant 0 : index
    %c0_16 = arith.constant 0 : index
    %c0_17 = arith.constant 0 : index
    %21 = vector.load %arg3[%c0_15, %c0_16, %c0_17] : memref<9x6x32xbf16, #tpu.memory_space<vmem>>, vector<1x6x32xbf16>
    %22 = vector.shape_cast %21 : vector<1x6x32xbf16> to vector<6x32xbf16>
    %cst_18 = arith.constant dense<0.000000e+00> : vector<72x32xf32>
    %23 = tpu.matmul %20, %22, %cst_18 {dimension_numbers = #tpu.dot_dimension_numbers<[1], [0], [0], [1], [0, 0, 1, 1], [], []>} : vector<72x6xbf16>, vector<6x32xbf16>, vector<72x32xf32> -> vector<72x32xf32>
    %c0_19 = arith.constant 0 : index
    %c0_20 = arith.constant 0 : index
    %24 = vector.load %arg12[%c0_19, %c0_20] : memref<72x32xf32, #tpu.memory_space<vmem>>, vector<72x32xf32>
    tpu.vector_store %arg12[%c0_19, %c0_20], %23 {strides = array<i32>} : memref<72x32xf32, #tpu.memory_space<vmem>>, vector<72x32xf32>,
    %c1 = arith.constant 1 : index
    %c0_21 = arith.constant 0 : index
    %25 = vector.load %arg11[%c1, %c0_21] : memref<83x6xbf16, #tpu.memory_space<vmem>>, vector<72x6xbf16>
    %c2 = arith.constant 2 : index
    %c0_22 = arith.constant 0 : index
    %c0_23 = arith.constant 0 : index
    %26 = vector.load %arg3[%c2, %c0_22, %c0_23] : memref<9x6x32xbf16, #tpu.memory_space<vmem>>, vector<1x6x32xbf16>
    %27 = vector.shape_cast %26 : vector<1x6x32xbf16> to vector<6x32xbf16>
    %cst_24 = arith.constant dense<0.000000e+00> : vector<72x32xf32>
    %28 = tpu.matmul %25, %27, %cst_24 {dimension_numbers = #tpu.dot_dimension_numbers<[1], [0], [0], [1], [0, 0, 1, 1], [], []>} : vector<72x6xbf16>, vector<6x32xbf16>, vector<72x32xf32> -> vector<72x32xf32>
    %c0_25 = arith.constant 0 : index
    %c0_26 = arith.constant 0 : index
    %29 = vector.load %arg12[%c0_25, %c0_26] : memref<72x32xf32, #tpu.memory_space<vmem>>, vector<72x32xf32>
    %30 = arith.addf %29, %28 : vector<72x32xf32>
    %c0_27 = arith.constant 0 : index
    %c0_28 = arith.constant 0 : index
    %31 = vector.load %arg12[%c0_27, %c0_28] : memref<72x32xf32, #tpu.memory_space<vmem>>, vector<72x32xf32>
    tpu.vector_store %arg12[%c0_27, %c0_28], %30 {strides = array<i32>} : memref<72x32xf32, #tpu.memory_space<vmem>>, vector<72x32xf32>,
    %c9 = arith.constant 9 : index
    %c0_29 = arith.constant 0 : index
    %32 = vector.load %arg11[%c9, %c0_29] : memref<83x6xbf16, #tpu.memory_space<vmem>>, vector<72x6xbf16>
    %c6 = arith.constant 6 : index
    %c0_30 = arith.constant 0 : index
    %c0_31 = arith.constant 0 : index
    %33 = vector.load %arg3[%c6, %c0_30, %c0_31] : memref<9x6x32xbf16, #tpu.memory_space<vmem>>, vector<1x6x32xbf16>
    %34 = vector.shape_cast %33 : vector<1x6x32xbf16> to vector<6x32xbf16>
    %cst_32 = arith.constant dense<0.000000e+00> : vector<72x32xf32>
    %35 = tpu.matmul %32, %34, %cst_32 {dimension_numbers = #tpu.dot_dimension_numbers<[1], [0], [0], [1], [0, 0, 1, 1], [], []>} : vector<72x6xbf16>, vector<6x32xbf16>, vector<72x32xf32> -> vector<72x32xf32>
    %c0_33 = arith.constant 0 : index
    %c0_34 = arith.constant 0 : index
    %36 = vector.load %arg12[%c0_33, %c0_34] : memref<72x32xf32, #tpu.memory_space<vmem>>, vector<72x32xf32>
    %37 = arith.addf %36, %35 : vector<72x32xf32>
    %c0_35 = arith.constant 0 : index
    %c0_36 = arith.constant 0 : index
    %38 = vector.load %arg12[%c0_35, %c0_36] : memref<72x32xf32, #tpu.memory_space<vmem>>, vector<72x32xf32>
    tpu.vector_store %arg12[%c0_35, %c0_36], %37 {strides = array<i32>} : memref<72x32xf32, #tpu.memory_space<vmem>>, vector<72x32xf32>,
    %c10 = arith.constant 10 : index
    %c0_37 = arith.constant 0 : index
    %39 = vector.load %arg11[%c10, %c0_37] : memref<83x6xbf16, #tpu.memory_space<vmem>>, vector<72x6xbf16>
    %c8 = arith.constant 8 : index
    %c0_38 = arith.constant 0 : index
    %c0_39 = arith.constant 0 : index
    %40 = vector.load %arg3[%c8, %c0_38, %c0_39] : memref<9x6x32xbf16, #tpu.memory_space<vmem>>, vector<1x6x32xbf16>
    %41 = vector.shape_cast %40 : vector<1x6x32xbf16> to vector<6x32xbf16>
    %cst_40 = arith.constant dense<0.000000e+00> : vector<72x32xf32>
    %42 = tpu.matmul %39, %41, %cst_40 {dimension_numbers = #tpu.dot_dimension_numbers<[1], [0], [0], [1], [0, 0, 1, 1], [], []>} : vector<72x6xbf16>, vector<6x32xbf16>, vector<72x32xf32> -> vector<72x32xf32>
    %c0_41 = arith.constant 0 : index
    %c0_42 = arith.constant 0 : index
    %43 = vector.load %arg12[%c0_41, %c0_42] : memref<72x32xf32, #tpu.memory_space<vmem>>, vector<72x32xf32>
    %44 = arith.addf %43, %42 : vector<72x32xf32>
    %c0_43 = arith.constant 0 : index
    %c0_44 = arith.constant 0 : index
    %45 = vector.load %arg12[%c0_43, %c0_44] : memref<72x32xf32, #tpu.memory_space<vmem>>, vector<72x32xf32>
    tpu.vector_store %arg12[%c0_43, %c0_44], %44 {strides = array<i32>} : memref<72x32xf32, #tpu.memory_space<vmem>>, vector<72x32xf32>,
    %c0_45 = arith.constant 0 : index
    %c1_46 = arith.constant 1 : index
    %c0_47 = arith.constant 0 : index
    %c0_48 = arith.constant 0 : index
    %46 = vector.load %arg1[%c0_45, %c1_46, %c0_47, %c0_48] : memref<1x4x83x6xbf16, #tpu.memory_space<vmem>>, vector<1x1x83x6xbf16>
    %47 = vector.shape_cast %46 : vector<1x1x83x6xbf16> to vector<83x6xbf16>
    %48 = arith.extf %47 : vector<83x6xbf16> to vector<83x6xf32>
    %49 = vector.broadcast %0 : vector<1x6xf32> to vector<83x6xf32>
    %50 = arith.mulf %48, %49 : vector<83x6xf32>
    %51 = vector.broadcast %1 : vector<1x6xf32> to vector<83x6xf32>
    %52 = arith.addf %50, %51 : vector<83x6xf32>
    %cst_49 = arith.constant 0.000000e+00 : f32
    %53 = vector.broadcast %cst_49 : f32 to vector<83x6xf32>
    %54 = arith.cmpf ogt, %52, %53 : vector<83x6xf32>
    %cst_50 = arith.constant 1.000000e+00 : f32
    %55 = vector.broadcast %cst_50 : f32 to vector<83x6xf32>
    %56 = arith.mulf %55, %52 : vector<83x6xf32>
    %57 = arith.select %54, %52, %56 : vector<83x6xi1>, vector<83x6xf32>
    %c1_51 = arith.constant 1 : index
    %c0_52 = arith.constant 0 : index
    %c0_53 = arith.constant 0 : index
    %58 = vector.load %arg2[%c1_51, %c0_52, %c0_53] : memref<4x83x1xf32, #tpu.memory_space<vmem>>, vector<1x83x1xf32>
    %59 = vector.shape_cast %58 : vector<1x83x1xf32> to vector<83x1xf32>
    %60 = vector.broadcast %59 : vector<83x1xf32> to vector<83x6xf32>
    %61 = arith.mulf %57, %60 : vector<83x6xf32>
    %62 = arith.truncf %61 : vector<83x6xf32> to vector<83x6xbf16>
    %c0_54 = arith.constant 0 : index
    %c0_55 = arith.constant 0 : index
    %63 = vector.load %arg11[%c0_54, %c0_55] : memref<83x6xbf16, #tpu.memory_space<vmem>>, vector<83x6xbf16>
    tpu.vector_store %arg11[%c0_54, %c0_55], %62 {strides = array<i32>} : memref<83x6xbf16, #tpu.memory_space<vmem>>, vector<83x6xbf16>,
    %c0_56 = arith.constant 0 : index
    %c0_57 = arith.constant 0 : index
    %64 = vector.load %arg11[%c0_56, %c0_57] : memref<83x6xbf16, #tpu.memory_space<vmem>>, vector<72x6xbf16>
    %c1_58 = arith.constant 1 : index
    %c0_59 = arith.constant 0 : index
    %c0_60 = arith.constant 0 : index
    %65 = vector.load %arg3[%c1_58, %c0_59, %c0_60] : memref<9x6x32xbf16, #tpu.memory_space<vmem>>, vector<1x6x32xbf16>
    %66 = vector.shape_cast %65 : vector<1x6x32xbf16> to vector<6x32xbf16>
    %cst_61 = arith.constant dense<0.000000e+00> : vector<72x32xf32>
    %67 = tpu.matmul %64, %66, %cst_61 {dimension_numbers = #tpu.dot_dimension_numbers<[1], [0], [0], [1], [0, 0, 1, 1], [], []>} : vector<72x6xbf16>, vector<6x32xbf16>, vector<72x32xf32> -> vector<72x32xf32>
    %c0_62 = arith.constant 0 : index
    %c0_63 = arith.constant 0 : index
    %68 = vector.load %arg12[%c0_62, %c0_63] : memref<72x32xf32, #tpu.memory_space<vmem>>, vector<72x32xf32>
    %69 = arith.addf %68, %67 : vector<72x32xf32>
    %c0_64 = arith.constant 0 : index
    %c0_65 = arith.constant 0 : index
    %70 = vector.load %arg12[%c0_64, %c0_65] : memref<72x32xf32, #tpu.memory_space<vmem>>, vector<72x32xf32>
    tpu.vector_store %arg12[%c0_64, %c0_65], %69 {strides = array<i32>} : memref<72x32xf32, #tpu.memory_space<vmem>>, vector<72x32xf32>,
    %c9_66 = arith.constant 9 : index
    %c0_67 = arith.constant 0 : index
    %71 = vector.load %arg11[%c9_66, %c0_67] : memref<83x6xbf16, #tpu.memory_space<vmem>>, vector<72x6xbf16>
    %c7 = arith.constant 7 : index
    %c0_68 = arith.constant 0 : index
    %c0_69 = arith.constant 0 : index
    %72 = vector.load %arg3[%c7, %c0_68, %c0_69] : memref<9x6x32xbf16, #tpu.memory_space<vmem>>, vector<1x6x32xbf16>
    %73 = vector.shape_cast %72 : vector<1x6x32xbf16> to vector<6x32xbf16>
    %cst_70 = arith.constant dense<0.000000e+00> : vector<72x32xf32>
    %74 = tpu.matmul %71, %73, %cst_70 {dimension_numbers = #tpu.dot_dimension_numbers<[1], [0], [0], [1], [0, 0, 1, 1], [], []>} : vector<72x6xbf16>, vector<6x32xbf16>, vector<72x32xf32> -> vector<72x32xf32>
    %c0_71 = arith.constant 0 : index
    %c0_72 = arith.constant 0 : index
    %75 = vector.load %arg12[%c0_71, %c0_72] : memref<72x32xf32, #tpu.memory_space<vmem>>, vector<72x32xf32>
    %76 = arith.addf %75, %74 : vector<72x32xf32>
    %c0_73 = arith.constant 0 : index
    %c0_74 = arith.constant 0 : index
    %77 = vector.load %arg12[%c0_73, %c0_74] : memref<72x32xf32, #tpu.memory_space<vmem>>, vector<72x32xf32>
    tpu.vector_store %arg12[%c0_73, %c0_74], %76 {strides = array<i32>} : memref<72x32xf32, #tpu.memory_space<vmem>>, vector<72x32xf32>,
    %c0_75 = arith.constant 0 : index
    %c2_76 = arith.constant 2 : index
    %c0_77 = arith.constant 0 : index
    %c0_78 = arith.constant 0 : index
    %78 = vector.load %arg1[%c0_75, %c2_76, %c0_77, %c0_78] : memref<1x4x83x6xbf16, #tpu.memory_space<vmem>>, vector<1x1x83x6xbf16>
    %79 = vector.shape_cast %78 : vector<1x1x83x6xbf16> to vector<83x6xbf16>
    %80 = arith.extf %79 : vector<83x6xbf16> to vector<83x6xf32>
    %81 = vector.broadcast %0 : vector<1x6xf32> to vector<83x6xf32>
    %82 = arith.mulf %80, %81 : vector<83x6xf32>
    %83 = vector.broadcast %1 : vector<1x6xf32> to vector<83x6xf32>
    %84 = arith.addf %82, %83 : vector<83x6xf32>
    %cst_79 = arith.constant 0.000000e+00 : f32
    %85 = vector.broadcast %cst_79 : f32 to vector<83x6xf32>
    %86 = arith.cmpf ogt, %84, %85 : vector<83x6xf32>
    %cst_80 = arith.constant 1.000000e+00 : f32
    %87 = vector.broadcast %cst_80 : f32 to vector<83x6xf32>
    %88 = arith.mulf %87, %84 : vector<83x6xf32>
    %89 = arith.select %86, %84, %88 : vector<83x6xi1>, vector<83x6xf32>
    %c2_81 = arith.constant 2 : index
    %c0_82 = arith.constant 0 : index
    %c0_83 = arith.constant 0 : index
    %90 = vector.load %arg2[%c2_81, %c0_82, %c0_83] : memref<4x83x1xf32, #tpu.memory_space<vmem>>, vector<1x83x1xf32>
    %91 = vector.shape_cast %90 : vector<1x83x1xf32> to vector<83x1xf32>
    %92 = vector.broadcast %91 : vector<83x1xf32> to vector<83x6xf32>
    %93 = arith.mulf %89, %92 : vector<83x6xf32>
    %94 = arith.truncf %93 : vector<83x6xf32> to vector<83x6xbf16>
    %c0_84 = arith.constant 0 : index
    %c0_85 = arith.constant 0 : index
    %95 = vector.load %arg11[%c0_84, %c0_85] : memref<83x6xbf16, #tpu.memory_space<vmem>>, vector<83x6xbf16>
    tpu.vector_store %arg11[%c0_84, %c0_85], %94 {strides = array<i32>} : memref<83x6xbf16, #tpu.memory_space<vmem>>, vector<83x6xbf16>,
    %c0_86 = arith.constant 0 : index
    %c0_87 = arith.constant 0 : index
    %96 = vector.load %arg11[%c0_86, %c0_87] : memref<83x6xbf16, #tpu.memory_space<vmem>>, vector<72x6xbf16>
    %c3 = arith.constant 3 : index
    %c0_88 = arith.constant 0 : index
    %c0_89 = arith.constant 0 : index
    %97 = vector.load %arg3[%c3, %c0_88, %c0_89] : memref<9x6x32xbf16, #tpu.memory_space<vmem>>, vector<1x6x32xbf16>
    %98 = vector.shape_cast %97 : vector<1x6x32xbf16> to vector<6x32xbf16>
    %cst_90 = arith.constant dense<0.000000e+00> : vector<72x32xf32>
    %99 = tpu.matmul %96, %98, %cst_90 {dimension_numbers = #tpu.dot_dimension_numbers<[1], [0], [0], [1], [0, 0, 1, 1], [], []>} : vector<72x6xbf16>, vector<6x32xbf16>, vector<72x32xf32> -> vector<72x32xf32>
    %c0_91 = arith.constant 0 : index
    %c0_92 = arith.constant 0 : index
    %100 = vector.load %arg12[%c0_91, %c0_92] : memref<72x32xf32, #tpu.memory_space<vmem>>, vector<72x32xf32>
    %101 = arith.addf %100, %99 : vector<72x32xf32>
    %c0_93 = arith.constant 0 : index
    %c0_94 = arith.constant 0 : index
    %102 = vector.load %arg12[%c0_93, %c0_94] : memref<72x32xf32, #tpu.memory_space<vmem>>, vector<72x32xf32>
    tpu.vector_store %arg12[%c0_93, %c0_94], %101 {strides = array<i32>} : memref<72x32xf32, #tpu.memory_space<vmem>>, vector<72x32xf32>,
    %c1_95 = arith.constant 1 : index
    %c0_96 = arith.constant 0 : index
    %103 = vector.load %arg11[%c1_95, %c0_96] : memref<83x6xbf16, #tpu.memory_space<vmem>>, vector<72x6xbf16>
    %c5 = arith.constant 5 : index
    %c0_97 = arith.constant 0 : index
    %c0_98 = arith.constant 0 : index
    %104 = vector.load %arg3[%c5, %c0_97, %c0_98] : memref<9x6x32xbf16, #tpu.memory_space<vmem>>, vector<1x6x32xbf16>
    %105 = vector.shape_cast %104 : vector<1x6x32xbf16> to vector<6x32xbf16>
    %cst_99 = arith.constant dense<0.000000e+00> : vector<72x32xf32>
    %106 = tpu.matmul %103, %105, %cst_99 {dimension_numbers = #tpu.dot_dimension_numbers<[1], [0], [0], [1], [0, 0, 1, 1], [], []>} : vector<72x6xbf16>, vector<6x32xbf16>, vector<72x32xf32> -> vector<72x32xf32>
    %c0_100 = arith.constant 0 : index
    %c0_101 = arith.constant 0 : index
    %107 = vector.load %arg12[%c0_100, %c0_101] : memref<72x32xf32, #tpu.memory_space<vmem>>, vector<72x32xf32>
    %108 = arith.addf %107, %106 : vector<72x32xf32>
    %c0_102 = arith.constant 0 : index
    %c0_103 = arith.constant 0 : index
    %109 = vector.load %arg12[%c0_102, %c0_103] : memref<72x32xf32, #tpu.memory_space<vmem>>, vector<72x32xf32>
    tpu.vector_store %arg12[%c0_102, %c0_103], %108 {strides = array<i32>} : memref<72x32xf32, #tpu.memory_space<vmem>>, vector<72x32xf32>,
    %c0_104 = arith.constant 0 : index
    %c3_105 = arith.constant 3 : index
    %c0_106 = arith.constant 0 : index
    %c0_107 = arith.constant 0 : index
    %110 = vector.load %arg1[%c0_104, %c3_105, %c0_106, %c0_107] : memref<1x4x83x6xbf16, #tpu.memory_space<vmem>>, vector<1x1x83x6xbf16>
    %111 = vector.shape_cast %110 : vector<1x1x83x6xbf16> to vector<83x6xbf16>
    %112 = arith.extf %111 : vector<83x6xbf16> to vector<83x6xf32>
    %113 = vector.broadcast %0 : vector<1x6xf32> to vector<83x6xf32>
    %114 = arith.mulf %112, %113 : vector<83x6xf32>
    %115 = vector.broadcast %1 : vector<1x6xf32> to vector<83x6xf32>
    %116 = arith.addf %114, %115 : vector<83x6xf32>
    %cst_108 = arith.constant 0.000000e+00 : f32
    %117 = vector.broadcast %cst_108 : f32 to vector<83x6xf32>
    %118 = arith.cmpf ogt, %116, %117 : vector<83x6xf32>
    %cst_109 = arith.constant 1.000000e+00 : f32
    %119 = vector.broadcast %cst_109 : f32 to vector<83x6xf32>
    %120 = arith.mulf %119, %116 : vector<83x6xf32>
    %121 = arith.select %118, %116, %120 : vector<83x6xi1>, vector<83x6xf32>
    %c3_110 = arith.constant 3 : index
    %c0_111 = arith.constant 0 : index
    %c0_112 = arith.constant 0 : index
    %122 = vector.load %arg2[%c3_110, %c0_111, %c0_112] : memref<4x83x1xf32, #tpu.memory_space<vmem>>, vector<1x83x1xf32>
    %123 = vector.shape_cast %122 : vector<1x83x1xf32> to vector<83x1xf32>
    %124 = vector.broadcast %123 : vector<83x1xf32> to vector<83x6xf32>
    %125 = arith.mulf %121, %124 : vector<83x6xf32>
    %126 = arith.truncf %125 : vector<83x6xf32> to vector<83x6xbf16>
    %c0_113 = arith.constant 0 : index
    %c0_114 = arith.constant 0 : index
    %127 = vector.load %arg11[%c0_113, %c0_114] : memref<83x6xbf16, #tpu.memory_space<vmem>>, vector<83x6xbf16>
    tpu.vector_store %arg11[%c0_113, %c0_114], %126 {strides = array<i32>} : memref<83x6xbf16, #tpu.memory_space<vmem>>, vector<83x6xbf16>,
    %c0_115 = arith.constant 0 : index
    %c0_116 = arith.constant 0 : index
    %128 = vector.load %arg11[%c0_115, %c0_116] : memref<83x6xbf16, #tpu.memory_space<vmem>>, vector<72x6xbf16>
    %c4 = arith.constant 4 : index
    %c0_117 = arith.constant 0 : index
    %c0_118 = arith.constant 0 : index
    %129 = vector.load %arg3[%c4, %c0_117, %c0_118] : memref<9x6x32xbf16, #tpu.memory_space<vmem>>, vector<1x6x32xbf16>
    %130 = vector.shape_cast %129 : vector<1x6x32xbf16> to vector<6x32xbf16>
    %cst_119 = arith.constant dense<0.000000e+00> : vector<72x32xf32>
    %131 = tpu.matmul %128, %130, %cst_119 {dimension_numbers = #tpu.dot_dimension_numbers<[1], [0], [0], [1], [0, 0, 1, 1], [], []>} : vector<72x6xbf16>, vector<6x32xbf16>, vector<72x32xf32> -> vector<72x32xf32>
    %c0_120 = arith.constant 0 : index
    %c0_121 = arith.constant 0 : index
    %132 = vector.load %arg12[%c0_120, %c0_121] : memref<72x32xf32, #tpu.memory_space<vmem>>, vector<72x32xf32>
    %133 = arith.addf %132, %131 : vector<72x32xf32>
    %c0_122 = arith.constant 0 : index
    %c0_123 = arith.constant 0 : index
    %134 = vector.load %arg12[%c0_122, %c0_123] : memref<72x32xf32, #tpu.memory_space<vmem>>, vector<72x32xf32>
    tpu.vector_store %arg12[%c0_122, %c0_123], %133 {strides = array<i32>} : memref<72x32xf32, #tpu.memory_space<vmem>>, vector<72x32xf32>,
    %c0_124 = arith.constant 0 : index
    %c0_125 = arith.constant 0 : index
    %135 = vector.load %arg12[%c0_124, %c0_125] : memref<72x32xf32, #tpu.memory_space<vmem>>, vector<72x32xf32>
    %c0_126 = arith.constant 0 : index
    %c0_127 = arith.constant 0 : index
    %136 = vector.load %arg4[%c0_126, %c0_127] : memref<1x32xf32, #tpu.memory_space<vmem>>, vector<1x32xf32>
    %137 = vector.broadcast %136 : vector<1x32xf32> to vector<72x32xf32>
    %138 = arith.addf %135, %137 : vector<72x32xf32>
    %139 = arith.truncf %138 : vector<72x32xf32> to vector<72x32xbf16>
    %c0_128 = arith.constant 0 : index
    %c0_129 = arith.constant 0 : index
    %c0_130 = arith.constant 0 : index
    %140 = vector.load %arg8[%c0_128, %c0_129, %c0_130] : memref<1x72x32xbf16, #tpu.memory_space<vmem>>, vector<1x72x32xbf16>
    %141 = vector.shape_cast %140 : vector<1x72x32xbf16> to vector<72x32xbf16>
    %142 = vector.shape_cast %139 : vector<72x32xbf16> to vector<1x72x32xbf16>
    tpu.vector_store %arg8[%c0_128, %c0_129, %c0_130], %142 {strides = array<i32>} : memref<1x72x32xbf16, #tpu.memory_space<vmem>>, vector<1x72x32xbf16>,
    %c0_131 = arith.constant 0 : index
    %c0_132 = arith.constant 0 : index
    %143 = vector.load %arg7[%c0_131, %c0_132] : memref<72x1xf32, #tpu.memory_space<vmem>>, vector<72x1xf32>
    %144 = vector.broadcast %143 : vector<72x1xf32> to vector<72x32xf32>
    %145 = arith.mulf %138, %144 : vector<72x32xf32>
    %cst_133 = arith.constant dense<0.000000e+00> : vector<32xf32>
    %146 = vector.multi_reduction <add>, %145, %cst_133 [0] : vector<72x32xf32> to vector<32xf32>
    %147 = vector.shape_cast %146 : vector<32xf32> to vector<1x32xf32>
    %c0_134 = arith.constant 0 : index
    %c0_135 = arith.constant 0 : index
    %c0_136 = arith.constant 0 : index
    %148 = vector.load %arg9[%c0_134, %c0_135, %c0_136] : memref<1x1x32xf32, #tpu.memory_space<vmem>>, vector<1x1x32xf32>
    %149 = vector.shape_cast %148 : vector<1x1x32xf32> to vector<1x32xf32>
    %150 = vector.shape_cast %147 : vector<1x32xf32> to vector<1x1x32xf32>
    tpu.vector_store %arg9[%c0_134, %c0_135, %c0_136], %150 {strides = array<i32>} : memref<1x1x32xf32, #tpu.memory_space<vmem>>, vector<1x1x32xf32>,
    %151 = arith.mulf %145, %145 : vector<72x32xf32>
    %cst_137 = arith.constant dense<0.000000e+00> : vector<32xf32>
    %152 = vector.multi_reduction <add>, %151, %cst_137 [0] : vector<72x32xf32> to vector<32xf32>
    %153 = vector.shape_cast %152 : vector<32xf32> to vector<1x32xf32>
    %c0_138 = arith.constant 0 : index
    %c0_139 = arith.constant 0 : index
    %c0_140 = arith.constant 0 : index
    %154 = vector.load %arg10[%c0_138, %c0_139, %c0_140] : memref<1x1x32xf32, #tpu.memory_space<vmem>>, vector<1x1x32xf32>
    %155 = vector.shape_cast %154 : vector<1x1x32xf32> to vector<1x32xf32>
    %156 = vector.shape_cast %153 : vector<1x32xf32> to vector<1x1x32xf32>
    tpu.vector_store %arg10[%c0_138, %c0_139, %c0_140], %156 {strides = array<i32>} : memref<1x1x32xf32, #tpu.memory_space<vmem>>, vector<1x1x32xf32>,
    return
  }
  func.func @transform_0(%arg0: i32) -> (i32, i32, i32, i32) {
    %c0_i32 = arith.constant 0 : i32
    %c0_i32_0 = arith.constant 0 : i32
    %c0_i32_1 = arith.constant 0 : i32
    %c0_i32_2 = arith.constant 0 : i32
    return %arg0, %c0_i32, %c0_i32_0, %c0_i32_1 : i32, i32, i32, i32
  }
  func.func @transform_1(%arg0: i32) -> (i32, i32, i32) {
    %c0_i32 = arith.constant 0 : i32
    %c0_i32_0 = arith.constant 0 : i32
    %c0_i32_1 = arith.constant 0 : i32
    %c0_i32_2 = arith.constant 0 : i32
    return %c0_i32, %c0_i32_0, %c0_i32_1 : i32, i32, i32
  }
  func.func @transform_2(%arg0: i32) -> (i32, i32, i32) {
    %c0_i32 = arith.constant 0 : i32
    %c0_i32_0 = arith.constant 0 : i32
    %c0_i32_1 = arith.constant 0 : i32
    %c0_i32_2 = arith.constant 0 : i32
    return %c0_i32, %c0_i32_0, %c0_i32_1 : i32, i32, i32
  }
  func.func @transform_3(%arg0: i32) -> (i32, i32) {
    %c0_i32 = arith.constant 0 : i32
    %c0_i32_0 = arith.constant 0 : i32
    %c0_i32_1 = arith.constant 0 : i32
    return %c0_i32, %c0_i32_0 : i32, i32
  }
  func.func @transform_4(%arg0: i32) -> (i32, i32) {
    %c0_i32 = arith.constant 0 : i32
    %c0_i32_0 = arith.constant 0 : i32
    %c0_i32_1 = arith.constant 0 : i32
    return %c0_i32, %c0_i32_0 : i32, i32
  }
  func.func @transform_5(%arg0: i32) -> (i32, i32) {
    %c0_i32 = arith.constant 0 : i32
    %c0_i32_0 = arith.constant 0 : i32
    %c0_i32_1 = arith.constant 0 : i32
    return %c0_i32, %c0_i32_0 : i32, i32
  }
  func.func @transform_6(%arg0: i32) -> (i32, i32) {
    %c0_i32 = arith.constant 0 : i32
    %c0_i32_0 = arith.constant 0 : i32
    %c0_i32_1 = arith.constant 0 : i32
    return %c0_i32, %c0_i32_0 : i32, i32
  }
  func.func @transform_7(%arg0: i32) -> (i32, i32, i32) {
    %c0_i32 = arith.constant 0 : i32
    %c0_i32_0 = arith.constant 0 : i32
    %c0_i32_1 = arith.constant 0 : i32
    return %arg0, %c0_i32, %c0_i32_0 : i32, i32, i32
  }
  func.func @transform_8(%arg0: i32) -> (i32, i32, i32) {
    %c0_i32 = arith.constant 0 : i32
    %c0_i32_0 = arith.constant 0 : i32
    %c0_i32_1 = arith.constant 0 : i32
    return %arg0, %c0_i32, %c0_i32_0 : i32, i32, i32
  }
  func.func @transform_9(%arg0: i32) -> (i32, i32, i32) {
    %c0_i32 = arith.constant 0 : i32
    %c0_i32_0 = arith.constant 0 : i32
    %c0_i32_1 = arith.constant 0 : i32
    return %arg0, %c0_i32, %c0_i32_0 : i32, i32, i32
  }
}

module attributes {stable_mosaic.version = 11 : i64} {
  func.func @kernel(%arg0: i32, %arg1: memref<1x4x27x32xbf16, #tpu.memory_space<vmem>>, %arg2: memref<4x27x1xf32, #tpu.memory_space<vmem>>, %arg3: memref<9x32x64xbf16, #tpu.memory_space<vmem>>, %arg4: memref<1x64xf32, #tpu.memory_space<vmem>>, %arg5: memref<1x32xf32, #tpu.memory_space<vmem>>, %arg6: memref<1x32xf32, #tpu.memory_space<vmem>>, %arg7: memref<20x1xf32, #tpu.memory_space<vmem>>, %arg8: memref<1x20x64xbf16, #tpu.memory_space<vmem>>, %arg9: memref<1x1x64xf32, #tpu.memory_space<vmem>>, %arg10: memref<1x1x64xf32, #tpu.memory_space<vmem>>, %arg11: memref<27x32xbf16, #tpu.memory_space<vmem>>, %arg12: memref<20x64xf32, #tpu.memory_space<vmem>>) attributes {dimension_semantics = [#tpu.dimension_semantics<parallel>], iteration_bounds = array<i64: 2>, scalar_prefetch = 0 : i64, scratch_operands = 2 : i64, tpu.core_type = #tpu.core_type<tc>, window_params = [{transform_indices = @transform_0, window_bounds = array<i64: 1, 4, 27, 32>}, {pipeline_mode = #tpu.pipeline_mode<synchronous>, transform_indices = @transform_1, window_bounds = array<i64: 4, 27, 1>}, {pipeline_mode = #tpu.pipeline_mode<synchronous>, transform_indices = @transform_2, window_bounds = array<i64: 9, 32, 64>}, {pipeline_mode = #tpu.pipeline_mode<synchronous>, transform_indices = @transform_3, window_bounds = array<i64: 1, 64>}, {pipeline_mode = #tpu.pipeline_mode<synchronous>, transform_indices = @transform_4, window_bounds = array<i64: 1, 32>}, {pipeline_mode = #tpu.pipeline_mode<synchronous>, transform_indices = @transform_5, window_bounds = array<i64: 1, 32>}, {pipeline_mode = #tpu.pipeline_mode<synchronous>, transform_indices = @transform_6, window_bounds = array<i64: 20, 1>}, {transform_indices = @transform_7, window_bounds = array<i64: 1, 20, 64>}, {transform_indices = @transform_8, window_bounds = array<i64: 1, 1, 64>}, {transform_indices = @transform_9, window_bounds = array<i64: 1, 1, 64>}]} {
    %c0 = arith.constant 0 : index
    %c0_0 = arith.constant 0 : index
    %0 = vector.load %arg5[%c0, %c0_0] : memref<1x32xf32, #tpu.memory_space<vmem>>, vector<1x32xf32>
    %c0_1 = arith.constant 0 : index
    %c0_2 = arith.constant 0 : index
    %1 = vector.load %arg6[%c0_1, %c0_2] : memref<1x32xf32, #tpu.memory_space<vmem>>, vector<1x32xf32>
    %c0_3 = arith.constant 0 : index
    %c0_4 = arith.constant 0 : index
    %c0_5 = arith.constant 0 : index
    %c0_6 = arith.constant 0 : index
    %2 = vector.load %arg1[%c0_3, %c0_4, %c0_5, %c0_6] : memref<1x4x27x32xbf16, #tpu.memory_space<vmem>>, vector<1x1x27x32xbf16>
    %3 = vector.shape_cast %2 : vector<1x1x27x32xbf16> to vector<27x32xbf16>
    %4 = arith.extf %3 : vector<27x32xbf16> to vector<27x32xf32>
    %5 = vector.broadcast %0 : vector<1x32xf32> to vector<27x32xf32>
    %6 = arith.mulf %4, %5 : vector<27x32xf32>
    %7 = vector.broadcast %1 : vector<1x32xf32> to vector<27x32xf32>
    %8 = arith.addf %6, %7 : vector<27x32xf32>
    %cst = arith.constant 0.000000e+00 : f32
    %9 = vector.broadcast %cst : f32 to vector<27x32xf32>
    %10 = arith.cmpf ogt, %8, %9 : vector<27x32xf32>
    %cst_7 = arith.constant 0.00999999977 : f32
    %11 = vector.broadcast %cst_7 : f32 to vector<27x32xf32>
    %12 = arith.mulf %11, %8 : vector<27x32xf32>
    %13 = arith.select %10, %8, %12 : vector<27x32xi1>, vector<27x32xf32>
    %c0_8 = arith.constant 0 : index
    %c0_9 = arith.constant 0 : index
    %c0_10 = arith.constant 0 : index
    %14 = vector.load %arg2[%c0_8, %c0_9, %c0_10] : memref<4x27x1xf32, #tpu.memory_space<vmem>>, vector<1x27x1xf32>
    %15 = vector.shape_cast %14 : vector<1x27x1xf32> to vector<27x1xf32>
    %16 = vector.broadcast %15 : vector<27x1xf32> to vector<27x32xf32>
    %17 = arith.mulf %13, %16 : vector<27x32xf32>
    %18 = arith.truncf %17 : vector<27x32xf32> to vector<27x32xbf16>
    %c0_11 = arith.constant 0 : index
    %c0_12 = arith.constant 0 : index
    %19 = vector.load %arg11[%c0_11, %c0_12] : memref<27x32xbf16, #tpu.memory_space<vmem>>, vector<27x32xbf16>
    tpu.vector_store %arg11[%c0_11, %c0_12], %18 {strides = array<i32>} : memref<27x32xbf16, #tpu.memory_space<vmem>>, vector<27x32xbf16>,
    %c0_13 = arith.constant 0 : index
    %c0_14 = arith.constant 0 : index
    %20 = vector.load %arg11[%c0_13, %c0_14] : memref<27x32xbf16, #tpu.memory_space<vmem>>, vector<20x32xbf16>
    %c0_15 = arith.constant 0 : index
    %c0_16 = arith.constant 0 : index
    %c0_17 = arith.constant 0 : index
    %21 = vector.load %arg3[%c0_15, %c0_16, %c0_17] : memref<9x32x64xbf16, #tpu.memory_space<vmem>>, vector<1x32x64xbf16>
    %22 = vector.shape_cast %21 : vector<1x32x64xbf16> to vector<32x64xbf16>
    %cst_18 = arith.constant dense<0.000000e+00> : vector<20x64xf32>
    %23 = tpu.matmul %20, %22, %cst_18 {dimension_numbers = #tpu.dot_dimension_numbers<[1], [0], [0], [1], [0, 0, 1, 1], [], []>} : vector<20x32xbf16>, vector<32x64xbf16>, vector<20x64xf32> -> vector<20x64xf32>
    %c0_19 = arith.constant 0 : index
    %c0_20 = arith.constant 0 : index
    %24 = vector.load %arg12[%c0_19, %c0_20] : memref<20x64xf32, #tpu.memory_space<vmem>>, vector<20x64xf32>
    tpu.vector_store %arg12[%c0_19, %c0_20], %23 {strides = array<i32>} : memref<20x64xf32, #tpu.memory_space<vmem>>, vector<20x64xf32>,
    %c1 = arith.constant 1 : index
    %c0_21 = arith.constant 0 : index
    %25 = vector.load %arg11[%c1, %c0_21] : memref<27x32xbf16, #tpu.memory_space<vmem>>, vector<20x32xbf16>
    %c2 = arith.constant 2 : index
    %c0_22 = arith.constant 0 : index
    %c0_23 = arith.constant 0 : index
    %26 = vector.load %arg3[%c2, %c0_22, %c0_23] : memref<9x32x64xbf16, #tpu.memory_space<vmem>>, vector<1x32x64xbf16>
    %27 = vector.shape_cast %26 : vector<1x32x64xbf16> to vector<32x64xbf16>
    %cst_24 = arith.constant dense<0.000000e+00> : vector<20x64xf32>
    %28 = tpu.matmul %25, %27, %cst_24 {dimension_numbers = #tpu.dot_dimension_numbers<[1], [0], [0], [1], [0, 0, 1, 1], [], []>} : vector<20x32xbf16>, vector<32x64xbf16>, vector<20x64xf32> -> vector<20x64xf32>
    %c0_25 = arith.constant 0 : index
    %c0_26 = arith.constant 0 : index
    %29 = vector.load %arg12[%c0_25, %c0_26] : memref<20x64xf32, #tpu.memory_space<vmem>>, vector<20x64xf32>
    %30 = arith.addf %29, %28 : vector<20x64xf32>
    %c0_27 = arith.constant 0 : index
    %c0_28 = arith.constant 0 : index
    %31 = vector.load %arg12[%c0_27, %c0_28] : memref<20x64xf32, #tpu.memory_space<vmem>>, vector<20x64xf32>
    tpu.vector_store %arg12[%c0_27, %c0_28], %30 {strides = array<i32>} : memref<20x64xf32, #tpu.memory_space<vmem>>, vector<20x64xf32>,
    %c5 = arith.constant 5 : index
    %c0_29 = arith.constant 0 : index
    %32 = vector.load %arg11[%c5, %c0_29] : memref<27x32xbf16, #tpu.memory_space<vmem>>, vector<20x32xbf16>
    %c6 = arith.constant 6 : index
    %c0_30 = arith.constant 0 : index
    %c0_31 = arith.constant 0 : index
    %33 = vector.load %arg3[%c6, %c0_30, %c0_31] : memref<9x32x64xbf16, #tpu.memory_space<vmem>>, vector<1x32x64xbf16>
    %34 = vector.shape_cast %33 : vector<1x32x64xbf16> to vector<32x64xbf16>
    %cst_32 = arith.constant dense<0.000000e+00> : vector<20x64xf32>
    %35 = tpu.matmul %32, %34, %cst_32 {dimension_numbers = #tpu.dot_dimension_numbers<[1], [0], [0], [1], [0, 0, 1, 1], [], []>} : vector<20x32xbf16>, vector<32x64xbf16>, vector<20x64xf32> -> vector<20x64xf32>
    %c0_33 = arith.constant 0 : index
    %c0_34 = arith.constant 0 : index
    %36 = vector.load %arg12[%c0_33, %c0_34] : memref<20x64xf32, #tpu.memory_space<vmem>>, vector<20x64xf32>
    %37 = arith.addf %36, %35 : vector<20x64xf32>
    %c0_35 = arith.constant 0 : index
    %c0_36 = arith.constant 0 : index
    %38 = vector.load %arg12[%c0_35, %c0_36] : memref<20x64xf32, #tpu.memory_space<vmem>>, vector<20x64xf32>
    tpu.vector_store %arg12[%c0_35, %c0_36], %37 {strides = array<i32>} : memref<20x64xf32, #tpu.memory_space<vmem>>, vector<20x64xf32>,
    %c6_37 = arith.constant 6 : index
    %c0_38 = arith.constant 0 : index
    %39 = vector.load %arg11[%c6_37, %c0_38] : memref<27x32xbf16, #tpu.memory_space<vmem>>, vector<20x32xbf16>
    %c8 = arith.constant 8 : index
    %c0_39 = arith.constant 0 : index
    %c0_40 = arith.constant 0 : index
    %40 = vector.load %arg3[%c8, %c0_39, %c0_40] : memref<9x32x64xbf16, #tpu.memory_space<vmem>>, vector<1x32x64xbf16>
    %41 = vector.shape_cast %40 : vector<1x32x64xbf16> to vector<32x64xbf16>
    %cst_41 = arith.constant dense<0.000000e+00> : vector<20x64xf32>
    %42 = tpu.matmul %39, %41, %cst_41 {dimension_numbers = #tpu.dot_dimension_numbers<[1], [0], [0], [1], [0, 0, 1, 1], [], []>} : vector<20x32xbf16>, vector<32x64xbf16>, vector<20x64xf32> -> vector<20x64xf32>
    %c0_42 = arith.constant 0 : index
    %c0_43 = arith.constant 0 : index
    %43 = vector.load %arg12[%c0_42, %c0_43] : memref<20x64xf32, #tpu.memory_space<vmem>>, vector<20x64xf32>
    %44 = arith.addf %43, %42 : vector<20x64xf32>
    %c0_44 = arith.constant 0 : index
    %c0_45 = arith.constant 0 : index
    %45 = vector.load %arg12[%c0_44, %c0_45] : memref<20x64xf32, #tpu.memory_space<vmem>>, vector<20x64xf32>
    tpu.vector_store %arg12[%c0_44, %c0_45], %44 {strides = array<i32>} : memref<20x64xf32, #tpu.memory_space<vmem>>, vector<20x64xf32>,
    %c0_46 = arith.constant 0 : index
    %c1_47 = arith.constant 1 : index
    %c0_48 = arith.constant 0 : index
    %c0_49 = arith.constant 0 : index
    %46 = vector.load %arg1[%c0_46, %c1_47, %c0_48, %c0_49] : memref<1x4x27x32xbf16, #tpu.memory_space<vmem>>, vector<1x1x27x32xbf16>
    %47 = vector.shape_cast %46 : vector<1x1x27x32xbf16> to vector<27x32xbf16>
    %48 = arith.extf %47 : vector<27x32xbf16> to vector<27x32xf32>
    %49 = vector.broadcast %0 : vector<1x32xf32> to vector<27x32xf32>
    %50 = arith.mulf %48, %49 : vector<27x32xf32>
    %51 = vector.broadcast %1 : vector<1x32xf32> to vector<27x32xf32>
    %52 = arith.addf %50, %51 : vector<27x32xf32>
    %cst_50 = arith.constant 0.000000e+00 : f32
    %53 = vector.broadcast %cst_50 : f32 to vector<27x32xf32>
    %54 = arith.cmpf ogt, %52, %53 : vector<27x32xf32>
    %cst_51 = arith.constant 0.00999999977 : f32
    %55 = vector.broadcast %cst_51 : f32 to vector<27x32xf32>
    %56 = arith.mulf %55, %52 : vector<27x32xf32>
    %57 = arith.select %54, %52, %56 : vector<27x32xi1>, vector<27x32xf32>
    %c1_52 = arith.constant 1 : index
    %c0_53 = arith.constant 0 : index
    %c0_54 = arith.constant 0 : index
    %58 = vector.load %arg2[%c1_52, %c0_53, %c0_54] : memref<4x27x1xf32, #tpu.memory_space<vmem>>, vector<1x27x1xf32>
    %59 = vector.shape_cast %58 : vector<1x27x1xf32> to vector<27x1xf32>
    %60 = vector.broadcast %59 : vector<27x1xf32> to vector<27x32xf32>
    %61 = arith.mulf %57, %60 : vector<27x32xf32>
    %62 = arith.truncf %61 : vector<27x32xf32> to vector<27x32xbf16>
    %c0_55 = arith.constant 0 : index
    %c0_56 = arith.constant 0 : index
    %63 = vector.load %arg11[%c0_55, %c0_56] : memref<27x32xbf16, #tpu.memory_space<vmem>>, vector<27x32xbf16>
    tpu.vector_store %arg11[%c0_55, %c0_56], %62 {strides = array<i32>} : memref<27x32xbf16, #tpu.memory_space<vmem>>, vector<27x32xbf16>,
    %c0_57 = arith.constant 0 : index
    %c0_58 = arith.constant 0 : index
    %64 = vector.load %arg11[%c0_57, %c0_58] : memref<27x32xbf16, #tpu.memory_space<vmem>>, vector<20x32xbf16>
    %c1_59 = arith.constant 1 : index
    %c0_60 = arith.constant 0 : index
    %c0_61 = arith.constant 0 : index
    %65 = vector.load %arg3[%c1_59, %c0_60, %c0_61] : memref<9x32x64xbf16, #tpu.memory_space<vmem>>, vector<1x32x64xbf16>
    %66 = vector.shape_cast %65 : vector<1x32x64xbf16> to vector<32x64xbf16>
    %cst_62 = arith.constant dense<0.000000e+00> : vector<20x64xf32>
    %67 = tpu.matmul %64, %66, %cst_62 {dimension_numbers = #tpu.dot_dimension_numbers<[1], [0], [0], [1], [0, 0, 1, 1], [], []>} : vector<20x32xbf16>, vector<32x64xbf16>, vector<20x64xf32> -> vector<20x64xf32>
    %c0_63 = arith.constant 0 : index
    %c0_64 = arith.constant 0 : index
    %68 = vector.load %arg12[%c0_63, %c0_64] : memref<20x64xf32, #tpu.memory_space<vmem>>, vector<20x64xf32>
    %69 = arith.addf %68, %67 : vector<20x64xf32>
    %c0_65 = arith.constant 0 : index
    %c0_66 = arith.constant 0 : index
    %70 = vector.load %arg12[%c0_65, %c0_66] : memref<20x64xf32, #tpu.memory_space<vmem>>, vector<20x64xf32>
    tpu.vector_store %arg12[%c0_65, %c0_66], %69 {strides = array<i32>} : memref<20x64xf32, #tpu.memory_space<vmem>>, vector<20x64xf32>,
    %c5_67 = arith.constant 5 : index
    %c0_68 = arith.constant 0 : index
    %71 = vector.load %arg11[%c5_67, %c0_68] : memref<27x32xbf16, #tpu.memory_space<vmem>>, vector<20x32xbf16>
    %c7 = arith.constant 7 : index
    %c0_69 = arith.constant 0 : index
    %c0_70 = arith.constant 0 : index
    %72 = vector.load %arg3[%c7, %c0_69, %c0_70] : memref<9x32x64xbf16, #tpu.memory_space<vmem>>, vector<1x32x64xbf16>
    %73 = vector.shape_cast %72 : vector<1x32x64xbf16> to vector<32x64xbf16>
    %cst_71 = arith.constant dense<0.000000e+00> : vector<20x64xf32>
    %74 = tpu.matmul %71, %73, %cst_71 {dimension_numbers = #tpu.dot_dimension_numbers<[1], [0], [0], [1], [0, 0, 1, 1], [], []>} : vector<20x32xbf16>, vector<32x64xbf16>, vector<20x64xf32> -> vector<20x64xf32>
    %c0_72 = arith.constant 0 : index
    %c0_73 = arith.constant 0 : index
    %75 = vector.load %arg12[%c0_72, %c0_73] : memref<20x64xf32, #tpu.memory_space<vmem>>, vector<20x64xf32>
    %76 = arith.addf %75, %74 : vector<20x64xf32>
    %c0_74 = arith.constant 0 : index
    %c0_75 = arith.constant 0 : index
    %77 = vector.load %arg12[%c0_74, %c0_75] : memref<20x64xf32, #tpu.memory_space<vmem>>, vector<20x64xf32>
    tpu.vector_store %arg12[%c0_74, %c0_75], %76 {strides = array<i32>} : memref<20x64xf32, #tpu.memory_space<vmem>>, vector<20x64xf32>,
    %c0_76 = arith.constant 0 : index
    %c2_77 = arith.constant 2 : index
    %c0_78 = arith.constant 0 : index
    %c0_79 = arith.constant 0 : index
    %78 = vector.load %arg1[%c0_76, %c2_77, %c0_78, %c0_79] : memref<1x4x27x32xbf16, #tpu.memory_space<vmem>>, vector<1x1x27x32xbf16>
    %79 = vector.shape_cast %78 : vector<1x1x27x32xbf16> to vector<27x32xbf16>
    %80 = arith.extf %79 : vector<27x32xbf16> to vector<27x32xf32>
    %81 = vector.broadcast %0 : vector<1x32xf32> to vector<27x32xf32>
    %82 = arith.mulf %80, %81 : vector<27x32xf32>
    %83 = vector.broadcast %1 : vector<1x32xf32> to vector<27x32xf32>
    %84 = arith.addf %82, %83 : vector<27x32xf32>
    %cst_80 = arith.constant 0.000000e+00 : f32
    %85 = vector.broadcast %cst_80 : f32 to vector<27x32xf32>
    %86 = arith.cmpf ogt, %84, %85 : vector<27x32xf32>
    %cst_81 = arith.constant 0.00999999977 : f32
    %87 = vector.broadcast %cst_81 : f32 to vector<27x32xf32>
    %88 = arith.mulf %87, %84 : vector<27x32xf32>
    %89 = arith.select %86, %84, %88 : vector<27x32xi1>, vector<27x32xf32>
    %c2_82 = arith.constant 2 : index
    %c0_83 = arith.constant 0 : index
    %c0_84 = arith.constant 0 : index
    %90 = vector.load %arg2[%c2_82, %c0_83, %c0_84] : memref<4x27x1xf32, #tpu.memory_space<vmem>>, vector<1x27x1xf32>
    %91 = vector.shape_cast %90 : vector<1x27x1xf32> to vector<27x1xf32>
    %92 = vector.broadcast %91 : vector<27x1xf32> to vector<27x32xf32>
    %93 = arith.mulf %89, %92 : vector<27x32xf32>
    %94 = arith.truncf %93 : vector<27x32xf32> to vector<27x32xbf16>
    %c0_85 = arith.constant 0 : index
    %c0_86 = arith.constant 0 : index
    %95 = vector.load %arg11[%c0_85, %c0_86] : memref<27x32xbf16, #tpu.memory_space<vmem>>, vector<27x32xbf16>
    tpu.vector_store %arg11[%c0_85, %c0_86], %94 {strides = array<i32>} : memref<27x32xbf16, #tpu.memory_space<vmem>>, vector<27x32xbf16>,
    %c0_87 = arith.constant 0 : index
    %c0_88 = arith.constant 0 : index
    %96 = vector.load %arg11[%c0_87, %c0_88] : memref<27x32xbf16, #tpu.memory_space<vmem>>, vector<20x32xbf16>
    %c3 = arith.constant 3 : index
    %c0_89 = arith.constant 0 : index
    %c0_90 = arith.constant 0 : index
    %97 = vector.load %arg3[%c3, %c0_89, %c0_90] : memref<9x32x64xbf16, #tpu.memory_space<vmem>>, vector<1x32x64xbf16>
    %98 = vector.shape_cast %97 : vector<1x32x64xbf16> to vector<32x64xbf16>
    %cst_91 = arith.constant dense<0.000000e+00> : vector<20x64xf32>
    %99 = tpu.matmul %96, %98, %cst_91 {dimension_numbers = #tpu.dot_dimension_numbers<[1], [0], [0], [1], [0, 0, 1, 1], [], []>} : vector<20x32xbf16>, vector<32x64xbf16>, vector<20x64xf32> -> vector<20x64xf32>
    %c0_92 = arith.constant 0 : index
    %c0_93 = arith.constant 0 : index
    %100 = vector.load %arg12[%c0_92, %c0_93] : memref<20x64xf32, #tpu.memory_space<vmem>>, vector<20x64xf32>
    %101 = arith.addf %100, %99 : vector<20x64xf32>
    %c0_94 = arith.constant 0 : index
    %c0_95 = arith.constant 0 : index
    %102 = vector.load %arg12[%c0_94, %c0_95] : memref<20x64xf32, #tpu.memory_space<vmem>>, vector<20x64xf32>
    tpu.vector_store %arg12[%c0_94, %c0_95], %101 {strides = array<i32>} : memref<20x64xf32, #tpu.memory_space<vmem>>, vector<20x64xf32>,
    %c1_96 = arith.constant 1 : index
    %c0_97 = arith.constant 0 : index
    %103 = vector.load %arg11[%c1_96, %c0_97] : memref<27x32xbf16, #tpu.memory_space<vmem>>, vector<20x32xbf16>
    %c5_98 = arith.constant 5 : index
    %c0_99 = arith.constant 0 : index
    %c0_100 = arith.constant 0 : index
    %104 = vector.load %arg3[%c5_98, %c0_99, %c0_100] : memref<9x32x64xbf16, #tpu.memory_space<vmem>>, vector<1x32x64xbf16>
    %105 = vector.shape_cast %104 : vector<1x32x64xbf16> to vector<32x64xbf16>
    %cst_101 = arith.constant dense<0.000000e+00> : vector<20x64xf32>
    %106 = tpu.matmul %103, %105, %cst_101 {dimension_numbers = #tpu.dot_dimension_numbers<[1], [0], [0], [1], [0, 0, 1, 1], [], []>} : vector<20x32xbf16>, vector<32x64xbf16>, vector<20x64xf32> -> vector<20x64xf32>
    %c0_102 = arith.constant 0 : index
    %c0_103 = arith.constant 0 : index
    %107 = vector.load %arg12[%c0_102, %c0_103] : memref<20x64xf32, #tpu.memory_space<vmem>>, vector<20x64xf32>
    %108 = arith.addf %107, %106 : vector<20x64xf32>
    %c0_104 = arith.constant 0 : index
    %c0_105 = arith.constant 0 : index
    %109 = vector.load %arg12[%c0_104, %c0_105] : memref<20x64xf32, #tpu.memory_space<vmem>>, vector<20x64xf32>
    tpu.vector_store %arg12[%c0_104, %c0_105], %108 {strides = array<i32>} : memref<20x64xf32, #tpu.memory_space<vmem>>, vector<20x64xf32>,
    %c0_106 = arith.constant 0 : index
    %c3_107 = arith.constant 3 : index
    %c0_108 = arith.constant 0 : index
    %c0_109 = arith.constant 0 : index
    %110 = vector.load %arg1[%c0_106, %c3_107, %c0_108, %c0_109] : memref<1x4x27x32xbf16, #tpu.memory_space<vmem>>, vector<1x1x27x32xbf16>
    %111 = vector.shape_cast %110 : vector<1x1x27x32xbf16> to vector<27x32xbf16>
    %112 = arith.extf %111 : vector<27x32xbf16> to vector<27x32xf32>
    %113 = vector.broadcast %0 : vector<1x32xf32> to vector<27x32xf32>
    %114 = arith.mulf %112, %113 : vector<27x32xf32>
    %115 = vector.broadcast %1 : vector<1x32xf32> to vector<27x32xf32>
    %116 = arith.addf %114, %115 : vector<27x32xf32>
    %cst_110 = arith.constant 0.000000e+00 : f32
    %117 = vector.broadcast %cst_110 : f32 to vector<27x32xf32>
    %118 = arith.cmpf ogt, %116, %117 : vector<27x32xf32>
    %cst_111 = arith.constant 0.00999999977 : f32
    %119 = vector.broadcast %cst_111 : f32 to vector<27x32xf32>
    %120 = arith.mulf %119, %116 : vector<27x32xf32>
    %121 = arith.select %118, %116, %120 : vector<27x32xi1>, vector<27x32xf32>
    %c3_112 = arith.constant 3 : index
    %c0_113 = arith.constant 0 : index
    %c0_114 = arith.constant 0 : index
    %122 = vector.load %arg2[%c3_112, %c0_113, %c0_114] : memref<4x27x1xf32, #tpu.memory_space<vmem>>, vector<1x27x1xf32>
    %123 = vector.shape_cast %122 : vector<1x27x1xf32> to vector<27x1xf32>
    %124 = vector.broadcast %123 : vector<27x1xf32> to vector<27x32xf32>
    %125 = arith.mulf %121, %124 : vector<27x32xf32>
    %126 = arith.truncf %125 : vector<27x32xf32> to vector<27x32xbf16>
    %c0_115 = arith.constant 0 : index
    %c0_116 = arith.constant 0 : index
    %127 = vector.load %arg11[%c0_115, %c0_116] : memref<27x32xbf16, #tpu.memory_space<vmem>>, vector<27x32xbf16>
    tpu.vector_store %arg11[%c0_115, %c0_116], %126 {strides = array<i32>} : memref<27x32xbf16, #tpu.memory_space<vmem>>, vector<27x32xbf16>,
    %c0_117 = arith.constant 0 : index
    %c0_118 = arith.constant 0 : index
    %128 = vector.load %arg11[%c0_117, %c0_118] : memref<27x32xbf16, #tpu.memory_space<vmem>>, vector<20x32xbf16>
    %c4 = arith.constant 4 : index
    %c0_119 = arith.constant 0 : index
    %c0_120 = arith.constant 0 : index
    %129 = vector.load %arg3[%c4, %c0_119, %c0_120] : memref<9x32x64xbf16, #tpu.memory_space<vmem>>, vector<1x32x64xbf16>
    %130 = vector.shape_cast %129 : vector<1x32x64xbf16> to vector<32x64xbf16>
    %cst_121 = arith.constant dense<0.000000e+00> : vector<20x64xf32>
    %131 = tpu.matmul %128, %130, %cst_121 {dimension_numbers = #tpu.dot_dimension_numbers<[1], [0], [0], [1], [0, 0, 1, 1], [], []>} : vector<20x32xbf16>, vector<32x64xbf16>, vector<20x64xf32> -> vector<20x64xf32>
    %c0_122 = arith.constant 0 : index
    %c0_123 = arith.constant 0 : index
    %132 = vector.load %arg12[%c0_122, %c0_123] : memref<20x64xf32, #tpu.memory_space<vmem>>, vector<20x64xf32>
    %133 = arith.addf %132, %131 : vector<20x64xf32>
    %c0_124 = arith.constant 0 : index
    %c0_125 = arith.constant 0 : index
    %134 = vector.load %arg12[%c0_124, %c0_125] : memref<20x64xf32, #tpu.memory_space<vmem>>, vector<20x64xf32>
    tpu.vector_store %arg12[%c0_124, %c0_125], %133 {strides = array<i32>} : memref<20x64xf32, #tpu.memory_space<vmem>>, vector<20x64xf32>,
    %c0_126 = arith.constant 0 : index
    %c0_127 = arith.constant 0 : index
    %135 = vector.load %arg12[%c0_126, %c0_127] : memref<20x64xf32, #tpu.memory_space<vmem>>, vector<20x64xf32>
    %c0_128 = arith.constant 0 : index
    %c0_129 = arith.constant 0 : index
    %136 = vector.load %arg4[%c0_128, %c0_129] : memref<1x64xf32, #tpu.memory_space<vmem>>, vector<1x64xf32>
    %137 = vector.broadcast %136 : vector<1x64xf32> to vector<20x64xf32>
    %138 = arith.addf %135, %137 : vector<20x64xf32>
    %139 = arith.truncf %138 : vector<20x64xf32> to vector<20x64xbf16>
    %c0_130 = arith.constant 0 : index
    %c0_131 = arith.constant 0 : index
    %c0_132 = arith.constant 0 : index
    %140 = vector.load %arg8[%c0_130, %c0_131, %c0_132] : memref<1x20x64xbf16, #tpu.memory_space<vmem>>, vector<1x20x64xbf16>
    %141 = vector.shape_cast %140 : vector<1x20x64xbf16> to vector<20x64xbf16>
    %142 = vector.shape_cast %139 : vector<20x64xbf16> to vector<1x20x64xbf16>
    tpu.vector_store %arg8[%c0_130, %c0_131, %c0_132], %142 {strides = array<i32>} : memref<1x20x64xbf16, #tpu.memory_space<vmem>>, vector<1x20x64xbf16>,
    %c0_133 = arith.constant 0 : index
    %c0_134 = arith.constant 0 : index
    %143 = vector.load %arg7[%c0_133, %c0_134] : memref<20x1xf32, #tpu.memory_space<vmem>>, vector<20x1xf32>
    %144 = vector.broadcast %143 : vector<20x1xf32> to vector<20x64xf32>
    %145 = arith.mulf %138, %144 : vector<20x64xf32>
    %cst_135 = arith.constant dense<0.000000e+00> : vector<64xf32>
    %146 = vector.multi_reduction <add>, %145, %cst_135 [0] : vector<20x64xf32> to vector<64xf32>
    %147 = vector.shape_cast %146 : vector<64xf32> to vector<1x64xf32>
    %c0_136 = arith.constant 0 : index
    %c0_137 = arith.constant 0 : index
    %c0_138 = arith.constant 0 : index
    %148 = vector.load %arg9[%c0_136, %c0_137, %c0_138] : memref<1x1x64xf32, #tpu.memory_space<vmem>>, vector<1x1x64xf32>
    %149 = vector.shape_cast %148 : vector<1x1x64xf32> to vector<1x64xf32>
    %150 = vector.shape_cast %147 : vector<1x64xf32> to vector<1x1x64xf32>
    tpu.vector_store %arg9[%c0_136, %c0_137, %c0_138], %150 {strides = array<i32>} : memref<1x1x64xf32, #tpu.memory_space<vmem>>, vector<1x1x64xf32>,
    %151 = arith.mulf %145, %145 : vector<20x64xf32>
    %cst_139 = arith.constant dense<0.000000e+00> : vector<64xf32>
    %152 = vector.multi_reduction <add>, %151, %cst_139 [0] : vector<20x64xf32> to vector<64xf32>
    %153 = vector.shape_cast %152 : vector<64xf32> to vector<1x64xf32>
    %c0_140 = arith.constant 0 : index
    %c0_141 = arith.constant 0 : index
    %c0_142 = arith.constant 0 : index
    %154 = vector.load %arg10[%c0_140, %c0_141, %c0_142] : memref<1x1x64xf32, #tpu.memory_space<vmem>>, vector<1x1x64xf32>
    %155 = vector.shape_cast %154 : vector<1x1x64xf32> to vector<1x64xf32>
    %156 = vector.shape_cast %153 : vector<1x64xf32> to vector<1x1x64xf32>
    tpu.vector_store %arg10[%c0_140, %c0_141, %c0_142], %156 {strides = array<i32>} : memref<1x1x64xf32, #tpu.memory_space<vmem>>, vector<1x1x64xf32>,
    return
  }
  func.func @transform_0(%arg0: i32) -> (i32, i32, i32, i32) {
    %c0_i32 = arith.constant 0 : i32
    %c0_i32_0 = arith.constant 0 : i32
    %c0_i32_1 = arith.constant 0 : i32
    %c0_i32_2 = arith.constant 0 : i32
    return %arg0, %c0_i32, %c0_i32_0, %c0_i32_1 : i32, i32, i32, i32
  }
  func.func @transform_1(%arg0: i32) -> (i32, i32, i32) {
    %c0_i32 = arith.constant 0 : i32
    %c0_i32_0 = arith.constant 0 : i32
    %c0_i32_1 = arith.constant 0 : i32
    %c0_i32_2 = arith.constant 0 : i32
    return %c0_i32, %c0_i32_0, %c0_i32_1 : i32, i32, i32
  }
  func.func @transform_2(%arg0: i32) -> (i32, i32, i32) {
    %c0_i32 = arith.constant 0 : i32
    %c0_i32_0 = arith.constant 0 : i32
    %c0_i32_1 = arith.constant 0 : i32
    %c0_i32_2 = arith.constant 0 : i32
    return %c0_i32, %c0_i32_0, %c0_i32_1 : i32, i32, i32
  }
  func.func @transform_3(%arg0: i32) -> (i32, i32) {
    %c0_i32 = arith.constant 0 : i32
    %c0_i32_0 = arith.constant 0 : i32
    %c0_i32_1 = arith.constant 0 : i32
    return %c0_i32, %c0_i32_0 : i32, i32
  }
  func.func @transform_4(%arg0: i32) -> (i32, i32) {
    %c0_i32 = arith.constant 0 : i32
    %c0_i32_0 = arith.constant 0 : i32
    %c0_i32_1 = arith.constant 0 : i32
    return %c0_i32, %c0_i32_0 : i32, i32
  }
  func.func @transform_5(%arg0: i32) -> (i32, i32) {
    %c0_i32 = arith.constant 0 : i32
    %c0_i32_0 = arith.constant 0 : i32
    %c0_i32_1 = arith.constant 0 : i32
    return %c0_i32, %c0_i32_0 : i32, i32
  }
  func.func @transform_6(%arg0: i32) -> (i32, i32) {
    %c0_i32 = arith.constant 0 : i32
    %c0_i32_0 = arith.constant 0 : i32
    %c0_i32_1 = arith.constant 0 : i32
    return %c0_i32, %c0_i32_0 : i32, i32
  }
  func.func @transform_7(%arg0: i32) -> (i32, i32, i32) {
    %c0_i32 = arith.constant 0 : i32
    %c0_i32_0 = arith.constant 0 : i32
    %c0_i32_1 = arith.constant 0 : i32
    return %arg0, %c0_i32, %c0_i32_0 : i32, i32, i32
  }
  func.func @transform_8(%arg0: i32) -> (i32, i32, i32) {
    %c0_i32 = arith.constant 0 : i32
    %c0_i32_0 = arith.constant 0 : i32
    %c0_i32_1 = arith.constant 0 : i32
    return %arg0, %c0_i32, %c0_i32_0 : i32, i32, i32
  }
  func.func @transform_9(%arg0: i32) -> (i32, i32, i32) {
    %c0_i32 = arith.constant 0 : i32
    %c0_i32_0 = arith.constant 0 : i32
    %c0_i32_1 = arith.constant 0 : i32
    return %arg0, %c0_i32, %c0_i32_0 : i32, i32, i32
  }
}

module attributes {stable_mosaic.version = 11 : i64} {
  func.func @kernel(%arg0: i32, %arg1: memref<1x1x38x64xbf16, #tpu.memory_space<vmem>>, %arg2: memref<1x38x1xf32, #tpu.memory_space<vmem>>, %arg3: memref<9x64x128xbf16, #tpu.memory_space<vmem>>, %arg4: memref<1x128xf32, #tpu.memory_space<vmem>>, %arg5: memref<1x64xf32, #tpu.memory_space<vmem>>, %arg6: memref<1x64xf32, #tpu.memory_space<vmem>>, %arg7: memref<24x1xf32, #tpu.memory_space<vmem>>, %arg8: memref<1x24x128xbf16, #tpu.memory_space<vmem>>, %arg9: memref<1x1x128xf32, #tpu.memory_space<vmem>>, %arg10: memref<1x1x128xf32, #tpu.memory_space<vmem>>, %arg11: memref<38x64xbf16, #tpu.memory_space<vmem>>, %arg12: memref<24x128xf32, #tpu.memory_space<vmem>>) attributes {dimension_semantics = [#tpu.dimension_semantics<parallel>], iteration_bounds = array<i64: 2>, scalar_prefetch = 0 : i64, scratch_operands = 2 : i64, tpu.core_type = #tpu.core_type<tc>, window_params = [{transform_indices = @transform_0, window_bounds = array<i64: 1, 1, 38, 64>}, {pipeline_mode = #tpu.pipeline_mode<synchronous>, transform_indices = @transform_1, window_bounds = array<i64: 1, 38, 1>}, {pipeline_mode = #tpu.pipeline_mode<synchronous>, transform_indices = @transform_2, window_bounds = array<i64: 9, 64, 128>}, {pipeline_mode = #tpu.pipeline_mode<synchronous>, transform_indices = @transform_3, window_bounds = array<i64: 1, 128>}, {pipeline_mode = #tpu.pipeline_mode<synchronous>, transform_indices = @transform_4, window_bounds = array<i64: 1, 64>}, {pipeline_mode = #tpu.pipeline_mode<synchronous>, transform_indices = @transform_5, window_bounds = array<i64: 1, 64>}, {pipeline_mode = #tpu.pipeline_mode<synchronous>, transform_indices = @transform_6, window_bounds = array<i64: 24, 1>}, {transform_indices = @transform_7, window_bounds = array<i64: 1, 24, 128>}, {transform_indices = @transform_8, window_bounds = array<i64: 1, 1, 128>}, {transform_indices = @transform_9, window_bounds = array<i64: 1, 1, 128>}]} {
    %c0 = arith.constant 0 : index
    %c0_0 = arith.constant 0 : index
    %0 = vector.load %arg5[%c0, %c0_0] : memref<1x64xf32, #tpu.memory_space<vmem>>, vector<1x64xf32>
    %c0_1 = arith.constant 0 : index
    %c0_2 = arith.constant 0 : index
    %1 = vector.load %arg6[%c0_1, %c0_2] : memref<1x64xf32, #tpu.memory_space<vmem>>, vector<1x64xf32>
    %c0_3 = arith.constant 0 : index
    %c0_4 = arith.constant 0 : index
    %c0_5 = arith.constant 0 : index
    %c0_6 = arith.constant 0 : index
    %2 = vector.load %arg1[%c0_3, %c0_4, %c0_5, %c0_6] : memref<1x1x38x64xbf16, #tpu.memory_space<vmem>>, vector<1x1x38x64xbf16>
    %3 = vector.shape_cast %2 : vector<1x1x38x64xbf16> to vector<38x64xbf16>
    %4 = arith.extf %3 : vector<38x64xbf16> to vector<38x64xf32>
    %5 = vector.broadcast %0 : vector<1x64xf32> to vector<38x64xf32>
    %6 = arith.mulf %4, %5 : vector<38x64xf32>
    %7 = vector.broadcast %1 : vector<1x64xf32> to vector<38x64xf32>
    %8 = arith.addf %6, %7 : vector<38x64xf32>
    %cst = arith.constant 0.000000e+00 : f32
    %9 = vector.broadcast %cst : f32 to vector<38x64xf32>
    %10 = arith.cmpf ogt, %8, %9 : vector<38x64xf32>
    %cst_7 = arith.constant 0.00999999977 : f32
    %11 = vector.broadcast %cst_7 : f32 to vector<38x64xf32>
    %12 = arith.mulf %11, %8 : vector<38x64xf32>
    %13 = arith.select %10, %8, %12 : vector<38x64xi1>, vector<38x64xf32>
    %c0_8 = arith.constant 0 : index
    %c0_9 = arith.constant 0 : index
    %c0_10 = arith.constant 0 : index
    %14 = vector.load %arg2[%c0_8, %c0_9, %c0_10] : memref<1x38x1xf32, #tpu.memory_space<vmem>>, vector<1x38x1xf32>
    %15 = vector.shape_cast %14 : vector<1x38x1xf32> to vector<38x1xf32>
    %16 = vector.broadcast %15 : vector<38x1xf32> to vector<38x64xf32>
    %17 = arith.mulf %13, %16 : vector<38x64xf32>
    %18 = arith.truncf %17 : vector<38x64xf32> to vector<38x64xbf16>
    %c0_11 = arith.constant 0 : index
    %c0_12 = arith.constant 0 : index
    %19 = vector.load %arg11[%c0_11, %c0_12] : memref<38x64xbf16, #tpu.memory_space<vmem>>, vector<38x64xbf16>
    tpu.vector_store %arg11[%c0_11, %c0_12], %18 {strides = array<i32>} : memref<38x64xbf16, #tpu.memory_space<vmem>>, vector<38x64xbf16>,
    %c0_13 = arith.constant 0 : index
    %c0_14 = arith.constant 0 : index
    %20 = vector.load %arg11[%c0_13, %c0_14] : memref<38x64xbf16, #tpu.memory_space<vmem>>, vector<24x64xbf16>
    %c0_15 = arith.constant 0 : index
    %c0_16 = arith.constant 0 : index
    %c0_17 = arith.constant 0 : index
    %21 = vector.load %arg3[%c0_15, %c0_16, %c0_17] : memref<9x64x128xbf16, #tpu.memory_space<vmem>>, vector<1x64x128xbf16>
    %22 = vector.shape_cast %21 : vector<1x64x128xbf16> to vector<64x128xbf16>
    %cst_18 = arith.constant dense<0.000000e+00> : vector<24x128xf32>
    %23 = tpu.matmul %20, %22, %cst_18 {dimension_numbers = #tpu.dot_dimension_numbers<[1], [0], [0], [1], [0, 0, 1, 1], [], []>} : vector<24x64xbf16>, vector<64x128xbf16>, vector<24x128xf32> -> vector<24x128xf32>
    %c0_19 = arith.constant 0 : index
    %c0_20 = arith.constant 0 : index
    %24 = vector.load %arg12[%c0_19, %c0_20] : memref<24x128xf32, #tpu.memory_space<vmem>>, vector<24x128xf32>
    tpu.vector_store %arg12[%c0_19, %c0_20], %23 {strides = array<i32>} : memref<24x128xf32, #tpu.memory_space<vmem>>, vector<24x128xf32>,
    %c1 = arith.constant 1 : index
    %c0_21 = arith.constant 0 : index
    %25 = vector.load %arg11[%c1, %c0_21] : memref<38x64xbf16, #tpu.memory_space<vmem>>, vector<24x64xbf16>
    %c1_22 = arith.constant 1 : index
    %c0_23 = arith.constant 0 : index
    %c0_24 = arith.constant 0 : index
    %26 = vector.load %arg3[%c1_22, %c0_23, %c0_24] : memref<9x64x128xbf16, #tpu.memory_space<vmem>>, vector<1x64x128xbf16>
    %27 = vector.shape_cast %26 : vector<1x64x128xbf16> to vector<64x128xbf16>
    %cst_25 = arith.constant dense<0.000000e+00> : vector<24x128xf32>
    %28 = tpu.matmul %25, %27, %cst_25 {dimension_numbers = #tpu.dot_dimension_numbers<[1], [0], [0], [1], [0, 0, 1, 1], [], []>} : vector<24x64xbf16>, vector<64x128xbf16>, vector<24x128xf32> -> vector<24x128xf32>
    %c0_26 = arith.constant 0 : index
    %c0_27 = arith.constant 0 : index
    %29 = vector.load %arg12[%c0_26, %c0_27] : memref<24x128xf32, #tpu.memory_space<vmem>>, vector<24x128xf32>
    %30 = arith.addf %29, %28 : vector<24x128xf32>
    %c0_28 = arith.constant 0 : index
    %c0_29 = arith.constant 0 : index
    %31 = vector.load %arg12[%c0_28, %c0_29] : memref<24x128xf32, #tpu.memory_space<vmem>>, vector<24x128xf32>
    tpu.vector_store %arg12[%c0_28, %c0_29], %30 {strides = array<i32>} : memref<24x128xf32, #tpu.memory_space<vmem>>, vector<24x128xf32>,
    %c2 = arith.constant 2 : index
    %c0_30 = arith.constant 0 : index
    %32 = vector.load %arg11[%c2, %c0_30] : memref<38x64xbf16, #tpu.memory_space<vmem>>, vector<24x64xbf16>
    %c2_31 = arith.constant 2 : index
    %c0_32 = arith.constant 0 : index
    %c0_33 = arith.constant 0 : index
    %33 = vector.load %arg3[%c2_31, %c0_32, %c0_33] : memref<9x64x128xbf16, #tpu.memory_space<vmem>>, vector<1x64x128xbf16>
    %34 = vector.shape_cast %33 : vector<1x64x128xbf16> to vector<64x128xbf16>
    %cst_34 = arith.constant dense<0.000000e+00> : vector<24x128xf32>
    %35 = tpu.matmul %32, %34, %cst_34 {dimension_numbers = #tpu.dot_dimension_numbers<[1], [0], [0], [1], [0, 0, 1, 1], [], []>} : vector<24x64xbf16>, vector<64x128xbf16>, vector<24x128xf32> -> vector<24x128xf32>
    %c0_35 = arith.constant 0 : index
    %c0_36 = arith.constant 0 : index
    %36 = vector.load %arg12[%c0_35, %c0_36] : memref<24x128xf32, #tpu.memory_space<vmem>>, vector<24x128xf32>
    %37 = arith.addf %36, %35 : vector<24x128xf32>
    %c0_37 = arith.constant 0 : index
    %c0_38 = arith.constant 0 : index
    %38 = vector.load %arg12[%c0_37, %c0_38] : memref<24x128xf32, #tpu.memory_space<vmem>>, vector<24x128xf32>
    tpu.vector_store %arg12[%c0_37, %c0_38], %37 {strides = array<i32>} : memref<24x128xf32, #tpu.memory_space<vmem>>, vector<24x128xf32>,
    %c6 = arith.constant 6 : index
    %c0_39 = arith.constant 0 : index
    %39 = vector.load %arg11[%c6, %c0_39] : memref<38x64xbf16, #tpu.memory_space<vmem>>, vector<24x64xbf16>
    %c3 = arith.constant 3 : index
    %c0_40 = arith.constant 0 : index
    %c0_41 = arith.constant 0 : index
    %40 = vector.load %arg3[%c3, %c0_40, %c0_41] : memref<9x64x128xbf16, #tpu.memory_space<vmem>>, vector<1x64x128xbf16>
    %41 = vector.shape_cast %40 : vector<1x64x128xbf16> to vector<64x128xbf16>
    %cst_42 = arith.constant dense<0.000000e+00> : vector<24x128xf32>
    %42 = tpu.matmul %39, %41, %cst_42 {dimension_numbers = #tpu.dot_dimension_numbers<[1], [0], [0], [1], [0, 0, 1, 1], [], []>} : vector<24x64xbf16>, vector<64x128xbf16>, vector<24x128xf32> -> vector<24x128xf32>
    %c0_43 = arith.constant 0 : index
    %c0_44 = arith.constant 0 : index
    %43 = vector.load %arg12[%c0_43, %c0_44] : memref<24x128xf32, #tpu.memory_space<vmem>>, vector<24x128xf32>
    %44 = arith.addf %43, %42 : vector<24x128xf32>
    %c0_45 = arith.constant 0 : index
    %c0_46 = arith.constant 0 : index
    %45 = vector.load %arg12[%c0_45, %c0_46] : memref<24x128xf32, #tpu.memory_space<vmem>>, vector<24x128xf32>
    tpu.vector_store %arg12[%c0_45, %c0_46], %44 {strides = array<i32>} : memref<24x128xf32, #tpu.memory_space<vmem>>, vector<24x128xf32>,
    %c7 = arith.constant 7 : index
    %c0_47 = arith.constant 0 : index
    %46 = vector.load %arg11[%c7, %c0_47] : memref<38x64xbf16, #tpu.memory_space<vmem>>, vector<24x64xbf16>
    %c4 = arith.constant 4 : index
    %c0_48 = arith.constant 0 : index
    %c0_49 = arith.constant 0 : index
    %47 = vector.load %arg3[%c4, %c0_48, %c0_49] : memref<9x64x128xbf16, #tpu.memory_space<vmem>>, vector<1x64x128xbf16>
    %48 = vector.shape_cast %47 : vector<1x64x128xbf16> to vector<64x128xbf16>
    %cst_50 = arith.constant dense<0.000000e+00> : vector<24x128xf32>
    %49 = tpu.matmul %46, %48, %cst_50 {dimension_numbers = #tpu.dot_dimension_numbers<[1], [0], [0], [1], [0, 0, 1, 1], [], []>} : vector<24x64xbf16>, vector<64x128xbf16>, vector<24x128xf32> -> vector<24x128xf32>
    %c0_51 = arith.constant 0 : index
    %c0_52 = arith.constant 0 : index
    %50 = vector.load %arg12[%c0_51, %c0_52] : memref<24x128xf32, #tpu.memory_space<vmem>>, vector<24x128xf32>
    %51 = arith.addf %50, %49 : vector<24x128xf32>
    %c0_53 = arith.constant 0 : index
    %c0_54 = arith.constant 0 : index
    %52 = vector.load %arg12[%c0_53, %c0_54] : memref<24x128xf32, #tpu.memory_space<vmem>>, vector<24x128xf32>
    tpu.vector_store %arg12[%c0_53, %c0_54], %51 {strides = array<i32>} : memref<24x128xf32, #tpu.memory_space<vmem>>, vector<24x128xf32>,
    %c8 = arith.constant 8 : index
    %c0_55 = arith.constant 0 : index
    %53 = vector.load %arg11[%c8, %c0_55] : memref<38x64xbf16, #tpu.memory_space<vmem>>, vector<24x64xbf16>
    %c5 = arith.constant 5 : index
    %c0_56 = arith.constant 0 : index
    %c0_57 = arith.constant 0 : index
    %54 = vector.load %arg3[%c5, %c0_56, %c0_57] : memref<9x64x128xbf16, #tpu.memory_space<vmem>>, vector<1x64x128xbf16>
    %55 = vector.shape_cast %54 : vector<1x64x128xbf16> to vector<64x128xbf16>
    %cst_58 = arith.constant dense<0.000000e+00> : vector<24x128xf32>
    %56 = tpu.matmul %53, %55, %cst_58 {dimension_numbers = #tpu.dot_dimension_numbers<[1], [0], [0], [1], [0, 0, 1, 1], [], []>} : vector<24x64xbf16>, vector<64x128xbf16>, vector<24x128xf32> -> vector<24x128xf32>
    %c0_59 = arith.constant 0 : index
    %c0_60 = arith.constant 0 : index
    %57 = vector.load %arg12[%c0_59, %c0_60] : memref<24x128xf32, #tpu.memory_space<vmem>>, vector<24x128xf32>
    %58 = arith.addf %57, %56 : vector<24x128xf32>
    %c0_61 = arith.constant 0 : index
    %c0_62 = arith.constant 0 : index
    %59 = vector.load %arg12[%c0_61, %c0_62] : memref<24x128xf32, #tpu.memory_space<vmem>>, vector<24x128xf32>
    tpu.vector_store %arg12[%c0_61, %c0_62], %58 {strides = array<i32>} : memref<24x128xf32, #tpu.memory_space<vmem>>, vector<24x128xf32>,
    %c12 = arith.constant 12 : index
    %c0_63 = arith.constant 0 : index
    %60 = vector.load %arg11[%c12, %c0_63] : memref<38x64xbf16, #tpu.memory_space<vmem>>, vector<24x64xbf16>
    %c6_64 = arith.constant 6 : index
    %c0_65 = arith.constant 0 : index
    %c0_66 = arith.constant 0 : index
    %61 = vector.load %arg3[%c6_64, %c0_65, %c0_66] : memref<9x64x128xbf16, #tpu.memory_space<vmem>>, vector<1x64x128xbf16>
    %62 = vector.shape_cast %61 : vector<1x64x128xbf16> to vector<64x128xbf16>
    %cst_67 = arith.constant dense<0.000000e+00> : vector<24x128xf32>
    %63 = tpu.matmul %60, %62, %cst_67 {dimension_numbers = #tpu.dot_dimension_numbers<[1], [0], [0], [1], [0, 0, 1, 1], [], []>} : vector<24x64xbf16>, vector<64x128xbf16>, vector<24x128xf32> -> vector<24x128xf32>
    %c0_68 = arith.constant 0 : index
    %c0_69 = arith.constant 0 : index
    %64 = vector.load %arg12[%c0_68, %c0_69] : memref<24x128xf32, #tpu.memory_space<vmem>>, vector<24x128xf32>
    %65 = arith.addf %64, %63 : vector<24x128xf32>
    %c0_70 = arith.constant 0 : index
    %c0_71 = arith.constant 0 : index
    %66 = vector.load %arg12[%c0_70, %c0_71] : memref<24x128xf32, #tpu.memory_space<vmem>>, vector<24x128xf32>
    tpu.vector_store %arg12[%c0_70, %c0_71], %65 {strides = array<i32>} : memref<24x128xf32, #tpu.memory_space<vmem>>, vector<24x128xf32>,
    %c13 = arith.constant 13 : index
    %c0_72 = arith.constant 0 : index
    %67 = vector.load %arg11[%c13, %c0_72] : memref<38x64xbf16, #tpu.memory_space<vmem>>, vector<24x64xbf16>
    %c7_73 = arith.constant 7 : index
    %c0_74 = arith.constant 0 : index
    %c0_75 = arith.constant 0 : index
    %68 = vector.load %arg3[%c7_73, %c0_74, %c0_75] : memref<9x64x128xbf16, #tpu.memory_space<vmem>>, vector<1x64x128xbf16>
    %69 = vector.shape_cast %68 : vector<1x64x128xbf16> to vector<64x128xbf16>
    %cst_76 = arith.constant dense<0.000000e+00> : vector<24x128xf32>
    %70 = tpu.matmul %67, %69, %cst_76 {dimension_numbers = #tpu.dot_dimension_numbers<[1], [0], [0], [1], [0, 0, 1, 1], [], []>} : vector<24x64xbf16>, vector<64x128xbf16>, vector<24x128xf32> -> vector<24x128xf32>
    %c0_77 = arith.constant 0 : index
    %c0_78 = arith.constant 0 : index
    %71 = vector.load %arg12[%c0_77, %c0_78] : memref<24x128xf32, #tpu.memory_space<vmem>>, vector<24x128xf32>
    %72 = arith.addf %71, %70 : vector<24x128xf32>
    %c0_79 = arith.constant 0 : index
    %c0_80 = arith.constant 0 : index
    %73 = vector.load %arg12[%c0_79, %c0_80] : memref<24x128xf32, #tpu.memory_space<vmem>>, vector<24x128xf32>
    tpu.vector_store %arg12[%c0_79, %c0_80], %72 {strides = array<i32>} : memref<24x128xf32, #tpu.memory_space<vmem>>, vector<24x128xf32>,
    %c14 = arith.constant 14 : index
    %c0_81 = arith.constant 0 : index
    %74 = vector.load %arg11[%c14, %c0_81] : memref<38x64xbf16, #tpu.memory_space<vmem>>, vector<24x64xbf16>
    %c8_82 = arith.constant 8 : index
    %c0_83 = arith.constant 0 : index
    %c0_84 = arith.constant 0 : index
    %75 = vector.load %arg3[%c8_82, %c0_83, %c0_84] : memref<9x64x128xbf16, #tpu.memory_space<vmem>>, vector<1x64x128xbf16>
    %76 = vector.shape_cast %75 : vector<1x64x128xbf16> to vector<64x128xbf16>
    %cst_85 = arith.constant dense<0.000000e+00> : vector<24x128xf32>
    %77 = tpu.matmul %74, %76, %cst_85 {dimension_numbers = #tpu.dot_dimension_numbers<[1], [0], [0], [1], [0, 0, 1, 1], [], []>} : vector<24x64xbf16>, vector<64x128xbf16>, vector<24x128xf32> -> vector<24x128xf32>
    %c0_86 = arith.constant 0 : index
    %c0_87 = arith.constant 0 : index
    %78 = vector.load %arg12[%c0_86, %c0_87] : memref<24x128xf32, #tpu.memory_space<vmem>>, vector<24x128xf32>
    %79 = arith.addf %78, %77 : vector<24x128xf32>
    %c0_88 = arith.constant 0 : index
    %c0_89 = arith.constant 0 : index
    %80 = vector.load %arg12[%c0_88, %c0_89] : memref<24x128xf32, #tpu.memory_space<vmem>>, vector<24x128xf32>
    tpu.vector_store %arg12[%c0_88, %c0_89], %79 {strides = array<i32>} : memref<24x128xf32, #tpu.memory_space<vmem>>, vector<24x128xf32>,
    %c0_90 = arith.constant 0 : index
    %c0_91 = arith.constant 0 : index
    %81 = vector.load %arg12[%c0_90, %c0_91] : memref<24x128xf32, #tpu.memory_space<vmem>>, vector<24x128xf32>
    %c0_92 = arith.constant 0 : index
    %c0_93 = arith.constant 0 : index
    %82 = vector.load %arg4[%c0_92, %c0_93] : memref<1x128xf32, #tpu.memory_space<vmem>>, vector<1x128xf32>
    %83 = vector.broadcast %82 : vector<1x128xf32> to vector<24x128xf32>
    %84 = arith.addf %81, %83 : vector<24x128xf32>
    %85 = arith.truncf %84 : vector<24x128xf32> to vector<24x128xbf16>
    %c0_94 = arith.constant 0 : index
    %c0_95 = arith.constant 0 : index
    %c0_96 = arith.constant 0 : index
    %86 = vector.load %arg8[%c0_94, %c0_95, %c0_96] : memref<1x24x128xbf16, #tpu.memory_space<vmem>>, vector<1x24x128xbf16>
    %87 = vector.shape_cast %86 : vector<1x24x128xbf16> to vector<24x128xbf16>
    %88 = vector.shape_cast %85 : vector<24x128xbf16> to vector<1x24x128xbf16>
    tpu.vector_store %arg8[%c0_94, %c0_95, %c0_96], %88 {strides = array<i32>} : memref<1x24x128xbf16, #tpu.memory_space<vmem>>, vector<1x24x128xbf16>,
    %c0_97 = arith.constant 0 : index
    %c0_98 = arith.constant 0 : index
    %89 = vector.load %arg7[%c0_97, %c0_98] : memref<24x1xf32, #tpu.memory_space<vmem>>, vector<24x1xf32>
    %90 = vector.broadcast %89 : vector<24x1xf32> to vector<24x128xf32>
    %91 = arith.mulf %84, %90 : vector<24x128xf32>
    %cst_99 = arith.constant dense<0.000000e+00> : vector<128xf32>
    %92 = vector.multi_reduction <add>, %91, %cst_99 [0] : vector<24x128xf32> to vector<128xf32>
    %93 = vector.shape_cast %92 : vector<128xf32> to vector<1x128xf32>
    %c0_100 = arith.constant 0 : index
    %c0_101 = arith.constant 0 : index
    %c0_102 = arith.constant 0 : index
    %94 = vector.load %arg9[%c0_100, %c0_101, %c0_102] : memref<1x1x128xf32, #tpu.memory_space<vmem>>, vector<1x1x128xf32>
    %95 = vector.shape_cast %94 : vector<1x1x128xf32> to vector<1x128xf32>
    %96 = vector.shape_cast %93 : vector<1x128xf32> to vector<1x1x128xf32>
    tpu.vector_store %arg9[%c0_100, %c0_101, %c0_102], %96 {strides = array<i32>} : memref<1x1x128xf32, #tpu.memory_space<vmem>>, vector<1x1x128xf32>,
    %97 = arith.mulf %91, %91 : vector<24x128xf32>
    %cst_103 = arith.constant dense<0.000000e+00> : vector<128xf32>
    %98 = vector.multi_reduction <add>, %97, %cst_103 [0] : vector<24x128xf32> to vector<128xf32>
    %99 = vector.shape_cast %98 : vector<128xf32> to vector<1x128xf32>
    %c0_104 = arith.constant 0 : index
    %c0_105 = arith.constant 0 : index
    %c0_106 = arith.constant 0 : index
    %100 = vector.load %arg10[%c0_104, %c0_105, %c0_106] : memref<1x1x128xf32, #tpu.memory_space<vmem>>, vector<1x1x128xf32>
    %101 = vector.shape_cast %100 : vector<1x1x128xf32> to vector<1x128xf32>
    %102 = vector.shape_cast %99 : vector<1x128xf32> to vector<1x1x128xf32>
    tpu.vector_store %arg10[%c0_104, %c0_105, %c0_106], %102 {strides = array<i32>} : memref<1x1x128xf32, #tpu.memory_space<vmem>>, vector<1x1x128xf32>,
    return
  }
  func.func @transform_0(%arg0: i32) -> (i32, i32, i32, i32) {
    %c0_i32 = arith.constant 0 : i32
    %c0_i32_0 = arith.constant 0 : i32
    %c0_i32_1 = arith.constant 0 : i32
    %c0_i32_2 = arith.constant 0 : i32
    return %arg0, %c0_i32, %c0_i32_0, %c0_i32_1 : i32, i32, i32, i32
  }
  func.func @transform_1(%arg0: i32) -> (i32, i32, i32) {
    %c0_i32 = arith.constant 0 : i32
    %c0_i32_0 = arith.constant 0 : i32
    %c0_i32_1 = arith.constant 0 : i32
    %c0_i32_2 = arith.constant 0 : i32
    return %c0_i32, %c0_i32_0, %c0_i32_1 : i32, i32, i32
  }
  func.func @transform_2(%arg0: i32) -> (i32, i32, i32) {
    %c0_i32 = arith.constant 0 : i32
    %c0_i32_0 = arith.constant 0 : i32
    %c0_i32_1 = arith.constant 0 : i32
    %c0_i32_2 = arith.constant 0 : i32
    return %c0_i32, %c0_i32_0, %c0_i32_1 : i32, i32, i32
  }
  func.func @transform_3(%arg0: i32) -> (i32, i32) {
    %c0_i32 = arith.constant 0 : i32
    %c0_i32_0 = arith.constant 0 : i32
    %c0_i32_1 = arith.constant 0 : i32
    return %c0_i32, %c0_i32_0 : i32, i32
  }
  func.func @transform_4(%arg0: i32) -> (i32, i32) {
    %c0_i32 = arith.constant 0 : i32
    %c0_i32_0 = arith.constant 0 : i32
    %c0_i32_1 = arith.constant 0 : i32
    return %c0_i32, %c0_i32_0 : i32, i32
  }
  func.func @transform_5(%arg0: i32) -> (i32, i32) {
    %c0_i32 = arith.constant 0 : i32
    %c0_i32_0 = arith.constant 0 : i32
    %c0_i32_1 = arith.constant 0 : i32
    return %c0_i32, %c0_i32_0 : i32, i32
  }
  func.func @transform_6(%arg0: i32) -> (i32, i32) {
    %c0_i32 = arith.constant 0 : i32
    %c0_i32_0 = arith.constant 0 : i32
    %c0_i32_1 = arith.constant 0 : i32
    return %c0_i32, %c0_i32_0 : i32, i32
  }
  func.func @transform_7(%arg0: i32) -> (i32, i32, i32) {
    %c0_i32 = arith.constant 0 : i32
    %c0_i32_0 = arith.constant 0 : i32
    %c0_i32_1 = arith.constant 0 : i32
    return %arg0, %c0_i32, %c0_i32_0 : i32, i32, i32
  }
  func.func @transform_8(%arg0: i32) -> (i32, i32, i32) {
    %c0_i32 = arith.constant 0 : i32
    %c0_i32_0 = arith.constant 0 : i32
    %c0_i32_1 = arith.constant 0 : i32
    return %arg0, %c0_i32, %c0_i32_0 : i32, i32, i32
  }
  func.func @transform_9(%arg0: i32) -> (i32, i32, i32) {
    %c0_i32 = arith.constant 0 : i32
    %c0_i32_0 = arith.constant 0 : i32
    %c0_i32_1 = arith.constant 0 : i32
    return %arg0, %c0_i32, %c0_i32_0 : i32, i32, i32
  }
}

module attributes {stable_mosaic.version = 11 : i64} {
  func.func @kernel(%arg0: i32, %arg1: memref<1x1x102x32xbf16, #tpu.memory_space<vmem>>, %arg2: memref<1x102x1xf32, #tpu.memory_space<vmem>>, %arg3: memref<9x32x16xbf16, #tpu.memory_space<vmem>>, %arg4: memref<1x16xf32, #tpu.memory_space<vmem>>, %arg5: memref<1x32xf32, #tpu.memory_space<vmem>>, %arg6: memref<1x32xf32, #tpu.memory_space<vmem>>, %arg7: memref<1x16xf32, #tpu.memory_space<vmem>>, %arg8: memref<1x16xf32, #tpu.memory_space<vmem>>, %arg9: memref<1x80x16xf32, #tpu.memory_space<vmem>>, %arg10: memref<102x32xbf16, #tpu.memory_space<vmem>>, %arg11: memref<80x16xf32, #tpu.memory_space<vmem>>) attributes {dimension_semantics = [#tpu.dimension_semantics<parallel>], iteration_bounds = array<i64: 2>, scalar_prefetch = 0 : i64, scratch_operands = 2 : i64, tpu.core_type = #tpu.core_type<tc>, window_params = [{transform_indices = @transform_0, window_bounds = array<i64: 1, 1, 102, 32>}, {pipeline_mode = #tpu.pipeline_mode<synchronous>, transform_indices = @transform_1, window_bounds = array<i64: 1, 102, 1>}, {pipeline_mode = #tpu.pipeline_mode<synchronous>, transform_indices = @transform_2, window_bounds = array<i64: 9, 32, 16>}, {pipeline_mode = #tpu.pipeline_mode<synchronous>, transform_indices = @transform_3, window_bounds = array<i64: 1, 16>}, {pipeline_mode = #tpu.pipeline_mode<synchronous>, transform_indices = @transform_4, window_bounds = array<i64: 1, 32>}, {pipeline_mode = #tpu.pipeline_mode<synchronous>, transform_indices = @transform_5, window_bounds = array<i64: 1, 32>}, {pipeline_mode = #tpu.pipeline_mode<synchronous>, transform_indices = @transform_6, window_bounds = array<i64: 1, 16>}, {pipeline_mode = #tpu.pipeline_mode<synchronous>, transform_indices = @transform_7, window_bounds = array<i64: 1, 16>}, {transform_indices = @transform_8, window_bounds = array<i64: 1, 80, 16>}]} {
    %c0 = arith.constant 0 : index
    %c0_0 = arith.constant 0 : index
    %0 = vector.load %arg5[%c0, %c0_0] : memref<1x32xf32, #tpu.memory_space<vmem>>, vector<1x32xf32>
    %c0_1 = arith.constant 0 : index
    %c0_2 = arith.constant 0 : index
    %1 = vector.load %arg6[%c0_1, %c0_2] : memref<1x32xf32, #tpu.memory_space<vmem>>, vector<1x32xf32>
    %c0_3 = arith.constant 0 : index
    %c0_4 = arith.constant 0 : index
    %c0_5 = arith.constant 0 : index
    %c0_6 = arith.constant 0 : index
    %2 = vector.load %arg1[%c0_3, %c0_4, %c0_5, %c0_6] : memref<1x1x102x32xbf16, #tpu.memory_space<vmem>>, vector<1x1x102x32xbf16>
    %3 = vector.shape_cast %2 : vector<1x1x102x32xbf16> to vector<102x32xbf16>
    %4 = arith.extf %3 : vector<102x32xbf16> to vector<102x32xf32>
    %5 = vector.broadcast %0 : vector<1x32xf32> to vector<102x32xf32>
    %6 = arith.mulf %4, %5 : vector<102x32xf32>
    %7 = vector.broadcast %1 : vector<1x32xf32> to vector<102x32xf32>
    %8 = arith.addf %6, %7 : vector<102x32xf32>
    %cst = arith.constant 0.000000e+00 : f32
    %9 = vector.broadcast %cst : f32 to vector<102x32xf32>
    %10 = arith.cmpf ogt, %8, %9 : vector<102x32xf32>
    %cst_7 = arith.constant 0.00999999977 : f32
    %11 = vector.broadcast %cst_7 : f32 to vector<102x32xf32>
    %12 = arith.mulf %11, %8 : vector<102x32xf32>
    %13 = arith.select %10, %8, %12 : vector<102x32xi1>, vector<102x32xf32>
    %c0_8 = arith.constant 0 : index
    %c0_9 = arith.constant 0 : index
    %c0_10 = arith.constant 0 : index
    %14 = vector.load %arg2[%c0_8, %c0_9, %c0_10] : memref<1x102x1xf32, #tpu.memory_space<vmem>>, vector<1x102x1xf32>
    %15 = vector.shape_cast %14 : vector<1x102x1xf32> to vector<102x1xf32>
    %16 = vector.broadcast %15 : vector<102x1xf32> to vector<102x32xf32>
    %17 = arith.mulf %13, %16 : vector<102x32xf32>
    %18 = arith.truncf %17 : vector<102x32xf32> to vector<102x32xbf16>
    %c0_11 = arith.constant 0 : index
    %c0_12 = arith.constant 0 : index
    %19 = vector.load %arg10[%c0_11, %c0_12] : memref<102x32xbf16, #tpu.memory_space<vmem>>, vector<102x32xbf16>
    tpu.vector_store %arg10[%c0_11, %c0_12], %18 {strides = array<i32>} : memref<102x32xbf16, #tpu.memory_space<vmem>>, vector<102x32xbf16>,
    %c0_13 = arith.constant 0 : index
    %c0_14 = arith.constant 0 : index
    %20 = vector.load %arg10[%c0_13, %c0_14] : memref<102x32xbf16, #tpu.memory_space<vmem>>, vector<80x32xbf16>
    %c0_15 = arith.constant 0 : index
    %c0_16 = arith.constant 0 : index
    %c0_17 = arith.constant 0 : index
    %21 = vector.load %arg3[%c0_15, %c0_16, %c0_17] : memref<9x32x16xbf16, #tpu.memory_space<vmem>>, vector<1x32x16xbf16>
    %22 = vector.shape_cast %21 : vector<1x32x16xbf16> to vector<32x16xbf16>
    %cst_18 = arith.constant dense<0.000000e+00> : vector<80x16xf32>
    %23 = tpu.matmul %20, %22, %cst_18 {dimension_numbers = #tpu.dot_dimension_numbers<[1], [0], [0], [1], [0, 0, 1, 1], [], []>} : vector<80x32xbf16>, vector<32x16xbf16>, vector<80x16xf32> -> vector<80x16xf32>
    %c0_19 = arith.constant 0 : index
    %c0_20 = arith.constant 0 : index
    %24 = vector.load %arg11[%c0_19, %c0_20] : memref<80x16xf32, #tpu.memory_space<vmem>>, vector<80x16xf32>
    tpu.vector_store %arg11[%c0_19, %c0_20], %23 {strides = array<i32>} : memref<80x16xf32, #tpu.memory_space<vmem>>, vector<80x16xf32>,
    %c1 = arith.constant 1 : index
    %c0_21 = arith.constant 0 : index
    %25 = vector.load %arg10[%c1, %c0_21] : memref<102x32xbf16, #tpu.memory_space<vmem>>, vector<80x32xbf16>
    %c1_22 = arith.constant 1 : index
    %c0_23 = arith.constant 0 : index
    %c0_24 = arith.constant 0 : index
    %26 = vector.load %arg3[%c1_22, %c0_23, %c0_24] : memref<9x32x16xbf16, #tpu.memory_space<vmem>>, vector<1x32x16xbf16>
    %27 = vector.shape_cast %26 : vector<1x32x16xbf16> to vector<32x16xbf16>
    %cst_25 = arith.constant dense<0.000000e+00> : vector<80x16xf32>
    %28 = tpu.matmul %25, %27, %cst_25 {dimension_numbers = #tpu.dot_dimension_numbers<[1], [0], [0], [1], [0, 0, 1, 1], [], []>} : vector<80x32xbf16>, vector<32x16xbf16>, vector<80x16xf32> -> vector<80x16xf32>
    %c0_26 = arith.constant 0 : index
    %c0_27 = arith.constant 0 : index
    %29 = vector.load %arg11[%c0_26, %c0_27] : memref<80x16xf32, #tpu.memory_space<vmem>>, vector<80x16xf32>
    %30 = arith.addf %29, %28 : vector<80x16xf32>
    %c0_28 = arith.constant 0 : index
    %c0_29 = arith.constant 0 : index
    %31 = vector.load %arg11[%c0_28, %c0_29] : memref<80x16xf32, #tpu.memory_space<vmem>>, vector<80x16xf32>
    tpu.vector_store %arg11[%c0_28, %c0_29], %30 {strides = array<i32>} : memref<80x16xf32, #tpu.memory_space<vmem>>, vector<80x16xf32>,
    %c2 = arith.constant 2 : index
    %c0_30 = arith.constant 0 : index
    %32 = vector.load %arg10[%c2, %c0_30] : memref<102x32xbf16, #tpu.memory_space<vmem>>, vector<80x32xbf16>
    %c2_31 = arith.constant 2 : index
    %c0_32 = arith.constant 0 : index
    %c0_33 = arith.constant 0 : index
    %33 = vector.load %arg3[%c2_31, %c0_32, %c0_33] : memref<9x32x16xbf16, #tpu.memory_space<vmem>>, vector<1x32x16xbf16>
    %34 = vector.shape_cast %33 : vector<1x32x16xbf16> to vector<32x16xbf16>
    %cst_34 = arith.constant dense<0.000000e+00> : vector<80x16xf32>
    %35 = tpu.matmul %32, %34, %cst_34 {dimension_numbers = #tpu.dot_dimension_numbers<[1], [0], [0], [1], [0, 0, 1, 1], [], []>} : vector<80x32xbf16>, vector<32x16xbf16>, vector<80x16xf32> -> vector<80x16xf32>
    %c0_35 = arith.constant 0 : index
    %c0_36 = arith.constant 0 : index
    %36 = vector.load %arg11[%c0_35, %c0_36] : memref<80x16xf32, #tpu.memory_space<vmem>>, vector<80x16xf32>
    %37 = arith.addf %36, %35 : vector<80x16xf32>
    %c0_37 = arith.constant 0 : index
    %c0_38 = arith.constant 0 : index
    %38 = vector.load %arg11[%c0_37, %c0_38] : memref<80x16xf32, #tpu.memory_space<vmem>>, vector<80x16xf32>
    tpu.vector_store %arg11[%c0_37, %c0_38], %37 {strides = array<i32>} : memref<80x16xf32, #tpu.memory_space<vmem>>, vector<80x16xf32>,
    %c10 = arith.constant 10 : index
    %c0_39 = arith.constant 0 : index
    %39 = vector.load %arg10[%c10, %c0_39] : memref<102x32xbf16, #tpu.memory_space<vmem>>, vector<80x32xbf16>
    %c3 = arith.constant 3 : index
    %c0_40 = arith.constant 0 : index
    %c0_41 = arith.constant 0 : index
    %40 = vector.load %arg3[%c3, %c0_40, %c0_41] : memref<9x32x16xbf16, #tpu.memory_space<vmem>>, vector<1x32x16xbf16>
    %41 = vector.shape_cast %40 : vector<1x32x16xbf16> to vector<32x16xbf16>
    %cst_42 = arith.constant dense<0.000000e+00> : vector<80x16xf32>
    %42 = tpu.matmul %39, %41, %cst_42 {dimension_numbers = #tpu.dot_dimension_numbers<[1], [0], [0], [1], [0, 0, 1, 1], [], []>} : vector<80x32xbf16>, vector<32x16xbf16>, vector<80x16xf32> -> vector<80x16xf32>
    %c0_43 = arith.constant 0 : index
    %c0_44 = arith.constant 0 : index
    %43 = vector.load %arg11[%c0_43, %c0_44] : memref<80x16xf32, #tpu.memory_space<vmem>>, vector<80x16xf32>
    %44 = arith.addf %43, %42 : vector<80x16xf32>
    %c0_45 = arith.constant 0 : index
    %c0_46 = arith.constant 0 : index
    %45 = vector.load %arg11[%c0_45, %c0_46] : memref<80x16xf32, #tpu.memory_space<vmem>>, vector<80x16xf32>
    tpu.vector_store %arg11[%c0_45, %c0_46], %44 {strides = array<i32>} : memref<80x16xf32, #tpu.memory_space<vmem>>, vector<80x16xf32>,
    %c11 = arith.constant 11 : index
    %c0_47 = arith.constant 0 : index
    %46 = vector.load %arg10[%c11, %c0_47] : memref<102x32xbf16, #tpu.memory_space<vmem>>, vector<80x32xbf16>
    %c4 = arith.constant 4 : index
    %c0_48 = arith.constant 0 : index
    %c0_49 = arith.constant 0 : index
    %47 = vector.load %arg3[%c4, %c0_48, %c0_49] : memref<9x32x16xbf16, #tpu.memory_space<vmem>>, vector<1x32x16xbf16>
    %48 = vector.shape_cast %47 : vector<1x32x16xbf16> to vector<32x16xbf16>
    %cst_50 = arith.constant dense<0.000000e+00> : vector<80x16xf32>
    %49 = tpu.matmul %46, %48, %cst_50 {dimension_numbers = #tpu.dot_dimension_numbers<[1], [0], [0], [1], [0, 0, 1, 1], [], []>} : vector<80x32xbf16>, vector<32x16xbf16>, vector<80x16xf32> -> vector<80x16xf32>
    %c0_51 = arith.constant 0 : index
    %c0_52 = arith.constant 0 : index
    %50 = vector.load %arg11[%c0_51, %c0_52] : memref<80x16xf32, #tpu.memory_space<vmem>>, vector<80x16xf32>
    %51 = arith.addf %50, %49 : vector<80x16xf32>
    %c0_53 = arith.constant 0 : index
    %c0_54 = arith.constant 0 : index
    %52 = vector.load %arg11[%c0_53, %c0_54] : memref<80x16xf32, #tpu.memory_space<vmem>>, vector<80x16xf32>
    tpu.vector_store %arg11[%c0_53, %c0_54], %51 {strides = array<i32>} : memref<80x16xf32, #tpu.memory_space<vmem>>, vector<80x16xf32>,
    %c12 = arith.constant 12 : index
    %c0_55 = arith.constant 0 : index
    %53 = vector.load %arg10[%c12, %c0_55] : memref<102x32xbf16, #tpu.memory_space<vmem>>, vector<80x32xbf16>
    %c5 = arith.constant 5 : index
    %c0_56 = arith.constant 0 : index
    %c0_57 = arith.constant 0 : index
    %54 = vector.load %arg3[%c5, %c0_56, %c0_57] : memref<9x32x16xbf16, #tpu.memory_space<vmem>>, vector<1x32x16xbf16>
    %55 = vector.shape_cast %54 : vector<1x32x16xbf16> to vector<32x16xbf16>
    %cst_58 = arith.constant dense<0.000000e+00> : vector<80x16xf32>
    %56 = tpu.matmul %53, %55, %cst_58 {dimension_numbers = #tpu.dot_dimension_numbers<[1], [0], [0], [1], [0, 0, 1, 1], [], []>} : vector<80x32xbf16>, vector<32x16xbf16>, vector<80x16xf32> -> vector<80x16xf32>
    %c0_59 = arith.constant 0 : index
    %c0_60 = arith.constant 0 : index
    %57 = vector.load %arg11[%c0_59, %c0_60] : memref<80x16xf32, #tpu.memory_space<vmem>>, vector<80x16xf32>
    %58 = arith.addf %57, %56 : vector<80x16xf32>
    %c0_61 = arith.constant 0 : index
    %c0_62 = arith.constant 0 : index
    %59 = vector.load %arg11[%c0_61, %c0_62] : memref<80x16xf32, #tpu.memory_space<vmem>>, vector<80x16xf32>
    tpu.vector_store %arg11[%c0_61, %c0_62], %58 {strides = array<i32>} : memref<80x16xf32, #tpu.memory_space<vmem>>, vector<80x16xf32>,
    %c20 = arith.constant 20 : index
    %c0_63 = arith.constant 0 : index
    %60 = vector.load %arg10[%c20, %c0_63] : memref<102x32xbf16, #tpu.memory_space<vmem>>, vector<80x32xbf16>
    %c6 = arith.constant 6 : index
    %c0_64 = arith.constant 0 : index
    %c0_65 = arith.constant 0 : index
    %61 = vector.load %arg3[%c6, %c0_64, %c0_65] : memref<9x32x16xbf16, #tpu.memory_space<vmem>>, vector<1x32x16xbf16>
    %62 = vector.shape_cast %61 : vector<1x32x16xbf16> to vector<32x16xbf16>
    %cst_66 = arith.constant dense<0.000000e+00> : vector<80x16xf32>
    %63 = tpu.matmul %60, %62, %cst_66 {dimension_numbers = #tpu.dot_dimension_numbers<[1], [0], [0], [1], [0, 0, 1, 1], [], []>} : vector<80x32xbf16>, vector<32x16xbf16>, vector<80x16xf32> -> vector<80x16xf32>
    %c0_67 = arith.constant 0 : index
    %c0_68 = arith.constant 0 : index
    %64 = vector.load %arg11[%c0_67, %c0_68] : memref<80x16xf32, #tpu.memory_space<vmem>>, vector<80x16xf32>
    %65 = arith.addf %64, %63 : vector<80x16xf32>
    %c0_69 = arith.constant 0 : index
    %c0_70 = arith.constant 0 : index
    %66 = vector.load %arg11[%c0_69, %c0_70] : memref<80x16xf32, #tpu.memory_space<vmem>>, vector<80x16xf32>
    tpu.vector_store %arg11[%c0_69, %c0_70], %65 {strides = array<i32>} : memref<80x16xf32, #tpu.memory_space<vmem>>, vector<80x16xf32>,
    %c21 = arith.constant 21 : index
    %c0_71 = arith.constant 0 : index
    %67 = vector.load %arg10[%c21, %c0_71] : memref<102x32xbf16, #tpu.memory_space<vmem>>, vector<80x32xbf16>
    %c7 = arith.constant 7 : index
    %c0_72 = arith.constant 0 : index
    %c0_73 = arith.constant 0 : index
    %68 = vector.load %arg3[%c7, %c0_72, %c0_73] : memref<9x32x16xbf16, #tpu.memory_space<vmem>>, vector<1x32x16xbf16>
    %69 = vector.shape_cast %68 : vector<1x32x16xbf16> to vector<32x16xbf16>
    %cst_74 = arith.constant dense<0.000000e+00> : vector<80x16xf32>
    %70 = tpu.matmul %67, %69, %cst_74 {dimension_numbers = #tpu.dot_dimension_numbers<[1], [0], [0], [1], [0, 0, 1, 1], [], []>} : vector<80x32xbf16>, vector<32x16xbf16>, vector<80x16xf32> -> vector<80x16xf32>
    %c0_75 = arith.constant 0 : index
    %c0_76 = arith.constant 0 : index
    %71 = vector.load %arg11[%c0_75, %c0_76] : memref<80x16xf32, #tpu.memory_space<vmem>>, vector<80x16xf32>
    %72 = arith.addf %71, %70 : vector<80x16xf32>
    %c0_77 = arith.constant 0 : index
    %c0_78 = arith.constant 0 : index
    %73 = vector.load %arg11[%c0_77, %c0_78] : memref<80x16xf32, #tpu.memory_space<vmem>>, vector<80x16xf32>
    tpu.vector_store %arg11[%c0_77, %c0_78], %72 {strides = array<i32>} : memref<80x16xf32, #tpu.memory_space<vmem>>, vector<80x16xf32>,
    %c22 = arith.constant 22 : index
    %c0_79 = arith.constant 0 : index
    %74 = vector.load %arg10[%c22, %c0_79] : memref<102x32xbf16, #tpu.memory_space<vmem>>, vector<80x32xbf16>
    %c8 = arith.constant 8 : index
    %c0_80 = arith.constant 0 : index
    %c0_81 = arith.constant 0 : index
    %75 = vector.load %arg3[%c8, %c0_80, %c0_81] : memref<9x32x16xbf16, #tpu.memory_space<vmem>>, vector<1x32x16xbf16>
    %76 = vector.shape_cast %75 : vector<1x32x16xbf16> to vector<32x16xbf16>
    %cst_82 = arith.constant dense<0.000000e+00> : vector<80x16xf32>
    %77 = tpu.matmul %74, %76, %cst_82 {dimension_numbers = #tpu.dot_dimension_numbers<[1], [0], [0], [1], [0, 0, 1, 1], [], []>} : vector<80x32xbf16>, vector<32x16xbf16>, vector<80x16xf32> -> vector<80x16xf32>
    %c0_83 = arith.constant 0 : index
    %c0_84 = arith.constant 0 : index
    %78 = vector.load %arg11[%c0_83, %c0_84] : memref<80x16xf32, #tpu.memory_space<vmem>>, vector<80x16xf32>
    %79 = arith.addf %78, %77 : vector<80x16xf32>
    %c0_85 = arith.constant 0 : index
    %c0_86 = arith.constant 0 : index
    %80 = vector.load %arg11[%c0_85, %c0_86] : memref<80x16xf32, #tpu.memory_space<vmem>>, vector<80x16xf32>
    tpu.vector_store %arg11[%c0_85, %c0_86], %79 {strides = array<i32>} : memref<80x16xf32, #tpu.memory_space<vmem>>, vector<80x16xf32>,
    %c0_87 = arith.constant 0 : index
    %c0_88 = arith.constant 0 : index
    %81 = vector.load %arg11[%c0_87, %c0_88] : memref<80x16xf32, #tpu.memory_space<vmem>>, vector<80x16xf32>
    %c0_89 = arith.constant 0 : index
    %c0_90 = arith.constant 0 : index
    %82 = vector.load %arg4[%c0_89, %c0_90] : memref<1x16xf32, #tpu.memory_space<vmem>>, vector<1x16xf32>
    %83 = vector.broadcast %82 : vector<1x16xf32> to vector<80x16xf32>
    %84 = arith.addf %81, %83 : vector<80x16xf32>
    %c0_91 = arith.constant 0 : index
    %c0_92 = arith.constant 0 : index
    %85 = vector.load %arg7[%c0_91, %c0_92] : memref<1x16xf32, #tpu.memory_space<vmem>>, vector<1x16xf32>
    %c0_93 = arith.constant 0 : index
    %c0_94 = arith.constant 0 : index
    %86 = vector.load %arg8[%c0_93, %c0_94] : memref<1x16xf32, #tpu.memory_space<vmem>>, vector<1x16xf32>
    %cst_95 = arith.constant 5.000000e-01 : f32
    %87 = vector.broadcast %cst_95 : f32 to vector<1x16xf32>
    %88 = arith.mulf %87, %85 : vector<1x16xf32>
    %cst_96 = arith.constant 1.000000e+00 : f32
    %89 = vector.broadcast %cst_96 : f32 to vector<1x16xf32>
    %90 = arith.subf %89, %88 : vector<1x16xf32>
    %91 = vector.broadcast %90 : vector<1x16xf32> to vector<80x16xf32>
    %92 = arith.mulf %84, %91 : vector<80x16xf32>
    %93 = math.tanh %92 : vector<80x16xf32>
    %cst_97 = arith.constant 1.000000e+00 : f32
    %94 = vector.broadcast %cst_97 : f32 to vector<80x16xf32>
    %95 = arith.addf %93, %94 : vector<80x16xf32>
    %cst_98 = arith.constant 5.000000e-01 : f32
    %96 = vector.broadcast %cst_98 : f32 to vector<80x16xf32>
    %97 = arith.mulf %96, %95 : vector<80x16xf32>
    %98 = vector.broadcast %85 : vector<1x16xf32> to vector<80x16xf32>
    %99 = arith.mulf %98, %97 : vector<80x16xf32>
    %cst_99 = arith.constant 1.000000e+00 : f32
    %100 = vector.broadcast %cst_99 : f32 to vector<1x16xf32>
    %101 = arith.subf %100, %85 : vector<1x16xf32>
    %102 = vector.broadcast %86 : vector<1x16xf32> to vector<80x16xf32>
    %103 = arith.mulf %102, %93 : vector<80x16xf32>
    %104 = vector.broadcast %101 : vector<1x16xf32> to vector<80x16xf32>
    %105 = arith.mulf %104, %103 : vector<80x16xf32>
    %106 = arith.addf %99, %105 : vector<80x16xf32>
    %c0_100 = arith.constant 0 : index
    %c0_101 = arith.constant 0 : index
    %c0_102 = arith.constant 0 : index
    %107 = vector.load %arg9[%c0_100, %c0_101, %c0_102] : memref<1x80x16xf32, #tpu.memory_space<vmem>>, vector<1x80x16xf32>
    %108 = vector.shape_cast %107 : vector<1x80x16xf32> to vector<80x16xf32>
    %109 = vector.shape_cast %106 : vector<80x16xf32> to vector<1x80x16xf32>
    tpu.vector_store %arg9[%c0_100, %c0_101, %c0_102], %109 {strides = array<i32>} : memref<1x80x16xf32, #tpu.memory_space<vmem>>, vector<1x80x16xf32>,
    return
  }
  func.func @transform_0(%arg0: i32) -> (i32, i32, i32, i32) {
    %c0_i32 = arith.constant 0 : i32
    %c0_i32_0 = arith.constant 0 : i32
    %c0_i32_1 = arith.constant 0 : i32
    %c0_i32_2 = arith.constant 0 : i32
    return %arg0, %c0_i32, %c0_i32_0, %c0_i32_1 : i32, i32, i32, i32
  }
  func.func @transform_1(%arg0: i32) -> (i32, i32, i32) {
    %c0_i32 = arith.constant 0 : i32
    %c0_i32_0 = arith.constant 0 : i32
    %c0_i32_1 = arith.constant 0 : i32
    %c0_i32_2 = arith.constant 0 : i32
    return %c0_i32, %c0_i32_0, %c0_i32_1 : i32, i32, i32
  }
  func.func @transform_2(%arg0: i32) -> (i32, i32, i32) {
    %c0_i32 = arith.constant 0 : i32
    %c0_i32_0 = arith.constant 0 : i32
    %c0_i32_1 = arith.constant 0 : i32
    %c0_i32_2 = arith.constant 0 : i32
    return %c0_i32, %c0_i32_0, %c0_i32_1 : i32, i32, i32
  }
  func.func @transform_3(%arg0: i32) -> (i32, i32) {
    %c0_i32 = arith.constant 0 : i32
    %c0_i32_0 = arith.constant 0 : i32
    %c0_i32_1 = arith.constant 0 : i32
    return %c0_i32, %c0_i32_0 : i32, i32
  }
  func.func @transform_4(%arg0: i32) -> (i32, i32) {
    %c0_i32 = arith.constant 0 : i32
    %c0_i32_0 = arith.constant 0 : i32
    %c0_i32_1 = arith.constant 0 : i32
    return %c0_i32, %c0_i32_0 : i32, i32
  }
  func.func @transform_5(%arg0: i32) -> (i32, i32) {
    %c0_i32 = arith.constant 0 : i32
    %c0_i32_0 = arith.constant 0 : i32
    %c0_i32_1 = arith.constant 0 : i32
    return %c0_i32, %c0_i32_0 : i32, i32
  }
  func.func @transform_6(%arg0: i32) -> (i32, i32) {
    %c0_i32 = arith.constant 0 : i32
    %c0_i32_0 = arith.constant 0 : i32
    %c0_i32_1 = arith.constant 0 : i32
    return %c0_i32, %c0_i32_0 : i32, i32
  }
  func.func @transform_7(%arg0: i32) -> (i32, i32) {
    %c0_i32 = arith.constant 0 : i32
    %c0_i32_0 = arith.constant 0 : i32
    %c0_i32_1 = arith.constant 0 : i32
    return %c0_i32, %c0_i32_0 : i32, i32
  }
  func.func @transform_8(%arg0: i32) -> (i32, i32, i32) {
    %c0_i32 = arith.constant 0 : i32
    %c0_i32_0 = arith.constant 0 : i32
    %c0_i32_1 = arith.constant 0 : i32
    return %arg0, %c0_i32, %c0_i32_0 : i32, i32, i32
  }
}

</mosaic_0001>

<llo_original>
// kernel: center_speed_forward.5
$region0: #{center_speed_forward.5}
  #allocation0 [shape = 'u32[]', space=smem, size = 0x4, offset = 0x4, fixed_abs, tag = 'smem constant byte address 0x4 - core index']
  #allocation1 [shape = 'u32[72,128]{1,0:T(1,128)}', space=vmem, size = 0x9000, scoped, tag = 'internal scratch']
  #allocation2 [shape = 'bf16[27,32]{1,0:T(8,128)(2,1)}', space=vmem, size = 0x2000, scoped, tag = 'scratch operand']
  #allocation3 [shape = 'f32[20,64]{1,0:T(8,128)}', space=vmem, size = 0x3000, scoped, tag = 'scratch operand']
  %s0 = inlined_call_operand.vmem [shape: bf16[2,4,27,32], index: 0, kind: input, shape index: {}]
  %s1 = inlined_call_operand.vmem [shape: f32[4,27,1], index: 1, kind: input, shape index: {}]
  %s2 = inlined_call_operand.vmem [shape: bf16[9,32,64], index: 2, kind: input, shape index: {}]
  %s3 = inlined_call_operand.vmem [shape: f32[1,64], index: 3, kind: input, shape index: {}]
  %s4 = inlined_call_operand.vmem [shape: f32[1,32], index: 4, kind: input, shape index: {}]
  %s5 = inlined_call_operand.vmem [shape: f32[1,32], index: 5, kind: input, shape index: {}]
  %s6 = inlined_call_operand.vmem [shape: f32[20,1], index: 6, kind: input, shape index: {}]
  %s7 = inlined_call_operand.vmem [shape: bf16[2,20,64], index: 7, kind: output, shape index: {0}]
  %s8 = inlined_call_operand.vmem [shape: f32[2,1,64], index: 8, kind: output, shape index: {1}]
  %s9 = inlined_call_operand.vmem [shape: f32[2,1,64], index: 9, kind: output, shape index: {2}]
  %10 = xla_tuple %s7, %s8, %s9
  %s11 = sld [smem:[#allocation0]]
  $region77: #{center_speed_forward.5} parent=0
    _
  %s13 = ssub.s32 1, %s11
  %s14 = scalar_select 0, %s13, %s11
  loop: start=0, step=1, limit=4
  $region2: #{center_speed_forward.5} parent=0 // loop_pre_header
    _
  $region3: #{center_speed_forward.5} parent=0 // loop_header
    %s16 = sphi 0, %s20
    %p17 = scmp.ge.s32.totalorder %s16, 4
    %s26 = sphi 0, %s28
    %s29 = sphi 0, %s26
    %s30 = sphi 0, %s29
    %s46 = sphi 0, %s30
    %s50 = sphi 0, %s50
    %s52 = sphi 0, %s50
    %s53 = sphi 0, %s52
    %s67 = sphi 0, %s53
    %s71 = sphi 0, %s71
    %s73 = sphi 0, %s71
    %s74 = sphi 0, %s73
    %s88 = sphi 0, %s74
    %s92 = sphi 0, %s92
    %s94 = sphi 0, %s92
    %s95 = sphi 0, %s94
    %s109 = sphi 0, %s95
    %s113 = sphi 0, %s113
    %s115 = sphi 0, %s113
    %s116 = sphi 0, %s115
    %s130 = sphi 0, %s116
    %s134 = sphi 0, %s134
    %s136 = sphi 0, %s134
    %s137 = sphi 0, %s136
    %s151 = sphi 0, %s137
    %s155 = sphi 0, %s155
    %s157 = sphi 0, %s155
    %s158 = sphi 0, %s157
    %s172 = sphi 0, %s158
    %s178 = sphi 0, %s180
    %s181 = sphi 0, %s178
    %s182 = sphi 0, %s181
    %s198 = sphi 0, %s182
    %s204 = sphi 0, %s206
    %s207 = sphi 0, %s204
    %s208 = sphi 0, %s207
    %s224 = sphi 0, %s208
    %s230 = sphi 0, %s232
    %s233 = sphi 0, %s230
    %s234 = sphi 0, %s233
    %s250 = sphi 0, %s234
  $region4: #{center_speed_forward.5} parent=0 // loop_header_branch
    %19 = sbr.rel (%p17) target = $region8
  $region5: #{center_speed_forward.5} parent=0 // loop_body
    %s21 = ssub.s32 %s16, 1
    %s22 = ssub.s32 %s16, 2
    %s23 = sadd.s32 %s16, 1
    %s24 = ssub.s32 %s16, %s23
    %p25 = scmp.eq.s32.totalorder %s24, 0
    %s27 = sadd.s32 %s26, 1
    %s28 = scalar_select %p25, %s26, %s27
    %p31 = pneg %p25
    %p32 = scmp.eq.s32.totalorder %s16, 1
    %p33 = por %p31, %p32
    %p34 = scmp.ne.s32.totalorder %s26, %s29
    %p35 = scmp.eq.s32.totalorder %s16, 0
    %p36 = por %p34, %p35
    %p37 = scmp.ne.s32.totalorder %s26, %s29
    %p38 = scmp.eq.s32.totalorder %s21, 1
    %p39 = por %p37, %p38
    %p40 = scmp.ne.s32.totalorder %s29, %s30
    %p41 = scmp.eq.s32.totalorder %s21, 0
    %p42 = por %p40, %p41
    %p43 = scmp.ne.s32.totalorder %s29, %s30
    %p44 = scmp.eq.s32.totalorder %s22, 1
    %p45 = por %p43, %p44
    %p47 = scmp.ne.s32.totalorder %s30, %s46
    %p48 = scmp.eq.s32.totalorder %s22, 0
    %p49 = por %p47, %p48
    %s51 = sadd.s32 %s50, 1
    %p54 = scmp.eq.s32.totalorder %s16, 1
    %p55 = scmp.ne.s32.totalorder %s50, %s52
    %p56 = scmp.eq.s32.totalorder %s16, 0
    %p57 = por %p55, %p56
    %p58 = scmp.ne.s32.totalorder %s50, %s52
    %p59 = scmp.eq.s32.totalorder %s21, 1
    %p60 = por %p58, %p59
    %p61 = scmp.ne.s32.totalorder %s52, %s53
    %p62 = scmp.eq.s32.totalorder %s21, 0
    %p63 = por %p61, %p62
    %p64 = scmp.ne.s32.totalorder %s52, %s53
    %p65 = scmp.eq.s32.totalorder %s22, 1
    %p66 = por %p64, %p65
    %p68 = scmp.ne.s32.totalorder %s53, %s67
    %p69 = scmp.eq.s32.totalorder %s22, 0
    %p70 = por %p68, %p69
    %s72 = sadd.s32 %s71, 1
    %p75 = scmp.eq.s32.totalorder %s16, 1
    %p76 = scmp.ne.s32.totalorder %s71, %s73
    %p77 = scmp.eq.s32.totalorder %s16, 0
    %p78 = por %p76, %p77
    %p79 = scmp.ne.s32.totalorder %s71, %s73
    %p80 = scmp.eq.s32.totalorder %s21, 1
    %p81 = por %p79, %p80
    %p82 = scmp.ne.s32.totalorder %s73, %s74
    %p83 = scmp.eq.s32.totalorder %s21, 0
    %p84 = por %p82, %p83
    %p85 = scmp.ne.s32.totalorder %s73, %s74
    %p86 = scmp.eq.s32.totalorder %s22, 1
    %p87 = por %p85, %p86
    %p89 = scmp.ne.s32.totalorder %s74, %s88
    %p90 = scmp.eq.s32.totalorder %s22, 0
    %p91 = por %p89, %p90
    %s93 = sadd.s32 %s92, 1
    %p96 = scmp.eq.s32.totalorder %s16, 1
    %p97 = scmp.ne.s32.totalorder %s92, %s94
    %p98 = scmp.eq.s32.totalorder %s16, 0
    %p99 = por %p97, %p98
    %p100 = scmp.ne.s32.totalorder %s92, %s94
    %p101 = scmp.eq.s32.totalorder %s21, 1
    %p102 = por %p100, %p101
    %p103 = scmp.ne.s32.totalorder %s94, %s95
    %p104 = scmp.eq.s32.totalorder %s21, 0
    %p105 = por %p103, %p104
    %p106 = scmp.ne.s32.totalorder %s94, %s95
    %p107 = scmp.eq.s32.totalorder %s22, 1
    %p108 = por %p106, %p107
    %p110 = scmp.ne.s32.totalorder %s95, %s109
    %p111 = scmp.eq.s32.totalorder %s22, 0
    %p112 = por %p110, %p111
    %s114 = sadd.s32 %s113, 1
    %p117 = scmp.eq.s32.totalorder %s16, 1
    %p118 = scmp.ne.s32.totalorder %s113, %s115
    %p119 = scmp.eq.s32.totalorder %s16, 0
    %p120 = por %p118, %p119
    %p121 = scmp.ne.s32.totalorder %s113, %s115
    %p122 = scmp.eq.s32.totalorder %s21, 1
    %p123 = por %p121, %p122
    %p124 = scmp.ne.s32.totalorder %s115, %s116
    %p125 = scmp.eq.s32.totalorder %s21, 0
    %p126 = por %p124, %p125
    %p127 = scmp.ne.s32.totalorder %s115, %s116
    %p128 = scmp.eq.s32.totalorder %s22, 1
    %p129 = por %p127, %p128
    %p131 = scmp.ne.s32.totalorder %s116, %s130
    %p132 = scmp.eq.s32.totalorder %s22, 0
    %p133 = por %p131, %p132
    %s135 = sadd.s32 %s134, 1
    %p138 = scmp.eq.s32.totalorder %s16, 1
    %p139 = scmp.ne.s32.totalorder %s134, %s136
    %p140 = scmp.eq.s32.totalorder %s16, 0
    %p141 = por %p139, %p140
    %p142 = scmp.ne.s32.totalorder %s134, %s136
    %p143 = scmp.eq.s32.totalorder %s21, 1
    %p144 = por %p142, %p143
    %p145 = scmp.ne.s32.totalorder %s136, %s137
    %p146 = scmp.eq.s32.totalorder %s21, 0
    %p147 = por %p145, %p146
    %p148 = scmp.ne.s32.totalorder %s136, %s137
    %p149 = scmp.eq.s32.totalorder %s22, 1
    %p150 = por %p148, %p149
    %p152 = scmp.ne.s32.totalorder %s137, %s151
    %p153 = scmp.eq.s32.totalorder %s22, 0
    %p154 = por %p152, %p153
    %s156 = sadd.s32 %s155, 1
    %p159 = scmp.eq.s32.totalorder %s16, 1
    %p160 = scmp.ne.s32.totalorder %s155, %s157
    %p161 = scmp.eq.s32.totalorder %s16, 0
    %p162 = por %p160, %p161
    %p163 = scmp.ne.s32.totalorder %s155, %s157
    %p164 = scmp.eq.s32.totalorder %s21, 1
    %p165 = por %p163, %p164
    %p166 = scmp.ne.s32.totalorder %s157, %s158
    %p167 = scmp.eq.s32.totalorder %s21, 0
    %p168 = por %p166, %p167
    %p169 = scmp.ne.s32.totalorder %s157, %s158
    %p170 = scmp.eq.s32.totalorder %s22, 1
    %p171 = por %p169, %p170
    %p173 = scmp.ne.s32.totalorder %s158, %s172
    %p174 = scmp.eq.s32.totalorder %s22, 0
    %p175 = por %p173, %p174
    %s176 = ssub.s32 %s16, %s23
    %p177 = scmp.eq.s32.totalorder %s176, 0
    %s179 = sadd.s32 %s178, 1
    %s180 = scalar_select %p177, %s178, %s179
    %p183 = pneg %p177
    %p184 = scmp.eq.s32.totalorder %s16, 1
    %p185 = por %p183, %p184
    %p186 = scmp.ne.s32.totalorder %s178, %s181
    %p187 = scmp.eq.s32.totalorder %s16, 0
    %p188 = por %p186, %p187
    %p189 = scmp.ne.s32.totalorder %s178, %s181
    %p190 = scmp.eq.s32.totalorder %s21, 1
    %p191 = por %p189, %p190
    %p192 = scmp.ne.s32.totalorder %s181, %s182
    %p193 = scmp.eq.s32.totalorder %s21, 0
    %p194 = por %p192, %p193
    %p195 = scmp.ne.s32.totalorder %s181, %s182
    %p196 = scmp.eq.s32.totalorder %s22, 1
    %p197 = por %p195, %p196
    %p199 = scmp.ne.s32.totalorder %s182, %s198
    %p200 = scmp.eq.s32.totalorder %s22, 0
    %p201 = por %p199, %p200
    %s202 = ssub.s32 %s16, %s23
    %p203 = scmp.eq.s32.totalorder %s202, 0
    %s205 = sadd.s32 %s204, 1
    %s206 = scalar_select %p203, %s204, %s205
    %p209 = pneg %p203
    %p210 = scmp.eq.s32.totalorder %s16, 1
    %p211 = por %p209, %p210
    %p212 = scmp.ne.s32.totalorder %s204, %s207
    %p213 = scmp.eq.s32.totalorder %s16, 0
    %p214 = por %p212, %p213
    %p215 = scmp.ne.s32.totalorder %s204, %s207
    %p216 = scmp.eq.s32.totalorder %s21, 1
    %p217 = por %p215, %p216
    %p218 = scmp.ne.s32.totalorder %s207, %s208
    %p219 = scmp.eq.s32.totalorder %s21, 0
    %p220 = por %p218, %p219
    %p221 = scmp.ne.s32.totalorder %s207, %s208
    %p222 = scmp.eq.s32.totalorder %s22, 1
    %p223 = por %p221, %p222
    %p225 = scmp.ne.s32.totalorder %s208, %s224
    %p226 = scmp.eq.s32.totalorder %s22, 0
    %p227 = por %p225, %p226
    %s228 = ssub.s32 %s16, %s23
    %p229 = scmp.eq.s32.totalorder %s228, 0
    %s231 = sadd.s32 %s230, 1
    %s232 = scalar_select %p229, %s230, %s231
    %p235 = pneg %p229
    %p236 = scmp.eq.s32.totalorder %s16, 1
    %p237 = por %p235, %p236
    %p238 = scmp.ne.s32.totalorder %s230, %s233
    %p239 = scmp.eq.s32.totalorder %s16, 0
    %p240 = por %p238, %p239
    %p241 = scmp.ne.s32.totalorder %s230, %s233
    %p242 = scmp.eq.s32.totalorder %s21, 1
    %p243 = por %p241, %p242
    %p244 = scmp.ne.s32.totalorder %s233, %s234
    %p245 = scmp.eq.s32.totalorder %s21, 0
    %p246 = por %p244, %p245
    %p247 = scmp.ne.s32.totalorder %s233, %s234
    %p248 = scmp.eq.s32.totalorder %s22, 1
    %p249 = por %p247, %p248
    %p251 = scmp.ne.s32.totalorder %s234, %s250
    %p252 = scmp.eq.s32.totalorder %s22, 0
    %p253 = por %p251, %p252
    %p254 = scmp.le.s32.totalorder 1, %s16
    %p255 = scmp.lt.s32.totalorder %s16, 3
    %p256 = pnand %p254, %p255
    %p257 = pneg %p256
    // Predicated region
    $region9: #{center_speed_forward.5} parent=5 // pred_check
      _
    $region10: #{center_speed_forward.5} parent=5 // pred_check_branch
      %259 = sbr.rel (%p256) target = $region12
    $region11: #{center_speed_forward.5} parent=5 // pred_region
      %s260 = ssub.s32 %s16, 1
      // Predicated region
      $region13: #{center_speed_forward.5} parent=11 // pred_check
        %p261 = pneg %p63
      $region14: #{center_speed_forward.5} parent=11 // pred_check_branch
        %263 = sbr.rel (%p261) target = $region16
      $region15: #{center_speed_forward.5} parent=11 // pred_region
        _
      $region16: #{center_speed_forward.5} parent=11 // pred_fallthru
        _
      // Predicated region
      $region17: #{center_speed_forward.5} parent=11 // pred_check
        %p264 = pneg %p84
      $region18: #{center_speed_forward.5} parent=11 // pred_check_branch
        %266 = sbr.rel (%p264) target = $region20
      $region19: #{center_speed_forward.5} parent=11 // pred_region
        _
      $region20: #{center_speed_forward.5} parent=11 // pred_fallthru
        _
      // Predicated region
      $region21: #{center_speed_forward.5} parent=11 // pred_check
        %p267 = pneg %p105
      $region22: #{center_speed_forward.5} parent=11 // pred_check_branch
        %269 = sbr.rel (%p267) target = $region24
      $region23: #{center_speed_forward.5} parent=11 // pred_region
        _
      $region24: #{center_speed_forward.5} parent=11 // pred_fallthru
        _
      // Predicated region
      $region25: #{center_speed_forward.5} parent=11 // pred_check
        %p270 = pneg %p126
      $region26: #{center_speed_forward.5} parent=11 // pred_check_branch
        %272 = sbr.rel (%p270) target = $region28
      $region27: #{center_speed_forward.5} parent=11 // pred_region
        _
      $region28: #{center_speed_forward.5} parent=11 // pred_fallthru
        _
      // Predicated region
      $region29: #{center_speed_forward.5} parent=11 // pred_check
        %p273 = pneg %p147
      $region30: #{center_speed_forward.5} parent=11 // pred_check_branch
        %275 = sbr.rel (%p273) target = $region32
      $region31: #{center_speed_forward.5} parent=11 // pred_region
        _
      $region32: #{center_speed_forward.5} parent=11 // pred_fallthru
        _
      // Predicated region
      $region33: #{center_speed_forward.5} parent=11 // pred_check
        %p276 = pneg %p168
      $region34: #{center_speed_forward.5} parent=11 // pred_check_branch
        %278 = sbr.rel (%p276) target = $region36
      $region35: #{center_speed_forward.5} parent=11 // pred_region
        _
      $region36: #{center_speed_forward.5} parent=11 // pred_fallthru
        _
    $region12: #{center_speed_forward.5} parent=5 // pred_fallthru
      _
    %p279 = scmp.lt.s32.totalorder %s16, 2
    // Predicated region
    $region37: #{center_speed_forward.5} parent=5 // pred_check
      %p280 = pneg %p279
    $region38: #{center_speed_forward.5} parent=5 // pred_check_branch
      %282 = sbr.rel (%p280) target = $region40
    $region39: #{center_speed_forward.5} parent=5 // pred_region
      // Predicated region
      $region41: #{center_speed_forward.5} parent=39 // pred_check
        %p283 = pneg %p36
      $region42: #{center_speed_forward.5} parent=39 // pred_check_branch
        %285 = sbr.rel (%p283) target = $region44
      $region43: #{center_speed_forward.5} parent=39 // pred_region
        %p286 = scmp.lt.s32.totalorder %s16, 1
        %s287 = scalar_select %p286, %s16, 1
        %s288 = smul.addr %s287, 16
        %s289 = smul.addr %s288, 4
        %s290 = scalar_lea.vmem %s0, %s289
      $region44: #{center_speed_forward.5} parent=39 // pred_fallthru
        _
    $region40: #{center_speed_forward.5} parent=5 // pred_fallthru
      _
    %p291 = scmp.le.s32.totalorder 1, %s16
    %p292 = scmp.lt.s32.totalorder %s16, 3
    %p293 = pnand %p291, %p292
    %p294 = pneg %p293
    // Predicated region
    $region45: #{center_speed_forward.5} parent=5 // pred_check
      _
    $region46: #{center_speed_forward.5} parent=5 // pred_check_branch
      %296 = sbr.rel (%p293) target = $region48
    $region47: #{center_speed_forward.5} parent=5 // pred_region
      %s297 = ssub.s32 %s16, 1
      %p298 = scmp.lt.s32.totalorder %s21, 1
      %s299 = scalar_select %p298, %s21, 1
      %s300 = smul.addr %s299, 16
      %s301 = smul.addr %s300, 4
      %s302 = scalar_lea.vmem %s0, %s301
      %p303 = pneg %p42
      %p304 = pneg %p39
      %p305 = pneg %p63
      %p306 = pneg %p60
      %p307 = pneg %p84
      %p308 = pneg %p81
      %p309 = pneg %p105
      %p310 = pneg %p102
      %p311 = pneg %p126
      %p312 = pneg %p123
      %p313 = pneg %p147
      %p314 = pneg %p144
      %p315 = pneg %p168
      %p316 = pneg %p165
      %p317 = pneg %p194
      %p318 = pneg %p191
      %p319 = scmp.lt.s32.totalorder %s21, 1
      %s320 = scalar_select %p319, %s21, 1
      %s321 = smul.addr %s320, 3
      %s322 = smul.addr %s321, 4
      %s323 = scalar_lea.vmem %s7, %s322
      %p324 = pneg %p220
      %p325 = pneg %p217
      %p326 = scmp.lt.s32.totalorder %s21, 1
      %s327 = scalar_select %p326, %s21, 1
      %s328 = scalar_lea.vmem %s8, %s327
      %p329 = pneg %p246
      %p330 = pneg %p243
      %p331 = scmp.lt.s32.totalorder %s21, 1
      %s332 = scalar_select %p331, %s21, 1
      %s333 = scalar_lea.vmem %s9, %s332
      %p334 = scmp.lt.s32.totalorder %s21, 1
      %s335 = scalar_select %p334, %s21, 1
      %s336 = smul.addr %s335, 16
      %s337 = smul.addr %s336, 4
      %s338 = scalar_lea.vmem %s0, %s337
      %p339 = scmp.lt.s32.totalorder %s21, 1
      %s340 = scalar_select %p339, %s21, 1
      %s341 = smul.addr %s340, 3
      %s342 = smul.addr %s341, 4
      %s343 = scalar_lea.vmem %s7, %s342
      %p344 = scmp.lt.s32.totalorder %s21, 1
      %s345 = scalar_select %p344, %s21, 1
      %s346 = scalar_lea.vmem %s8, %s345
      %p347 = scmp.lt.s32.totalorder %s21, 1
      %s348 = scalar_select %p347, %s21, 1
      %s349 = scalar_lea.vmem %s9, %s348
      %v351 = vld [vmem:[%s4] sm:$0x1]
      %v352 = vld [vmem:[%s5] sm:$0x1]
      %v353 = vld [vmem:[%s338] sm:$0xf]
      %v354 = vld [vmem:[%s338 + $0x4] sm:$0xf]
      %v355 = vld [vmem:[%s338 + $0x8] sm:$0xf]
      %v356 = vld [vmem:[%s338 + $0xc] sm:$0x3]
      %v357 = vunpack.c.l.bf16 %v353
      %v358 = vunpack.c.l.bf16 %v354
      %v359 = vunpack.c.l.bf16 %v355
      %v360 = vunpack.c.l.bf16 %v356
      %v362 = vperm.slane %v351, 0
      %v364 = vmul.f32 %v357, %v362
      %v365 = vmul.f32 %v358, %v362
      %v366 = vmul.f32 %v359, %v362
      %v367 = vmul.f32 %v360, %v362
      %v369 = vperm.slane %v352, 0
      %v371 = vadd.f32 %v364, %v369
      %v372 = vadd.f32 %v365, %v369
      %v373 = vadd.f32 %v366, %v369
      %v374 = vadd.f32 %v367, %v369
      %vm375 = vcmp.gt.f32.partialorder %v371, 0.0
      %vm376 = vcmp.gt.f32.partialorder %v372, 0.0
      %vm377 = vcmp.gt.f32.partialorder %v373, 0.0
      %vm378 = vcmp.gt.f32.partialorder %v374, 0.0
      %v379 = vmul.f32 %v371, 0.01
      %v380 = vmul.f32 %v372, 0.01
      %v381 = vmul.f32 %v373, 0.01
      %v382 = vmul.f32 %v374, 0.01
      %v383 = vsel %vm375, %v371, %v379
      %v384 = vsel %vm376, %v372, %v380
      %v385 = vsel %vm377, %v373, %v381
      %v386 = vsel %vm378, %v374, %v382
      %v387 = vld [vmem:[%s1] sm:$0xff]
      %v388 = vld [vmem:[%s1 + $0x8] sm:$0xff]
      %v389 = vld [vmem:[%s1 + $0x10] sm:$0xff]
      %v390 = vld [vmem:[%s1 + $0x18] sm:$0x7]
      %392 = vset.pattern.permute.xlu0 0
      %393 = vperm.xlu0 %392, %v387
      %v394 = vpop.permute.xlu0 %393
      %397 = vset.pattern.permute.xlu0 0
      %398 = vperm.xlu0 %397, %v388
      %v399 = vpop.permute.xlu0 %398
      %402 = vset.pattern.permute.xlu0 0
      %403 = vperm.xlu0 %402, %v389
      %v404 = vpop.permute.xlu0 %403
      %407 = vset.pattern.permute.xlu0 0
      %408 = vperm.xlu0 %407, %v390
      %v409 = vpop.permute.xlu0 %408
      %v411 = vmul.f32 %v383, %v394
      %v412 = vmul.f32 %v384, %v399
      %v413 = vmul.f32 %v385, %v404
      %v414 = vmul.f32 %v386, %v409
      %v415 = vpack.c.bf16 %v411, %v411
      %v416 = vpack.c.bf16 %v412, %v412
      %v417 = vpack.c.bf16 %v413, %v413
      %v418 = vpack.c.bf16 %v414, %v414
      %vm419 = vcmask 257024
      %420 = vst.msk [vmem:[#allocation2] sm:$0xf] %vm419, %v415
      %421 = vst.msk [vmem:[#allocation2 + $0x4] sm:$0xf] %vm419, %v416
      %422 = vst.msk [vmem:[#allocation2 + $0x8] sm:$0xf] %vm419, %v417
      %vm423 = vcmask 254976
      %vm424 = vsmask.f32 1280
      %vm425 = vmand %vm423, %vm424
      %v426 = vld [vmem:[#allocation2 + $0xc] sm:$0x3]
      %v427 = vsel %vm425, %v418, %v426
      %428 = vst [vmem:[#allocation2 + $0xc] sm:$0x3] %v427
      %v429 = vld [vmem:[#allocation2] sm:$0xf]
      %v430 = vld [vmem:[#allocation2 + $0x4] sm:$0xf]
      %v431 = vld [vmem:[#allocation2 + $0x8] sm:$0x3]
      %v432 = vld [vmem:[%s2] sm:$0xf]
      %v433 = vld [vmem:[%s2 + $0x4] sm:$0xf]
      %v434 = vld [vmem:[%s2 + $0x8] sm:$0xf]
      %v435 = vld [vmem:[%s2 + $0xc] sm:$0xf]
      %v439 = vunpack.c.l.b16 %v429
      %v440 = vunpack.c.l.b16 %v430
      %v441 = vunpack.c.l.b16 %v431
      %v442 = vpack.c.b16 %v440, %v439
      %v443 = vpack.c.b16 %v441, %v441
      %v448 = vunpack.c.l.b16 %v432
      %v449 = vunpack.c.l.b16 %v433
      %v450 = vunpack.c.l.b16 %v434
      %v451 = vunpack.c.l.b16 %v435
      %v452 = vpack.c.b16 %v449, %v448
      %v453 = vpack.c.b16 %v451, %v450
      %vm456 = vcmask 261120
      %v458 = vsel %vm456, %v442, 0
      %v461 = vsel %vm456, %v443, 0
      %463 = vmatpush.bf16.msra.mxu0 0
      %464 = vmatpush.bf16.msra.mxu0 0
      %465 = vmatpush.bf16.msra.mxu0 0
      %466 = vmatpush.bf16.msra.mxu0 0
      %467 = vmatpush.bf16.msra.mxu0 0
      %468 = vmatpush.bf16.msra.mxu0 0
      %469 = vmatpush.bf16.msra.mxu0 %v453
      %470 = vmatpush.bf16.msra.mxu0 %v452
      %471 = vmatmul.bf16.gmra.mxu0 %v458
      %v472 = vpop.f32.mrf.mxu0
      %v473 = vadd.f32 0.0, %v472
      %v474 = vpop.f32.mrf.mxu0
      %v475 = vadd.f32 0.0, %v474
      %476 = vmatmul.bf16.gmra.mxu0 %v461
      %v477 = vpop.f32.mrf.mxu0
      %v478 = vadd.f32 0.0, %v477
      %v479 = vpop.f32.mrf.mxu0
      %480 = vdwg.mxu0
      %vm481 = vcmask 523264
      %482 = vst.msk [vmem:[#allocation3] sm:$0xff] %vm481, %v473
      %483 = vst.msk [vmem:[#allocation3 + $0x8] sm:$0xff] %vm481, %v475
      %vm484 = vcmask 519168
      %485 = vst.msk [vmem:[#allocation3 + $0x10] sm:$0xf] %vm484, %v478
      %v486 = vld [vmem:[#allocation2] sm:$0xf]
      %v487 = vld [vmem:[#allocation2 + $0x4] sm:$0xf]
      %v488 = vld [vmem:[#allocation2 + $0x8] sm:$0x7]
      %s489 = scalar_lea.vmem %s2, 32
      %v490 = vld [vmem:[%s489] sm:$0xf]
      %v491 = vld [vmem:[%s489 + $0x4] sm:$0xf]
      %v492 = vld [vmem:[%s489 + $0x8] sm:$0xf]
      %v493 = vld [vmem:[%s489 + $0xc] sm:$0xf]
      %v497 = vunpack.c.l.b16 %v486
      %v498 = vunpack.c.l.b16 %v487
      %v499 = vunpack.c.l.b16 %v488
      %v500 = vpack.c.b16 %v498, %v497
      %v501 = vpack.c.b16 %v499, %v499
      %vm502 = vsmask.f32 7424
      %v504 = vshrl.u32 %v500, 16
      %v506 = vshll.u32 %v500, 16
      %v508 = vrot.slane %v506, 1
      %v509 = vor.u32 %v504, %v508
      %v511 = vshll.u32 %v501, 16
      %v513 = vrot.slane %v511, 1
      %v514 = vsel %vm502, %v509, %v513
      %v515 = vshrl.u32 %v501, 16
      %v517 = vor.u32 %v515, %v513
      %v522 = vunpack.c.l.b16 %v490
      %v523 = vunpack.c.l.b16 %v491
      %v524 = vunpack.c.l.b16 %v492
      %v525 = vunpack.c.l.b16 %v493
      %v526 = vpack.c.b16 %v523, %v522
      %v527 = vpack.c.b16 %v525, %v524
      %v531 = vsel %vm456, %v514, 0
      %v534 = vsel %vm456, %v517, 0
      %536 = vmatpush.bf16.msra.mxu0 0
      %537 = vmatpush.bf16.msra.mxu0 0
      %538 = vmatpush.bf16.msra.mxu0 0
      %539 = vmatpush.bf16.msra.mxu0 0
      %540 = vmatpush.bf16.msra.mxu0 0
      %541 = vmatpush.bf16.msra.mxu0 0
      %542 = vmatpush.bf16.msra.mxu0 %v527
      %543 = vmatpush.bf16.msra.mxu0 %v526
      %544 = vmatmul.bf16.gmra.mxu0 %v531
      %v545 = vpop.f32.mrf.mxu0
      %v546 = vadd.f32 0.0, %v545
      %v547 = vpop.f32.mrf.mxu0
      %v548 = vadd.f32 0.0, %v547
      %549 = vmatmul.bf16.gmra.mxu0 %v534
      %v550 = vpop.f32.mrf.mxu0
      %v551 = vadd.f32 0.0, %v550
      %v552 = vpop.f32.mrf.mxu0
      %553 = vdwg.mxu0
      %v554 = vld [vmem:[#allocation3] sm:$0xff]
      %v555 = vld [vmem:[#allocation3 + $0x8] sm:$0xff]
      %v556 = vld [vmem:[#allocation3 + $0x10] sm:$0xf]
      %v557 = vadd.f32 %v554, %v546
      %v558 = vadd.f32 %v555, %v548
      %v559 = vadd.f32 %v556, %v551
      %560 = vst.msk [vmem:[#allocation3] sm:$0xff] %vm481, %v557
      %561 = vst.msk [vmem:[#allocation3 + $0x8] sm:$0xff] %vm481, %v558
      %562 = vst.msk [vmem:[#allocation3 + $0x10] sm:$0xf] %vm484, %v559
      %v563 = vld [vmem:[#allocation2] sm:$0xc]
      %v564 = vld [vmem:[#allocation2 + $0x4] sm:$0xf]
      %v565 = vld [vmem:[#allocation2 + $0x8] sm:$0xf]
      %v566 = vld [vmem:[#allocation2 + $0xc] sm:$0x1]
      %s567 = scalar_lea.vmem %s2, 96
      %v568 = vld [vmem:[%s567] sm:$0xf]
      %v569 = vld [vmem:[%s567 + $0x4] sm:$0xf]
      %v570 = vld [vmem:[%s567 + $0x8] sm:$0xf]
      %v571 = vld [vmem:[%s567 + $0xc] sm:$0xf]
      %v576 = vunpack.c.l.b16 %v563
      %v577 = vunpack.c.l.b16 %v564
      %v578 = vunpack.c.l.b16 %v565
      %v579 = vunpack.c.l.b16 %v566
      %v580 = vpack.c.b16 %v577, %v576
      %v581 = vpack.c.b16 %v579, %v578
      %vm582 = vsmask.f32 5376
      %v584 = vshrl.u32 %v580, 16
      %v586 = vrot.slane %v584, 2
      %v587 = vshll.u32 %v580, 16
      %v589 = vrot.slane %v587, 3
      %v590 = vor.u32 %v586, %v589
      %v592 = vshrl.u32 %v581, 16
      %v594 = vrot.slane %v592, 2
      %v595 = vshll.u32 %v581, 16
      %v597 = vrot.slane %v595, 3
      %v598 = vor.u32 %v594, %v597
      %v599 = vsel %vm582, %v590, %v598
      %v604 = vunpack.c.l.b16 %v568
      %v605 = vunpack.c.l.b16 %v569
      %v606 = vunpack.c.l.b16 %v570
      %v607 = vunpack.c.l.b16 %v571
      %v608 = vpack.c.b16 %v605, %v604
      %v609 = vpack.c.b16 %v607, %v606
      %v613 = vsel %vm456, %v599, 0
      %v616 = vsel %vm456, %v598, 0
      %618 = vmatpush.bf16.msra.mxu0 0
      %619 = vmatpush.bf16.msra.mxu0 0
      %620 = vmatpush.bf16.msra.mxu0 0
      %621 = vmatpush.bf16.msra.mxu0 0
      %622 = vmatpush.bf16.msra.mxu0 0
      %623 = vmatpush.bf16.msra.mxu0 0
      %624 = vmatpush.bf16.msra.mxu0 %v609
      %625 = vmatpush.bf16.msra.mxu0 %v608
      %626 = vmatmul.bf16.gmra.mxu0 %v613
      %v627 = vpop.f32.mrf.mxu0
      %v628 = vadd.f32 0.0, %v627
      %v629 = vpop.f32.mrf.mxu0
      %v630 = vadd.f32 0.0, %v629
      %631 = vmatmul.bf16.gmra.mxu0 %v616
      %v632 = vpop.f32.mrf.mxu0
      %v633 = vadd.f32 0.0, %v632
      %v634 = vpop.f32.mrf.mxu0
      %635 = vdwg.mxu0
      %v636 = vld [vmem:[#allocation3] sm:$0xff]
      %v637 = vld [vmem:[#allocation3 + $0x8] sm:$0xff]
      %v638 = vld [vmem:[#allocation3 + $0x10] sm:$0xf]
      %v639 = vadd.f32 %v636, %v628
      %v640 = vadd.f32 %v637, %v630
      %v641 = vadd.f32 %v638, %v633
      %642 = vst.msk [vmem:[#allocation3] sm:$0xff] %vm481, %v639
      %643 = vst.msk [vmem:[#allocation3 + $0x8] sm:$0xff] %vm481, %v640
      %644 = vst.msk [vmem:[#allocation3 + $0x10] sm:$0xf] %vm484, %v641
      %v645 = vld [vmem:[#allocation2] sm:$0x8]
      %v646 = vld [vmem:[#allocation2 + $0x4] sm:$0xf]
      %v647 = vld [vmem:[#allocation2 + $0x8] sm:$0xf]
      %v648 = vld [vmem:[#allocation2 + $0xc] sm:$0x1]
      %s649 = scalar_lea.vmem %s2, 128
      %v650 = vld [vmem:[%s649] sm:$0xf]
      %v651 = vld [vmem:[%s649 + $0x4] sm:$0xf]
      %v652 = vld [vmem:[%s649 + $0x8] sm:$0xf]
      %v653 = vld [vmem:[%s649 + $0xc] sm:$0xf]
      %v658 = vunpack.c.l.b16 %v645
      %v659 = vunpack.c.l.b16 %v646
      %v660 = vunpack.c.l.b16 %v647
      %v661 = vunpack.c.l.b16 %v648
      %v662 = vpack.c.b16 %v659, %v658
      %v663 = vpack.c.b16 %v661, %v660
      %vm664 = vcmask 1044480
      %v665 = vrot.slane %v662, 3
      %v666 = vrot.slane %v663, 3
      %v667 = vsel %vm664, %v665, %v666
      %v672 = vunpack.c.l.b16 %v650
      %v673 = vunpack.c.l.b16 %v651
      %v674 = vunpack.c.l.b16 %v652
      %v675 = vunpack.c.l.b16 %v653
      %v676 = vpack.c.b16 %v673, %v672
      %v677 = vpack.c.b16 %v675, %v674
      %v681 = vsel %vm456, %v667, 0
      %v684 = vsel %vm456, %v666, 0
      %686 = vmatpush.bf16.msra.mxu0 0
      %687 = vmatpush.bf16.msra.mxu0 0
      %688 = vmatpush.bf16.msra.mxu0 0
      %689 = vmatpush.bf16.msra.mxu0 0
      %690 = vmatpush.bf16.msra.mxu0 0
      %691 = vmatpush.bf16.msra.mxu0 0
      %692 = vmatpush.bf16.msra.mxu0 %v677
      %693 = vmatpush.bf16.msra.mxu0 %v676
      %694 = vmatmul.bf16.gmra.mxu0 %v681
      %v695 = vpop.f32.mrf.mxu0
      %v696 = vadd.f32 0.0, %v695
      %v697 = vpop.f32.mrf.mxu0
      %v698 = vadd.f32 0.0, %v697
      %699 = vmatmul.bf16.gmra.mxu0 %v684
      %v700 = vpop.f32.mrf.mxu0
      %v701 = vadd.f32 0.0, %v700
      %v702 = vpop.f32.mrf.mxu0
      %703 = vdwg.mxu0
      %v704 = vld [vmem:[#allocation3] sm:$0xff]
      %v705 = vld [vmem:[#allocation3 + $0x8] sm:$0xff]
      %v706 = vld [vmem:[#allocation3 + $0x10] sm:$0xf]
      %v707 = vadd.f32 %v704, %v696
      %v708 = vadd.f32 %v705, %v698
      %v709 = vadd.f32 %v706, %v701
      %710 = vst.msk [vmem:[#allocation3] sm:$0xff] %vm481, %v707
      %711 = vst.msk [vmem:[#allocation3 + $0x8] sm:$0xff] %vm481, %v708
      %712 = vst.msk [vmem:[#allocation3 + $0x10] sm:$0xf] %vm484, %v709
      %s713 = scalar_lea.vmem %s338, 16
      %v714 = vld [vmem:[%s713] sm:$0xf]
      %v715 = vld [vmem:[%s713 + $0x4] sm:$0xf]
      %v716 = vld [vmem:[%s713 + $0x8] sm:$0xf]
      %v717 = vld [vmem:[%s713 + $0xc] sm:$0x3]
      %v718 = vunpack.c.l.bf16 %v714
      %v719 = vunpack.c.l.bf16 %v715
      %v720 = vunpack.c.l.bf16 %v716
      %v721 = vunpack.c.l.bf16 %v717
      %v722 = vmul.f32 %v718, %v362
      %v723 = vmul.f32 %v719, %v362
      %v724 = vmul.f32 %v720, %v362
      %v725 = vmul.f32 %v721, %v362
      %v726 = vadd.f32 %v722, %v369
      %v727 = vadd.f32 %v723, %v369
      %v728 = vadd.f32 %v724, %v369
      %v729 = vadd.f32 %v725, %v369
      %vm730 = vcmp.gt.f32.partialorder %v726, 0.0
      %vm731 = vcmp.gt.f32.partialorder %v727, 0.0
      %vm732 = vcmp.gt.f32.partialorder %v728, 0.0
      %vm733 = vcmp.gt.f32.partialorder %v729, 0.0
      %v734 = vmul.f32 %v726, 0.01
      %v735 = vmul.f32 %v727, 0.01
      %v736 = vmul.f32 %v728, 0.01
      %v737 = vmul.f32 %v729, 0.01
      %v738 = vsel %vm730, %v726, %v734
      %v739 = vsel %vm731, %v727, %v735
      %v740 = vsel %vm732, %v728, %v736
      %v741 = vsel %vm733, %v729, %v737
      %s742 = scalar_lea.vmem %s1, 32
      %v743 = vld [vmem:[%s742] sm:$0xff]
      %v744 = vld [vmem:[%s742 + $0x8] sm:$0xff]
      %v745 = vld [vmem:[%s742 + $0x10] sm:$0xff]
      %v746 = vld [vmem:[%s742 + $0x18] sm:$0x7]
      %748 = vset.pattern.permute.xlu0 0
      %749 = vperm.xlu0 %748, %v743
      %v750 = vpop.permute.xlu0 %749
      %753 = vset.pattern.permute.xlu0 0
      %754 = vperm.xlu0 %753, %v744
      %v755 = vpop.permute.xlu0 %754
      %758 = vset.pattern.permute.xlu0 0
      %759 = vperm.xlu0 %758, %v745
      %v760 = vpop.permute.xlu0 %759
      %763 = vset.pattern.permute.xlu0 0
      %764 = vperm.xlu0 %763, %v746
      %v765 = vpop.permute.xlu0 %764
      %v767 = vmul.f32 %v738, %v750
      %v768 = vmul.f32 %v739, %v755
      %v769 = vmul.f32 %v740, %v760
      %v770 = vmul.f32 %v741, %v765
      %v771 = vpack.c.bf16 %v767, %v767
      %v772 = vpack.c.bf16 %v768, %v768
      %v773 = vpack.c.bf16 %v769, %v769
      %v774 = vpack.c.bf16 %v770, %v770
      %775 = vst.msk [vmem:[#allocation2] sm:$0xf] %vm419, %v771
      %776 = vst.msk [vmem:[#allocation2 + $0x4] sm:$0xf] %vm419, %v772
      %777 = vst.msk [vmem:[#allocation2 + $0x8] sm:$0xf] %vm419, %v773
      %v778 = vld [vmem:[#allocation2 + $0xc] sm:$0x3]
      %v779 = vsel %vm425, %v774, %v778
      %780 = vst [vmem:[#allocation2 + $0xc] sm:$0x3] %v779
      %v781 = vld [vmem:[#allocation2] sm:$0xf]
      %v782 = vld [vmem:[#allocation2 + $0x4] sm:$0xf]
      %v783 = vld [vmem:[#allocation2 + $0x8] sm:$0x3]
      %s784 = scalar_lea.vmem %s2, 16
      %v785 = vld [vmem:[%s784] sm:$0xf]
      %v786 = vld [vmem:[%s784 + $0x4] sm:$0xf]
      %v787 = vld [vmem:[%s784 + $0x8] sm:$0xf]
      %v788 = vld [vmem:[%s784 + $0xc] sm:$0xf]
      %v792 = vunpack.c.l.b16 %v781
      %v793 = vunpack.c.l.b16 %v782
      %v794 = vunpack.c.l.b16 %v783
      %v795 = vpack.c.b16 %v793, %v792
      %v796 = vpack.c.b16 %v794, %v794
      %v801 = vunpack.c.l.b16 %v785
      %v802 = vunpack.c.l.b16 %v786
      %v803 = vunpack.c.l.b16 %v787
      %v804 = vunpack.c.l.b16 %v788
      %v805 = vpack.c.b16 %v802, %v801
      %v806 = vpack.c.b16 %v804, %v803
      %v810 = vsel %vm456, %v795, 0
      %v813 = vsel %vm456, %v796, 0
      %815 = vmatpush.bf16.msra.mxu0 0
      %816 = vmatpush.bf16.msra.mxu0 0
      %817 = vmatpush.bf16.msra.mxu0 0
      %818 = vmatpush.bf16.msra.mxu0 0
      %819 = vmatpush.bf16.msra.mxu0 0
      %820 = vmatpush.bf16.msra.mxu0 0
      %821 = vmatpush.bf16.msra.mxu0 %v806
      %822 = vmatpush.bf16.msra.mxu0 %v805
      %823 = vmatmul.bf16.gmra.mxu0 %v810
      %v824 = vpop.f32.mrf.mxu0
      %v825 = vadd.f32 0.0, %v824
      %v826 = vpop.f32.mrf.mxu0
      %v827 = vadd.f32 0.0, %v826
      %828 = vmatmul.bf16.gmra.mxu0 %v813
      %v829 = vpop.f32.mrf.mxu0
      %v830 = vadd.f32 0.0, %v829
      %v831 = vpop.f32.mrf.mxu0
      %832 = vdwg.mxu0
      %v833 = vld [vmem:[#allocation3] sm:$0xff]
      %v834 = vld [vmem:[#allocation3 + $0x8] sm:$0xff]
      %v835 = vld [vmem:[#allocation3 + $0x10] sm:$0xf]
      %v836 = vadd.f32 %v833, %v825
      %v837 = vadd.f32 %v834, %v827
      %v838 = vadd.f32 %v835, %v830
      %839 = vst.msk [vmem:[#allocation3] sm:$0xff] %vm481, %v836
      %840 = vst.msk [vmem:[#allocation3 + $0x8] sm:$0xff] %vm481, %v837
      %841 = vst.msk [vmem:[#allocation3 + $0x10] sm:$0xf] %vm484, %v838
      %v842 = vld [vmem:[#allocation2] sm:$0xc]
      %v843 = vld [vmem:[#allocation2 + $0x4] sm:$0xf]
      %v844 = vld [vmem:[#allocation2 + $0x8] sm:$0xf]
      %v845 = vld [vmem:[#allocation2 + $0xc] sm:$0x1]
      %s846 = scalar_lea.vmem %s2, 112
      %v847 = vld [vmem:[%s846] sm:$0xf]
      %v848 = vld [vmem:[%s846 + $0x4] sm:$0xf]
      %v849 = vld [vmem:[%s846 + $0x8] sm:$0xf]
      %v850 = vld [vmem:[%s846 + $0xc] sm:$0xf]
      %v855 = vunpack.c.l.b16 %v842
      %v856 = vunpack.c.l.b16 %v843
      %v857 = vunpack.c.l.b16 %v844
      %v858 = vunpack.c.l.b16 %v845
      %v859 = vpack.c.b16 %v856, %v855
      %v860 = vpack.c.b16 %v858, %v857
      %v862 = vshrl.u32 %v859, 16
      %v864 = vrot.slane %v862, 2
      %v865 = vshll.u32 %v859, 16
      %v867 = vrot.slane %v865, 3
      %v868 = vor.u32 %v864, %v867
      %v870 = vshrl.u32 %v860, 16
      %v872 = vrot.slane %v870, 2
      %v873 = vshll.u32 %v860, 16
      %v875 = vrot.slane %v873, 3
      %v876 = vor.u32 %v872, %v875
      %v877 = vsel %vm582, %v868, %v876
      %v882 = vunpack.c.l.b16 %v847
      %v883 = vunpack.c.l.b16 %v848
      %v884 = vunpack.c.l.b16 %v849
      %v885 = vunpack.c.l.b16 %v850
      %v886 = vpack.c.b16 %v883, %v882
      %v887 = vpack.c.b16 %v885, %v884
      %v891 = vsel %vm456, %v877, 0
      %v894 = vsel %vm456, %v876, 0
      %896 = vmatpush.bf16.msra.mxu0 0
      %897 = vmatpush.bf16.msra.mxu0 0
      %898 = vmatpush.bf16.msra.mxu0 0
      %899 = vmatpush.bf16.msra.mxu0 0
      %900 = vmatpush.bf16.msra.mxu0 0
      %901 = vmatpush.bf16.msra.mxu0 0
      %902 = vmatpush.bf16.msra.mxu0 %v887
      %903 = vmatpush.bf16.msra.mxu0 %v886
      %904 = vmatmul.bf16.gmra.mxu0 %v891
      %v905 = vpop.f32.mrf.mxu0
      %v906 = vadd.f32 0.0, %v905
      %v907 = vpop.f32.mrf.mxu0
      %v908 = vadd.f32 0.0, %v907
      %909 = vmatmul.bf16.gmra.mxu0 %v894
      %v910 = vpop.f32.mrf.mxu0
      %v911 = vadd.f32 0.0, %v910
      %v912 = vpop.f32.mrf.mxu0
      %913 = vdwg.mxu0
      %v914 = vld [vmem:[#allocation3] sm:$0xff]
      %v915 = vld [vmem:[#allocation3 + $0x8] sm:$0xff]
      %v916 = vld [vmem:[#allocation3 + $0x10] sm:$0xf]
      %v917 = vadd.f32 %v914, %v906
      %v918 = vadd.f32 %v915, %v908
      %v919 = vadd.f32 %v916, %v911
      %920 = vst.msk [vmem:[#allocation3] sm:$0xff] %vm481, %v917
      %921 = vst.msk [vmem:[#allocation3 + $0x8] sm:$0xff] %vm481, %v918
      %922 = vst.msk [vmem:[#allocation3 + $0x10] sm:$0xf] %vm484, %v919
      %s923 = scalar_lea.vmem %s338, 32
      %v924 = vld [vmem:[%s923] sm:$0xf]
      %v925 = vld [vmem:[%s923 + $0x4] sm:$0xf]
      %v926 = vld [vmem:[%s923 + $0x8] sm:$0xf]
      %v927 = vld [vmem:[%s923 + $0xc] sm:$0x3]
      %v928 = vunpack.c.l.bf16 %v924
      %v929 = vunpack.c.l.bf16 %v925
      %v930 = vunpack.c.l.bf16 %v926
      %v931 = vunpack.c.l.bf16 %v927
      %v932 = vmul.f32 %v928, %v362
      %v933 = vmul.f32 %v929, %v362
      %v934 = vmul.f32 %v930, %v362
      %v935 = vmul.f32 %v931, %v362
      %v936 = vadd.f32 %v932, %v369
      %v937 = vadd.f32 %v933, %v369
      %v938 = vadd.f32 %v934, %v369
      %v939 = vadd.f32 %v935, %v369
      %vm940 = vcmp.gt.f32.partialorder %v936, 0.0
      %vm941 = vcmp.gt.f32.partialorder %v937, 0.0
      %vm942 = vcmp.gt.f32.partialorder %v938, 0.0
      %vm943 = vcmp.gt.f32.partialorder %v939, 0.0
      %v944 = vmul.f32 %v936, 0.01
      %v945 = vmul.f32 %v937, 0.01
      %v946 = vmul.f32 %v938, 0.01
      %v947 = vmul.f32 %v939, 0.01
      %v948 = vsel %vm940, %v936, %v944
      %v949 = vsel %vm941, %v937, %v945
      %v950 = vsel %vm942, %v938, %v946
      %v951 = vsel %vm943, %v939, %v947
      %s952 = scalar_lea.vmem %s1, 64
      %v953 = vld [vmem:[%s952] sm:$0xff]
      %v954 = vld [vmem:[%s952 + $0x8] sm:$0xff]
      %v955 = vld [vmem:[%s952 + $0x10] sm:$0xff]
      %v956 = vld [vmem:[%s952 + $0x18] sm:$0x7]
      %958 = vset.pattern.permute.xlu0 0
      %959 = vperm.xlu0 %958, %v953
      %v960 = vpop.permute.xlu0 %959
      %963 = vset.pattern.permute.xlu0 0
      %964 = vperm.xlu0 %963, %v954
      %v965 = vpop.permute.xlu0 %964
      %968 = vset.pattern.permute.xlu0 0
      %969 = vperm.xlu0 %968, %v955
      %v970 = vpop.permute.xlu0 %969
      %973 = vset.pattern.permute.xlu0 0
      %974 = vperm.xlu0 %973, %v956
      %v975 = vpop.permute.xlu0 %974
      %v977 = vmul.f32 %v948, %v960
      %v978 = vmul.f32 %v949, %v965
      %v979 = vmul.f32 %v950, %v970
      %v980 = vmul.f32 %v951, %v975
      %v981 = vpack.c.bf16 %v977, %v977
      %v982 = vpack.c.bf16 %v978, %v978
      %v983 = vpack.c.bf16 %v979, %v979
      %v984 = vpack.c.bf16 %v980, %v980
      %985 = vst.msk [vmem:[#allocation2] sm:$0xf] %vm419, %v981
      %986 = vst.msk [vmem:[#allocation2 + $0x4] sm:$0xf] %vm419, %v982
      %987 = vst.msk [vmem:[#allocation2 + $0x8] sm:$0xf] %vm419, %v983
      %v988 = vld [vmem:[#allocation2 + $0xc] sm:$0x3]
      %v989 = vsel %vm425, %v984, %v988
      %990 = vst [vmem:[#allocation2 + $0xc] sm:$0x3] %v989
      %v991 = vld [vmem:[#allocation2] sm:$0xf]
      %v992 = vld [vmem:[#allocation2 + $0x4] sm:$0xf]
      %v993 = vld [vmem:[#allocation2 + $0x8] sm:$0x3]
      %s994 = scalar_lea.vmem %s2, 48
      %v995 = vld [vmem:[%s994] sm:$0xf]
      %v996 = vld [vmem:[%s994 + $0x4] sm:$0xf]
      %v997 = vld [vmem:[%s994 + $0x8] sm:$0xf]
      %v998 = vld [vmem:[%s994 + $0xc] sm:$0xf]
      %v1002 = vunpack.c.l.b16 %v991
      %v1003 = vunpack.c.l.b16 %v992
      %v1004 = vunpack.c.l.b16 %v993
      %v1005 = vpack.c.b16 %v1003, %v1002
      %v1006 = vpack.c.b16 %v1004, %v1004
      %v1011 = vunpack.c.l.b16 %v995
      %v1012 = vunpack.c.l.b16 %v996
      %v1013 = vunpack.c.l.b16 %v997
      %v1014 = vunpack.c.l.b16 %v998
      %v1015 = vpack.c.b16 %v1012, %v1011
      %v1016 = vpack.c.b16 %v1014, %v1013
      %v1020 = vsel %vm456, %v1005, 0
      %v1023 = vsel %vm456, %v1006, 0
      %1025 = vmatpush.bf16.msra.mxu0 0
      %1026 = vmatpush.bf16.msra.mxu0 0
      %1027 = vmatpush.bf16.msra.mxu0 0
      %1028 = vmatpush.bf16.msra.mxu0 0
      %1029 = vmatpush.bf16.msra.mxu0 0
      %1030 = vmatpush.bf16.msra.mxu0 0
      %1031 = vmatpush.bf16.msra.mxu0 %v1016
      %1032 = vmatpush.bf16.msra.mxu0 %v1015
      %1033 = vmatmul.bf16.gmra.mxu0 %v1020
      %v1034 = vpop.f32.mrf.mxu0
      %v1035 = vadd.f32 0.0, %v1034
      %v1036 = vpop.f32.mrf.mxu0
      %v1037 = vadd.f32 0.0, %v1036
      %1038 = vmatmul.bf16.gmra.mxu0 %v1023
      %v1039 = vpop.f32.mrf.mxu0
      %v1040 = vadd.f32 0.0, %v1039
      %v1041 = vpop.f32.mrf.mxu0
      %1042 = vdwg.mxu0
      %v1043 = vld [vmem:[#allocation3] sm:$0xff]
      %v1044 = vld [vmem:[#allocation3 + $0x8] sm:$0xff]
      %v1045 = vld [vmem:[#allocation3 + $0x10] sm:$0xf]
      %v1046 = vadd.f32 %v1043, %v1035
      %v1047 = vadd.f32 %v1044, %v1037
      %v1048 = vadd.f32 %v1045, %v1040
      %1049 = vst.msk [vmem:[#allocation3] sm:$0xff] %vm481, %v1046
      %1050 = vst.msk [vmem:[#allocation3 + $0x8] sm:$0xff] %vm481, %v1047
      %1051 = vst.msk [vmem:[#allocation3 + $0x10] sm:$0xf] %vm484, %v1048
      %v1052 = vld [vmem:[#allocation2] sm:$0xf]
      %v1053 = vld [vmem:[#allocation2 + $0x4] sm:$0xf]
      %v1054 = vld [vmem:[#allocation2 + $0x8] sm:$0x7]
      %s1055 = scalar_lea.vmem %s2, 80
      %v1056 = vld [vmem:[%s1055] sm:$0xf]
      %v1057 = vld [vmem:[%s1055 + $0x4] sm:$0xf]
      %v1058 = vld [vmem:[%s1055 + $0x8] sm:$0xf]
      %v1059 = vld [vmem:[%s1055 + $0xc] sm:$0xf]
      %v1063 = vunpack.c.l.b16 %v1052
      %v1064 = vunpack.c.l.b16 %v1053
      %v1065 = vunpack.c.l.b16 %v1054
      %v1066 = vpack.c.b16 %v1064, %v1063
      %v1067 = vpack.c.b16 %v1065, %v1065
      %v1069 = vshrl.u32 %v1066, 16
      %v1071 = vshll.u32 %v1066, 16
      %v1073 = vrot.slane %v1071, 1
      %v1074 = vor.u32 %v1069, %v1073
      %v1076 = vshll.u32 %v1067, 16
      %v1078 = vrot.slane %v1076, 1
      %v1079 = vsel %vm502, %v1074, %v1078
      %v1080 = vshrl.u32 %v1067, 16
      %v1082 = vor.u32 %v1080, %v1078
      %v1087 = vunpack.c.l.b16 %v1056
      %v1088 = vunpack.c.l.b16 %v1057
      %v1089 = vunpack.c.l.b16 %v1058
      %v1090 = vunpack.c.l.b16 %v1059
      %v1091 = vpack.c.b16 %v1088, %v1087
      %v1092 = vpack.c.b16 %v1090, %v1089
      %v1096 = vsel %vm456, %v1079, 0
      %v1099 = vsel %vm456, %v1082, 0
      %1101 = vmatpush.bf16.msra.mxu0 0
      %1102 = vmatpush.bf16.msra.mxu0 0
      %1103 = vmatpush.bf16.msra.mxu0 0
      %1104 = vmatpush.bf16.msra.mxu0 0
      %1105 = vmatpush.bf16.msra.mxu0 0
      %1106 = vmatpush.bf16.msra.mxu0 0
      %1107 = vmatpush.bf16.msra.mxu0 %v1092
      %1108 = vmatpush.bf16.msra.mxu0 %v1091
      %1109 = vmatmul.bf16.gmra.mxu0 %v1096
      %v1110 = vpop.f32.mrf.mxu0
      %v1111 = vadd.f32 0.0, %v1110
      %v1112 = vpop.f32.mrf.mxu0
      %v1113 = vadd.f32 0.0, %v1112
      %1114 = vmatmul.bf16.gmra.mxu0 %v1099
      %v1115 = vpop.f32.mrf.mxu0
      %v1116 = vadd.f32 0.0, %v1115
      %v1117 = vpop.f32.mrf.mxu0
      %1118 = vdwg.mxu0
      %v1119 = vld [vmem:[#allocation3] sm:$0xff]
      %v1120 = vld [vmem:[#allocation3 + $0x8] sm:$0xff]
      %v1121 = vld [vmem:[#allocation3 + $0x10] sm:$0xf]
      %v1122 = vadd.f32 %v1119, %v1111
      %v1123 = vadd.f32 %v1120, %v1113
      %v1124 = vadd.f32 %v1121, %v1116
      %1125 = vst.msk [vmem:[#allocation3] sm:$0xff] %vm481, %v1122
      %1126 = vst.msk [vmem:[#allocation3 + $0x8] sm:$0xff] %vm481, %v1123
      %1127 = vst.msk [vmem:[#allocation3 + $0x10] sm:$0xf] %vm484, %v1124
      %s1128 = scalar_lea.vmem %s338, 48
      %v1129 = vld [vmem:[%s1128] sm:$0xf]
      %v1130 = vld [vmem:[%s1128 + $0x4] sm:$0xf]
      %v1131 = vld [vmem:[%s1128 + $0x8] sm:$0xf]
      %v1132 = vld [vmem:[%s1128 + $0xc] sm:$0x3]
      %v1133 = vunpack.c.l.bf16 %v1129
      %v1134 = vunpack.c.l.bf16 %v1130
      %v1135 = vunpack.c.l.bf16 %v1131
      %v1136 = vunpack.c.l.bf16 %v1132
      %v1137 = vmul.f32 %v1133, %v362
      %v1138 = vmul.f32 %v1134, %v362
      %v1139 = vmul.f32 %v1135, %v362
      %v1140 = vmul.f32 %v1136, %v362
      %v1141 = vadd.f32 %v1137, %v369
      %v1142 = vadd.f32 %v1138, %v369
      %v1143 = vadd.f32 %v1139, %v369
      %v1144 = vadd.f32 %v1140, %v369
      %vm1145 = vcmp.gt.f32.partialorder %v1141, 0.0
      %vm1146 = vcmp.gt.f32.partialorder %v1142, 0.0
      %vm1147 = vcmp.gt.f32.partialorder %v1143, 0.0
      %vm1148 = vcmp.gt.f32.partialorder %v1144, 0.0
      %v1149 = vmul.f32 %v1141, 0.01
      %v1150 = vmul.f32 %v1142, 0.01
      %v1151 = vmul.f32 %v1143, 0.01
      %v1152 = vmul.f32 %v1144, 0.01
      %v1153 = vsel %vm1145, %v1141, %v1149
      %v1154 = vsel %vm1146, %v1142, %v1150
      %v1155 = vsel %vm1147, %v1143, %v1151
      %v1156 = vsel %vm1148, %v1144, %v1152
      %s1157 = scalar_lea.vmem %s1, 96
      %v1158 = vld [vmem:[%s1157] sm:$0xff]
      %v1159 = vld [vmem:[%s1157 + $0x8] sm:$0xff]
      %v1160 = vld [vmem:[%s1157 + $0x10] sm:$0xff]
      %v1161 = vld [vmem:[%s1157 + $0x18] sm:$0x7]
      %1163 = vset.pattern.permute.xlu0 0
      %1164 = vperm.xlu0 %1163, %v1158
      %v1165 = vpop.permute.xlu0 %1164
      %1168 = vset.pattern.permute.xlu0 0
      %1169 = vperm.xlu0 %1168, %v1159
      %v1170 = vpop.permute.xlu0 %1169
      %1173 = vset.pattern.permute.xlu0 0
      %1174 = vperm.xlu0 %1173, %v1160
      %v1175 = vpop.permute.xlu0 %1174
      %1178 = vset.pattern.permute.xlu0 0
      %1179 = vperm.xlu0 %1178, %v1161
      %v1180 = vpop.permute.xlu0 %1179
      %v1182 = vmul.f32 %v1153, %v1165
      %v1183 = vmul.f32 %v1154, %v1170
      %v1184 = vmul.f32 %v1155, %v1175
      %v1185 = vmul.f32 %v1156, %v1180
      %v1186 = vpack.c.bf16 %v1182, %v1182
      %v1187 = vpack.c.bf16 %v1183, %v1183
      %v1188 = vpack.c.bf16 %v1184, %v1184
      %v1189 = vpack.c.bf16 %v1185, %v1185
      %1190 = vst.msk [vmem:[#allocation2] sm:$0xf] %vm419, %v1186
      %1191 = vst.msk [vmem:[#allocation2 + $0x4] sm:$0xf] %vm419, %v1187
      %1192 = vst.msk [vmem:[#allocation2 + $0x8] sm:$0xf] %vm419, %v1188
      %v1193 = vld [vmem:[#allocation2 + $0xc] sm:$0x3]
      %v1194 = vsel %vm425, %v1189, %v1193
      %1195 = vst [vmem:[#allocation2 + $0xc] sm:$0x3] %v1194
      %v1196 = vld [vmem:[#allocation2] sm:$0xf]
      %v1197 = vld [vmem:[#allocation2 + $0x4] sm:$0xf]
      %v1198 = vld [vmem:[#allocation2 + $0x8] sm:$0x3]
      %s1199 = scalar_lea.vmem %s2, 64
      %v1200 = vld [vmem:[%s1199] sm:$0xf]
      %v1201 = vld [vmem:[%s1199 + $0x4] sm:$0xf]
      %v1202 = vld [vmem:[%s1199 + $0x8] sm:$0xf]
      %v1203 = vld [vmem:[%s1199 + $0xc] sm:$0xf]
      %v1207 = vunpack.c.l.b16 %v1196
      %v1208 = vunpack.c.l.b16 %v1197
      %v1209 = vunpack.c.l.b16 %v1198
      %v1210 = vpack.c.b16 %v1208, %v1207
      %v1211 = vpack.c.b16 %v1209, %v1209
      %v1216 = vunpack.c.l.b16 %v1200
      %v1217 = vunpack.c.l.b16 %v1201
      %v1218 = vunpack.c.l.b16 %v1202
      %v1219 = vunpack.c.l.b16 %v1203
      %v1220 = vpack.c.b16 %v1217, %v1216
      %v1221 = vpack.c.b16 %v1219, %v1218
      %v1225 = vsel %vm456, %v1210, 0
      %v1228 = vsel %vm456, %v1211, 0
      %1230 = vmatpush.bf16.msra.mxu0 0
      %1231 = vmatpush.bf16.msra.mxu0 0
      %1232 = vmatpush.bf16.msra.mxu0 0
      %1233 = vmatpush.bf16.msra.mxu0 0
      %1234 = vmatpush.bf16.msra.mxu0 0
      %1235 = vmatpush.bf16.msra.mxu0 0
      %1236 = vmatpush.bf16.msra.mxu0 %v1221
      %1237 = vmatpush.bf16.msra.mxu0 %v1220
      %1238 = vmatmul.bf16.gmra.mxu0 %v1225
      %v1239 = vpop.f32.mrf.mxu0
      %v1240 = vadd.f32 0.0, %v1239
      %v1241 = vpop.f32.mrf.mxu0
      %v1242 = vadd.f32 0.0, %v1241
      %1243 = vmatmul.bf16.gmra.mxu0 %v1228
      %v1244 = vpop.f32.mrf.mxu0
      %v1245 = vadd.f32 0.0, %v1244
      %v1246 = vpop.f32.mrf.mxu0
      %1247 = vdwg.mxu0
      %v1248 = vld [vmem:[#allocation3] sm:$0xff]
      %v1249 = vld [vmem:[#allocation3 + $0x8] sm:$0xff]
      %v1250 = vld [vmem:[#allocation3 + $0x10] sm:$0xf]
      %v1251 = vadd.f32 %v1248, %v1240
      %v1252 = vadd.f32 %v1249, %v1242
      %v1253 = vadd.f32 %v1250, %v1245
      %1254 = vst.msk [vmem:[#allocation3] sm:$0xff] %vm481, %v1251
      %1255 = vst.msk [vmem:[#allocation3 + $0x8] sm:$0xff] %vm481, %v1252
      %1256 = vst.msk [vmem:[#allocation3 + $0x10] sm:$0xf] %vm484, %v1253
      %v1257 = vld [vmem:[#allocation3] sm:$0xff]
      %v1258 = vld [vmem:[#allocation3 + $0x8] sm:$0xff]
      %v1259 = vld [vmem:[#allocation3 + $0x10] sm:$0xf]
      %v1260 = vld [vmem:[%s3] sm:$0x1]
      %v1262 = vperm.slane %v1260, 0
      %v1264 = vadd.f32 %v1257, %v1262
      %v1265 = vadd.f32 %v1258, %v1262
      %v1266 = vadd.f32 %v1259, %v1262
      %v1267 = vpack.c.bf16 %v1264, %v1264
      %v1268 = vpack.c.bf16 %v1265, %v1265
      %v1269 = vpack.c.bf16 %v1266, %v1266
      %1270 = vst.msk [vmem:[%s343] sm:$0xf] %vm484, %v1267
      %1271 = vst.msk [vmem:[%s343 + $0x4] sm:$0xf] %vm484, %v1268
      %vm1272 = vcmask 517120
      %1273 = vst.msk [vmem:[%s343 + $0x8] sm:$0x3] %vm1272, %v1269
      %v1274 = vld [vmem:[%s6] sm:$0xff]
      %v1275 = vld [vmem:[%s6 + $0x8] sm:$0xff]
      %v1276 = vld [vmem:[%s6 + $0x10] sm:$0xf]
      %1278 = vset.pattern.permute.xlu0 0
      %1279 = vperm.xlu0 %1278, %v1274
      %v1280 = vpop.permute.xlu0 %1279
      %1283 = vset.pattern.permute.xlu0 0
      %1284 = vperm.xlu0 %1283, %v1275
      %v1285 = vpop.permute.xlu0 %1284
      %1288 = vset.pattern.permute.xlu0 0
      %1289 = vperm.xlu0 %1288, %v1276
      %v1290 = vpop.permute.xlu0 %1289
      %v1292 = vmul.f32 %v1264, %v1280
      %v1293 = vmul.f32 %v1265, %v1285
      %v1294 = vmul.f32 %v1266, %v1290
      %v1295 = vsel %vm481, %v1292, 0.0
      %v1296 = vsel %vm481, %v1293, 0.0
      %v1297 = vadd.f32 %v1295, %v1296
      %v1298 = vsel %vm484, %v1294, 0.0
      %v1299 = vadd.f32 %v1297, %v1298
      %v1300 = vrot.slane %v1299, 4
      %v1301 = vadd.f32 %v1299, %v1300
      %v1302 = vrot.slane %v1301, 2
      %v1303 = vadd.f32 %v1301, %v1302
      %v1304 = vrot.slane %v1303, 1
      %v1305 = vadd.f32 %v1303, %v1304
      %vm1306 = vcmask 516096
      %1307 = vst.msk [vmem:[%s346] sm:$0x1] %vm1306, %v1305
      %v1308 = vmul.f32 %v1292, %v1292
      %v1309 = vmul.f32 %v1293, %v1293
      %v1310 = vmul.f32 %v1294, %v1294
      %v1311 = vsel %vm481, %v1308, 0.0
      %v1312 = vsel %vm481, %v1309, 0.0
      %v1313 = vadd.f32 %v1311, %v1312
      %v1314 = vsel %vm484, %v1310, 0.0
      %v1315 = vadd.f32 %v1313, %v1314
      %v1316 = vrot.slane %v1315, 4
      %v1317 = vadd.f32 %v1315, %v1316
      %v1318 = vrot.slane %v1317, 2
      %v1319 = vadd.f32 %v1317, %v1318
      %v1320 = vrot.slane %v1319, 1
      %v1321 = vadd.f32 %v1319, %v1320
      %1322 = vst.msk [vmem:[%s349] sm:$0x1] %vm1306, %v1321
      %p1323 = scmp.lt.s32.totalorder %s21, 1
      %s1324 = scalar_select %p1323, %s21, 1
      %s1325 = smul.addr %s1324, 3
      %s1326 = smul.addr %s1325, 4
      %s1327 = scalar_lea.vmem %s7, %s1326
      %p1328 = scmp.lt.s32.totalorder %s21, 1
      %s1329 = scalar_select %p1328, %s21, 1
      %s1330 = scalar_lea.vmem %s8, %s1329
      %p1331 = scmp.lt.s32.totalorder %s21, 1
      %s1332 = scalar_select %p1331, %s21, 1
      %s1333 = scalar_lea.vmem %s9, %s1332
      // Predicated region
      $region49: #{center_speed_forward.5} parent=47 // pred_check
        %p1334 = pneg %p191
      $region50: #{center_speed_forward.5} parent=47 // pred_check_branch
        %1336 = sbr.rel (%p1334) target = $region52
      $region51: #{center_speed_forward.5} parent=47 // pred_region
        _
      $region52: #{center_speed_forward.5} parent=47 // pred_fallthru
        _
      // Predicated region
      $region53: #{center_speed_forward.5} parent=47 // pred_check
        %p1337 = pneg %p217
      $region54: #{center_speed_forward.5} parent=47 // pred_check_branch
        %1339 = sbr.rel (%p1337) target = $region56
      $region55: #{center_speed_forward.5} parent=47 // pred_region
        _
      $region56: #{center_speed_forward.5} parent=47 // pred_fallthru
        _
      // Predicated region
      $region57: #{center_speed_forward.5} parent=47 // pred_check
        %p1340 = pneg %p243
      $region58: #{center_speed_forward.5} parent=47 // pred_check_branch
        %1342 = sbr.rel (%p1340) target = $region60
      $region59: #{center_speed_forward.5} parent=47 // pred_region
        _
      $region60: #{center_speed_forward.5} parent=47 // pred_fallthru
        _
    $region48: #{center_speed_forward.5} parent=5 // pred_fallthru
      _
    %p1343 = scmp.le.s32.totalorder 2, %s16
    // Predicated region
    $region61: #{center_speed_forward.5} parent=5 // pred_check
      %p1344 = pneg %p1343
    $region62: #{center_speed_forward.5} parent=5 // pred_check_branch
      %1346 = sbr.rel (%p1344) target = $region64
    $region63: #{center_speed_forward.5} parent=5 // pred_region
      %s1347 = ssub.s32 %s16, 2
      // Predicated region
      $region65: #{center_speed_forward.5} parent=63 // pred_check
        %p1348 = pneg %p197
      $region66: #{center_speed_forward.5} parent=63 // pred_check_branch
        %1350 = sbr.rel (%p1348) target = $region68
      $region67: #{center_speed_forward.5} parent=63 // pred_region
        %p1351 = scmp.lt.s32.totalorder %s22, 1
        %s1352 = scalar_select %p1351, %s22, 1
        %s1353 = smul.addr %s1352, 3
        %s1354 = smul.addr %s1353, 4
        %s1355 = scalar_lea.vmem %s7, %s1354
      $region68: #{center_speed_forward.5} parent=63 // pred_fallthru
        _
      // Predicated region
      $region69: #{center_speed_forward.5} parent=63 // pred_check
        %p1356 = pneg %p223
      $region70: #{center_speed_forward.5} parent=63 // pred_check_branch
        %1358 = sbr.rel (%p1356) target = $region72
      $region71: #{center_speed_forward.5} parent=63 // pred_region
        %p1359 = scmp.lt.s32.totalorder %s22, 1
        %s1360 = scalar_select %p1359, %s22, 1
        %s1361 = scalar_lea.vmem %s8, %s1360
      $region72: #{center_speed_forward.5} parent=63 // pred_fallthru
        _
      // Predicated region
      $region73: #{center_speed_forward.5} parent=63 // pred_check
        %p1362 = pneg %p249
      $region74: #{center_speed_forward.5} parent=63 // pred_check_branch
        %1364 = sbr.rel (%p1362) target = $region76
      $region75: #{center_speed_forward.5} parent=63 // pred_region
        %p1365 = scmp.lt.s32.totalorder %s22, 1
        %s1366 = scalar_select %p1365, %s22, 1
        %s1367 = scalar_lea.vmem %s9, %s1366
      $region76: #{center_speed_forward.5} parent=63 // pred_fallthru
        _
    $region64: #{center_speed_forward.5} parent=5 // pred_fallthru
      _
  $region6: #{center_speed_forward.5} parent=0 // loop_footer
    %s20 = sadd.s32 1, %s16
  $region7: #{center_speed_forward.5} parent=0 // loop_footer_branch
    %15 = sbr.rel target = $region3
  $region8: #{center_speed_forward.5} parent=0 // loop_exit
    _

// kernel: center_speed_forward.4
$region0: #{center_speed_forward.4}
  #allocation0 [shape = 'u32[]', space=smem, size = 0x4, offset = 0x4, fixed_abs, tag = 'smem constant byte address 0x4 - core index']
  #allocation1 [shape = 'u32[72,128]{1,0:T(1,128)}', space=vmem, size = 0x9000, scoped, tag = 'internal scratch']
  #allocation2 [shape = 'bf16[83,6]{1,0:T(8,128)(2,1)}', space=vmem, size = 0x5800, scoped, tag = 'scratch operand']
  #allocation3 [shape = 'f32[72,32]{1,0:T(8,128)}', space=vmem, size = 0x9000, scoped, tag = 'scratch operand']
  %s0 = inlined_call_operand.vmem [shape: bf16[2,4,83,6], index: 0, kind: input, shape index: {}]
  %s1 = inlined_call_operand.vmem [shape: f32[4,83,1], index: 1, kind: input, shape index: {}]
  %s2 = inlined_call_operand.vmem [shape: bf16[9,6,32], index: 2, kind: input, shape index: {}]
  %s3 = inlined_call_operand.vmem [shape: f32[1,32], index: 3, kind: input, shape index: {}]
  %s4 = inlined_call_operand.vmem [shape: f32[1,6], index: 4, kind: input, shape index: {}]
  %s5 = inlined_call_operand.vmem [shape: f32[1,6], index: 5, kind: input, shape index: {}]
  %s6 = inlined_call_operand.vmem [shape: f32[72,1], index: 6, kind: input, shape index: {}]
  %s7 = inlined_call_operand.vmem [shape: bf16[2,72,32], index: 7, kind: output, shape index: {0}]
  %s8 = inlined_call_operand.vmem [shape: f32[2,1,32], index: 8, kind: output, shape index: {1}]
  %s9 = inlined_call_operand.vmem [shape: f32[2,1,32], index: 9, kind: output, shape index: {2}]
  %10 = xla_tuple %s7, %s8, %s9
  %s11 = sld [smem:[#allocation0]]
  $region77: #{center_speed_forward.4} parent=0
    _
  %s13 = ssub.s32 1, %s11
  %s14 = scalar_select 0, %s13, %s11
  loop: start=0, step=1, limit=4
  $region2: #{center_speed_forward.4} parent=0 // loop_pre_header
    _
  $region3: #{center_speed_forward.4} parent=0 // loop_header
    %s16 = sphi 0, %s20
    %p17 = scmp.ge.s32.totalorder %s16, 4
    %s26 = sphi 0, %s28
    %s29 = sphi 0, %s26
    %s30 = sphi 0, %s29
    %s46 = sphi 0, %s30
    %s50 = sphi 0, %s50
    %s52 = sphi 0, %s50
    %s53 = sphi 0, %s52
    %s67 = sphi 0, %s53
    %s71 = sphi 0, %s71
    %s73 = sphi 0, %s71
    %s74 = sphi 0, %s73
    %s88 = sphi 0, %s74
    %s92 = sphi 0, %s92
    %s94 = sphi 0, %s92
    %s95 = sphi 0, %s94
    %s109 = sphi 0, %s95
    %s113 = sphi 0, %s113
    %s115 = sphi 0, %s113
    %s116 = sphi 0, %s115
    %s130 = sphi 0, %s116
    %s134 = sphi 0, %s134
    %s136 = sphi 0, %s134
    %s137 = sphi 0, %s136
    %s151 = sphi 0, %s137
    %s155 = sphi 0, %s155
    %s157 = sphi 0, %s155
    %s158 = sphi 0, %s157
    %s172 = sphi 0, %s158
    %s178 = sphi 0, %s180
    %s181 = sphi 0, %s178
    %s182 = sphi 0, %s181
    %s198 = sphi 0, %s182
    %s204 = sphi 0, %s206
    %s207 = sphi 0, %s204
    %s208 = sphi 0, %s207
    %s224 = sphi 0, %s208
    %s230 = sphi 0, %s232
    %s233 = sphi 0, %s230
    %s234 = sphi 0, %s233
    %s250 = sphi 0, %s234
  $region4: #{center_speed_forward.4} parent=0 // loop_header_branch
    %19 = sbr.rel (%p17) target = $region8
  $region5: #{center_speed_forward.4} parent=0 // loop_body
    %s21 = ssub.s32 %s16, 1
    %s22 = ssub.s32 %s16, 2
    %s23 = sadd.s32 %s16, 1
    %s24 = ssub.s32 %s16, %s23
    %p25 = scmp.eq.s32.totalorder %s24, 0
    %s27 = sadd.s32 %s26, 1
    %s28 = scalar_select %p25, %s26, %s27
    %p31 = pneg %p25
    %p32 = scmp.eq.s32.totalorder %s16, 1
    %p33 = por %p31, %p32
    %p34 = scmp.ne.s32.totalorder %s26, %s29
    %p35 = scmp.eq.s32.totalorder %s16, 0
    %p36 = por %p34, %p35
    %p37 = scmp.ne.s32.totalorder %s26, %s29
    %p38 = scmp.eq.s32.totalorder %s21, 1
    %p39 = por %p37, %p38
    %p40 = scmp.ne.s32.totalorder %s29, %s30
    %p41 = scmp.eq.s32.totalorder %s21, 0
    %p42 = por %p40, %p41
    %p43 = scmp.ne.s32.totalorder %s29, %s30
    %p44 = scmp.eq.s32.totalorder %s22, 1
    %p45 = por %p43, %p44
    %p47 = scmp.ne.s32.totalorder %s30, %s46
    %p48 = scmp.eq.s32.totalorder %s22, 0
    %p49 = por %p47, %p48
    %s51 = sadd.s32 %s50, 1
    %p54 = scmp.eq.s32.totalorder %s16, 1
    %p55 = scmp.ne.s32.totalorder %s50, %s52
    %p56 = scmp.eq.s32.totalorder %s16, 0
    %p57 = por %p55, %p56
    %p58 = scmp.ne.s32.totalorder %s50, %s52
    %p59 = scmp.eq.s32.totalorder %s21, 1
    %p60 = por %p58, %p59
    %p61 = scmp.ne.s32.totalorder %s52, %s53
    %p62 = scmp.eq.s32.totalorder %s21, 0
    %p63 = por %p61, %p62
    %p64 = scmp.ne.s32.totalorder %s52, %s53
    %p65 = scmp.eq.s32.totalorder %s22, 1
    %p66 = por %p64, %p65
    %p68 = scmp.ne.s32.totalorder %s53, %s67
    %p69 = scmp.eq.s32.totalorder %s22, 0
    %p70 = por %p68, %p69
    %s72 = sadd.s32 %s71, 1
    %p75 = scmp.eq.s32.totalorder %s16, 1
    %p76 = scmp.ne.s32.totalorder %s71, %s73
    %p77 = scmp.eq.s32.totalorder %s16, 0
    %p78 = por %p76, %p77
    %p79 = scmp.ne.s32.totalorder %s71, %s73
    %p80 = scmp.eq.s32.totalorder %s21, 1
    %p81 = por %p79, %p80
    %p82 = scmp.ne.s32.totalorder %s73, %s74
    %p83 = scmp.eq.s32.totalorder %s21, 0
    %p84 = por %p82, %p83
    %p85 = scmp.ne.s32.totalorder %s73, %s74
    %p86 = scmp.eq.s32.totalorder %s22, 1
    %p87 = por %p85, %p86
    %p89 = scmp.ne.s32.totalorder %s74, %s88
    %p90 = scmp.eq.s32.totalorder %s22, 0
    %p91 = por %p89, %p90
    %s93 = sadd.s32 %s92, 1
    %p96 = scmp.eq.s32.totalorder %s16, 1
    %p97 = scmp.ne.s32.totalorder %s92, %s94
    %p98 = scmp.eq.s32.totalorder %s16, 0
    %p99 = por %p97, %p98
    %p100 = scmp.ne.s32.totalorder %s92, %s94
    %p101 = scmp.eq.s32.totalorder %s21, 1
    %p102 = por %p100, %p101
    %p103 = scmp.ne.s32.totalorder %s94, %s95
    %p104 = scmp.eq.s32.totalorder %s21, 0
    %p105 = por %p103, %p104
    %p106 = scmp.ne.s32.totalorder %s94, %s95
    %p107 = scmp.eq.s32.totalorder %s22, 1
    %p108 = por %p106, %p107
    %p110 = scmp.ne.s32.totalorder %s95, %s109
    %p111 = scmp.eq.s32.totalorder %s22, 0
    %p112 = por %p110, %p111
    %s114 = sadd.s32 %s113, 1
    %p117 = scmp.eq.s32.totalorder %s16, 1
    %p118 = scmp.ne.s32.totalorder %s113, %s115
    %p119 = scmp.eq.s32.totalorder %s16, 0
    %p120 = por %p118, %p119
    %p121 = scmp.ne.s32.totalorder %s113, %s115
    %p122 = scmp.eq.s32.totalorder %s21, 1
    %p123 = por %p121, %p122
    %p124 = scmp.ne.s32.totalorder %s115, %s116
    %p125 = scmp.eq.s32.totalorder %s21, 0
    %p126 = por %p124, %p125
    %p127 = scmp.ne.s32.totalorder %s115, %s116
    %p128 = scmp.eq.s32.totalorder %s22, 1
    %p129 = por %p127, %p128
    %p131 = scmp.ne.s32.totalorder %s116, %s130
    %p132 = scmp.eq.s32.totalorder %s22, 0
    %p133 = por %p131, %p132
    %s135 = sadd.s32 %s134, 1
    %p138 = scmp.eq.s32.totalorder %s16, 1
    %p139 = scmp.ne.s32.totalorder %s134, %s136
    %p140 = scmp.eq.s32.totalorder %s16, 0
    %p141 = por %p139, %p140
    %p142 = scmp.ne.s32.totalorder %s134, %s136
    %p143 = scmp.eq.s32.totalorder %s21, 1
    %p144 = por %p142, %p143
    %p145 = scmp.ne.s32.totalorder %s136, %s137
    %p146 = scmp.eq.s32.totalorder %s21, 0
    %p147 = por %p145, %p146
    %p148 = scmp.ne.s32.totalorder %s136, %s137
    %p149 = scmp.eq.s32.totalorder %s22, 1
    %p150 = por %p148, %p149
    %p152 = scmp.ne.s32.totalorder %s137, %s151
    %p153 = scmp.eq.s32.totalorder %s22, 0
    %p154 = por %p152, %p153
    %s156 = sadd.s32 %s155, 1
    %p159 = scmp.eq.s32.totalorder %s16, 1
    %p160 = scmp.ne.s32.totalorder %s155, %s157
    %p161 = scmp.eq.s32.totalorder %s16, 0
    %p162 = por %p160, %p161
    %p163 = scmp.ne.s32.totalorder %s155, %s157
    %p164 = scmp.eq.s32.totalorder %s21, 1
    %p165 = por %p163, %p164
    %p166 = scmp.ne.s32.totalorder %s157, %s158
    %p167 = scmp.eq.s32.totalorder %s21, 0
    %p168 = por %p166, %p167
    %p169 = scmp.ne.s32.totalorder %s157, %s158
    %p170 = scmp.eq.s32.totalorder %s22, 1
    %p171 = por %p169, %p170
    %p173 = scmp.ne.s32.totalorder %s158, %s172
    %p174 = scmp.eq.s32.totalorder %s22, 0
    %p175 = por %p173, %p174
    %s176 = ssub.s32 %s16, %s23
    %p177 = scmp.eq.s32.totalorder %s176, 0
    %s179 = sadd.s32 %s178, 1
    %s180 = scalar_select %p177, %s178, %s179
    %p183 = pneg %p177
    %p184 = scmp.eq.s32.totalorder %s16, 1
    %p185 = por %p183, %p184
    %p186 = scmp.ne.s32.totalorder %s178, %s181
    %p187 = scmp.eq.s32.totalorder %s16, 0
    %p188 = por %p186, %p187
    %p189 = scmp.ne.s32.totalorder %s178, %s181
    %p190 = scmp.eq.s32.totalorder %s21, 1
    %p191 = por %p189, %p190
    %p192 = scmp.ne.s32.totalorder %s181, %s182
    %p193 = scmp.eq.s32.totalorder %s21, 0
    %p194 = por %p192, %p193
    %p195 = scmp.ne.s32.totalorder %s181, %s182
    %p196 = scmp.eq.s32.totalorder %s22, 1
    %p197 = por %p195, %p196
    %p199 = scmp.ne.s32.totalorder %s182, %s198
    %p200 = scmp.eq.s32.totalorder %s22, 0
    %p201 = por %p199, %p200
    %s202 = ssub.s32 %s16, %s23
    %p203 = scmp.eq.s32.totalorder %s202, 0
    %s205 = sadd.s32 %s204, 1
    %s206 = scalar_select %p203, %s204, %s205
    %p209 = pneg %p203
    %p210 = scmp.eq.s32.totalorder %s16, 1
    %p211 = por %p209, %p210
    %p212 = scmp.ne.s32.totalorder %s204, %s207
    %p213 = scmp.eq.s32.totalorder %s16, 0
    %p214 = por %p212, %p213
    %p215 = scmp.ne.s32.totalorder %s204, %s207
    %p216 = scmp.eq.s32.totalorder %s21, 1
    %p217 = por %p215, %p216
    %p218 = scmp.ne.s32.totalorder %s207, %s208
    %p219 = scmp.eq.s32.totalorder %s21, 0
    %p220 = por %p218, %p219
    %p221 = scmp.ne.s32.totalorder %s207, %s208
    %p222 = scmp.eq.s32.totalorder %s22, 1
    %p223 = por %p221, %p222
    %p225 = scmp.ne.s32.totalorder %s208, %s224
    %p226 = scmp.eq.s32.totalorder %s22, 0
    %p227 = por %p225, %p226
    %s228 = ssub.s32 %s16, %s23
    %p229 = scmp.eq.s32.totalorder %s228, 0
    %s231 = sadd.s32 %s230, 1
    %s232 = scalar_select %p229, %s230, %s231
    %p235 = pneg %p229
    %p236 = scmp.eq.s32.totalorder %s16, 1
    %p237 = por %p235, %p236
    %p238 = scmp.ne.s32.totalorder %s230, %s233
    %p239 = scmp.eq.s32.totalorder %s16, 0
    %p240 = por %p238, %p239
    %p241 = scmp.ne.s32.totalorder %s230, %s233
    %p242 = scmp.eq.s32.totalorder %s21, 1
    %p243 = por %p241, %p242
    %p244 = scmp.ne.s32.totalorder %s233, %s234
    %p245 = scmp.eq.s32.totalorder %s21, 0
    %p246 = por %p244, %p245
    %p247 = scmp.ne.s32.totalorder %s233, %s234
    %p248 = scmp.eq.s32.totalorder %s22, 1
    %p249 = por %p247, %p248
    %p251 = scmp.ne.s32.totalorder %s234, %s250
    %p252 = scmp.eq.s32.totalorder %s22, 0
    %p253 = por %p251, %p252
    %p254 = scmp.le.s32.totalorder 1, %s16
    %p255 = scmp.lt.s32.totalorder %s16, 3
    %p256 = pnand %p254, %p255
    %p257 = pneg %p256
    // Predicated region
    $region9: #{center_speed_forward.4} parent=5 // pred_check
      _
    $region10: #{center_speed_forward.4} parent=5 // pred_check_branch
      %259 = sbr.rel (%p256) target = $region12
    $region11: #{center_speed_forward.4} parent=5 // pred_region
      %s260 = ssub.s32 %s16, 1
      // Predicated region
      $region13: #{center_speed_forward.4} parent=11 // pred_check
        %p261 = pneg %p63
      $region14: #{center_speed_forward.4} parent=11 // pred_check_branch
        %263 = sbr.rel (%p261) target = $region16
      $region15: #{center_speed_forward.4} parent=11 // pred_region
        _
      $region16: #{center_speed_forward.4} parent=11 // pred_fallthru
        _
      // Predicated region
      $region17: #{center_speed_forward.4} parent=11 // pred_check
        %p264 = pneg %p84
      $region18: #{center_speed_forward.4} parent=11 // pred_check_branch
        %266 = sbr.rel (%p264) target = $region20
      $region19: #{center_speed_forward.4} parent=11 // pred_region
        _
      $region20: #{center_speed_forward.4} parent=11 // pred_fallthru
        _
      // Predicated region
      $region21: #{center_speed_forward.4} parent=11 // pred_check
        %p267 = pneg %p105
      $region22: #{center_speed_forward.4} parent=11 // pred_check_branch
        %269 = sbr.rel (%p267) target = $region24
      $region23: #{center_speed_forward.4} parent=11 // pred_region
        _
      $region24: #{center_speed_forward.4} parent=11 // pred_fallthru
        _
      // Predicated region
      $region25: #{center_speed_forward.4} parent=11 // pred_check
        %p270 = pneg %p126
      $region26: #{center_speed_forward.4} parent=11 // pred_check_branch
        %272 = sbr.rel (%p270) target = $region28
      $region27: #{center_speed_forward.4} parent=11 // pred_region
        _
      $region28: #{center_speed_forward.4} parent=11 // pred_fallthru
        _
      // Predicated region
      $region29: #{center_speed_forward.4} parent=11 // pred_check
        %p273 = pneg %p147
      $region30: #{center_speed_forward.4} parent=11 // pred_check_branch
        %275 = sbr.rel (%p273) target = $region32
      $region31: #{center_speed_forward.4} parent=11 // pred_region
        _
      $region32: #{center_speed_forward.4} parent=11 // pred_fallthru
        _
      // Predicated region
      $region33: #{center_speed_forward.4} parent=11 // pred_check
        %p276 = pneg %p168
      $region34: #{center_speed_forward.4} parent=11 // pred_check_branch
        %278 = sbr.rel (%p276) target = $region36
      $region35: #{center_speed_forward.4} parent=11 // pred_region
        _
      $region36: #{center_speed_forward.4} parent=11 // pred_fallthru
        _
    $region12: #{center_speed_forward.4} parent=5 // pred_fallthru
      _
    %p279 = scmp.lt.s32.totalorder %s16, 2
    // Predicated region
    $region37: #{center_speed_forward.4} parent=5 // pred_check
      %p280 = pneg %p279
    $region38: #{center_speed_forward.4} parent=5 // pred_check_branch
      %282 = sbr.rel (%p280) target = $region40
    $region39: #{center_speed_forward.4} parent=5 // pred_region
      // Predicated region
      $region41: #{center_speed_forward.4} parent=39 // pred_check
        %p283 = pneg %p36
      $region42: #{center_speed_forward.4} parent=39 // pred_check_branch
        %285 = sbr.rel (%p283) target = $region44
      $region43: #{center_speed_forward.4} parent=39 // pred_region
        %p286 = scmp.lt.s32.totalorder %s16, 1
        %s287 = scalar_select %p286, %s16, 1
        %s288 = smul.addr %s287, 44
        %s289 = smul.addr %s288, 4
        %s290 = scalar_lea.vmem %s0, %s289
      $region44: #{center_speed_forward.4} parent=39 // pred_fallthru
        _
    $region40: #{center_speed_forward.4} parent=5 // pred_fallthru
      _
    %p291 = scmp.le.s32.totalorder 1, %s16
    %p292 = scmp.lt.s32.totalorder %s16, 3
    %p293 = pnand %p291, %p292
    %p294 = pneg %p293
    // Predicated region
    $region45: #{center_speed_forward.4} parent=5 // pred_check
      _
    $region46: #{center_speed_forward.4} parent=5 // pred_check_branch
      %296 = sbr.rel (%p293) target = $region48
    $region47: #{center_speed_forward.4} parent=5 // pred_region
      %s297 = ssub.s32 %s16, 1
      %p298 = scmp.lt.s32.totalorder %s21, 1
      %s299 = scalar_select %p298, %s21, 1
      %s300 = smul.addr %s299, 44
      %s301 = smul.addr %s300, 4
      %s302 = scalar_lea.vmem %s0, %s301
      %p303 = pneg %p42
      %p304 = pneg %p39
      %p305 = pneg %p63
      %p306 = pneg %p60
      %p307 = pneg %p84
      %p308 = pneg %p81
      %p309 = pneg %p105
      %p310 = pneg %p102
      %p311 = pneg %p126
      %p312 = pneg %p123
      %p313 = pneg %p147
      %p314 = pneg %p144
      %p315 = pneg %p168
      %p316 = pneg %p165
      %p317 = pneg %p194
      %p318 = pneg %p191
      %p319 = scmp.lt.s32.totalorder %s21, 1
      %s320 = scalar_select %p319, %s21, 1
      %s321 = smul.addr %s320, 9
      %s322 = smul.addr %s321, 4
      %s323 = scalar_lea.vmem %s7, %s322
      %p324 = pneg %p220
      %p325 = pneg %p217
      %p326 = scmp.lt.s32.totalorder %s21, 1
      %s327 = scalar_select %p326, %s21, 1
      %s328 = scalar_lea.vmem %s8, %s327
      %p329 = pneg %p246
      %p330 = pneg %p243
      %p331 = scmp.lt.s32.totalorder %s21, 1
      %s332 = scalar_select %p331, %s21, 1
      %s333 = scalar_lea.vmem %s9, %s332
      %p334 = scmp.lt.s32.totalorder %s21, 1
      %s335 = scalar_select %p334, %s21, 1
      %s336 = smul.addr %s335, 44
      %s337 = smul.addr %s336, 4
      %s338 = scalar_lea.vmem %s0, %s337
      %p339 = scmp.lt.s32.totalorder %s21, 1
      %s340 = scalar_select %p339, %s21, 1
      %s341 = smul.addr %s340, 9
      %s342 = smul.addr %s341, 4
      %s343 = scalar_lea.vmem %s7, %s342
      %p344 = scmp.lt.s32.totalorder %s21, 1
      %s345 = scalar_select %p344, %s21, 1
      %s346 = scalar_lea.vmem %s8, %s345
      %p347 = scmp.lt.s32.totalorder %s21, 1
      %s348 = scalar_select %p347, %s21, 1
      %s349 = scalar_lea.vmem %s9, %s348
      %v351 = vld [vmem:[%s4] sm:$0x1]
      %v352 = vld [vmem:[%s5] sm:$0x1]
      %v353 = vld [vmem:[%s338] sm:$0xf]
      %v354 = vld [vmem:[%s338 + $0x4] sm:$0xf]
      %v355 = vld [vmem:[%s338 + $0x8] sm:$0xf]
      %v356 = vld [vmem:[%s338 + $0xc] sm:$0xf]
      %v357 = vld [vmem:[%s338 + $0x10] sm:$0xf]
      %v358 = vld [vmem:[%s338 + $0x14] sm:$0xf]
      %v359 = vld [vmem:[%s338 + $0x18] sm:$0xf]
      %v360 = vld [vmem:[%s338 + $0x1c] sm:$0xf]
      %v361 = vld [vmem:[%s338 + $0x20] sm:$0xf]
      %v362 = vld [vmem:[%s338 + $0x24] sm:$0xf]
      %v363 = vld [vmem:[%s338 + $0x28] sm:$0x3]
      %v364 = vunpack.c.l.bf16 %v353
      %v365 = vunpack.c.l.bf16 %v354
      %v366 = vunpack.c.l.bf16 %v355
      %v367 = vunpack.c.l.bf16 %v356
      %v368 = vunpack.c.l.bf16 %v357
      %v369 = vunpack.c.l.bf16 %v358
      %v370 = vunpack.c.l.bf16 %v359
      %v371 = vunpack.c.l.bf16 %v360
      %v372 = vunpack.c.l.bf16 %v361
      %v373 = vunpack.c.l.bf16 %v362
      %v374 = vunpack.c.l.bf16 %v363
      %v376 = vperm.slane %v351, 0
      %v378 = vmul.f32 %v364, %v376
      %v379 = vmul.f32 %v365, %v376
      %v380 = vmul.f32 %v366, %v376
      %v381 = vmul.f32 %v367, %v376
      %v382 = vmul.f32 %v368, %v376
      %v383 = vmul.f32 %v369, %v376
      %v384 = vmul.f32 %v370, %v376
      %v385 = vmul.f32 %v371, %v376
      %v386 = vmul.f32 %v372, %v376
      %v387 = vmul.f32 %v373, %v376
      %v388 = vmul.f32 %v374, %v376
      %v390 = vperm.slane %v352, 0
      %v392 = vadd.f32 %v378, %v390
      %v393 = vadd.f32 %v379, %v390
      %v394 = vadd.f32 %v380, %v390
      %v395 = vadd.f32 %v381, %v390
      %v396 = vadd.f32 %v382, %v390
      %v397 = vadd.f32 %v383, %v390
      %v398 = vadd.f32 %v384, %v390
      %v399 = vadd.f32 %v385, %v390
      %v400 = vadd.f32 %v386, %v390
      %v401 = vadd.f32 %v387, %v390
      %v402 = vadd.f32 %v388, %v390
      %v403 = vld [vmem:[%s1] sm:$0xff]
      %v404 = vld [vmem:[%s1 + $0x8] sm:$0xff]
      %v405 = vld [vmem:[%s1 + $0x10] sm:$0xff]
      %v406 = vld [vmem:[%s1 + $0x18] sm:$0xff]
      %v407 = vld [vmem:[%s1 + $0x20] sm:$0xff]
      %v408 = vld [vmem:[%s1 + $0x28] sm:$0xff]
      %v409 = vld [vmem:[%s1 + $0x30] sm:$0xff]
      %v410 = vld [vmem:[%s1 + $0x38] sm:$0xff]
      %v411 = vld [vmem:[%s1 + $0x40] sm:$0xff]
      %v412 = vld [vmem:[%s1 + $0x48] sm:$0xff]
      %v413 = vld [vmem:[%s1 + $0x50] sm:$0x7]
      %415 = vset.pattern.permute.xlu0 0
      %416 = vperm.xlu0 %415, %v403
      %v417 = vpop.permute.xlu0 %416
      %420 = vset.pattern.permute.xlu0 0
      %421 = vperm.xlu0 %420, %v404
      %v422 = vpop.permute.xlu0 %421
      %425 = vset.pattern.permute.xlu0 0
      %426 = vperm.xlu0 %425, %v405
      %v427 = vpop.permute.xlu0 %426
      %430 = vset.pattern.permute.xlu0 0
      %431 = vperm.xlu0 %430, %v406
      %v432 = vpop.permute.xlu0 %431
      %435 = vset.pattern.permute.xlu0 0
      %436 = vperm.xlu0 %435, %v407
      %v437 = vpop.permute.xlu0 %436
      %440 = vset.pattern.permute.xlu0 0
      %441 = vperm.xlu0 %440, %v408
      %v442 = vpop.permute.xlu0 %441
      %445 = vset.pattern.permute.xlu0 0
      %446 = vperm.xlu0 %445, %v409
      %v447 = vpop.permute.xlu0 %446
      %450 = vset.pattern.permute.xlu0 0
      %451 = vperm.xlu0 %450, %v410
      %v452 = vpop.permute.xlu0 %451
      %455 = vset.pattern.permute.xlu0 0
      %456 = vperm.xlu0 %455, %v411
      %v457 = vpop.permute.xlu0 %456
      %460 = vset.pattern.permute.xlu0 0
      %461 = vperm.xlu0 %460, %v412
      %v462 = vpop.permute.xlu0 %461
      %465 = vset.pattern.permute.xlu0 0
      %466 = vperm.xlu0 %465, %v413
      %v467 = vpop.permute.xlu0 %466
      %v469 = vmul.f32 %v392, %v417
      %v470 = vmul.f32 %v393, %v422
      %v471 = vmul.f32 %v394, %v427
      %v472 = vmul.f32 %v395, %v432
      %v473 = vmul.f32 %v396, %v437
      %v474 = vmul.f32 %v397, %v442
      %v475 = vmul.f32 %v398, %v447
      %v476 = vmul.f32 %v399, %v452
      %v477 = vmul.f32 %v400, %v457
      %v478 = vmul.f32 %v401, %v462
      %v479 = vmul.f32 %v402, %v467
      %v480 = vpack.c.bf16 %v469, %v469
      %v481 = vpack.c.bf16 %v470, %v470
      %v482 = vpack.c.bf16 %v471, %v471
      %v483 = vpack.c.bf16 %v472, %v472
      %v484 = vpack.c.bf16 %v473, %v473
      %v485 = vpack.c.bf16 %v474, %v474
      %v486 = vpack.c.bf16 %v475, %v475
      %v487 = vpack.c.bf16 %v476, %v476
      %v488 = vpack.c.bf16 %v477, %v477
      %v489 = vpack.c.bf16 %v478, %v478
      %v490 = vpack.c.bf16 %v479, %v479
      %vm491 = vcmask 44032
      %492 = vst.msk [vmem:[#allocation2] sm:$0xf] %vm491, %v480
      %493 = vst.msk [vmem:[#allocation2 + $0x4] sm:$0xf] %vm491, %v481
      %494 = vst.msk [vmem:[#allocation2 + $0x8] sm:$0xf] %vm491, %v482
      %495 = vst.msk [vmem:[#allocation2 + $0xc] sm:$0xf] %vm491, %v483
      %496 = vst.msk [vmem:[#allocation2 + $0x10] sm:$0xf] %vm491, %v484
      %497 = vst.msk [vmem:[#allocation2 + $0x14] sm:$0xf] %vm491, %v485
      %498 = vst.msk [vmem:[#allocation2 + $0x18] sm:$0xf] %vm491, %v486
      %499 = vst.msk [vmem:[#allocation2 + $0x1c] sm:$0xf] %vm491, %v487
      %500 = vst.msk [vmem:[#allocation2 + $0x20] sm:$0xf] %vm491, %v488
      %501 = vst.msk [vmem:[#allocation2 + $0x24] sm:$0xf] %vm491, %v489
      %vm502 = vcmask 41984
      %vm503 = vsmask.f32 1280
      %vm504 = vmand %vm502, %vm503
      %v505 = vld [vmem:[#allocation2 + $0x28] sm:$0x3]
      %v506 = vsel %vm504, %v490, %v505
      %507 = vst [vmem:[#allocation2 + $0x28] sm:$0x3] %v506
      %v508 = vld [vmem:[#allocation2] sm:$0xf]
      %v509 = vld [vmem:[#allocation2 + $0x4] sm:$0xf]
      %v510 = vld [vmem:[#allocation2 + $0x8] sm:$0xf]
      %v511 = vld [vmem:[#allocation2 + $0xc] sm:$0xf]
      %v512 = vld [vmem:[#allocation2 + $0x10] sm:$0xf]
      %v513 = vld [vmem:[#allocation2 + $0x14] sm:$0xf]
      %v514 = vld [vmem:[#allocation2 + $0x18] sm:$0xf]
      %v515 = vld [vmem:[#allocation2 + $0x1c] sm:$0xf]
      %v516 = vld [vmem:[#allocation2 + $0x20] sm:$0xf]
      %v517 = vld [vmem:[%s2] sm:$0x7]
      %v527 = vunpack.c.l.b16 %v508
      %v528 = vunpack.c.l.b16 %v509
      %v529 = vunpack.c.l.b16 %v510
      %v530 = vunpack.c.l.b16 %v511
      %v531 = vunpack.c.l.b16 %v512
      %v532 = vunpack.c.l.b16 %v513
      %v533 = vunpack.c.l.b16 %v514
      %v534 = vunpack.c.l.b16 %v515
      %v535 = vunpack.c.l.b16 %v516
      %v536 = vpack.c.b16 %v528, %v527
      %v537 = vpack.c.b16 %v530, %v529
      %v538 = vpack.c.b16 %v532, %v531
      %v539 = vpack.c.b16 %v534, %v533
      %v540 = vpack.c.b16 %v535, %v535
      %vm541 = vcmask 48128
      %v543 = vsel %vm541, %v536, 0
      %v546 = vsel %vm541, %v537, 0
      %v549 = vsel %vm541, %v538, 0
      %v552 = vsel %vm541, %v539, 0
      %v555 = vsel %vm541, %v540, 0
      %vm557 = vcmask 1042432
      %v559 = vsel %vm557, %v517, 0
      %561 = vmatpush.bf16.msra.mxu0 0
      %562 = vmatpush.bf16.msra.mxu0 0
      %563 = vmatpush.bf16.msra.mxu0 0
      %564 = vmatpush.bf16.msra.mxu0 0
      %565 = vmatpush.bf16.msra.mxu0 0
      %566 = vmatpush.bf16.msra.mxu0 0
      %567 = vmatpush.bf16.msra.mxu0 0
      %568 = vmatpush.bf16.msra.mxu0 %v559
      %569 = vmatmul.bf16.gmra.mxu0 %v543
      %v570 = vpop.f32.mrf.mxu0
      %v571 = vadd.f32 0.0, %v570
      %v572 = vpop.f32.mrf.mxu0
      %v573 = vadd.f32 0.0, %v572
      %574 = vmatmul.bf16.gmra.mxu0 %v546
      %v575 = vpop.f32.mrf.mxu0
      %v576 = vadd.f32 0.0, %v575
      %v577 = vpop.f32.mrf.mxu0
      %v578 = vadd.f32 0.0, %v577
      %579 = vmatmul.bf16.gmra.mxu0 %v549
      %v580 = vpop.f32.mrf.mxu0
      %v581 = vadd.f32 0.0, %v580
      %v582 = vpop.f32.mrf.mxu0
      %v583 = vadd.f32 0.0, %v582
      %584 = vmatmul.bf16.gmra.mxu0 %v552
      %v585 = vpop.f32.mrf.mxu0
      %v586 = vadd.f32 0.0, %v585
      %v587 = vpop.f32.mrf.mxu0
      %v588 = vadd.f32 0.0, %v587
      %589 = vmatmul.bf16.gmra.mxu0 %v555
      %v590 = vpop.f32.mrf.mxu0
      %v591 = vadd.f32 0.0, %v590
      %v592 = vpop.f32.mrf.mxu0
      %593 = vdwg.mxu0
      %vm594 = vcmask 261120
      %595 = vst.msk [vmem:[#allocation3] sm:$0xff] %vm594, %v571
      %596 = vst.msk [vmem:[#allocation3 + $0x8] sm:$0xff] %vm594, %v573
      %597 = vst.msk [vmem:[#allocation3 + $0x10] sm:$0xff] %vm594, %v576
      %598 = vst.msk [vmem:[#allocation3 + $0x18] sm:$0xff] %vm594, %v578
      %599 = vst.msk [vmem:[#allocation3 + $0x20] sm:$0xff] %vm594, %v581
      %600 = vst.msk [vmem:[#allocation3 + $0x28] sm:$0xff] %vm594, %v583
      %601 = vst.msk [vmem:[#allocation3 + $0x30] sm:$0xff] %vm594, %v586
      %602 = vst.msk [vmem:[#allocation3 + $0x38] sm:$0xff] %vm594, %v588
      %603 = vst.msk [vmem:[#allocation3 + $0x40] sm:$0xff] %vm594, %v591
      %v604 = vld [vmem:[#allocation2] sm:$0xf]
      %v605 = vld [vmem:[#allocation2 + $0x4] sm:$0xf]
      %v606 = vld [vmem:[#allocation2 + $0x8] sm:$0xf]
      %v607 = vld [vmem:[#allocation2 + $0xc] sm:$0xf]
      %v608 = vld [vmem:[#allocation2 + $0x10] sm:$0xf]
      %v609 = vld [vmem:[#allocation2 + $0x14] sm:$0xf]
      %v610 = vld [vmem:[#allocation2 + $0x18] sm:$0xf]
      %v611 = vld [vmem:[#allocation2 + $0x1c] sm:$0xf]
      %v612 = vld [vmem:[#allocation2 + $0x20] sm:$0xf]
      %v613 = vld [vmem:[#allocation2 + $0x24] sm:$0x1]
      %s614 = scalar_lea.vmem %s2, 8
      %v615 = vld [vmem:[%s614] sm:$0x7]
      %v626 = vunpack.c.l.b16 %v604
      %v627 = vunpack.c.l.b16 %v605
      %v628 = vunpack.c.l.b16 %v606
      %v629 = vunpack.c.l.b16 %v607
      %v630 = vunpack.c.l.b16 %v608
      %v631 = vunpack.c.l.b16 %v609
      %v632 = vunpack.c.l.b16 %v610
      %v633 = vunpack.c.l.b16 %v611
      %v634 = vunpack.c.l.b16 %v612
      %v635 = vunpack.c.l.b16 %v613
      %v636 = vpack.c.b16 %v627, %v626
      %v637 = vpack.c.b16 %v629, %v628
      %v638 = vpack.c.b16 %v631, %v630
      %v639 = vpack.c.b16 %v633, %v632
      %v640 = vpack.c.b16 %v635, %v634
      %vm641 = vsmask.f32 7424
      %v643 = vshrl.u32 %v636, 16
      %v645 = vshll.u32 %v636, 16
      %v647 = vrot.slane %v645, 1
      %v648 = vor.u32 %v643, %v647
      %v650 = vshll.u32 %v637, 16
      %v652 = vrot.slane %v650, 1
      %v653 = vsel %vm641, %v648, %v652
      %v654 = vshrl.u32 %v637, 16
      %v656 = vor.u32 %v654, %v652
      %v658 = vshll.u32 %v638, 16
      %v660 = vrot.slane %v658, 1
      %v661 = vsel %vm641, %v656, %v660
      %v662 = vshrl.u32 %v638, 16
      %v664 = vor.u32 %v662, %v660
      %v666 = vshll.u32 %v639, 16
      %v668 = vrot.slane %v666, 1
      %v669 = vsel %vm641, %v664, %v668
      %v670 = vshrl.u32 %v639, 16
      %v672 = vor.u32 %v670, %v668
      %v674 = vshll.u32 %v640, 16
      %v676 = vrot.slane %v674, 1
      %v677 = vsel %vm641, %v672, %v676
      %v678 = vshrl.u32 %v640, 16
      %v680 = vor.u32 %v678, %v676
      %v682 = vsel %vm541, %v653, 0
      %v685 = vsel %vm541, %v661, 0
      %v688 = vsel %vm541, %v669, 0
      %v691 = vsel %vm541, %v677, 0
      %v694 = vsel %vm541, %v680, 0
      %v697 = vsel %vm557, %v615, 0
      %699 = vmatpush.bf16.msra.mxu0 0
      %700 = vmatpush.bf16.msra.mxu0 0
      %701 = vmatpush.bf16.msra.mxu0 0
      %702 = vmatpush.bf16.msra.mxu0 0
      %703 = vmatpush.bf16.msra.mxu0 0
      %704 = vmatpush.bf16.msra.mxu0 0
      %705 = vmatpush.bf16.msra.mxu0 0
      %706 = vmatpush.bf16.msra.mxu0 %v697
      %707 = vmatmul.bf16.gmra.mxu0 %v682
      %v708 = vpop.f32.mrf.mxu0
      %v709 = vadd.f32 0.0, %v708
      %v710 = vpop.f32.mrf.mxu0
      %v711 = vadd.f32 0.0, %v710
      %712 = vmatmul.bf16.gmra.mxu0 %v685
      %v713 = vpop.f32.mrf.mxu0
      %v714 = vadd.f32 0.0, %v713
      %v715 = vpop.f32.mrf.mxu0
      %v716 = vadd.f32 0.0, %v715
      %717 = vmatmul.bf16.gmra.mxu0 %v688
      %v718 = vpop.f32.mrf.mxu0
      %v719 = vadd.f32 0.0, %v718
      %v720 = vpop.f32.mrf.mxu0
      %v721 = vadd.f32 0.0, %v720
      %722 = vmatmul.bf16.gmra.mxu0 %v691
      %v723 = vpop.f32.mrf.mxu0
      %v724 = vadd.f32 0.0, %v723
      %v725 = vpop.f32.mrf.mxu0
      %v726 = vadd.f32 0.0, %v725
      %727 = vmatmul.bf16.gmra.mxu0 %v694
      %v728 = vpop.f32.mrf.mxu0
      %v729 = vadd.f32 0.0, %v728
      %v730 = vpop.f32.mrf.mxu0
      %731 = vdwg.mxu0
      %v732 = vld [vmem:[#allocation3] sm:$0xff]
      %v733 = vld [vmem:[#allocation3 + $0x8] sm:$0xff]
      %v734 = vld [vmem:[#allocation3 + $0x10] sm:$0xff]
      %v735 = vld [vmem:[#allocation3 + $0x18] sm:$0xff]
      %v736 = vld [vmem:[#allocation3 + $0x20] sm:$0xff]
      %v737 = vld [vmem:[#allocation3 + $0x28] sm:$0xff]
      %v738 = vld [vmem:[#allocation3 + $0x30] sm:$0xff]
      %v739 = vld [vmem:[#allocation3 + $0x38] sm:$0xff]
      %v740 = vld [vmem:[#allocation3 + $0x40] sm:$0xff]
      %v741 = vadd.f32 %v732, %v709
      %v742 = vadd.f32 %v733, %v711
      %v743 = vadd.f32 %v734, %v714
      %v744 = vadd.f32 %v735, %v716
      %v745 = vadd.f32 %v736, %v719
      %v746 = vadd.f32 %v737, %v721
      %v747 = vadd.f32 %v738, %v724
      %v748 = vadd.f32 %v739, %v726
      %v749 = vadd.f32 %v740, %v729
      %750 = vst.msk [vmem:[#allocation3] sm:$0xff] %vm594, %v741
      %751 = vst.msk [vmem:[#allocation3 + $0x8] sm:$0xff] %vm594, %v742
      %752 = vst.msk [vmem:[#allocation3 + $0x10] sm:$0xff] %vm594, %v743
      %753 = vst.msk [vmem:[#allocation3 + $0x18] sm:$0xff] %vm594, %v744
      %754 = vst.msk [vmem:[#allocation3 + $0x20] sm:$0xff] %vm594, %v745
      %755 = vst.msk [vmem:[#allocation3 + $0x28] sm:$0xff] %vm594, %v746
      %756 = vst.msk [vmem:[#allocation3 + $0x30] sm:$0xff] %vm594, %v747
      %757 = vst.msk [vmem:[#allocation3 + $0x38] sm:$0xff] %vm594, %v748
      %758 = vst.msk [vmem:[#allocation3 + $0x40] sm:$0xff] %vm594, %v749
      %v759 = vld [vmem:[#allocation2 + $0x4] sm:$0xf]
      %v760 = vld [vmem:[#allocation2 + $0x8] sm:$0xf]
      %v761 = vld [vmem:[#allocation2 + $0xc] sm:$0xf]
      %v762 = vld [vmem:[#allocation2 + $0x10] sm:$0xf]
      %v763 = vld [vmem:[#allocation2 + $0x14] sm:$0xf]
      %v764 = vld [vmem:[#allocation2 + $0x18] sm:$0xf]
      %v765 = vld [vmem:[#allocation2 + $0x1c] sm:$0xf]
      %v766 = vld [vmem:[#allocation2 + $0x20] sm:$0xf]
      %v767 = vld [vmem:[#allocation2 + $0x24] sm:$0xf]
      %v768 = vld [vmem:[#allocation2 + $0x28] sm:$0x1]
      %s769 = scalar_lea.vmem %s2, 24
      %v770 = vld [vmem:[%s769] sm:$0x7]
      %v781 = vunpack.c.l.b16 %v759
      %v782 = vunpack.c.l.b16 %v760
      %v783 = vunpack.c.l.b16 %v761
      %v784 = vunpack.c.l.b16 %v762
      %v785 = vunpack.c.l.b16 %v763
      %v786 = vunpack.c.l.b16 %v764
      %v787 = vunpack.c.l.b16 %v765
      %v788 = vunpack.c.l.b16 %v766
      %v789 = vunpack.c.l.b16 %v767
      %v790 = vunpack.c.l.b16 %v768
      %v791 = vpack.c.b16 %v782, %v781
      %v792 = vpack.c.b16 %v784, %v783
      %v793 = vpack.c.b16 %v786, %v785
      %v794 = vpack.c.b16 %v788, %v787
      %v795 = vpack.c.b16 %v790, %v789
      %v797 = vshrl.u32 %v791, 16
      %v799 = vshll.u32 %v791, 16
      %v801 = vrot.slane %v799, 1
      %v802 = vor.u32 %v797, %v801
      %v804 = vshll.u32 %v792, 16
      %v806 = vrot.slane %v804, 1
      %v807 = vsel %vm641, %v802, %v806
      %v808 = vshrl.u32 %v792, 16
      %v810 = vor.u32 %v808, %v806
      %v812 = vshll.u32 %v793, 16
      %v814 = vrot.slane %v812, 1
      %v815 = vsel %vm641, %v810, %v814
      %v816 = vshrl.u32 %v793, 16
      %v818 = vor.u32 %v816, %v814
      %v820 = vshll.u32 %v794, 16
      %v822 = vrot.slane %v820, 1
      %v823 = vsel %vm641, %v818, %v822
      %v824 = vshrl.u32 %v794, 16
      %v826 = vor.u32 %v824, %v822
      %v828 = vshll.u32 %v795, 16
      %v830 = vrot.slane %v828, 1
      %v831 = vsel %vm641, %v826, %v830
      %v832 = vshrl.u32 %v795, 16
      %v834 = vor.u32 %v832, %v830
      %v836 = vsel %vm541, %v807, 0
      %v839 = vsel %vm541, %v815, 0
      %v842 = vsel %vm541, %v823, 0
      %v845 = vsel %vm541, %v831, 0
      %v848 = vsel %vm541, %v834, 0
      %v851 = vsel %vm557, %v770, 0
      %853 = vmatpush.bf16.msra.mxu0 0
      %854 = vmatpush.bf16.msra.mxu0 0
      %855 = vmatpush.bf16.msra.mxu0 0
      %856 = vmatpush.bf16.msra.mxu0 0
      %857 = vmatpush.bf16.msra.mxu0 0
      %858 = vmatpush.bf16.msra.mxu0 0
      %859 = vmatpush.bf16.msra.mxu0 0
      %860 = vmatpush.bf16.msra.mxu0 %v851
      %861 = vmatmul.bf16.gmra.mxu0 %v836
      %v862 = vpop.f32.mrf.mxu0
      %v863 = vadd.f32 0.0, %v862
      %v864 = vpop.f32.mrf.mxu0
      %v865 = vadd.f32 0.0, %v864
      %866 = vmatmul.bf16.gmra.mxu0 %v839
      %v867 = vpop.f32.mrf.mxu0
      %v868 = vadd.f32 0.0, %v867
      %v869 = vpop.f32.mrf.mxu0
      %v870 = vadd.f32 0.0, %v869
      %871 = vmatmul.bf16.gmra.mxu0 %v842
      %v872 = vpop.f32.mrf.mxu0
      %v873 = vadd.f32 0.0, %v872
      %v874 = vpop.f32.mrf.mxu0
      %v875 = vadd.f32 0.0, %v874
      %876 = vmatmul.bf16.gmra.mxu0 %v845
      %v877 = vpop.f32.mrf.mxu0
      %v878 = vadd.f32 0.0, %v877
      %v879 = vpop.f32.mrf.mxu0
      %v880 = vadd.f32 0.0, %v879
      %881 = vmatmul.bf16.gmra.mxu0 %v848
      %v882 = vpop.f32.mrf.mxu0
      %v883 = vadd.f32 0.0, %v882
      %v884 = vpop.f32.mrf.mxu0
      %885 = vdwg.mxu0
      %v886 = vld [vmem:[#allocation3] sm:$0xff]
      %v887 = vld [vmem:[#allocation3 + $0x8] sm:$0xff]
      %v888 = vld [vmem:[#allocation3 + $0x10] sm:$0xff]
      %v889 = vld [vmem:[#allocation3 + $0x18] sm:$0xff]
      %v890 = vld [vmem:[#allocation3 + $0x20] sm:$0xff]
      %v891 = vld [vmem:[#allocation3 + $0x28] sm:$0xff]
      %v892 = vld [vmem:[#allocation3 + $0x30] sm:$0xff]
      %v893 = vld [vmem:[#allocation3 + $0x38] sm:$0xff]
      %v894 = vld [vmem:[#allocation3 + $0x40] sm:$0xff]
      %v895 = vadd.f32 %v886, %v863
      %v896 = vadd.f32 %v887, %v865
      %v897 = vadd.f32 %v888, %v868
      %v898 = vadd.f32 %v889, %v870
      %v899 = vadd.f32 %v890, %v873
      %v900 = vadd.f32 %v891, %v875
      %v901 = vadd.f32 %v892, %v878
      %v902 = vadd.f32 %v893, %v880
      %v903 = vadd.f32 %v894, %v883
      %904 = vst.msk [vmem:[#allocation3] sm:$0xff] %vm594, %v895
      %905 = vst.msk [vmem:[#allocation3 + $0x8] sm:$0xff] %vm594, %v896
      %906 = vst.msk [vmem:[#allocation3 + $0x10] sm:$0xff] %vm594, %v897
      %907 = vst.msk [vmem:[#allocation3 + $0x18] sm:$0xff] %vm594, %v898
      %908 = vst.msk [vmem:[#allocation3 + $0x20] sm:$0xff] %vm594, %v899
      %909 = vst.msk [vmem:[#allocation3 + $0x28] sm:$0xff] %vm594, %v900
      %910 = vst.msk [vmem:[#allocation3 + $0x30] sm:$0xff] %vm594, %v901
      %911 = vst.msk [vmem:[#allocation3 + $0x38] sm:$0xff] %vm594, %v902
      %912 = vst.msk [vmem:[#allocation3 + $0x40] sm:$0xff] %vm594, %v903
      %v913 = vld [vmem:[#allocation2 + $0x4] sm:$0xe]
      %v914 = vld [vmem:[#allocation2 + $0x8] sm:$0xf]
      %v915 = vld [vmem:[#allocation2 + $0xc] sm:$0xf]
      %v916 = vld [vmem:[#allocation2 + $0x10] sm:$0xf]
      %v917 = vld [vmem:[#allocation2 + $0x14] sm:$0xf]
      %v918 = vld [vmem:[#allocation2 + $0x18] sm:$0xf]
      %v919 = vld [vmem:[#allocation2 + $0x1c] sm:$0xf]
      %v920 = vld [vmem:[#allocation2 + $0x20] sm:$0xf]
      %v921 = vld [vmem:[#allocation2 + $0x24] sm:$0xf]
      %v922 = vld [vmem:[#allocation2 + $0x28] sm:$0x1]
      %s923 = scalar_lea.vmem %s2, 32
      %v924 = vld [vmem:[%s923] sm:$0x7]
      %v935 = vunpack.c.l.b16 %v913
      %v936 = vunpack.c.l.b16 %v914
      %v937 = vunpack.c.l.b16 %v915
      %v938 = vunpack.c.l.b16 %v916
      %v939 = vunpack.c.l.b16 %v917
      %v940 = vunpack.c.l.b16 %v918
      %v941 = vunpack.c.l.b16 %v919
      %v942 = vunpack.c.l.b16 %v920
      %v943 = vunpack.c.l.b16 %v921
      %v944 = vunpack.c.l.b16 %v922
      %v945 = vpack.c.b16 %v936, %v935
      %v946 = vpack.c.b16 %v938, %v937
      %v947 = vpack.c.b16 %v940, %v939
      %v948 = vpack.c.b16 %v942, %v941
      %v949 = vpack.c.b16 %v944, %v943
      %vm950 = vcmask 1046528
      %v951 = vrot.slane %v945, 1
      %v952 = vrot.slane %v946, 1
      %v953 = vsel %vm950, %v951, %v952
      %v954 = vrot.slane %v947, 1
      %v955 = vsel %vm950, %v952, %v954
      %v956 = vrot.slane %v948, 1
      %v957 = vsel %vm950, %v954, %v956
      %v958 = vrot.slane %v949, 1
      %v959 = vsel %vm950, %v956, %v958
      %v961 = vsel %vm541, %v953, 0
      %v964 = vsel %vm541, %v955, 0
      %v967 = vsel %vm541, %v957, 0
      %v970 = vsel %vm541, %v959, 0
      %v973 = vsel %vm541, %v958, 0
      %v976 = vsel %vm557, %v924, 0
      %978 = vmatpush.bf16.msra.mxu0 0
      %979 = vmatpush.bf16.msra.mxu0 0
      %980 = vmatpush.bf16.msra.mxu0 0
      %981 = vmatpush.bf16.msra.mxu0 0
      %982 = vmatpush.bf16.msra.mxu0 0
      %983 = vmatpush.bf16.msra.mxu0 0
      %984 = vmatpush.bf16.msra.mxu0 0
      %985 = vmatpush.bf16.msra.mxu0 %v976
      %986 = vmatmul.bf16.gmra.mxu0 %v961
      %v987 = vpop.f32.mrf.mxu0
      %v988 = vadd.f32 0.0, %v987
      %v989 = vpop.f32.mrf.mxu0
      %v990 = vadd.f32 0.0, %v989
      %991 = vmatmul.bf16.gmra.mxu0 %v964
      %v992 = vpop.f32.mrf.mxu0
      %v993 = vadd.f32 0.0, %v992
      %v994 = vpop.f32.mrf.mxu0
      %v995 = vadd.f32 0.0, %v994
      %996 = vmatmul.bf16.gmra.mxu0 %v967
      %v997 = vpop.f32.mrf.mxu0
      %v998 = vadd.f32 0.0, %v997
      %v999 = vpop.f32.mrf.mxu0
      %v1000 = vadd.f32 0.0, %v999
      %1001 = vmatmul.bf16.gmra.mxu0 %v970
      %v1002 = vpop.f32.mrf.mxu0
      %v1003 = vadd.f32 0.0, %v1002
      %v1004 = vpop.f32.mrf.mxu0
      %v1005 = vadd.f32 0.0, %v1004
      %1006 = vmatmul.bf16.gmra.mxu0 %v973
      %v1007 = vpop.f32.mrf.mxu0
      %v1008 = vadd.f32 0.0, %v1007
      %v1009 = vpop.f32.mrf.mxu0
      %1010 = vdwg.mxu0
      %v1011 = vld [vmem:[#allocation3] sm:$0xff]
      %v1012 = vld [vmem:[#allocation3 + $0x8] sm:$0xff]
      %v1013 = vld [vmem:[#allocation3 + $0x10] sm:$0xff]
      %v1014 = vld [vmem:[#allocation3 + $0x18] sm:$0xff]
      %v1015 = vld [vmem:[#allocation3 + $0x20] sm:$0xff]
      %v1016 = vld [vmem:[#allocation3 + $0x28] sm:$0xff]
      %v1017 = vld [vmem:[#allocation3 + $0x30] sm:$0xff]
      %v1018 = vld [vmem:[#allocation3 + $0x38] sm:$0xff]
      %v1019 = vld [vmem:[#allocation3 + $0x40] sm:$0xff]
      %v1020 = vadd.f32 %v1011, %v988
      %v1021 = vadd.f32 %v1012, %v990
      %v1022 = vadd.f32 %v1013, %v993
      %v1023 = vadd.f32 %v1014, %v995
      %v1024 = vadd.f32 %v1015, %v998
      %v1025 = vadd.f32 %v1016, %v1000
      %v1026 = vadd.f32 %v1017, %v1003
      %v1027 = vadd.f32 %v1018, %v1005
      %v1028 = vadd.f32 %v1019, %v1008
      %1029 = vst.msk [vmem:[#allocation3] sm:$0xff] %vm594, %v1020
      %1030 = vst.msk [vmem:[#allocation3 + $0x8] sm:$0xff] %vm594, %v1021
      %1031 = vst.msk [vmem:[#allocation3 + $0x10] sm:$0xff] %vm594, %v1022
      %1032 = vst.msk [vmem:[#allocation3 + $0x18] sm:$0xff] %vm594, %v1023
      %1033 = vst.msk [vmem:[#allocation3 + $0x20] sm:$0xff] %vm594, %v1024
      %1034 = vst.msk [vmem:[#allocation3 + $0x28] sm:$0xff] %vm594, %v1025
      %1035 = vst.msk [vmem:[#allocation3 + $0x30] sm:$0xff] %vm594, %v1026
      %1036 = vst.msk [vmem:[#allocation3 + $0x38] sm:$0xff] %vm594, %v1027
      %1037 = vst.msk [vmem:[#allocation3 + $0x40] sm:$0xff] %vm594, %v1028
      %s1038 = scalar_lea.vmem %s338, 44
      %v1039 = vld [vmem:[%s1038] sm:$0xf]
      %v1040 = vld [vmem:[%s1038 + $0x4] sm:$0xf]
      %v1041 = vld [vmem:[%s1038 + $0x8] sm:$0xf]
      %v1042 = vld [vmem:[%s1038 + $0xc] sm:$0xf]
      %v1043 = vld [vmem:[%s1038 + $0x10] sm:$0xf]
      %v1044 = vld [vmem:[%s1038 + $0x14] sm:$0xf]
      %v1045 = vld [vmem:[%s1038 + $0x18] sm:$0xf]
      %v1046 = vld [vmem:[%s1038 + $0x1c] sm:$0xf]
      %v1047 = vld [vmem:[%s1038 + $0x20] sm:$0xf]
      %v1048 = vld [vmem:[%s1038 + $0x24] sm:$0xf]
      %v1049 = vld [vmem:[%s1038 + $0x28] sm:$0x3]
      %v1050 = vunpack.c.l.bf16 %v1039
      %v1051 = vunpack.c.l.bf16 %v1040
      %v1052 = vunpack.c.l.bf16 %v1041
      %v1053 = vunpack.c.l.bf16 %v1042
      %v1054 = vunpack.c.l.bf16 %v1043
      %v1055 = vunpack.c.l.bf16 %v1044
      %v1056 = vunpack.c.l.bf16 %v1045
      %v1057 = vunpack.c.l.bf16 %v1046
      %v1058 = vunpack.c.l.bf16 %v1047
      %v1059 = vunpack.c.l.bf16 %v1048
      %v1060 = vunpack.c.l.bf16 %v1049
      %v1061 = vmul.f32 %v1050, %v376
      %v1062 = vmul.f32 %v1051, %v376
      %v1063 = vmul.f32 %v1052, %v376
      %v1064 = vmul.f32 %v1053, %v376
      %v1065 = vmul.f32 %v1054, %v376
      %v1066 = vmul.f32 %v1055, %v376
      %v1067 = vmul.f32 %v1056, %v376
      %v1068 = vmul.f32 %v1057, %v376
      %v1069 = vmul.f32 %v1058, %v376
      %v1070 = vmul.f32 %v1059, %v376
      %v1071 = vmul.f32 %v1060, %v376
      %v1072 = vadd.f32 %v1061, %v390
      %v1073 = vadd.f32 %v1062, %v390
      %v1074 = vadd.f32 %v1063, %v390
      %v1075 = vadd.f32 %v1064, %v390
      %v1076 = vadd.f32 %v1065, %v390
      %v1077 = vadd.f32 %v1066, %v390
      %v1078 = vadd.f32 %v1067, %v390
      %v1079 = vadd.f32 %v1068, %v390
      %v1080 = vadd.f32 %v1069, %v390
      %v1081 = vadd.f32 %v1070, %v390
      %v1082 = vadd.f32 %v1071, %v390
      %s1083 = scalar_lea.vmem %s1, 88
      %v1084 = vld [vmem:[%s1083] sm:$0xff]
      %v1085 = vld [vmem:[%s1083 + $0x8] sm:$0xff]
      %v1086 = vld [vmem:[%s1083 + $0x10] sm:$0xff]
      %v1087 = vld [vmem:[%s1083 + $0x18] sm:$0xff]
      %v1088 = vld [vmem:[%s1083 + $0x20] sm:$0xff]
      %v1089 = vld [vmem:[%s1083 + $0x28] sm:$0xff]
      %v1090 = vld [vmem:[%s1083 + $0x30] sm:$0xff]
      %v1091 = vld [vmem:[%s1083 + $0x38] sm:$0xff]
      %v1092 = vld [vmem:[%s1083 + $0x40] sm:$0xff]
      %v1093 = vld [vmem:[%s1083 + $0x48] sm:$0xff]
      %v1094 = vld [vmem:[%s1083 + $0x50] sm:$0x7]
      %1096 = vset.pattern.permute.xlu0 0
      %1097 = vperm.xlu0 %1096, %v1084
      %v1098 = vpop.permute.xlu0 %1097
      %1101 = vset.pattern.permute.xlu0 0
      %1102 = vperm.xlu0 %1101, %v1085
      %v1103 = vpop.permute.xlu0 %1102
      %1106 = vset.pattern.permute.xlu0 0
      %1107 = vperm.xlu0 %1106, %v1086
      %v1108 = vpop.permute.xlu0 %1107
      %1111 = vset.pattern.permute.xlu0 0
      %1112 = vperm.xlu0 %1111, %v1087
      %v1113 = vpop.permute.xlu0 %1112
      %1116 = vset.pattern.permute.xlu0 0
      %1117 = vperm.xlu0 %1116, %v1088
      %v1118 = vpop.permute.xlu0 %1117
      %1121 = vset.pattern.permute.xlu0 0
      %1122 = vperm.xlu0 %1121, %v1089
      %v1123 = vpop.permute.xlu0 %1122
      %1126 = vset.pattern.permute.xlu0 0
      %1127 = vperm.xlu0 %1126, %v1090
      %v1128 = vpop.permute.xlu0 %1127
      %1131 = vset.pattern.permute.xlu0 0
      %1132 = vperm.xlu0 %1131, %v1091
      %v1133 = vpop.permute.xlu0 %1132
      %1136 = vset.pattern.permute.xlu0 0
      %1137 = vperm.xlu0 %1136, %v1092
      %v1138 = vpop.permute.xlu0 %1137
      %1141 = vset.pattern.permute.xlu0 0
      %1142 = vperm.xlu0 %1141, %v1093
      %v1143 = vpop.permute.xlu0 %1142
      %1146 = vset.pattern.permute.xlu0 0
      %1147 = vperm.xlu0 %1146, %v1094
      %v1148 = vpop.permute.xlu0 %1147
      %v1150 = vmul.f32 %v1072, %v1098
      %v1151 = vmul.f32 %v1073, %v1103
      %v1152 = vmul.f32 %v1074, %v1108
      %v1153 = vmul.f32 %v1075, %v1113
      %v1154 = vmul.f32 %v1076, %v1118
      %v1155 = vmul.f32 %v1077, %v1123
      %v1156 = vmul.f32 %v1078, %v1128
      %v1157 = vmul.f32 %v1079, %v1133
      %v1158 = vmul.f32 %v1080, %v1138
      %v1159 = vmul.f32 %v1081, %v1143
      %v1160 = vmul.f32 %v1082, %v1148
      %v1161 = vpack.c.bf16 %v1150, %v1150
      %v1162 = vpack.c.bf16 %v1151, %v1151
      %v1163 = vpack.c.bf16 %v1152, %v1152
      %v1164 = vpack.c.bf16 %v1153, %v1153
      %v1165 = vpack.c.bf16 %v1154, %v1154
      %v1166 = vpack.c.bf16 %v1155, %v1155
      %v1167 = vpack.c.bf16 %v1156, %v1156
      %v1168 = vpack.c.bf16 %v1157, %v1157
      %v1169 = vpack.c.bf16 %v1158, %v1158
      %v1170 = vpack.c.bf16 %v1159, %v1159
      %v1171 = vpack.c.bf16 %v1160, %v1160
      %1172 = vst.msk [vmem:[#allocation2] sm:$0xf] %vm491, %v1161
      %1173 = vst.msk [vmem:[#allocation2 + $0x4] sm:$0xf] %vm491, %v1162
      %1174 = vst.msk [vmem:[#allocation2 + $0x8] sm:$0xf] %vm491, %v1163
      %1175 = vst.msk [vmem:[#allocation2 + $0xc] sm:$0xf] %vm491, %v1164
      %1176 = vst.msk [vmem:[#allocation2 + $0x10] sm:$0xf] %vm491, %v1165
      %1177 = vst.msk [vmem:[#allocation2 + $0x14] sm:$0xf] %vm491, %v1166
      %1178 = vst.msk [vmem:[#allocation2 + $0x18] sm:$0xf] %vm491, %v1167
      %1179 = vst.msk [vmem:[#allocation2 + $0x1c] sm:$0xf] %vm491, %v1168
      %1180 = vst.msk [vmem:[#allocation2 + $0x20] sm:$0xf] %vm491, %v1169
      %1181 = vst.msk [vmem:[#allocation2 + $0x24] sm:$0xf] %vm491, %v1170
      %v1182 = vld [vmem:[#allocation2 + $0x28] sm:$0x3]
      %v1183 = vsel %vm504, %v1171, %v1182
      %1184 = vst [vmem:[#allocation2 + $0x28] sm:$0x3] %v1183
      %v1185 = vld [vmem:[#allocation2] sm:$0xf]
      %v1186 = vld [vmem:[#allocation2 + $0x4] sm:$0xf]
      %v1187 = vld [vmem:[#allocation2 + $0x8] sm:$0xf]
      %v1188 = vld [vmem:[#allocation2 + $0xc] sm:$0xf]
      %v1189 = vld [vmem:[#allocation2 + $0x10] sm:$0xf]
      %v1190 = vld [vmem:[#allocation2 + $0x14] sm:$0xf]
      %v1191 = vld [vmem:[#allocation2 + $0x18] sm:$0xf]
      %v1192 = vld [vmem:[#allocation2 + $0x1c] sm:$0xf]
      %v1193 = vld [vmem:[#allocation2 + $0x20] sm:$0xf]
      %s1194 = scalar_lea.vmem %s2, 4
      %v1195 = vld [vmem:[%s1194] sm:$0x7]
      %v1205 = vunpack.c.l.b16 %v1185
      %v1206 = vunpack.c.l.b16 %v1186
      %v1207 = vunpack.c.l.b16 %v1187
      %v1208 = vunpack.c.l.b16 %v1188
      %v1209 = vunpack.c.l.b16 %v1189
      %v1210 = vunpack.c.l.b16 %v1190
      %v1211 = vunpack.c.l.b16 %v1191
      %v1212 = vunpack.c.l.b16 %v1192
      %v1213 = vunpack.c.l.b16 %v1193
      %v1214 = vpack.c.b16 %v1206, %v1205
      %v1215 = vpack.c.b16 %v1208, %v1207
      %v1216 = vpack.c.b16 %v1210, %v1209
      %v1217 = vpack.c.b16 %v1212, %v1211
      %v1218 = vpack.c.b16 %v1213, %v1213
      %v1220 = vsel %vm541, %v1214, 0
      %v1223 = vsel %vm541, %v1215, 0
      %v1226 = vsel %vm541, %v1216, 0
      %v1229 = vsel %vm541, %v1217, 0
      %v1232 = vsel %vm541, %v1218, 0
      %v1235 = vsel %vm557, %v1195, 0
      %1237 = vmatpush.bf16.msra.mxu0 0
      %1238 = vmatpush.bf16.msra.mxu0 0
      %1239 = vmatpush.bf16.msra.mxu0 0
      %1240 = vmatpush.bf16.msra.mxu0 0
      %1241 = vmatpush.bf16.msra.mxu0 0
      %1242 = vmatpush.bf16.msra.mxu0 0
      %1243 = vmatpush.bf16.msra.mxu0 0
      %1244 = vmatpush.bf16.msra.mxu0 %v1235
      %1245 = vmatmul.bf16.gmra.mxu0 %v1220
      %v1246 = vpop.f32.mrf.mxu0
      %v1247 = vadd.f32 0.0, %v1246
      %v1248 = vpop.f32.mrf.mxu0
      %v1249 = vadd.f32 0.0, %v1248
      %1250 = vmatmul.bf16.gmra.mxu0 %v1223
      %v1251 = vpop.f32.mrf.mxu0
      %v1252 = vadd.f32 0.0, %v1251
      %v1253 = vpop.f32.mrf.mxu0
      %v1254 = vadd.f32 0.0, %v1253
      %1255 = vmatmul.bf16.gmra.mxu0 %v1226
      %v1256 = vpop.f32.mrf.mxu0
      %v1257 = vadd.f32 0.0, %v1256
      %v1258 = vpop.f32.mrf.mxu0
      %v1259 = vadd.f32 0.0, %v1258
      %1260 = vmatmul.bf16.gmra.mxu0 %v1229
      %v1261 = vpop.f32.mrf.mxu0
      %v1262 = vadd.f32 0.0, %v1261
      %v1263 = vpop.f32.mrf.mxu0
      %v1264 = vadd.f32 0.0, %v1263
      %1265 = vmatmul.bf16.gmra.mxu0 %v1232
      %v1266 = vpop.f32.mrf.mxu0
      %v1267 = vadd.f32 0.0, %v1266
      %v1268 = vpop.f32.mrf.mxu0
      %1269 = vdwg.mxu0
      %v1270 = vld [vmem:[#allocation3] sm:$0xff]
      %v1271 = vld [vmem:[#allocation3 + $0x8] sm:$0xff]
      %v1272 = vld [vmem:[#allocation3 + $0x10] sm:$0xff]
      %v1273 = vld [vmem:[#allocation3 + $0x18] sm:$0xff]
      %v1274 = vld [vmem:[#allocation3 + $0x20] sm:$0xff]
      %v1275 = vld [vmem:[#allocation3 + $0x28] sm:$0xff]
      %v1276 = vld [vmem:[#allocation3 + $0x30] sm:$0xff]
      %v1277 = vld [vmem:[#allocation3 + $0x38] sm:$0xff]
      %v1278 = vld [vmem:[#allocation3 + $0x40] sm:$0xff]
      %v1279 = vadd.f32 %v1270, %v1247
      %v1280 = vadd.f32 %v1271, %v1249
      %v1281 = vadd.f32 %v1272, %v1252
      %v1282 = vadd.f32 %v1273, %v1254
      %v1283 = vadd.f32 %v1274, %v1257
      %v1284 = vadd.f32 %v1275, %v1259
      %v1285 = vadd.f32 %v1276, %v1262
      %v1286 = vadd.f32 %v1277, %v1264
      %v1287 = vadd.f32 %v1278, %v1267
      %1288 = vst.msk [vmem:[#allocation3] sm:$0xff] %vm594, %v1279
      %1289 = vst.msk [vmem:[#allocation3 + $0x8] sm:$0xff] %vm594, %v1280
      %1290 = vst.msk [vmem:[#allocation3 + $0x10] sm:$0xff] %vm594, %v1281
      %1291 = vst.msk [vmem:[#allocation3 + $0x18] sm:$0xff] %vm594, %v1282
      %1292 = vst.msk [vmem:[#allocation3 + $0x20] sm:$0xff] %vm594, %v1283
      %1293 = vst.msk [vmem:[#allocation3 + $0x28] sm:$0xff] %vm594, %v1284
      %1294 = vst.msk [vmem:[#allocation3 + $0x30] sm:$0xff] %vm594, %v1285
      %1295 = vst.msk [vmem:[#allocation3 + $0x38] sm:$0xff] %vm594, %v1286
      %1296 = vst.msk [vmem:[#allocation3 + $0x40] sm:$0xff] %vm594, %v1287
      %v1297 = vld [vmem:[#allocation2 + $0x4] sm:$0xf]
      %v1298 = vld [vmem:[#allocation2 + $0x8] sm:$0xf]
      %v1299 = vld [vmem:[#allocation2 + $0xc] sm:$0xf]
      %v1300 = vld [vmem:[#allocation2 + $0x10] sm:$0xf]
      %v1301 = vld [vmem:[#allocation2 + $0x14] sm:$0xf]
      %v1302 = vld [vmem:[#allocation2 + $0x18] sm:$0xf]
      %v1303 = vld [vmem:[#allocation2 + $0x1c] sm:$0xf]
      %v1304 = vld [vmem:[#allocation2 + $0x20] sm:$0xf]
      %v1305 = vld [vmem:[#allocation2 + $0x24] sm:$0xf]
      %v1306 = vld [vmem:[#allocation2 + $0x28] sm:$0x1]
      %s1307 = scalar_lea.vmem %s2, 28
      %v1308 = vld [vmem:[%s1307] sm:$0x7]
      %v1319 = vunpack.c.l.b16 %v1297
      %v1320 = vunpack.c.l.b16 %v1298
      %v1321 = vunpack.c.l.b16 %v1299
      %v1322 = vunpack.c.l.b16 %v1300
      %v1323 = vunpack.c.l.b16 %v1301
      %v1324 = vunpack.c.l.b16 %v1302
      %v1325 = vunpack.c.l.b16 %v1303
      %v1326 = vunpack.c.l.b16 %v1304
      %v1327 = vunpack.c.l.b16 %v1305
      %v1328 = vunpack.c.l.b16 %v1306
      %v1329 = vpack.c.b16 %v1320, %v1319
      %v1330 = vpack.c.b16 %v1322, %v1321
      %v1331 = vpack.c.b16 %v1324, %v1323
      %v1332 = vpack.c.b16 %v1326, %v1325
      %v1333 = vpack.c.b16 %v1328, %v1327
      %v1335 = vshrl.u32 %v1329, 16
      %v1337 = vshll.u32 %v1329, 16
      %v1339 = vrot.slane %v1337, 1
      %v1340 = vor.u32 %v1335, %v1339
      %v1342 = vshll.u32 %v1330, 16
      %v1344 = vrot.slane %v1342, 1
      %v1345 = vsel %vm641, %v1340, %v1344
      %v1346 = vshrl.u32 %v1330, 16
      %v1348 = vor.u32 %v1346, %v1344
      %v1350 = vshll.u32 %v1331, 16
      %v1352 = vrot.slane %v1350, 1
      %v1353 = vsel %vm641, %v1348, %v1352
      %v1354 = vshrl.u32 %v1331, 16
      %v1356 = vor.u32 %v1354, %v1352
      %v1358 = vshll.u32 %v1332, 16
      %v1360 = vrot.slane %v1358, 1
      %v1361 = vsel %vm641, %v1356, %v1360
      %v1362 = vshrl.u32 %v1332, 16
      %v1364 = vor.u32 %v1362, %v1360
      %v1366 = vshll.u32 %v1333, 16
      %v1368 = vrot.slane %v1366, 1
      %v1369 = vsel %vm641, %v1364, %v1368
      %v1370 = vshrl.u32 %v1333, 16
      %v1372 = vor.u32 %v1370, %v1368
      %v1374 = vsel %vm541, %v1345, 0
      %v1377 = vsel %vm541, %v1353, 0
      %v1380 = vsel %vm541, %v1361, 0
      %v1383 = vsel %vm541, %v1369, 0
      %v1386 = vsel %vm541, %v1372, 0
      %v1389 = vsel %vm557, %v1308, 0
      %1391 = vmatpush.bf16.msra.mxu0 0
      %1392 = vmatpush.bf16.msra.mxu0 0
      %1393 = vmatpush.bf16.msra.mxu0 0
      %1394 = vmatpush.bf16.msra.mxu0 0
      %1395 = vmatpush.bf16.msra.mxu0 0
      %1396 = vmatpush.bf16.msra.mxu0 0
      %1397 = vmatpush.bf16.msra.mxu0 0
      %1398 = vmatpush.bf16.msra.mxu0 %v1389
      %1399 = vmatmul.bf16.gmra.mxu0 %v1374
      %v1400 = vpop.f32.mrf.mxu0
      %v1401 = vadd.f32 0.0, %v1400
      %v1402 = vpop.f32.mrf.mxu0
      %v1403 = vadd.f32 0.0, %v1402
      %1404 = vmatmul.bf16.gmra.mxu0 %v1377
      %v1405 = vpop.f32.mrf.mxu0
      %v1406 = vadd.f32 0.0, %v1405
      %v1407 = vpop.f32.mrf.mxu0
      %v1408 = vadd.f32 0.0, %v1407
      %1409 = vmatmul.bf16.gmra.mxu0 %v1380
      %v1410 = vpop.f32.mrf.mxu0
      %v1411 = vadd.f32 0.0, %v1410
      %v1412 = vpop.f32.mrf.mxu0
      %v1413 = vadd.f32 0.0, %v1412
      %1414 = vmatmul.bf16.gmra.mxu0 %v1383
      %v1415 = vpop.f32.mrf.mxu0
      %v1416 = vadd.f32 0.0, %v1415
      %v1417 = vpop.f32.mrf.mxu0
      %v1418 = vadd.f32 0.0, %v1417
      %1419 = vmatmul.bf16.gmra.mxu0 %v1386
      %v1420 = vpop.f32.mrf.mxu0
      %v1421 = vadd.f32 0.0, %v1420
      %v1422 = vpop.f32.mrf.mxu0
      %1423 = vdwg.mxu0
      %v1424 = vld [vmem:[#allocation3] sm:$0xff]
      %v1425 = vld [vmem:[#allocation3 + $0x8] sm:$0xff]
      %v1426 = vld [vmem:[#allocation3 + $0x10] sm:$0xff]
      %v1427 = vld [vmem:[#allocation3 + $0x18] sm:$0xff]
      %v1428 = vld [vmem:[#allocation3 + $0x20] sm:$0xff]
      %v1429 = vld [vmem:[#allocation3 + $0x28] sm:$0xff]
      %v1430 = vld [vmem:[#allocation3 + $0x30] sm:$0xff]
      %v1431 = vld [vmem:[#allocation3 + $0x38] sm:$0xff]
      %v1432 = vld [vmem:[#allocation3 + $0x40] sm:$0xff]
      %v1433 = vadd.f32 %v1424, %v1401
      %v1434 = vadd.f32 %v1425, %v1403
      %v1435 = vadd.f32 %v1426, %v1406
      %v1436 = vadd.f32 %v1427, %v1408
      %v1437 = vadd.f32 %v1428, %v1411
      %v1438 = vadd.f32 %v1429, %v1413
      %v1439 = vadd.f32 %v1430, %v1416
      %v1440 = vadd.f32 %v1431, %v1418
      %v1441 = vadd.f32 %v1432, %v1421
      %1442 = vst.msk [vmem:[#allocation3] sm:$0xff] %vm594, %v1433
      %1443 = vst.msk [vmem:[#allocation3 + $0x8] sm:$0xff] %vm594, %v1434
      %1444 = vst.msk [vmem:[#allocation3 + $0x10] sm:$0xff] %vm594, %v1435
      %1445 = vst.msk [vmem:[#allocation3 + $0x18] sm:$0xff] %vm594, %v1436
      %1446 = vst.msk [vmem:[#allocation3 + $0x20] sm:$0xff] %vm594, %v1437
      %1447 = vst.msk [vmem:[#allocation3 + $0x28] sm:$0xff] %vm594, %v1438
      %1448 = vst.msk [vmem:[#allocation3 + $0x30] sm:$0xff] %vm594, %v1439
      %1449 = vst.msk [vmem:[#allocation3 + $0x38] sm:$0xff] %vm594, %v1440
      %1450 = vst.msk [vmem:[#allocation3 + $0x40] sm:$0xff] %vm594, %v1441
      %s1451 = scalar_lea.vmem %s338, 88
      %v1452 = vld [vmem:[%s1451] sm:$0xf]
      %v1453 = vld [vmem:[%s1451 + $0x4] sm:$0xf]
      %v1454 = vld [vmem:[%s1451 + $0x8] sm:$0xf]
      %v1455 = vld [vmem:[%s1451 + $0xc] sm:$0xf]
      %v1456 = vld [vmem:[%s1451 + $0x10] sm:$0xf]
      %v1457 = vld [vmem:[%s1451 + $0x14] sm:$0xf]
      %v1458 = vld [vmem:[%s1451 + $0x18] sm:$0xf]
      %v1459 = vld [vmem:[%s1451 + $0x1c] sm:$0xf]
      %v1460 = vld [vmem:[%s1451 + $0x20] sm:$0xf]
      %v1461 = vld [vmem:[%s1451 + $0x24] sm:$0xf]
      %v1462 = vld [vmem:[%s1451 + $0x28] sm:$0x3]
      %v1463 = vunpack.c.l.bf16 %v1452
      %v1464 = vunpack.c.l.bf16 %v1453
      %v1465 = vunpack.c.l.bf16 %v1454
      %v1466 = vunpack.c.l.bf16 %v1455
      %v1467 = vunpack.c.l.bf16 %v1456
      %v1468 = vunpack.c.l.bf16 %v1457
      %v1469 = vunpack.c.l.bf16 %v1458
      %v1470 = vunpack.c.l.bf16 %v1459
      %v1471 = vunpack.c.l.bf16 %v1460
      %v1472 = vunpack.c.l.bf16 %v1461
      %v1473 = vunpack.c.l.bf16 %v1462
      %v1474 = vmul.f32 %v1463, %v376
      %v1475 = vmul.f32 %v1464, %v376
      %v1476 = vmul.f32 %v1465, %v376
      %v1477 = vmul.f32 %v1466, %v376
      %v1478 = vmul.f32 %v1467, %v376
      %v1479 = vmul.f32 %v1468, %v376
      %v1480 = vmul.f32 %v1469, %v376
      %v1481 = vmul.f32 %v1470, %v376
      %v1482 = vmul.f32 %v1471, %v376
      %v1483 = vmul.f32 %v1472, %v376
      %v1484 = vmul.f32 %v1473, %v376
      %v1485 = vadd.f32 %v1474, %v390
      %v1486 = vadd.f32 %v1475, %v390
      %v1487 = vadd.f32 %v1476, %v390
      %v1488 = vadd.f32 %v1477, %v390
      %v1489 = vadd.f32 %v1478, %v390
      %v1490 = vadd.f32 %v1479, %v390
      %v1491 = vadd.f32 %v1480, %v390
      %v1492 = vadd.f32 %v1481, %v390
      %v1493 = vadd.f32 %v1482, %v390
      %v1494 = vadd.f32 %v1483, %v390
      %v1495 = vadd.f32 %v1484, %v390
      %s1496 = scalar_lea.vmem %s1, 176
      %v1497 = vld [vmem:[%s1496] sm:$0xff]
      %v1498 = vld [vmem:[%s1496 + $0x8] sm:$0xff]
      %v1499 = vld [vmem:[%s1496 + $0x10] sm:$0xff]
      %v1500 = vld [vmem:[%s1496 + $0x18] sm:$0xff]
      %v1501 = vld [vmem:[%s1496 + $0x20] sm:$0xff]
      %v1502 = vld [vmem:[%s1496 + $0x28] sm:$0xff]
      %v1503 = vld [vmem:[%s1496 + $0x30] sm:$0xff]
      %v1504 = vld [vmem:[%s1496 + $0x38] sm:$0xff]
      %v1505 = vld [vmem:[%s1496 + $0x40] sm:$0xff]
      %v1506 = vld [vmem:[%s1496 + $0x48] sm:$0xff]
      %v1507 = vld [vmem:[%s1496 + $0x50] sm:$0x7]
      %1509 = vset.pattern.permute.xlu0 0
      %1510 = vperm.xlu0 %1509, %v1497
      %v1511 = vpop.permute.xlu0 %1510
      %1514 = vset.pattern.permute.xlu0 0
      %1515 = vperm.xlu0 %1514, %v1498
      %v1516 = vpop.permute.xlu0 %1515
      %1519 = vset.pattern.permute.xlu0 0
      %1520 = vperm.xlu0 %1519, %v1499
      %v1521 = vpop.permute.xlu0 %1520
      %1524 = vset.pattern.permute.xlu0 0
      %1525 = vperm.xlu0 %1524, %v1500
      %v1526 = vpop.permute.xlu0 %1525
      %1529 = vset.pattern.permute.xlu0 0
      %1530 = vperm.xlu0 %1529, %v1501
      %v1531 = vpop.permute.xlu0 %1530
      %1534 = vset.pattern.permute.xlu0 0
      %1535 = vperm.xlu0 %1534, %v1502
      %v1536 = vpop.permute.xlu0 %1535
      %1539 = vset.pattern.permute.xlu0 0
      %1540 = vperm.xlu0 %1539, %v1503
      %v1541 = vpop.permute.xlu0 %1540
      %1544 = vset.pattern.permute.xlu0 0
      %1545 = vperm.xlu0 %1544, %v1504
      %v1546 = vpop.permute.xlu0 %1545
      %1549 = vset.pattern.permute.xlu0 0
      %1550 = vperm.xlu0 %1549, %v1505
      %v1551 = vpop.permute.xlu0 %1550
      %1554 = vset.pattern.permute.xlu0 0
      %1555 = vperm.xlu0 %1554, %v1506
      %v1556 = vpop.permute.xlu0 %1555
      %1559 = vset.pattern.permute.xlu0 0
      %1560 = vperm.xlu0 %1559, %v1507
      %v1561 = vpop.permute.xlu0 %1560
      %v1563 = vmul.f32 %v1485, %v1511
      %v1564 = vmul.f32 %v1486, %v1516
      %v1565 = vmul.f32 %v1487, %v1521
      %v1566 = vmul.f32 %v1488, %v1526
      %v1567 = vmul.f32 %v1489, %v1531
      %v1568 = vmul.f32 %v1490, %v1536
      %v1569 = vmul.f32 %v1491, %v1541
      %v1570 = vmul.f32 %v1492, %v1546
      %v1571 = vmul.f32 %v1493, %v1551
      %v1572 = vmul.f32 %v1494, %v1556
      %v1573 = vmul.f32 %v1495, %v1561
      %v1574 = vpack.c.bf16 %v1563, %v1563
      %v1575 = vpack.c.bf16 %v1564, %v1564
      %v1576 = vpack.c.bf16 %v1565, %v1565
      %v1577 = vpack.c.bf16 %v1566, %v1566
      %v1578 = vpack.c.bf16 %v1567, %v1567
      %v1579 = vpack.c.bf16 %v1568, %v1568
      %v1580 = vpack.c.bf16 %v1569, %v1569
      %v1581 = vpack.c.bf16 %v1570, %v1570
      %v1582 = vpack.c.bf16 %v1571, %v1571
      %v1583 = vpack.c.bf16 %v1572, %v1572
      %v1584 = vpack.c.bf16 %v1573, %v1573
      %1585 = vst.msk [vmem:[#allocation2] sm:$0xf] %vm491, %v1574
      %1586 = vst.msk [vmem:[#allocation2 + $0x4] sm:$0xf] %vm491, %v1575
      %1587 = vst.msk [vmem:[#allocation2 + $0x8] sm:$0xf] %vm491, %v1576
      %1588 = vst.msk [vmem:[#allocation2 + $0xc] sm:$0xf] %vm491, %v1577
      %1589 = vst.msk [vmem:[#allocation2 + $0x10] sm:$0xf] %vm491, %v1578
      %1590 = vst.msk [vmem:[#allocation2 + $0x14] sm:$0xf] %vm491, %v1579
      %1591 = vst.msk [vmem:[#allocation2 + $0x18] sm:$0xf] %vm491, %v1580
      %1592 = vst.msk [vmem:[#allocation2 + $0x1c] sm:$0xf] %vm491, %v1581
      %1593 = vst.msk [vmem:[#allocation2 + $0x20] sm:$0xf] %vm491, %v1582
      %1594 = vst.msk [vmem:[#allocation2 + $0x24] sm:$0xf] %vm491, %v1583
      %v1595 = vld [vmem:[#allocation2 + $0x28] sm:$0x3]
      %v1596 = vsel %vm504, %v1584, %v1595
      %1597 = vst [vmem:[#allocation2 + $0x28] sm:$0x3] %v1596
      %v1598 = vld [vmem:[#allocation2] sm:$0xf]
      %v1599 = vld [vmem:[#allocation2 + $0x4] sm:$0xf]
      %v1600 = vld [vmem:[#allocation2 + $0x8] sm:$0xf]
      %v1601 = vld [vmem:[#allocation2 + $0xc] sm:$0xf]
      %v1602 = vld [vmem:[#allocation2 + $0x10] sm:$0xf]
      %v1603 = vld [vmem:[#allocation2 + $0x14] sm:$0xf]
      %v1604 = vld [vmem:[#allocation2 + $0x18] sm:$0xf]
      %v1605 = vld [vmem:[#allocation2 + $0x1c] sm:$0xf]
      %v1606 = vld [vmem:[#allocation2 + $0x20] sm:$0xf]
      %s1607 = scalar_lea.vmem %s2, 12
      %v1608 = vld [vmem:[%s1607] sm:$0x7]
      %v1618 = vunpack.c.l.b16 %v1598
      %v1619 = vunpack.c.l.b16 %v1599
      %v1620 = vunpack.c.l.b16 %v1600
      %v1621 = vunpack.c.l.b16 %v1601
      %v1622 = vunpack.c.l.b16 %v1602
      %v1623 = vunpack.c.l.b16 %v1603
      %v1624 = vunpack.c.l.b16 %v1604
      %v1625 = vunpack.c.l.b16 %v1605
      %v1626 = vunpack.c.l.b16 %v1606
      %v1627 = vpack.c.b16 %v1619, %v1618
      %v1628 = vpack.c.b16 %v1621, %v1620
      %v1629 = vpack.c.b16 %v1623, %v1622
      %v1630 = vpack.c.b16 %v1625, %v1624
      %v1631 = vpack.c.b16 %v1626, %v1626
      %v1633 = vsel %vm541, %v1627, 0
      %v1636 = vsel %vm541, %v1628, 0
      %v1639 = vsel %vm541, %v1629, 0
      %v1642 = vsel %vm541, %v1630, 0
      %v1645 = vsel %vm541, %v1631, 0
      %v1648 = vsel %vm557, %v1608, 0
      %1650 = vmatpush.bf16.msra.mxu0 0
      %1651 = vmatpush.bf16.msra.mxu0 0
      %1652 = vmatpush.bf16.msra.mxu0 0
      %1653 = vmatpush.bf16.msra.mxu0 0
      %1654 = vmatpush.bf16.msra.mxu0 0
      %1655 = vmatpush.bf16.msra.mxu0 0
      %1656 = vmatpush.bf16.msra.mxu0 0
      %1657 = vmatpush.bf16.msra.mxu0 %v1648
      %1658 = vmatmul.bf16.gmra.mxu0 %v1633
      %v1659 = vpop.f32.mrf.mxu0
      %v1660 = vadd.f32 0.0, %v1659
      %v1661 = vpop.f32.mrf.mxu0
      %v1662 = vadd.f32 0.0, %v1661
      %1663 = vmatmul.bf16.gmra.mxu0 %v1636
      %v1664 = vpop.f32.mrf.mxu0
      %v1665 = vadd.f32 0.0, %v1664
      %v1666 = vpop.f32.mrf.mxu0
      %v1667 = vadd.f32 0.0, %v1666
      %1668 = vmatmul.bf16.gmra.mxu0 %v1639
      %v1669 = vpop.f32.mrf.mxu0
      %v1670 = vadd.f32 0.0, %v1669
      %v1671 = vpop.f32.mrf.mxu0
      %v1672 = vadd.f32 0.0, %v1671
      %1673 = vmatmul.bf16.gmra.mxu0 %v1642
      %v1674 = vpop.f32.mrf.mxu0
      %v1675 = vadd.f32 0.0, %v1674
      %v1676 = vpop.f32.mrf.mxu0
      %v1677 = vadd.f32 0.0, %v1676
      %1678 = vmatmul.bf16.gmra.mxu0 %v1645
      %v1679 = vpop.f32.mrf.mxu0
      %v1680 = vadd.f32 0.0, %v1679
      %v1681 = vpop.f32.mrf.mxu0
      %1682 = vdwg.mxu0
      %v1683 = vld [vmem:[#allocation3] sm:$0xff]
      %v1684 = vld [vmem:[#allocation3 + $0x8] sm:$0xff]
      %v1685 = vld [vmem:[#allocation3 + $0x10] sm:$0xff]
      %v1686 = vld [vmem:[#allocation3 + $0x18] sm:$0xff]
      %v1687 = vld [vmem:[#allocation3 + $0x20] sm:$0xff]
      %v1688 = vld [vmem:[#allocation3 + $0x28] sm:$0xff]
      %v1689 = vld [vmem:[#allocation3 + $0x30] sm:$0xff]
      %v1690 = vld [vmem:[#allocation3 + $0x38] sm:$0xff]
      %v1691 = vld [vmem:[#allocation3 + $0x40] sm:$0xff]
      %v1692 = vadd.f32 %v1683, %v1660
      %v1693 = vadd.f32 %v1684, %v1662
      %v1694 = vadd.f32 %v1685, %v1665
      %v1695 = vadd.f32 %v1686, %v1667
      %v1696 = vadd.f32 %v1687, %v1670
      %v1697 = vadd.f32 %v1688, %v1672
      %v1698 = vadd.f32 %v1689, %v1675
      %v1699 = vadd.f32 %v1690, %v1677
      %v1700 = vadd.f32 %v1691, %v1680
      %1701 = vst.msk [vmem:[#allocation3] sm:$0xff] %vm594, %v1692
      %1702 = vst.msk [vmem:[#allocation3 + $0x8] sm:$0xff] %vm594, %v1693
      %1703 = vst.msk [vmem:[#allocation3 + $0x10] sm:$0xff] %vm594, %v1694
      %1704 = vst.msk [vmem:[#allocation3 + $0x18] sm:$0xff] %vm594, %v1695
      %1705 = vst.msk [vmem:[#allocation3 + $0x20] sm:$0xff] %vm594, %v1696
      %1706 = vst.msk [vmem:[#allocation3 + $0x28] sm:$0xff] %vm594, %v1697
      %1707 = vst.msk [vmem:[#allocation3 + $0x30] sm:$0xff] %vm594, %v1698
      %1708 = vst.msk [vmem:[#allocation3 + $0x38] sm:$0xff] %vm594, %v1699
      %1709 = vst.msk [vmem:[#allocation3 + $0x40] sm:$0xff] %vm594, %v1700
      %v1710 = vld [vmem:[#allocation2] sm:$0xf]
      %v1711 = vld [vmem:[#allocation2 + $0x4] sm:$0xf]
      %v1712 = vld [vmem:[#allocation2 + $0x8] sm:$0xf]
      %v1713 = vld [vmem:[#allocation2 + $0xc] sm:$0xf]
      %v1714 = vld [vmem:[#allocation2 + $0x10] sm:$0xf]
      %v1715 = vld [vmem:[#allocation2 + $0x14] sm:$0xf]
      %v1716 = vld [vmem:[#allocation2 + $0x18] sm:$0xf]
      %v1717 = vld [vmem:[#allocation2 + $0x1c] sm:$0xf]
      %v1718 = vld [vmem:[#allocation2 + $0x20] sm:$0xf]
      %v1719 = vld [vmem:[#allocation2 + $0x24] sm:$0x1]
      %s1720 = scalar_lea.vmem %s2, 20
      %v1721 = vld [vmem:[%s1720] sm:$0x7]
      %v1732 = vunpack.c.l.b16 %v1710
      %v1733 = vunpack.c.l.b16 %v1711
      %v1734 = vunpack.c.l.b16 %v1712
      %v1735 = vunpack.c.l.b16 %v1713
      %v1736 = vunpack.c.l.b16 %v1714
      %v1737 = vunpack.c.l.b16 %v1715
      %v1738 = vunpack.c.l.b16 %v1716
      %v1739 = vunpack.c.l.b16 %v1717
      %v1740 = vunpack.c.l.b16 %v1718
      %v1741 = vunpack.c.l.b16 %v1719
      %v1742 = vpack.c.b16 %v1733, %v1732
      %v1743 = vpack.c.b16 %v1735, %v1734
      %v1744 = vpack.c.b16 %v1737, %v1736
      %v1745 = vpack.c.b16 %v1739, %v1738
      %v1746 = vpack.c.b16 %v1741, %v1740
      %v1748 = vshrl.u32 %v1742, 16
      %v1750 = vshll.u32 %v1742, 16
      %v1752 = vrot.slane %v1750, 1
      %v1753 = vor.u32 %v1748, %v1752
      %v1755 = vshll.u32 %v1743, 16
      %v1757 = vrot.slane %v1755, 1
      %v1758 = vsel %vm641, %v1753, %v1757
      %v1759 = vshrl.u32 %v1743, 16
      %v1761 = vor.u32 %v1759, %v1757
      %v1763 = vshll.u32 %v1744, 16
      %v1765 = vrot.slane %v1763, 1
      %v1766 = vsel %vm641, %v1761, %v1765
      %v1767 = vshrl.u32 %v1744, 16
      %v1769 = vor.u32 %v1767, %v1765
      %v1771 = vshll.u32 %v1745, 16
      %v1773 = vrot.slane %v1771, 1
      %v1774 = vsel %vm641, %v1769, %v1773
      %v1775 = vshrl.u32 %v1745, 16
      %v1777 = vor.u32 %v1775, %v1773
      %v1779 = vshll.u32 %v1746, 16
      %v1781 = vrot.slane %v1779, 1
      %v1782 = vsel %vm641, %v1777, %v1781
      %v1783 = vshrl.u32 %v1746, 16
      %v1785 = vor.u32 %v1783, %v1781
      %v1787 = vsel %vm541, %v1758, 0
      %v1790 = vsel %vm541, %v1766, 0
      %v1793 = vsel %vm541, %v1774, 0
      %v1796 = vsel %vm541, %v1782, 0
      %v1799 = vsel %vm541, %v1785, 0
      %v1802 = vsel %vm557, %v1721, 0
      %1804 = vmatpush.bf16.msra.mxu0 0
      %1805 = vmatpush.bf16.msra.mxu0 0
      %1806 = vmatpush.bf16.msra.mxu0 0
      %1807 = vmatpush.bf16.msra.mxu0 0
      %1808 = vmatpush.bf16.msra.mxu0 0
      %1809 = vmatpush.bf16.msra.mxu0 0
      %1810 = vmatpush.bf16.msra.mxu0 0
      %1811 = vmatpush.bf16.msra.mxu0 %v1802
      %1812 = vmatmul.bf16.gmra.mxu0 %v1787
      %v1813 = vpop.f32.mrf.mxu0
      %v1814 = vadd.f32 0.0, %v1813
      %v1815 = vpop.f32.mrf.mxu0
      %v1816 = vadd.f32 0.0, %v1815
      %1817 = vmatmul.bf16.gmra.mxu0 %v1790
      %v1818 = vpop.f32.mrf.mxu0
      %v1819 = vadd.f32 0.0, %v1818
      %v1820 = vpop.f32.mrf.mxu0
      %v1821 = vadd.f32 0.0, %v1820
      %1822 = vmatmul.bf16.gmra.mxu0 %v1793
      %v1823 = vpop.f32.mrf.mxu0
      %v1824 = vadd.f32 0.0, %v1823
      %v1825 = vpop.f32.mrf.mxu0
      %v1826 = vadd.f32 0.0, %v1825
      %1827 = vmatmul.bf16.gmra.mxu0 %v1796
      %v1828 = vpop.f32.mrf.mxu0
      %v1829 = vadd.f32 0.0, %v1828
      %v1830 = vpop.f32.mrf.mxu0
      %v1831 = vadd.f32 0.0, %v1830
      %1832 = vmatmul.bf16.gmra.mxu0 %v1799
      %v1833 = vpop.f32.mrf.mxu0
      %v1834 = vadd.f32 0.0, %v1833
      %v1835 = vpop.f32.mrf.mxu0
      %1836 = vdwg.mxu0
      %v1837 = vld [vmem:[#allocation3] sm:$0xff]
      %v1838 = vld [vmem:[#allocation3 + $0x8] sm:$0xff]
      %v1839 = vld [vmem:[#allocation3 + $0x10] sm:$0xff]
      %v1840 = vld [vmem:[#allocation3 + $0x18] sm:$0xff]
      %v1841 = vld [vmem:[#allocation3 + $0x20] sm:$0xff]
      %v1842 = vld [vmem:[#allocation3 + $0x28] sm:$0xff]
      %v1843 = vld [vmem:[#allocation3 + $0x30] sm:$0xff]
      %v1844 = vld [vmem:[#allocation3 + $0x38] sm:$0xff]
      %v1845 = vld [vmem:[#allocation3 + $0x40] sm:$0xff]
      %v1846 = vadd.f32 %v1837, %v1814
      %v1847 = vadd.f32 %v1838, %v1816
      %v1848 = vadd.f32 %v1839, %v1819
      %v1849 = vadd.f32 %v1840, %v1821
      %v1850 = vadd.f32 %v1841, %v1824
      %v1851 = vadd.f32 %v1842, %v1826
      %v1852 = vadd.f32 %v1843, %v1829
      %v1853 = vadd.f32 %v1844, %v1831
      %v1854 = vadd.f32 %v1845, %v1834
      %1855 = vst.msk [vmem:[#allocation3] sm:$0xff] %vm594, %v1846
      %1856 = vst.msk [vmem:[#allocation3 + $0x8] sm:$0xff] %vm594, %v1847
      %1857 = vst.msk [vmem:[#allocation3 + $0x10] sm:$0xff] %vm594, %v1848
      %1858 = vst.msk [vmem:[#allocation3 + $0x18] sm:$0xff] %vm594, %v1849
      %1859 = vst.msk [vmem:[#allocation3 + $0x20] sm:$0xff] %vm594, %v1850
      %1860 = vst.msk [vmem:[#allocation3 + $0x28] sm:$0xff] %vm594, %v1851
      %1861 = vst.msk [vmem:[#allocation3 + $0x30] sm:$0xff] %vm594, %v1852
      %1862 = vst.msk [vmem:[#allocation3 + $0x38] sm:$0xff] %vm594, %v1853
      %1863 = vst.msk [vmem:[#allocation3 + $0x40] sm:$0xff] %vm594, %v1854
      %s1864 = scalar_lea.vmem %s338, 132
      %v1865 = vld [vmem:[%s1864] sm:$0xf]
      %v1866 = vld [vmem:[%s1864 + $0x4] sm:$0xf]
      %v1867 = vld [vmem:[%s1864 + $0x8] sm:$0xf]
      %v1868 = vld [vmem:[%s1864 + $0xc] sm:$0xf]
      %v1869 = vld [vmem:[%s1864 + $0x10] sm:$0xf]
      %v1870 = vld [vmem:[%s1864 + $0x14] sm:$0xf]
      %v1871 = vld [vmem:[%s1864 + $0x18] sm:$0xf]
      %v1872 = vld [vmem:[%s1864 + $0x1c] sm:$0xf]
      %v1873 = vld [vmem:[%s1864 + $0x20] sm:$0xf]
      %v1874 = vld [vmem:[%s1864 + $0x24] sm:$0xf]
      %v1875 = vld [vmem:[%s1864 + $0x28] sm:$0x3]
      %v1876 = vunpack.c.l.bf16 %v1865
      %v1877 = vunpack.c.l.bf16 %v1866
      %v1878 = vunpack.c.l.bf16 %v1867
      %v1879 = vunpack.c.l.bf16 %v1868
      %v1880 = vunpack.c.l.bf16 %v1869
      %v1881 = vunpack.c.l.bf16 %v1870
      %v1882 = vunpack.c.l.bf16 %v1871
      %v1883 = vunpack.c.l.bf16 %v1872
      %v1884 = vunpack.c.l.bf16 %v1873
      %v1885 = vunpack.c.l.bf16 %v1874
      %v1886 = vunpack.c.l.bf16 %v1875
      %v1887 = vmul.f32 %v1876, %v376
      %v1888 = vmul.f32 %v1877, %v376
      %v1889 = vmul.f32 %v1878, %v376
      %v1890 = vmul.f32 %v1879, %v376
      %v1891 = vmul.f32 %v1880, %v376
      %v1892 = vmul.f32 %v1881, %v376
      %v1893 = vmul.f32 %v1882, %v376
      %v1894 = vmul.f32 %v1883, %v376
      %v1895 = vmul.f32 %v1884, %v376
      %v1896 = vmul.f32 %v1885, %v376
      %v1897 = vmul.f32 %v1886, %v376
      %v1898 = vadd.f32 %v1887, %v390
      %v1899 = vadd.f32 %v1888, %v390
      %v1900 = vadd.f32 %v1889, %v390
      %v1901 = vadd.f32 %v1890, %v390
      %v1902 = vadd.f32 %v1891, %v390
      %v1903 = vadd.f32 %v1892, %v390
      %v1904 = vadd.f32 %v1893, %v390
      %v1905 = vadd.f32 %v1894, %v390
      %v1906 = vadd.f32 %v1895, %v390
      %v1907 = vadd.f32 %v1896, %v390
      %v1908 = vadd.f32 %v1897, %v390
      %s1909 = scalar_lea.vmem %s1, 264
      %v1910 = vld [vmem:[%s1909] sm:$0xff]
      %v1911 = vld [vmem:[%s1909 + $0x8] sm:$0xff]
      %v1912 = vld [vmem:[%s1909 + $0x10] sm:$0xff]
      %v1913 = vld [vmem:[%s1909 + $0x18] sm:$0xff]
      %v1914 = vld [vmem:[%s1909 + $0x20] sm:$0xff]
      %v1915 = vld [vmem:[%s1909 + $0x28] sm:$0xff]
      %v1916 = vld [vmem:[%s1909 + $0x30] sm:$0xff]
      %v1917 = vld [vmem:[%s1909 + $0x38] sm:$0xff]
      %v1918 = vld [vmem:[%s1909 + $0x40] sm:$0xff]
      %v1919 = vld [vmem:[%s1909 + $0x48] sm:$0xff]
      %v1920 = vld [vmem:[%s1909 + $0x50] sm:$0x7]
      %1922 = vset.pattern.permute.xlu0 0
      %1923 = vperm.xlu0 %1922, %v1910
      %v1924 = vpop.permute.xlu0 %1923
      %1927 = vset.pattern.permute.xlu0 0
      %1928 = vperm.xlu0 %1927, %v1911
      %v1929 = vpop.permute.xlu0 %1928
      %1932 = vset.pattern.permute.xlu0 0
      %1933 = vperm.xlu0 %1932, %v1912
      %v1934 = vpop.permute.xlu0 %1933
      %1937 = vset.pattern.permute.xlu0 0
      %1938 = vperm.xlu0 %1937, %v1913
      %v1939 = vpop.permute.xlu0 %1938
      %1942 = vset.pattern.permute.xlu0 0
      %1943 = vperm.xlu0 %1942, %v1914
      %v1944 = vpop.permute.xlu0 %1943
      %1947 = vset.pattern.permute.xlu0 0
      %1948 = vperm.xlu0 %1947, %v1915
      %v1949 = vpop.permute.xlu0 %1948
      %1952 = vset.pattern.permute.xlu0 0
      %1953 = vperm.xlu0 %1952, %v1916
      %v1954 = vpop.permute.xlu0 %1953
      %1957 = vset.pattern.permute.xlu0 0
      %1958 = vperm.xlu0 %1957, %v1917
      %v1959 = vpop.permute.xlu0 %1958
      %1962 = vset.pattern.permute.xlu0 0
      %1963 = vperm.xlu0 %1962, %v1918
      %v1964 = vpop.permute.xlu0 %1963
      %1967 = vset.pattern.permute.xlu0 0
      %1968 = vperm.xlu0 %1967, %v1919
      %v1969 = vpop.permute.xlu0 %1968
      %1972 = vset.pattern.permute.xlu0 0
      %1973 = vperm.xlu0 %1972, %v1920
      %v1974 = vpop.permute.xlu0 %1973
      %v1976 = vmul.f32 %v1898, %v1924
      %v1977 = vmul.f32 %v1899, %v1929
      %v1978 = vmul.f32 %v1900, %v1934
      %v1979 = vmul.f32 %v1901, %v1939
      %v1980 = vmul.f32 %v1902, %v1944
      %v1981 = vmul.f32 %v1903, %v1949
      %v1982 = vmul.f32 %v1904, %v1954
      %v1983 = vmul.f32 %v1905, %v1959
      %v1984 = vmul.f32 %v1906, %v1964
      %v1985 = vmul.f32 %v1907, %v1969
      %v1986 = vmul.f32 %v1908, %v1974
      %v1987 = vpack.c.bf16 %v1976, %v1976
      %v1988 = vpack.c.bf16 %v1977, %v1977
      %v1989 = vpack.c.bf16 %v1978, %v1978
      %v1990 = vpack.c.bf16 %v1979, %v1979
      %v1991 = vpack.c.bf16 %v1980, %v1980
      %v1992 = vpack.c.bf16 %v1981, %v1981
      %v1993 = vpack.c.bf16 %v1982, %v1982
      %v1994 = vpack.c.bf16 %v1983, %v1983
      %v1995 = vpack.c.bf16 %v1984, %v1984
      %v1996 = vpack.c.bf16 %v1985, %v1985
      %v1997 = vpack.c.bf16 %v1986, %v1986
      %1998 = vst.msk [vmem:[#allocation2] sm:$0xf] %vm491, %v1987
      %1999 = vst.msk [vmem:[#allocation2 + $0x4] sm:$0xf] %vm491, %v1988
      %2000 = vst.msk [vmem:[#allocation2 + $0x8] sm:$0xf] %vm491, %v1989
      %2001 = vst.msk [vmem:[#allocation2 + $0xc] sm:$0xf] %vm491, %v1990
      %2002 = vst.msk [vmem:[#allocation2 + $0x10] sm:$0xf] %vm491, %v1991
      %2003 = vst.msk [vmem:[#allocation2 + $0x14] sm:$0xf] %vm491, %v1992
      %2004 = vst.msk [vmem:[#allocation2 + $0x18] sm:$0xf] %vm491, %v1993
      %2005 = vst.msk [vmem:[#allocation2 + $0x1c] sm:$0xf] %vm491, %v1994
      %2006 = vst.msk [vmem:[#allocation2 + $0x20] sm:$0xf] %vm491, %v1995
      %2007 = vst.msk [vmem:[#allocation2 + $0x24] sm:$0xf] %vm491, %v1996
      %v2008 = vld [vmem:[#allocation2 + $0x28] sm:$0x3]
      %v2009 = vsel %vm504, %v1997, %v2008
      %2010 = vst [vmem:[#allocation2 + $0x28] sm:$0x3] %v2009
      %v2011 = vld [vmem:[#allocation2] sm:$0xf]
      %v2012 = vld [vmem:[#allocation2 + $0x4] sm:$0xf]
      %v2013 = vld [vmem:[#allocation2 + $0x8] sm:$0xf]
      %v2014 = vld [vmem:[#allocation2 + $0xc] sm:$0xf]
      %v2015 = vld [vmem:[#allocation2 + $0x10] sm:$0xf]
      %v2016 = vld [vmem:[#allocation2 + $0x14] sm:$0xf]
      %v2017 = vld [vmem:[#allocation2 + $0x18] sm:$0xf]
      %v2018 = vld [vmem:[#allocation2 + $0x1c] sm:$0xf]
      %v2019 = vld [vmem:[#allocation2 + $0x20] sm:$0xf]
      %s2020 = scalar_lea.vmem %s2, 16
      %v2021 = vld [vmem:[%s2020] sm:$0x7]
      %v2031 = vunpack.c.l.b16 %v2011
      %v2032 = vunpack.c.l.b16 %v2012
      %v2033 = vunpack.c.l.b16 %v2013
      %v2034 = vunpack.c.l.b16 %v2014
      %v2035 = vunpack.c.l.b16 %v2015
      %v2036 = vunpack.c.l.b16 %v2016
      %v2037 = vunpack.c.l.b16 %v2017
      %v2038 = vunpack.c.l.b16 %v2018
      %v2039 = vunpack.c.l.b16 %v2019
      %v2040 = vpack.c.b16 %v2032, %v2031
      %v2041 = vpack.c.b16 %v2034, %v2033
      %v2042 = vpack.c.b16 %v2036, %v2035
      %v2043 = vpack.c.b16 %v2038, %v2037
      %v2044 = vpack.c.b16 %v2039, %v2039
      %v2046 = vsel %vm541, %v2040, 0
      %v2049 = vsel %vm541, %v2041, 0
      %v2052 = vsel %vm541, %v2042, 0
      %v2055 = vsel %vm541, %v2043, 0
      %v2058 = vsel %vm541, %v2044, 0
      %v2061 = vsel %vm557, %v2021, 0
      %2063 = vmatpush.bf16.msra.mxu0 0
      %2064 = vmatpush.bf16.msra.mxu0 0
      %2065 = vmatpush.bf16.msra.mxu0 0
      %2066 = vmatpush.bf16.msra.mxu0 0
      %2067 = vmatpush.bf16.msra.mxu0 0
      %2068 = vmatpush.bf16.msra.mxu0 0
      %2069 = vmatpush.bf16.msra.mxu0 0
      %2070 = vmatpush.bf16.msra.mxu0 %v2061
      %2071 = vmatmul.bf16.gmra.mxu0 %v2046
      %v2072 = vpop.f32.mrf.mxu0
      %v2073 = vadd.f32 0.0, %v2072
      %v2074 = vpop.f32.mrf.mxu0
      %v2075 = vadd.f32 0.0, %v2074
      %2076 = vmatmul.bf16.gmra.mxu0 %v2049
      %v2077 = vpop.f32.mrf.mxu0
      %v2078 = vadd.f32 0.0, %v2077
      %v2079 = vpop.f32.mrf.mxu0
      %v2080 = vadd.f32 0.0, %v2079
      %2081 = vmatmul.bf16.gmra.mxu0 %v2052
      %v2082 = vpop.f32.mrf.mxu0
      %v2083 = vadd.f32 0.0, %v2082
      %v2084 = vpop.f32.mrf.mxu0
      %v2085 = vadd.f32 0.0, %v2084
      %2086 = vmatmul.bf16.gmra.mxu0 %v2055
      %v2087 = vpop.f32.mrf.mxu0
      %v2088 = vadd.f32 0.0, %v2087
      %v2089 = vpop.f32.mrf.mxu0
      %v2090 = vadd.f32 0.0, %v2089
      %2091 = vmatmul.bf16.gmra.mxu0 %v2058
      %v2092 = vpop.f32.mrf.mxu0
      %v2093 = vadd.f32 0.0, %v2092
      %v2094 = vpop.f32.mrf.mxu0
      %2095 = vdwg.mxu0
      %v2096 = vld [vmem:[#allocation3] sm:$0xff]
      %v2097 = vld [vmem:[#allocation3 + $0x8] sm:$0xff]
      %v2098 = vld [vmem:[#allocation3 + $0x10] sm:$0xff]
      %v2099 = vld [vmem:[#allocation3 + $0x18] sm:$0xff]
      %v2100 = vld [vmem:[#allocation3 + $0x20] sm:$0xff]
      %v2101 = vld [vmem:[#allocation3 + $0x28] sm:$0xff]
      %v2102 = vld [vmem:[#allocation3 + $0x30] sm:$0xff]
      %v2103 = vld [vmem:[#allocation3 + $0x38] sm:$0xff]
      %v2104 = vld [vmem:[#allocation3 + $0x40] sm:$0xff]
      %v2105 = vadd.f32 %v2096, %v2073
      %v2106 = vadd.f32 %v2097, %v2075
      %v2107 = vadd.f32 %v2098, %v2078
      %v2108 = vadd.f32 %v2099, %v2080
      %v2109 = vadd.f32 %v2100, %v2083
      %v2110 = vadd.f32 %v2101, %v2085
      %v2111 = vadd.f32 %v2102, %v2088
      %v2112 = vadd.f32 %v2103, %v2090
      %v2113 = vadd.f32 %v2104, %v2093
      %2114 = vst.msk [vmem:[#allocation3] sm:$0xff] %vm594, %v2105
      %2115 = vst.msk [vmem:[#allocation3 + $0x8] sm:$0xff] %vm594, %v2106
      %2116 = vst.msk [vmem:[#allocation3 + $0x10] sm:$0xff] %vm594, %v2107
      %2117 = vst.msk [vmem:[#allocation3 + $0x18] sm:$0xff] %vm594, %v2108
      %2118 = vst.msk [vmem:[#allocation3 + $0x20] sm:$0xff] %vm594, %v2109
      %2119 = vst.msk [vmem:[#allocation3 + $0x28] sm:$0xff] %vm594, %v2110
      %2120 = vst.msk [vmem:[#allocation3 + $0x30] sm:$0xff] %vm594, %v2111
      %2121 = vst.msk [vmem:[#allocation3 + $0x38] sm:$0xff] %vm594, %v2112
      %2122 = vst.msk [vmem:[#allocation3 + $0x40] sm:$0xff] %vm594, %v2113
      %v2123 = vld [vmem:[#allocation3] sm:$0xff]
      %v2124 = vld [vmem:[#allocation3 + $0x8] sm:$0xff]
      %v2125 = vld [vmem:[#allocation3 + $0x10] sm:$0xff]
      %v2126 = vld [vmem:[#allocation3 + $0x18] sm:$0xff]
      %v2127 = vld [vmem:[#allocation3 + $0x20] sm:$0xff]
      %v2128 = vld [vmem:[#allocation3 + $0x28] sm:$0xff]
      %v2129 = vld [vmem:[#allocation3 + $0x30] sm:$0xff]
      %v2130 = vld [vmem:[#allocation3 + $0x38] sm:$0xff]
      %v2131 = vld [vmem:[#allocation3 + $0x40] sm:$0xff]
      %v2132 = vld [vmem:[%s3] sm:$0x1]
      %v2134 = vperm.slane %v2132, 0
      %v2136 = vadd.f32 %v2123, %v2134
      %v2137 = vadd.f32 %v2124, %v2134
      %v2138 = vadd.f32 %v2125, %v2134
      %v2139 = vadd.f32 %v2126, %v2134
      %v2140 = vadd.f32 %v2127, %v2134
      %v2141 = vadd.f32 %v2128, %v2134
      %v2142 = vadd.f32 %v2129, %v2134
      %v2143 = vadd.f32 %v2130, %v2134
      %v2144 = vadd.f32 %v2131, %v2134
      %v2145 = vpack.c.bf16 %v2136, %v2136
      %v2146 = vpack.c.bf16 %v2137, %v2137
      %v2147 = vpack.c.bf16 %v2138, %v2138
      %v2148 = vpack.c.bf16 %v2139, %v2139
      %v2149 = vpack.c.bf16 %v2140, %v2140
      %v2150 = vpack.c.bf16 %v2141, %v2141
      %v2151 = vpack.c.bf16 %v2142, %v2142
      %v2152 = vpack.c.bf16 %v2143, %v2143
      %v2153 = vpack.c.bf16 %v2144, %v2144
      %vm2154 = vcmask 257024
      %2155 = vst.msk [vmem:[%s343] sm:$0xf] %vm2154, %v2145
      %2156 = vst.msk [vmem:[%s343 + $0x4] sm:$0xf] %vm2154, %v2146
      %2157 = vst.msk [vmem:[%s343 + $0x8] sm:$0xf] %vm2154, %v2147
      %2158 = vst.msk [vmem:[%s343 + $0xc] sm:$0xf] %vm2154, %v2148
      %2159 = vst.msk [vmem:[%s343 + $0x10] sm:$0xf] %vm2154, %v2149
      %2160 = vst.msk [vmem:[%s343 + $0x14] sm:$0xf] %vm2154, %v2150
      %2161 = vst.msk [vmem:[%s343 + $0x18] sm:$0xf] %vm2154, %v2151
      %2162 = vst.msk [vmem:[%s343 + $0x1c] sm:$0xf] %vm2154, %v2152
      %2163 = vst.msk [vmem:[%s343 + $0x20] sm:$0xf] %vm2154, %v2153
      %v2164 = vld [vmem:[%s6] sm:$0xff]
      %v2165 = vld [vmem:[%s6 + $0x8] sm:$0xff]
      %v2166 = vld [vmem:[%s6 + $0x10] sm:$0xff]
      %v2167 = vld [vmem:[%s6 + $0x18] sm:$0xff]
      %v2168 = vld [vmem:[%s6 + $0x20] sm:$0xff]
      %v2169 = vld [vmem:[%s6 + $0x28] sm:$0xff]
      %v2170 = vld [vmem:[%s6 + $0x30] sm:$0xff]
      %v2171 = vld [vmem:[%s6 + $0x38] sm:$0xff]
      %v2172 = vld [vmem:[%s6 + $0x40] sm:$0xff]
      %2174 = vset.pattern.permute.xlu0 0
      %2175 = vperm.xlu0 %2174, %v2164
      %v2176 = vpop.permute.xlu0 %2175
      %2179 = vset.pattern.permute.xlu0 0
      %2180 = vperm.xlu0 %2179, %v2165
      %v2181 = vpop.permute.xlu0 %2180
      %2184 = vset.pattern.permute.xlu0 0
      %2185 = vperm.xlu0 %2184, %v2166
      %v2186 = vpop.permute.xlu0 %2185
      %2189 = vset.pattern.permute.xlu0 0
      %2190 = vperm.xlu0 %2189, %v2167
      %v2191 = vpop.permute.xlu0 %2190
      %2194 = vset.pattern.permute.xlu0 0
      %2195 = vperm.xlu0 %2194, %v2168
      %v2196 = vpop.permute.xlu0 %2195
      %2199 = vset.pattern.permute.xlu0 0
      %2200 = vperm.xlu0 %2199, %v2169
      %v2201 = vpop.permute.xlu0 %2200
      %2204 = vset.pattern.permute.xlu0 0
      %2205 = vperm.xlu0 %2204, %v2170
      %v2206 = vpop.permute.xlu0 %2205
      %2209 = vset.pattern.permute.xlu0 0
      %2210 = vperm.xlu0 %2209, %v2171
      %v2211 = vpop.permute.xlu0 %2210
      %2214 = vset.pattern.permute.xlu0 0
      %2215 = vperm.xlu0 %2214, %v2172
      %v2216 = vpop.permute.xlu0 %2215
      %v2218 = vmul.f32 %v2136, %v2176
      %v2219 = vmul.f32 %v2137, %v2181
      %v2220 = vmul.f32 %v2138, %v2186
      %v2221 = vmul.f32 %v2139, %v2191
      %v2222 = vmul.f32 %v2140, %v2196
      %v2223 = vmul.f32 %v2141, %v2201
      %v2224 = vmul.f32 %v2142, %v2206
      %v2225 = vmul.f32 %v2143, %v2211
      %v2226 = vmul.f32 %v2144, %v2216
      %v2227 = vsel %vm594, %v2218, 0.0
      %v2228 = vsel %vm594, %v2219, 0.0
      %v2229 = vadd.f32 %v2227, %v2228
      %v2230 = vsel %vm594, %v2220, 0.0
      %v2231 = vadd.f32 %v2229, %v2230
      %v2232 = vsel %vm594, %v2221, 0.0
      %v2233 = vadd.f32 %v2231, %v2232
      %v2234 = vsel %vm594, %v2222, 0.0
      %v2235 = vadd.f32 %v2233, %v2234
      %v2236 = vsel %vm594, %v2223, 0.0
      %v2237 = vadd.f32 %v2235, %v2236
      %v2238 = vsel %vm594, %v2224, 0.0
      %v2239 = vadd.f32 %v2237, %v2238
      %v2240 = vsel %vm594, %v2225, 0.0
      %v2241 = vadd.f32 %v2239, %v2240
      %v2242 = vsel %vm594, %v2226, 0.0
      %v2243 = vadd.f32 %v2241, %v2242
      %v2244 = vrot.slane %v2243, 4
      %v2245 = vadd.f32 %v2243, %v2244
      %v2246 = vrot.slane %v2245, 2
      %v2247 = vadd.f32 %v2245, %v2246
      %v2248 = vrot.slane %v2247, 1
      %v2249 = vadd.f32 %v2247, %v2248
      %vm2250 = vcmask 253952
      %2251 = vst.msk [vmem:[%s346] sm:$0x1] %vm2250, %v2249
      %v2252 = vmul.f32 %v2218, %v2218
      %v2253 = vmul.f32 %v2219, %v2219
      %v2254 = vmul.f32 %v2220, %v2220
      %v2255 = vmul.f32 %v2221, %v2221
      %v2256 = vmul.f32 %v2222, %v2222
      %v2257 = vmul.f32 %v2223, %v2223
      %v2258 = vmul.f32 %v2224, %v2224
      %v2259 = vmul.f32 %v2225, %v2225
      %v2260 = vmul.f32 %v2226, %v2226
      %v2261 = vsel %vm594, %v2252, 0.0
      %v2262 = vsel %vm594, %v2253, 0.0
      %v2263 = vadd.f32 %v2261, %v2262
      %v2264 = vsel %vm594, %v2254, 0.0
      %v2265 = vadd.f32 %v2263, %v2264
      %v2266 = vsel %vm594, %v2255, 0.0
      %v2267 = vadd.f32 %v2265, %v2266
      %v2268 = vsel %vm594, %v2256, 0.0
      %v2269 = vadd.f32 %v2267, %v2268
      %v2270 = vsel %vm594, %v2257, 0.0
      %v2271 = vadd.f32 %v2269, %v2270
      %v2272 = vsel %vm594, %v2258, 0.0
      %v2273 = vadd.f32 %v2271, %v2272
      %v2274 = vsel %vm594, %v2259, 0.0
      %v2275 = vadd.f32 %v2273, %v2274
      %v2276 = vsel %vm594, %v2260, 0.0
      %v2277 = vadd.f32 %v2275, %v2276
      %v2278 = vrot.slane %v2277, 4
      %v2279 = vadd.f32 %v2277, %v2278
      %v2280 = vrot.slane %v2279, 2
      %v2281 = vadd.f32 %v2279, %v2280
      %v2282 = vrot.slane %v2281, 1
      %v2283 = vadd.f32 %v2281, %v2282
      %2284 = vst.msk [vmem:[%s349] sm:$0x1] %vm2250, %v2283
      %p2285 = scmp.lt.s32.totalorder %s21, 1
      %s2286 = scalar_select %p2285, %s21, 1
      %s2287 = smul.addr %s2286, 9
      %s2288 = smul.addr %s2287, 4
      %s2289 = scalar_lea.vmem %s7, %s2288
      %p2290 = scmp.lt.s32.totalorder %s21, 1
      %s2291 = scalar_select %p2290, %s21, 1
      %s2292 = scalar_lea.vmem %s8, %s2291
      %p2293 = scmp.lt.s32.totalorder %s21, 1
      %s2294 = scalar_select %p2293, %s21, 1
      %s2295 = scalar_lea.vmem %s9, %s2294
      // Predicated region
      $region49: #{center_speed_forward.4} parent=47 // pred_check
        %p2296 = pneg %p191
      $region50: #{center_speed_forward.4} parent=47 // pred_check_branch
        %2298 = sbr.rel (%p2296) target = $region52
      $region51: #{center_speed_forward.4} parent=47 // pred_region
        _
      $region52: #{center_speed_forward.4} parent=47 // pred_fallthru
        _
      // Predicated region
      $region53: #{center_speed_forward.4} parent=47 // pred_check
        %p2299 = pneg %p217
      $region54: #{center_speed_forward.4} parent=47 // pred_check_branch
        %2301 = sbr.rel (%p2299) target = $region56
      $region55: #{center_speed_forward.4} parent=47 // pred_region
        _
      $region56: #{center_speed_forward.4} parent=47 // pred_fallthru
        _
      // Predicated region
      $region57: #{center_speed_forward.4} parent=47 // pred_check
        %p2302 = pneg %p243
      $region58: #{center_speed_forward.4} parent=47 // pred_check_branch
        %2304 = sbr.rel (%p2302) target = $region60
      $region59: #{center_speed_forward.4} parent=47 // pred_region
        _
      $region60: #{center_speed_forward.4} parent=47 // pred_fallthru
        _
    $region48: #{center_speed_forward.4} parent=5 // pred_fallthru
      _
    %p2305 = scmp.le.s32.totalorder 2, %s16
    // Predicated region
    $region61: #{center_speed_forward.4} parent=5 // pred_check
      %p2306 = pneg %p2305
    $region62: #{center_speed_forward.4} parent=5 // pred_check_branch
      %2308 = sbr.rel (%p2306) target = $region64
    $region63: #{center_speed_forward.4} parent=5 // pred_region
      %s2309 = ssub.s32 %s16, 2
      // Predicated region
      $region65: #{center_speed_forward.4} parent=63 // pred_check
        %p2310 = pneg %p197
      $region66: #{center_speed_forward.4} parent=63 // pred_check_branch
        %2312 = sbr.rel (%p2310) target = $region68
      $region67: #{center_speed_forward.4} parent=63 // pred_region
        %p2313 = scmp.lt.s32.totalorder %s22, 1
        %s2314 = scalar_select %p2313, %s22, 1
        %s2315 = smul.addr %s2314, 9
        %s2316 = smul.addr %s2315, 4
        %s2317 = scalar_lea.vmem %s7, %s2316
      $region68: #{center_speed_forward.4} parent=63 // pred_fallthru
        _
      // Predicated region
      $region69: #{center_speed_forward.4} parent=63 // pred_check
        %p2318 = pneg %p223
      $region70: #{center_speed_forward.4} parent=63 // pred_check_branch
        %2320 = sbr.rel (%p2318) target = $region72
      $region71: #{center_speed_forward.4} parent=63 // pred_region
        %p2321 = scmp.lt.s32.totalorder %s22, 1
        %s2322 = scalar_select %p2321, %s22, 1
        %s2323 = scalar_lea.vmem %s8, %s2322
      $region72: #{center_speed_forward.4} parent=63 // pred_fallthru
        _
      // Predicated region
      $region73: #{center_speed_forward.4} parent=63 // pred_check
        %p2324 = pneg %p249
      $region74: #{center_speed_forward.4} parent=63 // pred_check_branch
        %2326 = sbr.rel (%p2324) target = $region76
      $region75: #{center_speed_forward.4} parent=63 // pred_region
        %p2327 = scmp.lt.s32.totalorder %s22, 1
        %s2328 = scalar_select %p2327, %s22, 1
        %s2329 = scalar_lea.vmem %s9, %s2328
      $region76: #{center_speed_forward.4} parent=63 // pred_fallthru
        _
    $region64: #{center_speed_forward.4} parent=5 // pred_fallthru
      _
  $region6: #{center_speed_forward.4} parent=0 // loop_footer
    %s20 = sadd.s32 1, %s16
  $region7: #{center_speed_forward.4} parent=0 // loop_footer_branch
    %15 = sbr.rel target = $region3
  $region8: #{center_speed_forward.4} parent=0 // loop_exit
    _

// kernel: tile.21
$region0: #{tile.21}
  #allocation0 [shape = 's32[1]{0}', space=sflag, size = 0x4, scoped, tag = 'scoped memory for tile.21']
  %s0 = inlined_call_operand.vmem [shape: f32[32], index: 0, kind: input, shape index: {}]
  %s1 = inlined_call_operand.vmem [shape: f32[4,32], index: 1, kind: output, shape index: {}]
  // Predicated region
  $region2: #{tile.21} parent=0 // pred_check
    _
  $region3: #{tile.21} parent=0 // pred_check_branch
    %3 = sbr.rel (0) target = $region5
  $region4: #{tile.21} parent=0 // pred_region
    _
  $region5: #{tile.21} parent=0 // pred_fallthru
    _
  %v4 = vld [vmem:[%s0] ss:$0 sm:$0xff]
  %5 = vst [vmem:[%s1] sm:$0xf] %v4

// kernel: tile.22
$region0: #{tile.22}
  %s0 = inlined_call_operand.vmem [shape: f32[4,32], index: 0, kind: input, shape index: {}]
  %s1 = inlined_call_operand.vmem [shape: f32[1,128], index: 1, kind: output, shape index: {}]
  $region1: #{tile.22} parent=0
    #allocation0 [shape = 'u8[4096]{0}', space=vmem, size = 0x1000, scoped, tag = 'scoped mem for output reshape']
    #allocation1 [shape = 'u8[4096]{0}', space=vmem, size = 0x1000, scoped, tag = 'scoped mem for input reshape']
    %s3 = ssub.s32 16, 1
    %v4 = vld [vmem:[%s0] sm:%s3]
    %5 = vst [vmem:[#allocation1] sm:%s3] %v4
    %v6 = vld [vmem:[#allocation1] sm:$0x1]
    %vm7 = vcmask 261120
    %8 = vst.msk [vmem:[#allocation0] sm:$0x1] %vm7, %v6
    %s9 = scalar_lea.vmem [#allocation1], 3
    %v10 = vld [vmem:[%s9] sm:$0x1]
    %11 = vrot.lane.b32.xlu0 %v10, 96
    %v12 = vpop.permute.xlu0 %11
    %vm13 = vcmask 1048320
    %14 = vst.msk [vmem:[#allocation0] sm:$0x1] %vm13, %v12
    %s15 = scalar_lea.vmem [#allocation1], 2
    %v16 = vld [vmem:[%s15] sm:$0x1]
    %17 = vrot.lane.b32.xlu0 %v16, 64
    %v18 = vpop.permute.xlu0 %17
    %vm19 = vcmask 785920
    %20 = vst.msk [vmem:[#allocation0] sm:$0x1] %vm19, %v18
    %s21 = scalar_lea.vmem [#allocation1], 1
    %v22 = vld [vmem:[%s21] sm:$0x1]
    %23 = vrot.lane.b32.xlu0 %v22, 32
    %v24 = vpop.permute.xlu0 %23
    %vm25 = vcmask 523520
    %26 = vst.msk [vmem:[#allocation0] sm:$0x1] %vm25, %v24
    %s28 = ssub.s32 2, 1
    %v29 = vld [vmem:[#allocation0] sm:%s28]
    %s31 = ssub.s32 2, 1
    %32 = vst [vmem:[%s1] sm:%s31] %v29

// kernel: tile.32
$region0: #{tile.32}
  #allocation0 [shape = 's32[1]{0}', space=sflag, size = 0x4, scoped, tag = 'scoped memory for tile.32']
  %s0 = inlined_call_operand.vmem [shape: f32[4], index: 0, kind: input, shape index: {}]
  %s1 = inlined_call_operand.vmem [shape: f32[4,4], index: 1, kind: output, shape index: {}]
  // Predicated region
  $region2: #{tile.32} parent=0 // pred_check
    _
  $region3: #{tile.32} parent=0 // pred_check_branch
    %3 = sbr.rel (0) target = $region5
  $region4: #{tile.32} parent=0 // pred_region
    _
  $region5: #{tile.32} parent=0 // pred_fallthru
    _
  %v4 = vld [vmem:[%s0] ss:$0 sm:$0xff]
  %5 = vst [vmem:[%s1] sm:$0xf] %v4

// kernel: tile.33
$region0: #{tile.33}
  %s0 = inlined_call_operand.vmem [shape: f32[4,4], index: 0, kind: input, shape index: {}]
  %s1 = inlined_call_operand.vmem [shape: f32[1,16], index: 1, kind: output, shape index: {}]
  $region1: #{tile.33} parent=0
    #allocation0 [shape = 'u8[4096]{0}', space=vmem, size = 0x1000, scoped, tag = 'scoped mem for output reshape']
    #allocation1 [shape = 'u8[4096]{0}', space=vmem, size = 0x1000, scoped, tag = 'scoped mem for input reshape']
    %s3 = ssub.s32 16, 1
    %v4 = vld [vmem:[%s0] sm:%s3]
    %5 = vst [vmem:[#allocation1] sm:%s3] %v4
    %v6 = vld [vmem:[#allocation1] sm:$0x1]
    %vm7 = vcmask 31744
    %8 = vst.msk [vmem:[#allocation0] sm:$0x1] %vm7, %v6
    %s9 = scalar_lea.vmem [#allocation1], 3
    %v10 = vld [vmem:[%s9] sm:$0x1]
    %11 = vrot.lane.b32.xlu0 %v10, 12
    %v12 = vpop.permute.xlu0 %11
    %vm13 = vcmask 130144
    %14 = vst.msk [vmem:[#allocation0] sm:$0x1] %vm13, %v12
    %s15 = scalar_lea.vmem [#allocation1], 2
    %v16 = vld [vmem:[%s15] sm:$0x1]
    %17 = vrot.lane.b32.xlu0 %v16, 8
    %v18 = vpop.permute.xlu0 %17
    %vm19 = vcmask 97344
    %20 = vst.msk [vmem:[#allocation0] sm:$0x1] %vm19, %v18
    %s21 = scalar_lea.vmem [#allocation1], 1
    %v22 = vld [vmem:[%s21] sm:$0x1]
    %23 = vrot.lane.b32.xlu0 %v22, 4
    %v24 = vpop.permute.xlu0 %23
    %vm25 = vcmask 64544
    %26 = vst.msk [vmem:[#allocation0] sm:$0x1] %vm25, %v24
    %s28 = ssub.s32 2, 1
    %v29 = vld [vmem:[#allocation0] sm:%s28]
    %s31 = ssub.s32 2, 1
    %32 = vst [vmem:[%s1] sm:%s31] %v29

// kernel: center_speed_forward.6
$region0: #{center_speed_forward.6}
  #allocation0 [shape = 'u32[]', space=smem, size = 0x4, offset = 0x4, fixed_abs, tag = 'smem constant byte address 0x4 - core index']
  #allocation1 [shape = 'u32[72,128]{1,0:T(1,128)}', space=vmem, size = 0x9000, scoped, tag = 'internal scratch']
  #allocation2 [shape = 'bf16[38,64]{1,0:T(8,128)(2,1)}', space=vmem, size = 0x2800, scoped, tag = 'scratch operand']
  #allocation3 [shape = 'f32[24,128]{1,0:T(8,128)}', space=vmem, size = 0x3000, scoped, tag = 'scratch operand']
  %s0 = inlined_call_operand.vmem [shape: bf16[2,1,38,64], index: 0, kind: input, shape index: {}]
  %s1 = inlined_call_operand.vmem [shape: f32[1,38,1], index: 1, kind: input, shape index: {}]
  %s2 = inlined_call_operand.vmem [shape: bf16[9,64,128], index: 2, kind: input, shape index: {}]
  %s3 = inlined_call_operand.vmem [shape: f32[1,128], index: 3, kind: input, shape index: {}]
  %s4 = inlined_call_operand.vmem [shape: f32[1,64], index: 4, kind: input, shape index: {}]
  %s5 = inlined_call_operand.vmem [shape: f32[1,64], index: 5, kind: input, shape index: {}]
  %s6 = inlined_call_operand.vmem [shape: f32[24,1], index: 6, kind: input, shape index: {}]
  %s7 = inlined_call_operand.vmem [shape: bf16[2,24,128], index: 7, kind: output, shape index: {0}]
  %s8 = inlined_call_operand.vmem [shape: f32[2,1,128], index: 8, kind: output, shape index: {1}]
  %s9 = inlined_call_operand.vmem [shape: f32[2,1,128], index: 9, kind: output, shape index: {2}]
  %10 = xla_tuple %s7, %s8, %s9
  %s11 = sld [smem:[#allocation0]]
  $region77: #{center_speed_forward.6} parent=0
    _
  %s13 = ssub.s32 1, %s11
  %s14 = scalar_select 0, %s13, %s11
  loop: start=0, step=1, limit=4
  $region2: #{center_speed_forward.6} parent=0 // loop_pre_header
    _
  $region3: #{center_speed_forward.6} parent=0 // loop_header
    %s16 = sphi 0, %s20
    %p17 = scmp.ge.s32.totalorder %s16, 4
    %s26 = sphi 0, %s28
    %s29 = sphi 0, %s26
    %s30 = sphi 0, %s29
    %s46 = sphi 0, %s30
    %s50 = sphi 0, %s50
    %s52 = sphi 0, %s50
    %s53 = sphi 0, %s52
    %s67 = sphi 0, %s53
    %s71 = sphi 0, %s71
    %s73 = sphi 0, %s71
    %s74 = sphi 0, %s73
    %s88 = sphi 0, %s74
    %s92 = sphi 0, %s92
    %s94 = sphi 0, %s92
    %s95 = sphi 0, %s94
    %s109 = sphi 0, %s95
    %s113 = sphi 0, %s113
    %s115 = sphi 0, %s113
    %s116 = sphi 0, %s115
    %s130 = sphi 0, %s116
    %s134 = sphi 0, %s134
    %s136 = sphi 0, %s134
    %s137 = sphi 0, %s136
    %s151 = sphi 0, %s137
    %s155 = sphi 0, %s155
    %s157 = sphi 0, %s155
    %s158 = sphi 0, %s157
    %s172 = sphi 0, %s158
    %s178 = sphi 0, %s180
    %s181 = sphi 0, %s178
    %s182 = sphi 0, %s181
    %s198 = sphi 0, %s182
    %s204 = sphi 0, %s206
    %s207 = sphi 0, %s204
    %s208 = sphi 0, %s207
    %s224 = sphi 0, %s208
    %s230 = sphi 0, %s232
    %s233 = sphi 0, %s230
    %s234 = sphi 0, %s233
    %s250 = sphi 0, %s234
  $region4: #{center_speed_forward.6} parent=0 // loop_header_branch
    %19 = sbr.rel (%p17) target = $region8
  $region5: #{center_speed_forward.6} parent=0 // loop_body
    %s21 = ssub.s32 %s16, 1
    %s22 = ssub.s32 %s16, 2
    %s23 = sadd.s32 %s16, 1
    %s24 = ssub.s32 %s16, %s23
    %p25 = scmp.eq.s32.totalorder %s24, 0
    %s27 = sadd.s32 %s26, 1
    %s28 = scalar_select %p25, %s26, %s27
    %p31 = pneg %p25
    %p32 = scmp.eq.s32.totalorder %s16, 1
    %p33 = por %p31, %p32
    %p34 = scmp.ne.s32.totalorder %s26, %s29
    %p35 = scmp.eq.s32.totalorder %s16, 0
    %p36 = por %p34, %p35
    %p37 = scmp.ne.s32.totalorder %s26, %s29
    %p38 = scmp.eq.s32.totalorder %s21, 1
    %p39 = por %p37, %p38
    %p40 = scmp.ne.s32.totalorder %s29, %s30
    %p41 = scmp.eq.s32.totalorder %s21, 0
    %p42 = por %p40, %p41
    %p43 = scmp.ne.s32.totalorder %s29, %s30
    %p44 = scmp.eq.s32.totalorder %s22, 1
    %p45 = por %p43, %p44
    %p47 = scmp.ne.s32.totalorder %s30, %s46
    %p48 = scmp.eq.s32.totalorder %s22, 0
    %p49 = por %p47, %p48
    %s51 = sadd.s32 %s50, 1
    %p54 = scmp.eq.s32.totalorder %s16, 1
    %p55 = scmp.ne.s32.totalorder %s50, %s52
    %p56 = scmp.eq.s32.totalorder %s16, 0
    %p57 = por %p55, %p56
    %p58 = scmp.ne.s32.totalorder %s50, %s52
    %p59 = scmp.eq.s32.totalorder %s21, 1
    %p60 = por %p58, %p59
    %p61 = scmp.ne.s32.totalorder %s52, %s53
    %p62 = scmp.eq.s32.totalorder %s21, 0
    %p63 = por %p61, %p62
    %p64 = scmp.ne.s32.totalorder %s52, %s53
    %p65 = scmp.eq.s32.totalorder %s22, 1
    %p66 = por %p64, %p65
    %p68 = scmp.ne.s32.totalorder %s53, %s67
    %p69 = scmp.eq.s32.totalorder %s22, 0
    %p70 = por %p68, %p69
    %s72 = sadd.s32 %s71, 1
    %p75 = scmp.eq.s32.totalorder %s16, 1
    %p76 = scmp.ne.s32.totalorder %s71, %s73
    %p77 = scmp.eq.s32.totalorder %s16, 0
    %p78 = por %p76, %p77
    %p79 = scmp.ne.s32.totalorder %s71, %s73
    %p80 = scmp.eq.s32.totalorder %s21, 1
    %p81 = por %p79, %p80
    %p82 = scmp.ne.s32.totalorder %s73, %s74
    %p83 = scmp.eq.s32.totalorder %s21, 0
    %p84 = por %p82, %p83
    %p85 = scmp.ne.s32.totalorder %s73, %s74
    %p86 = scmp.eq.s32.totalorder %s22, 1
    %p87 = por %p85, %p86
    %p89 = scmp.ne.s32.totalorder %s74, %s88
    %p90 = scmp.eq.s32.totalorder %s22, 0
    %p91 = por %p89, %p90
    %s93 = sadd.s32 %s92, 1
    %p96 = scmp.eq.s32.totalorder %s16, 1
    %p97 = scmp.ne.s32.totalorder %s92, %s94
    %p98 = scmp.eq.s32.totalorder %s16, 0
    %p99 = por %p97, %p98
    %p100 = scmp.ne.s32.totalorder %s92, %s94
    %p101 = scmp.eq.s32.totalorder %s21, 1
    %p102 = por %p100, %p101
    %p103 = scmp.ne.s32.totalorder %s94, %s95
    %p104 = scmp.eq.s32.totalorder %s21, 0
    %p105 = por %p103, %p104
    %p106 = scmp.ne.s32.totalorder %s94, %s95
    %p107 = scmp.eq.s32.totalorder %s22, 1
    %p108 = por %p106, %p107
    %p110 = scmp.ne.s32.totalorder %s95, %s109
    %p111 = scmp.eq.s32.totalorder %s22, 0
    %p112 = por %p110, %p111
    %s114 = sadd.s32 %s113, 1
    %p117 = scmp.eq.s32.totalorder %s16, 1
    %p118 = scmp.ne.s32.totalorder %s113, %s115
    %p119 = scmp.eq.s32.totalorder %s16, 0
    %p120 = por %p118, %p119
    %p121 = scmp.ne.s32.totalorder %s113, %s115
    %p122 = scmp.eq.s32.totalorder %s21, 1
    %p123 = por %p121, %p122
    %p124 = scmp.ne.s32.totalorder %s115, %s116
    %p125 = scmp.eq.s32.totalorder %s21, 0
    %p126 = por %p124, %p125
    %p127 = scmp.ne.s32.totalorder %s115, %s116
    %p128 = scmp.eq.s32.totalorder %s22, 1
    %p129 = por %p127, %p128
    %p131 = scmp.ne.s32.totalorder %s116, %s130
    %p132 = scmp.eq.s32.totalorder %s22, 0
    %p133 = por %p131, %p132
    %s135 = sadd.s32 %s134, 1
    %p138 = scmp.eq.s32.totalorder %s16, 1
    %p139 = scmp.ne.s32.totalorder %s134, %s136
    %p140 = scmp.eq.s32.totalorder %s16, 0
    %p141 = por %p139, %p140
    %p142 = scmp.ne.s32.totalorder %s134, %s136
    %p143 = scmp.eq.s32.totalorder %s21, 1
    %p144 = por %p142, %p143
    %p145 = scmp.ne.s32.totalorder %s136, %s137
    %p146 = scmp.eq.s32.totalorder %s21, 0
    %p147 = por %p145, %p146
    %p148 = scmp.ne.s32.totalorder %s136, %s137
    %p149 = scmp.eq.s32.totalorder %s22, 1
    %p150 = por %p148, %p149
    %p152 = scmp.ne.s32.totalorder %s137, %s151
    %p153 = scmp.eq.s32.totalorder %s22, 0
    %p154 = por %p152, %p153
    %s156 = sadd.s32 %s155, 1
    %p159 = scmp.eq.s32.totalorder %s16, 1
    %p160 = scmp.ne.s32.totalorder %s155, %s157
    %p161 = scmp.eq.s32.totalorder %s16, 0
    %p162 = por %p160, %p161
    %p163 = scmp.ne.s32.totalorder %s155, %s157
    %p164 = scmp.eq.s32.totalorder %s21, 1
    %p165 = por %p163, %p164
    %p166 = scmp.ne.s32.totalorder %s157, %s158
    %p167 = scmp.eq.s32.totalorder %s21, 0
    %p168 = por %p166, %p167
    %p169 = scmp.ne.s32.totalorder %s157, %s158
    %p170 = scmp.eq.s32.totalorder %s22, 1
    %p171 = por %p169, %p170
    %p173 = scmp.ne.s32.totalorder %s158, %s172
    %p174 = scmp.eq.s32.totalorder %s22, 0
    %p175 = por %p173, %p174
    %s176 = ssub.s32 %s16, %s23
    %p177 = scmp.eq.s32.totalorder %s176, 0
    %s179 = sadd.s32 %s178, 1
    %s180 = scalar_select %p177, %s178, %s179
    %p183 = pneg %p177
    %p184 = scmp.eq.s32.totalorder %s16, 1
    %p185 = por %p183, %p184
    %p186 = scmp.ne.s32.totalorder %s178, %s181
    %p187 = scmp.eq.s32.totalorder %s16, 0
    %p188 = por %p186, %p187
    %p189 = scmp.ne.s32.totalorder %s178, %s181
    %p190 = scmp.eq.s32.totalorder %s21, 1
    %p191 = por %p189, %p190
    %p192 = scmp.ne.s32.totalorder %s181, %s182
    %p193 = scmp.eq.s32.totalorder %s21, 0
    %p194 = por %p192, %p193
    %p195 = scmp.ne.s32.totalorder %s181, %s182
    %p196 = scmp.eq.s32.totalorder %s22, 1
    %p197 = por %p195, %p196
    %p199 = scmp.ne.s32.totalorder %s182, %s198
    %p200 = scmp.eq.s32.totalorder %s22, 0
    %p201 = por %p199, %p200
    %s202 = ssub.s32 %s16, %s23
    %p203 = scmp.eq.s32.totalorder %s202, 0
    %s205 = sadd.s32 %s204, 1
    %s206 = scalar_select %p203, %s204, %s205
    %p209 = pneg %p203
    %p210 = scmp.eq.s32.totalorder %s16, 1
    %p211 = por %p209, %p210
    %p212 = scmp.ne.s32.totalorder %s204, %s207
    %p213 = scmp.eq.s32.totalorder %s16, 0
    %p214 = por %p212, %p213
    %p215 = scmp.ne.s32.totalorder %s204, %s207
    %p216 = scmp.eq.s32.totalorder %s21, 1
    %p217 = por %p215, %p216
    %p218 = scmp.ne.s32.totalorder %s207, %s208
    %p219 = scmp.eq.s32.totalorder %s21, 0
    %p220 = por %p218, %p219
    %p221 = scmp.ne.s32.totalorder %s207, %s208
    %p222 = scmp.eq.s32.totalorder %s22, 1
    %p223 = por %p221, %p222
    %p225 = scmp.ne.s32.totalorder %s208, %s224
    %p226 = scmp.eq.s32.totalorder %s22, 0
    %p227 = por %p225, %p226
    %s228 = ssub.s32 %s16, %s23
    %p229 = scmp.eq.s32.totalorder %s228, 0
    %s231 = sadd.s32 %s230, 1
    %s232 = scalar_select %p229, %s230, %s231
    %p235 = pneg %p229
    %p236 = scmp.eq.s32.totalorder %s16, 1
    %p237 = por %p235, %p236
    %p238 = scmp.ne.s32.totalorder %s230, %s233
    %p239 = scmp.eq.s32.totalorder %s16, 0
    %p240 = por %p238, %p239
    %p241 = scmp.ne.s32.totalorder %s230, %s233
    %p242 = scmp.eq.s32.totalorder %s21, 1
    %p243 = por %p241, %p242
    %p244 = scmp.ne.s32.totalorder %s233, %s234
    %p245 = scmp.eq.s32.totalorder %s21, 0
    %p246 = por %p244, %p245
    %p247 = scmp.ne.s32.totalorder %s233, %s234
    %p248 = scmp.eq.s32.totalorder %s22, 1
    %p249 = por %p247, %p248
    %p251 = scmp.ne.s32.totalorder %s234, %s250
    %p252 = scmp.eq.s32.totalorder %s22, 0
    %p253 = por %p251, %p252
    %p254 = scmp.le.s32.totalorder 1, %s16
    %p255 = scmp.lt.s32.totalorder %s16, 3
    %p256 = pnand %p254, %p255
    %p257 = pneg %p256
    // Predicated region
    $region9: #{center_speed_forward.6} parent=5 // pred_check
      _
    $region10: #{center_speed_forward.6} parent=5 // pred_check_branch
      %259 = sbr.rel (%p256) target = $region12
    $region11: #{center_speed_forward.6} parent=5 // pred_region
      %s260 = ssub.s32 %s16, 1
      // Predicated region
      $region13: #{center_speed_forward.6} parent=11 // pred_check
        %p261 = pneg %p63
      $region14: #{center_speed_forward.6} parent=11 // pred_check_branch
        %263 = sbr.rel (%p261) target = $region16
      $region15: #{center_speed_forward.6} parent=11 // pred_region
        _
      $region16: #{center_speed_forward.6} parent=11 // pred_fallthru
        _
      // Predicated region
      $region17: #{center_speed_forward.6} parent=11 // pred_check
        %p264 = pneg %p84
      $region18: #{center_speed_forward.6} parent=11 // pred_check_branch
        %266 = sbr.rel (%p264) target = $region20
      $region19: #{center_speed_forward.6} parent=11 // pred_region
        _
      $region20: #{center_speed_forward.6} parent=11 // pred_fallthru
        _
      // Predicated region
      $region21: #{center_speed_forward.6} parent=11 // pred_check
        %p267 = pneg %p105
      $region22: #{center_speed_forward.6} parent=11 // pred_check_branch
        %269 = sbr.rel (%p267) target = $region24
      $region23: #{center_speed_forward.6} parent=11 // pred_region
        _
      $region24: #{center_speed_forward.6} parent=11 // pred_fallthru
        _
      // Predicated region
      $region25: #{center_speed_forward.6} parent=11 // pred_check
        %p270 = pneg %p126
      $region26: #{center_speed_forward.6} parent=11 // pred_check_branch
        %272 = sbr.rel (%p270) target = $region28
      $region27: #{center_speed_forward.6} parent=11 // pred_region
        _
      $region28: #{center_speed_forward.6} parent=11 // pred_fallthru
        _
      // Predicated region
      $region29: #{center_speed_forward.6} parent=11 // pred_check
        %p273 = pneg %p147
      $region30: #{center_speed_forward.6} parent=11 // pred_check_branch
        %275 = sbr.rel (%p273) target = $region32
      $region31: #{center_speed_forward.6} parent=11 // pred_region
        _
      $region32: #{center_speed_forward.6} parent=11 // pred_fallthru
        _
      // Predicated region
      $region33: #{center_speed_forward.6} parent=11 // pred_check
        %p276 = pneg %p168
      $region34: #{center_speed_forward.6} parent=11 // pred_check_branch
        %278 = sbr.rel (%p276) target = $region36
      $region35: #{center_speed_forward.6} parent=11 // pred_region
        _
      $region36: #{center_speed_forward.6} parent=11 // pred_fallthru
        _
    $region12: #{center_speed_forward.6} parent=5 // pred_fallthru
      _
    %p279 = scmp.lt.s32.totalorder %s16, 2
    // Predicated region
    $region37: #{center_speed_forward.6} parent=5 // pred_check
      %p280 = pneg %p279
    $region38: #{center_speed_forward.6} parent=5 // pred_check_branch
      %282 = sbr.rel (%p280) target = $region40
    $region39: #{center_speed_forward.6} parent=5 // pred_region
      // Predicated region
      $region41: #{center_speed_forward.6} parent=39 // pred_check
        %p283 = pneg %p36
      $region42: #{center_speed_forward.6} parent=39 // pred_check_branch
        %285 = sbr.rel (%p283) target = $region44
      $region43: #{center_speed_forward.6} parent=39 // pred_region
        %p286 = scmp.lt.s32.totalorder %s16, 1
        %s287 = scalar_select %p286, %s16, 1
        %s288 = smul.addr %s287, 5
        %s289 = smul.addr %s288, 4
        %s290 = scalar_lea.vmem %s0, %s289
      $region44: #{center_speed_forward.6} parent=39 // pred_fallthru
        _
    $region40: #{center_speed_forward.6} parent=5 // pred_fallthru
      _
    %p291 = scmp.le.s32.totalorder 1, %s16
    %p292 = scmp.lt.s32.totalorder %s16, 3
    %p293 = pnand %p291, %p292
    %p294 = pneg %p293
    // Predicated region
    $region45: #{center_speed_forward.6} parent=5 // pred_check
      _
    $region46: #{center_speed_forward.6} parent=5 // pred_check_branch
      %296 = sbr.rel (%p293) target = $region48
    $region47: #{center_speed_forward.6} parent=5 // pred_region
      %s297 = ssub.s32 %s16, 1
      %p298 = scmp.lt.s32.totalorder %s21, 1
      %s299 = scalar_select %p298, %s21, 1
      %s300 = smul.addr %s299, 5
      %s301 = smul.addr %s300, 4
      %s302 = scalar_lea.vmem %s0, %s301
      %p303 = pneg %p42
      %p304 = pneg %p39
      %p305 = pneg %p63
      %p306 = pneg %p60
      %p307 = pneg %p84
      %p308 = pneg %p81
      %p309 = pneg %p105
      %p310 = pneg %p102
      %p311 = pneg %p126
      %p312 = pneg %p123
      %p313 = pneg %p147
      %p314 = pneg %p144
      %p315 = pneg %p168
      %p316 = pneg %p165
      %p317 = pneg %p194
      %p318 = pneg %p191
      %p319 = scmp.lt.s32.totalorder %s21, 1
      %s320 = scalar_select %p319, %s21, 1
      %s321 = smul.addr %s320, 3
      %s322 = smul.addr %s321, 4
      %s323 = scalar_lea.vmem %s7, %s322
      %p324 = pneg %p220
      %p325 = pneg %p217
      %p326 = scmp.lt.s32.totalorder %s21, 1
      %s327 = scalar_select %p326, %s21, 1
      %s328 = scalar_lea.vmem %s8, %s327
      %p329 = pneg %p246
      %p330 = pneg %p243
      %p331 = scmp.lt.s32.totalorder %s21, 1
      %s332 = scalar_select %p331, %s21, 1
      %s333 = scalar_lea.vmem %s9, %s332
      %p334 = scmp.lt.s32.totalorder %s21, 1
      %s335 = scalar_select %p334, %s21, 1
      %s336 = smul.addr %s335, 5
      %s337 = smul.addr %s336, 4
      %s338 = scalar_lea.vmem %s0, %s337
      %p339 = scmp.lt.s32.totalorder %s21, 1
      %s340 = scalar_select %p339, %s21, 1
      %s341 = smul.addr %s340, 3
      %s342 = smul.addr %s341, 4
      %s343 = scalar_lea.vmem %s7, %s342
      %p344 = scmp.lt.s32.totalorder %s21, 1
      %s345 = scalar_select %p344, %s21, 1
      %s346 = scalar_lea.vmem %s8, %s345
      %p347 = scmp.lt.s32.totalorder %s21, 1
      %s348 = scalar_select %p347, %s21, 1
      %s349 = scalar_lea.vmem %s9, %s348
      %v351 = vld [vmem:[%s4] sm:$0x1]
      %v352 = vld [vmem:[%s5] sm:$0x1]
      %v353 = vld [vmem:[%s338] sm:$0xf]
      %v354 = vld [vmem:[%s338 + $0x4] sm:$0xf]
      %v355 = vld [vmem:[%s338 + $0x8] sm:$0xf]
      %v356 = vld [vmem:[%s338 + $0xc] sm:$0xf]
      %v357 = vld [vmem:[%s338 + $0x10] sm:$0x7]
      %v358 = vunpack.c.l.bf16 %v353
      %v359 = vunpack.c.l.bf16 %v354
      %v360 = vunpack.c.l.bf16 %v355
      %v361 = vunpack.c.l.bf16 %v356
      %v362 = vunpack.c.l.bf16 %v357
      %v364 = vperm.slane %v351, 0
      %v366 = vmul.f32 %v358, %v364
      %v367 = vmul.f32 %v359, %v364
      %v368 = vmul.f32 %v360, %v364
      %v369 = vmul.f32 %v361, %v364
      %v370 = vmul.f32 %v362, %v364
      %v372 = vperm.slane %v352, 0
      %v374 = vadd.f32 %v366, %v372
      %v375 = vadd.f32 %v367, %v372
      %v376 = vadd.f32 %v368, %v372
      %v377 = vadd.f32 %v369, %v372
      %v378 = vadd.f32 %v370, %v372
      %vm379 = vcmp.gt.f32.partialorder %v374, 0.0
      %vm380 = vcmp.gt.f32.partialorder %v375, 0.0
      %vm381 = vcmp.gt.f32.partialorder %v376, 0.0
      %vm382 = vcmp.gt.f32.partialorder %v377, 0.0
      %vm383 = vcmp.gt.f32.partialorder %v378, 0.0
      %v384 = vmul.f32 %v374, 0.01
      %v385 = vmul.f32 %v375, 0.01
      %v386 = vmul.f32 %v376, 0.01
      %v387 = vmul.f32 %v377, 0.01
      %v388 = vmul.f32 %v378, 0.01
      %v389 = vsel %vm379, %v374, %v384
      %v390 = vsel %vm380, %v375, %v385
      %v391 = vsel %vm381, %v376, %v386
      %v392 = vsel %vm382, %v377, %v387
      %v393 = vsel %vm383, %v378, %v388
      %v394 = vld [vmem:[%s1] sm:$0xff]
      %v395 = vld [vmem:[%s1 + $0x8] sm:$0xff]
      %v396 = vld [vmem:[%s1 + $0x10] sm:$0xff]
      %v397 = vld [vmem:[%s1 + $0x18] sm:$0xff]
      %v398 = vld [vmem:[%s1 + $0x20] sm:$0x3f]
      %400 = vset.pattern.permute.xlu0 0
      %401 = vperm.xlu0 %400, %v394
      %v402 = vpop.permute.xlu0 %401
      %405 = vset.pattern.permute.xlu0 0
      %406 = vperm.xlu0 %405, %v395
      %v407 = vpop.permute.xlu0 %406
      %410 = vset.pattern.permute.xlu0 0
      %411 = vperm.xlu0 %410, %v396
      %v412 = vpop.permute.xlu0 %411
      %415 = vset.pattern.permute.xlu0 0
      %416 = vperm.xlu0 %415, %v397
      %v417 = vpop.permute.xlu0 %416
      %420 = vset.pattern.permute.xlu0 0
      %421 = vperm.xlu0 %420, %v398
      %v422 = vpop.permute.xlu0 %421
      %v424 = vmul.f32 %v389, %v402
      %v425 = vmul.f32 %v390, %v407
      %v426 = vmul.f32 %v391, %v412
      %v427 = vmul.f32 %v392, %v417
      %v428 = vmul.f32 %v393, %v422
      %v429 = vpack.c.bf16 %v424, %v424
      %v430 = vpack.c.bf16 %v425, %v425
      %v431 = vpack.c.bf16 %v426, %v426
      %v432 = vpack.c.bf16 %v427, %v427
      %v433 = vpack.c.bf16 %v428, %v428
      %vm434 = vcmask 519168
      %435 = vst.msk [vmem:[#allocation2] sm:$0xf] %vm434, %v429
      %436 = vst.msk [vmem:[#allocation2 + $0x4] sm:$0xf] %vm434, %v430
      %437 = vst.msk [vmem:[#allocation2 + $0x8] sm:$0xf] %vm434, %v431
      %438 = vst.msk [vmem:[#allocation2 + $0xc] sm:$0xf] %vm434, %v432
      %vm439 = vcmask 518144
      %440 = vst.msk [vmem:[#allocation2 + $0x10] sm:$0x7] %vm439, %v433
      %v441 = vld [vmem:[#allocation2] sm:$0xf]
      %v442 = vld [vmem:[#allocation2 + $0x4] sm:$0xf]
      %v443 = vld [vmem:[#allocation2 + $0x8] sm:$0xf]
      %v444 = vld [vmem:[%s2] sm:$0xf]
      %v445 = vld [vmem:[%s2 + $0x4] sm:$0xf]
      %v446 = vld [vmem:[%s2 + $0x8] sm:$0xf]
      %v447 = vld [vmem:[%s2 + $0xc] sm:$0xf]
      %v448 = vld [vmem:[%s2 + $0x10] sm:$0xf]
      %v449 = vld [vmem:[%s2 + $0x14] sm:$0xf]
      %v450 = vld [vmem:[%s2 + $0x18] sm:$0xf]
      %v451 = vld [vmem:[%s2 + $0x1c] sm:$0xf]
      %v455 = vunpack.c.l.b16 %v441
      %v456 = vunpack.c.l.b16 %v442
      %v457 = vunpack.c.l.b16 %v443
      %v458 = vpack.c.b16 %v456, %v455
      %v459 = vpack.c.b16 %v457, %v457
      %v468 = vunpack.c.l.b16 %v444
      %v469 = vunpack.c.l.b16 %v445
      %v470 = vunpack.c.l.b16 %v446
      %v471 = vunpack.c.l.b16 %v447
      %v472 = vunpack.c.l.b16 %v448
      %v473 = vunpack.c.l.b16 %v449
      %v474 = vunpack.c.l.b16 %v450
      %v475 = vunpack.c.l.b16 %v451
      %v476 = vpack.c.b16 %v469, %v468
      %v477 = vpack.c.b16 %v471, %v470
      %v478 = vpack.c.b16 %v473, %v472
      %v479 = vpack.c.b16 %v475, %v474
      %vm484 = vcmask 523264
      %v486 = vsel %vm484, %v458, 0
      %v489 = vsel %vm484, %v459, 0
      %491 = vmatpush.bf16.msra.mxu0 0
      %492 = vmatpush.bf16.msra.mxu0 0
      %493 = vmatpush.bf16.msra.mxu0 0
      %494 = vmatpush.bf16.msra.mxu0 0
      %495 = vmatpush.bf16.msra.mxu0 %v479
      %496 = vmatpush.bf16.msra.mxu0 %v478
      %497 = vmatpush.bf16.msra.mxu0 %v477
      %498 = vmatpush.bf16.msra.mxu0 %v476
      %499 = vmatmul.bf16.gmra.mxu0 %v486
      %v500 = vpop.f32.mrf.mxu0
      %v501 = vadd.f32 0.0, %v500
      %v502 = vpop.f32.mrf.mxu0
      %v503 = vadd.f32 0.0, %v502
      %504 = vmatmul.bf16.gmra.mxu0 %v489
      %v505 = vpop.f32.mrf.mxu0
      %v506 = vadd.f32 0.0, %v505
      %v507 = vpop.f32.mrf.mxu0
      %508 = vdwg.mxu0
      %509 = vst [vmem:[#allocation3] sm:$0xff] %v501
      %510 = vst [vmem:[#allocation3 + $0x8] sm:$0xff] %v503
      %511 = vst [vmem:[#allocation3 + $0x10] sm:$0xff] %v506
      %v512 = vld [vmem:[#allocation2] sm:$0xf]
      %v513 = vld [vmem:[#allocation2 + $0x4] sm:$0xf]
      %v514 = vld [vmem:[#allocation2 + $0x8] sm:$0xf]
      %v515 = vld [vmem:[#allocation2 + $0xc] sm:$0x1]
      %s516 = scalar_lea.vmem %s2, 32
      %v517 = vld [vmem:[%s516] sm:$0xf]
      %v518 = vld [vmem:[%s516 + $0x4] sm:$0xf]
      %v519 = vld [vmem:[%s516 + $0x8] sm:$0xf]
      %v520 = vld [vmem:[%s516 + $0xc] sm:$0xf]
      %v521 = vld [vmem:[%s516 + $0x10] sm:$0xf]
      %v522 = vld [vmem:[%s516 + $0x14] sm:$0xf]
      %v523 = vld [vmem:[%s516 + $0x18] sm:$0xf]
      %v524 = vld [vmem:[%s516 + $0x1c] sm:$0xf]
      %v529 = vunpack.c.l.b16 %v512
      %v530 = vunpack.c.l.b16 %v513
      %v531 = vunpack.c.l.b16 %v514
      %v532 = vunpack.c.l.b16 %v515
      %v533 = vpack.c.b16 %v530, %v529
      %v534 = vpack.c.b16 %v532, %v531
      %vm535 = vsmask.f32 7424
      %v537 = vshrl.u32 %v533, 16
      %v539 = vshll.u32 %v533, 16
      %v541 = vrot.slane %v539, 1
      %v542 = vor.u32 %v537, %v541
      %v544 = vshll.u32 %v534, 16
      %v546 = vrot.slane %v544, 1
      %v547 = vsel %vm535, %v542, %v546
      %v548 = vshrl.u32 %v534, 16
      %v550 = vor.u32 %v548, %v546
      %v559 = vunpack.c.l.b16 %v517
      %v560 = vunpack.c.l.b16 %v518
      %v561 = vunpack.c.l.b16 %v519
      %v562 = vunpack.c.l.b16 %v520
      %v563 = vunpack.c.l.b16 %v521
      %v564 = vunpack.c.l.b16 %v522
      %v565 = vunpack.c.l.b16 %v523
      %v566 = vunpack.c.l.b16 %v524
      %v567 = vpack.c.b16 %v560, %v559
      %v568 = vpack.c.b16 %v562, %v561
      %v569 = vpack.c.b16 %v564, %v563
      %v570 = vpack.c.b16 %v566, %v565
      %v576 = vsel %vm484, %v547, 0
      %v579 = vsel %vm484, %v550, 0
      %581 = vmatpush.bf16.msra.mxu0 0
      %582 = vmatpush.bf16.msra.mxu0 0
      %583 = vmatpush.bf16.msra.mxu0 0
      %584 = vmatpush.bf16.msra.mxu0 0
      %585 = vmatpush.bf16.msra.mxu0 %v570
      %586 = vmatpush.bf16.msra.mxu0 %v569
      %587 = vmatpush.bf16.msra.mxu0 %v568
      %588 = vmatpush.bf16.msra.mxu0 %v567
      %589 = vmatmul.bf16.gmra.mxu0 %v576
      %v590 = vpop.f32.mrf.mxu0
      %v591 = vadd.f32 0.0, %v590
      %v592 = vpop.f32.mrf.mxu0
      %v593 = vadd.f32 0.0, %v592
      %594 = vmatmul.bf16.gmra.mxu0 %v579
      %v595 = vpop.f32.mrf.mxu0
      %v596 = vadd.f32 0.0, %v595
      %v597 = vpop.f32.mrf.mxu0
      %598 = vdwg.mxu0
      %v599 = vld [vmem:[#allocation3] sm:$0xff]
      %v600 = vld [vmem:[#allocation3 + $0x8] sm:$0xff]
      %v601 = vld [vmem:[#allocation3 + $0x10] sm:$0xff]
      %v602 = vadd.f32 %v599, %v591
      %v603 = vadd.f32 %v600, %v593
      %v604 = vadd.f32 %v601, %v596
      %605 = vst [vmem:[#allocation3] sm:$0xff] %v602
      %606 = vst [vmem:[#allocation3 + $0x8] sm:$0xff] %v603
      %607 = vst [vmem:[#allocation3 + $0x10] sm:$0xff] %v604
      %v608 = vld [vmem:[#allocation2] sm:$0xe]
      %v609 = vld [vmem:[#allocation2 + $0x4] sm:$0xf]
      %v610 = vld [vmem:[#allocation2 + $0x8] sm:$0xf]
      %v611 = vld [vmem:[#allocation2 + $0xc] sm:$0x1]
      %s612 = scalar_lea.vmem %s2, 64
      %v613 = vld [vmem:[%s612] sm:$0xf]
      %v614 = vld [vmem:[%s612 + $0x4] sm:$0xf]
      %v615 = vld [vmem:[%s612 + $0x8] sm:$0xf]
      %v616 = vld [vmem:[%s612 + $0xc] sm:$0xf]
      %v617 = vld [vmem:[%s612 + $0x10] sm:$0xf]
      %v618 = vld [vmem:[%s612 + $0x14] sm:$0xf]
      %v619 = vld [vmem:[%s612 + $0x18] sm:$0xf]
      %v620 = vld [vmem:[%s612 + $0x1c] sm:$0xf]
      %v625 = vunpack.c.l.b16 %v608
      %v626 = vunpack.c.l.b16 %v609
      %v627 = vunpack.c.l.b16 %v610
      %v628 = vunpack.c.l.b16 %v611
      %v629 = vpack.c.b16 %v626, %v625
      %v630 = vpack.c.b16 %v628, %v627
      %vm631 = vcmask 1046528
      %v632 = vrot.slane %v629, 1
      %v633 = vrot.slane %v630, 1
      %v634 = vsel %vm631, %v632, %v633
      %v643 = vunpack.c.l.b16 %v613
      %v644 = vunpack.c.l.b16 %v614
      %v645 = vunpack.c.l.b16 %v615
      %v646 = vunpack.c.l.b16 %v616
      %v647 = vunpack.c.l.b16 %v617
      %v648 = vunpack.c.l.b16 %v618
      %v649 = vunpack.c.l.b16 %v619
      %v650 = vunpack.c.l.b16 %v620
      %v651 = vpack.c.b16 %v644, %v643
      %v652 = vpack.c.b16 %v646, %v645
      %v653 = vpack.c.b16 %v648, %v647
      %v654 = vpack.c.b16 %v650, %v649
      %v660 = vsel %vm484, %v634, 0
      %v663 = vsel %vm484, %v633, 0
      %665 = vmatpush.bf16.msra.mxu0 0
      %666 = vmatpush.bf16.msra.mxu0 0
      %667 = vmatpush.bf16.msra.mxu0 0
      %668 = vmatpush.bf16.msra.mxu0 0
      %669 = vmatpush.bf16.msra.mxu0 %v654
      %670 = vmatpush.bf16.msra.mxu0 %v653
      %671 = vmatpush.bf16.msra.mxu0 %v652
      %672 = vmatpush.bf16.msra.mxu0 %v651
      %673 = vmatmul.bf16.gmra.mxu0 %v660
      %v674 = vpop.f32.mrf.mxu0
      %v675 = vadd.f32 0.0, %v674
      %v676 = vpop.f32.mrf.mxu0
      %v677 = vadd.f32 0.0, %v676
      %678 = vmatmul.bf16.gmra.mxu0 %v663
      %v679 = vpop.f32.mrf.mxu0
      %v680 = vadd.f32 0.0, %v679
      %v681 = vpop.f32.mrf.mxu0
      %682 = vdwg.mxu0
      %v683 = vld [vmem:[#allocation3] sm:$0xff]
      %v684 = vld [vmem:[#allocation3 + $0x8] sm:$0xff]
      %v685 = vld [vmem:[#allocation3 + $0x10] sm:$0xff]
      %v686 = vadd.f32 %v683, %v675
      %v687 = vadd.f32 %v684, %v677
      %v688 = vadd.f32 %v685, %v680
      %689 = vst [vmem:[#allocation3] sm:$0xff] %v686
      %690 = vst [vmem:[#allocation3 + $0x8] sm:$0xff] %v687
      %691 = vst [vmem:[#allocation3 + $0x10] sm:$0xff] %v688
      %v692 = vld [vmem:[#allocation2] sm:$0x8]
      %v693 = vld [vmem:[#allocation2 + $0x4] sm:$0xf]
      %v694 = vld [vmem:[#allocation2 + $0x8] sm:$0xf]
      %v695 = vld [vmem:[#allocation2 + $0xc] sm:$0x7]
      %s696 = scalar_lea.vmem %s2, 96
      %v697 = vld [vmem:[%s696] sm:$0xf]
      %v698 = vld [vmem:[%s696 + $0x4] sm:$0xf]
      %v699 = vld [vmem:[%s696 + $0x8] sm:$0xf]
      %v700 = vld [vmem:[%s696 + $0xc] sm:$0xf]
      %v701 = vld [vmem:[%s696 + $0x10] sm:$0xf]
      %v702 = vld [vmem:[%s696 + $0x14] sm:$0xf]
      %v703 = vld [vmem:[%s696 + $0x18] sm:$0xf]
      %v704 = vld [vmem:[%s696 + $0x1c] sm:$0xf]
      %v709 = vunpack.c.l.b16 %v692
      %v710 = vunpack.c.l.b16 %v693
      %v711 = vunpack.c.l.b16 %v694
      %v712 = vunpack.c.l.b16 %v695
      %v713 = vpack.c.b16 %v710, %v709
      %v714 = vpack.c.b16 %v712, %v711
      %vm715 = vcmask 1044480
      %v716 = vrot.slane %v713, 3
      %v717 = vrot.slane %v714, 3
      %v718 = vsel %vm715, %v716, %v717
      %v727 = vunpack.c.l.b16 %v697
      %v728 = vunpack.c.l.b16 %v698
      %v729 = vunpack.c.l.b16 %v699
      %v730 = vunpack.c.l.b16 %v700
      %v731 = vunpack.c.l.b16 %v701
      %v732 = vunpack.c.l.b16 %v702
      %v733 = vunpack.c.l.b16 %v703
      %v734 = vunpack.c.l.b16 %v704
      %v735 = vpack.c.b16 %v728, %v727
      %v736 = vpack.c.b16 %v730, %v729
      %v737 = vpack.c.b16 %v732, %v731
      %v738 = vpack.c.b16 %v734, %v733
      %v744 = vsel %vm484, %v718, 0
      %v747 = vsel %vm484, %v717, 0
      %749 = vmatpush.bf16.msra.mxu0 0
      %750 = vmatpush.bf16.msra.mxu0 0
      %751 = vmatpush.bf16.msra.mxu0 0
      %752 = vmatpush.bf16.msra.mxu0 0
      %753 = vmatpush.bf16.msra.mxu0 %v738
      %754 = vmatpush.bf16.msra.mxu0 %v737
      %755 = vmatpush.bf16.msra.mxu0 %v736
      %756 = vmatpush.bf16.msra.mxu0 %v735
      %757 = vmatmul.bf16.gmra.mxu0 %v744
      %v758 = vpop.f32.mrf.mxu0
      %v759 = vadd.f32 0.0, %v758
      %v760 = vpop.f32.mrf.mxu0
      %v761 = vadd.f32 0.0, %v760
      %762 = vmatmul.bf16.gmra.mxu0 %v747
      %v763 = vpop.f32.mrf.mxu0
      %v764 = vadd.f32 0.0, %v763
      %v765 = vpop.f32.mrf.mxu0
      %766 = vdwg.mxu0
      %v767 = vld [vmem:[#allocation3] sm:$0xff]
      %v768 = vld [vmem:[#allocation3 + $0x8] sm:$0xff]
      %v769 = vld [vmem:[#allocation3 + $0x10] sm:$0xff]
      %v770 = vadd.f32 %v767, %v759
      %v771 = vadd.f32 %v768, %v761
      %v772 = vadd.f32 %v769, %v764
      %773 = vst [vmem:[#allocation3] sm:$0xff] %v770
      %774 = vst [vmem:[#allocation3 + $0x8] sm:$0xff] %v771
      %775 = vst [vmem:[#allocation3 + $0x10] sm:$0xff] %v772
      %v776 = vld [vmem:[#allocation2] sm:$0x8]
      %v777 = vld [vmem:[#allocation2 + $0x4] sm:$0xf]
      %v778 = vld [vmem:[#allocation2 + $0x8] sm:$0xf]
      %v779 = vld [vmem:[#allocation2 + $0xc] sm:$0xf]
      %s780 = scalar_lea.vmem %s2, 128
      %v781 = vld [vmem:[%s780] sm:$0xf]
      %v782 = vld [vmem:[%s780 + $0x4] sm:$0xf]
      %v783 = vld [vmem:[%s780 + $0x8] sm:$0xf]
      %v784 = vld [vmem:[%s780 + $0xc] sm:$0xf]
      %v785 = vld [vmem:[%s780 + $0x10] sm:$0xf]
      %v786 = vld [vmem:[%s780 + $0x14] sm:$0xf]
      %v787 = vld [vmem:[%s780 + $0x18] sm:$0xf]
      %v788 = vld [vmem:[%s780 + $0x1c] sm:$0xf]
      %v793 = vunpack.c.l.b16 %v776
      %v794 = vunpack.c.l.b16 %v777
      %v795 = vunpack.c.l.b16 %v778
      %v796 = vunpack.c.l.b16 %v779
      %v797 = vpack.c.b16 %v794, %v793
      %v798 = vpack.c.b16 %v796, %v795
      %vm799 = vsmask.f32 4352
      %v801 = vshrl.u32 %v797, 16
      %v803 = vrot.slane %v801, 3
      %v804 = vshll.u32 %v797, 16
      %v806 = vrot.slane %v804, 4
      %v807 = vor.u32 %v803, %v806
      %v809 = vshrl.u32 %v798, 16
      %v811 = vrot.slane %v809, 3
      %v812 = vshll.u32 %v798, 16
      %v814 = vrot.slane %v812, 4
      %v815 = vor.u32 %v811, %v814
      %v816 = vsel %vm799, %v807, %v815
      %v825 = vunpack.c.l.b16 %v781
      %v826 = vunpack.c.l.b16 %v782
      %v827 = vunpack.c.l.b16 %v783
      %v828 = vunpack.c.l.b16 %v784
      %v829 = vunpack.c.l.b16 %v785
      %v830 = vunpack.c.l.b16 %v786
      %v831 = vunpack.c.l.b16 %v787
      %v832 = vunpack.c.l.b16 %v788
      %v833 = vpack.c.b16 %v826, %v825
      %v834 = vpack.c.b16 %v828, %v827
      %v835 = vpack.c.b16 %v830, %v829
      %v836 = vpack.c.b16 %v832, %v831
      %v842 = vsel %vm484, %v816, 0
      %v845 = vsel %vm484, %v815, 0
      %847 = vmatpush.bf16.msra.mxu0 0
      %848 = vmatpush.bf16.msra.mxu0 0
      %849 = vmatpush.bf16.msra.mxu0 0
      %850 = vmatpush.bf16.msra.mxu0 0
      %851 = vmatpush.bf16.msra.mxu0 %v836
      %852 = vmatpush.bf16.msra.mxu0 %v835
      %853 = vmatpush.bf16.msra.mxu0 %v834
      %854 = vmatpush.bf16.msra.mxu0 %v833
      %855 = vmatmul.bf16.gmra.mxu0 %v842
      %v856 = vpop.f32.mrf.mxu0
      %v857 = vadd.f32 0.0, %v856
      %v858 = vpop.f32.mrf.mxu0
      %v859 = vadd.f32 0.0, %v858
      %860 = vmatmul.bf16.gmra.mxu0 %v845
      %v861 = vpop.f32.mrf.mxu0
      %v862 = vadd.f32 0.0, %v861
      %v863 = vpop.f32.mrf.mxu0
      %864 = vdwg.mxu0
      %v865 = vld [vmem:[#allocation3] sm:$0xff]
      %v866 = vld [vmem:[#allocation3 + $0x8] sm:$0xff]
      %v867 = vld [vmem:[#allocation3 + $0x10] sm:$0xff]
      %v868 = vadd.f32 %v865, %v857
      %v869 = vadd.f32 %v866, %v859
      %v870 = vadd.f32 %v867, %v862
      %871 = vst [vmem:[#allocation3] sm:$0xff] %v868
      %872 = vst [vmem:[#allocation3 + $0x8] sm:$0xff] %v869
      %873 = vst [vmem:[#allocation3 + $0x10] sm:$0xff] %v870
      %v874 = vld [vmem:[#allocation2 + $0x4] sm:$0xf]
      %v875 = vld [vmem:[#allocation2 + $0x8] sm:$0xf]
      %v876 = vld [vmem:[#allocation2 + $0xc] sm:$0xf]
      %s877 = scalar_lea.vmem %s2, 160
      %v878 = vld [vmem:[%s877] sm:$0xf]
      %v879 = vld [vmem:[%s877 + $0x4] sm:$0xf]
      %v880 = vld [vmem:[%s877 + $0x8] sm:$0xf]
      %v881 = vld [vmem:[%s877 + $0xc] sm:$0xf]
      %v882 = vld [vmem:[%s877 + $0x10] sm:$0xf]
      %v883 = vld [vmem:[%s877 + $0x14] sm:$0xf]
      %v884 = vld [vmem:[%s877 + $0x18] sm:$0xf]
      %v885 = vld [vmem:[%s877 + $0x1c] sm:$0xf]
      %v889 = vunpack.c.l.b16 %v874
      %v890 = vunpack.c.l.b16 %v875
      %v891 = vunpack.c.l.b16 %v876
      %v892 = vpack.c.b16 %v890, %v889
      %v893 = vpack.c.b16 %v891, %v891
      %v902 = vunpack.c.l.b16 %v878
      %v903 = vunpack.c.l.b16 %v879
      %v904 = vunpack.c.l.b16 %v880
      %v905 = vunpack.c.l.b16 %v881
      %v906 = vunpack.c.l.b16 %v882
      %v907 = vunpack.c.l.b16 %v883
      %v908 = vunpack.c.l.b16 %v884
      %v909 = vunpack.c.l.b16 %v885
      %v910 = vpack.c.b16 %v903, %v902
      %v911 = vpack.c.b16 %v905, %v904
      %v912 = vpack.c.b16 %v907, %v906
      %v913 = vpack.c.b16 %v909, %v908
      %v919 = vsel %vm484, %v892, 0
      %v922 = vsel %vm484, %v893, 0
      %924 = vmatpush.bf16.msra.mxu0 0
      %925 = vmatpush.bf16.msra.mxu0 0
      %926 = vmatpush.bf16.msra.mxu0 0
      %927 = vmatpush.bf16.msra.mxu0 0
      %928 = vmatpush.bf16.msra.mxu0 %v913
      %929 = vmatpush.bf16.msra.mxu0 %v912
      %930 = vmatpush.bf16.msra.mxu0 %v911
      %931 = vmatpush.bf16.msra.mxu0 %v910
      %932 = vmatmul.bf16.gmra.mxu0 %v919
      %v933 = vpop.f32.mrf.mxu0
      %v934 = vadd.f32 0.0, %v933
      %v935 = vpop.f32.mrf.mxu0
      %v936 = vadd.f32 0.0, %v935
      %937 = vmatmul.bf16.gmra.mxu0 %v922
      %v938 = vpop.f32.mrf.mxu0
      %v939 = vadd.f32 0.0, %v938
      %v940 = vpop.f32.mrf.mxu0
      %941 = vdwg.mxu0
      %v942 = vld [vmem:[#allocation3] sm:$0xff]
      %v943 = vld [vmem:[#allocation3 + $0x8] sm:$0xff]
      %v944 = vld [vmem:[#allocation3 + $0x10] sm:$0xff]
      %v945 = vadd.f32 %v942, %v934
      %v946 = vadd.f32 %v943, %v936
      %v947 = vadd.f32 %v944, %v939
      %948 = vst [vmem:[#allocation3] sm:$0xff] %v945
      %949 = vst [vmem:[#allocation3 + $0x8] sm:$0xff] %v946
      %950 = vst [vmem:[#allocation3 + $0x10] sm:$0xff] %v947
      %v951 = vld [vmem:[#allocation2 + $0x4] sm:$0xc]
      %v952 = vld [vmem:[#allocation2 + $0x8] sm:$0xf]
      %v953 = vld [vmem:[#allocation2 + $0xc] sm:$0xf]
      %v954 = vld [vmem:[#allocation2 + $0x10] sm:$0x3]
      %s955 = scalar_lea.vmem %s2, 192
      %v956 = vld [vmem:[%s955] sm:$0xf]
      %v957 = vld [vmem:[%s955 + $0x4] sm:$0xf]
      %v958 = vld [vmem:[%s955 + $0x8] sm:$0xf]
      %v959 = vld [vmem:[%s955 + $0xc] sm:$0xf]
      %v960 = vld [vmem:[%s955 + $0x10] sm:$0xf]
      %v961 = vld [vmem:[%s955 + $0x14] sm:$0xf]
      %v962 = vld [vmem:[%s955 + $0x18] sm:$0xf]
      %v963 = vld [vmem:[%s955 + $0x1c] sm:$0xf]
      %v968 = vunpack.c.l.b16 %v951
      %v969 = vunpack.c.l.b16 %v952
      %v970 = vunpack.c.l.b16 %v953
      %v971 = vunpack.c.l.b16 %v954
      %v972 = vpack.c.b16 %v969, %v968
      %v973 = vpack.c.b16 %v971, %v970
      %vm974 = vcmask 1045504
      %v975 = vrot.slane %v972, 2
      %v976 = vrot.slane %v973, 2
      %v977 = vsel %vm974, %v975, %v976
      %v986 = vunpack.c.l.b16 %v956
      %v987 = vunpack.c.l.b16 %v957
      %v988 = vunpack.c.l.b16 %v958
      %v989 = vunpack.c.l.b16 %v959
      %v990 = vunpack.c.l.b16 %v960
      %v991 = vunpack.c.l.b16 %v961
      %v992 = vunpack.c.l.b16 %v962
      %v993 = vunpack.c.l.b16 %v963
      %v994 = vpack.c.b16 %v987, %v986
      %v995 = vpack.c.b16 %v989, %v988
      %v996 = vpack.c.b16 %v991, %v990
      %v997 = vpack.c.b16 %v993, %v992
      %v1003 = vsel %vm484, %v977, 0
      %v1006 = vsel %vm484, %v976, 0
      %1008 = vmatpush.bf16.msra.mxu0 0
      %1009 = vmatpush.bf16.msra.mxu0 0
      %1010 = vmatpush.bf16.msra.mxu0 0
      %1011 = vmatpush.bf16.msra.mxu0 0
      %1012 = vmatpush.bf16.msra.mxu0 %v997
      %1013 = vmatpush.bf16.msra.mxu0 %v996
      %1014 = vmatpush.bf16.msra.mxu0 %v995
      %1015 = vmatpush.bf16.msra.mxu0 %v994
      %1016 = vmatmul.bf16.gmra.mxu0 %v1003
      %v1017 = vpop.f32.mrf.mxu0
      %v1018 = vadd.f32 0.0, %v1017
      %v1019 = vpop.f32.mrf.mxu0
      %v1020 = vadd.f32 0.0, %v1019
      %1021 = vmatmul.bf16.gmra.mxu0 %v1006
      %v1022 = vpop.f32.mrf.mxu0
      %v1023 = vadd.f32 0.0, %v1022
      %v1024 = vpop.f32.mrf.mxu0
      %1025 = vdwg.mxu0
      %v1026 = vld [vmem:[#allocation3] sm:$0xff]
      %v1027 = vld [vmem:[#allocation3 + $0x8] sm:$0xff]
      %v1028 = vld [vmem:[#allocation3 + $0x10] sm:$0xff]
      %v1029 = vadd.f32 %v1026, %v1018
      %v1030 = vadd.f32 %v1027, %v1020
      %v1031 = vadd.f32 %v1028, %v1023
      %1032 = vst [vmem:[#allocation3] sm:$0xff] %v1029
      %1033 = vst [vmem:[#allocation3 + $0x8] sm:$0xff] %v1030
      %1034 = vst [vmem:[#allocation3 + $0x10] sm:$0xff] %v1031
      %v1035 = vld [vmem:[#allocation2 + $0x4] sm:$0xc]
      %v1036 = vld [vmem:[#allocation2 + $0x8] sm:$0xf]
      %v1037 = vld [vmem:[#allocation2 + $0xc] sm:$0xf]
      %v1038 = vld [vmem:[#allocation2 + $0x10] sm:$0x7]
      %s1039 = scalar_lea.vmem %s2, 224
      %v1040 = vld [vmem:[%s1039] sm:$0xf]
      %v1041 = vld [vmem:[%s1039 + $0x4] sm:$0xf]
      %v1042 = vld [vmem:[%s1039 + $0x8] sm:$0xf]
      %v1043 = vld [vmem:[%s1039 + $0xc] sm:$0xf]
      %v1044 = vld [vmem:[%s1039 + $0x10] sm:$0xf]
      %v1045 = vld [vmem:[%s1039 + $0x14] sm:$0xf]
      %v1046 = vld [vmem:[%s1039 + $0x18] sm:$0xf]
      %v1047 = vld [vmem:[%s1039 + $0x1c] sm:$0xf]
      %v1052 = vunpack.c.l.b16 %v1035
      %v1053 = vunpack.c.l.b16 %v1036
      %v1054 = vunpack.c.l.b16 %v1037
      %v1055 = vunpack.c.l.b16 %v1038
      %v1056 = vpack.c.b16 %v1053, %v1052
      %v1057 = vpack.c.b16 %v1055, %v1054
      %vm1058 = vsmask.f32 5376
      %v1060 = vshrl.u32 %v1056, 16
      %v1062 = vrot.slane %v1060, 2
      %v1063 = vshll.u32 %v1056, 16
      %v1065 = vrot.slane %v1063, 3
      %v1066 = vor.u32 %v1062, %v1065
      %v1068 = vshrl.u32 %v1057, 16
      %v1070 = vrot.slane %v1068, 2
      %v1071 = vshll.u32 %v1057, 16
      %v1073 = vrot.slane %v1071, 3
      %v1074 = vor.u32 %v1070, %v1073
      %v1075 = vsel %vm1058, %v1066, %v1074
      %v1084 = vunpack.c.l.b16 %v1040
      %v1085 = vunpack.c.l.b16 %v1041
      %v1086 = vunpack.c.l.b16 %v1042
      %v1087 = vunpack.c.l.b16 %v1043
      %v1088 = vunpack.c.l.b16 %v1044
      %v1089 = vunpack.c.l.b16 %v1045
      %v1090 = vunpack.c.l.b16 %v1046
      %v1091 = vunpack.c.l.b16 %v1047
      %v1092 = vpack.c.b16 %v1085, %v1084
      %v1093 = vpack.c.b16 %v1087, %v1086
      %v1094 = vpack.c.b16 %v1089, %v1088
      %v1095 = vpack.c.b16 %v1091, %v1090
      %v1101 = vsel %vm484, %v1075, 0
      %v1104 = vsel %vm484, %v1074, 0
      %1106 = vmatpush.bf16.msra.mxu0 0
      %1107 = vmatpush.bf16.msra.mxu0 0
      %1108 = vmatpush.bf16.msra.mxu0 0
      %1109 = vmatpush.bf16.msra.mxu0 0
      %1110 = vmatpush.bf16.msra.mxu0 %v1095
      %1111 = vmatpush.bf16.msra.mxu0 %v1094
      %1112 = vmatpush.bf16.msra.mxu0 %v1093
      %1113 = vmatpush.bf16.msra.mxu0 %v1092
      %1114 = vmatmul.bf16.gmra.mxu0 %v1101
      %v1115 = vpop.f32.mrf.mxu0
      %v1116 = vadd.f32 0.0, %v1115
      %v1117 = vpop.f32.mrf.mxu0
      %v1118 = vadd.f32 0.0, %v1117
      %1119 = vmatmul.bf16.gmra.mxu0 %v1104
      %v1120 = vpop.f32.mrf.mxu0
      %v1121 = vadd.f32 0.0, %v1120
      %v1122 = vpop.f32.mrf.mxu0
      %1123 = vdwg.mxu0
      %v1124 = vld [vmem:[#allocation3] sm:$0xff]
      %v1125 = vld [vmem:[#allocation3 + $0x8] sm:$0xff]
      %v1126 = vld [vmem:[#allocation3 + $0x10] sm:$0xff]
      %v1127 = vadd.f32 %v1124, %v1116
      %v1128 = vadd.f32 %v1125, %v1118
      %v1129 = vadd.f32 %v1126, %v1121
      %1130 = vst [vmem:[#allocation3] sm:$0xff] %v1127
      %1131 = vst [vmem:[#allocation3 + $0x8] sm:$0xff] %v1128
      %1132 = vst [vmem:[#allocation3 + $0x10] sm:$0xff] %v1129
      %v1133 = vld [vmem:[#allocation2 + $0x4] sm:$0x8]
      %v1134 = vld [vmem:[#allocation2 + $0x8] sm:$0xf]
      %v1135 = vld [vmem:[#allocation2 + $0xc] sm:$0xf]
      %v1136 = vld [vmem:[#allocation2 + $0x10] sm:$0x7]
      %s1137 = scalar_lea.vmem %s2, 256
      %v1138 = vld [vmem:[%s1137] sm:$0xf]
      %v1139 = vld [vmem:[%s1137 + $0x4] sm:$0xf]
      %v1140 = vld [vmem:[%s1137 + $0x8] sm:$0xf]
      %v1141 = vld [vmem:[%s1137 + $0xc] sm:$0xf]
      %v1142 = vld [vmem:[%s1137 + $0x10] sm:$0xf]
      %v1143 = vld [vmem:[%s1137 + $0x14] sm:$0xf]
      %v1144 = vld [vmem:[%s1137 + $0x18] sm:$0xf]
      %v1145 = vld [vmem:[%s1137 + $0x1c] sm:$0xf]
      %v1150 = vunpack.c.l.b16 %v1133
      %v1151 = vunpack.c.l.b16 %v1134
      %v1152 = vunpack.c.l.b16 %v1135
      %v1153 = vunpack.c.l.b16 %v1136
      %v1154 = vpack.c.b16 %v1151, %v1150
      %v1155 = vpack.c.b16 %v1153, %v1152
      %v1156 = vrot.slane %v1154, 3
      %v1157 = vrot.slane %v1155, 3
      %v1158 = vsel %vm715, %v1156, %v1157
      %v1167 = vunpack.c.l.b16 %v1138
      %v1168 = vunpack.c.l.b16 %v1139
      %v1169 = vunpack.c.l.b16 %v1140
      %v1170 = vunpack.c.l.b16 %v1141
      %v1171 = vunpack.c.l.b16 %v1142
      %v1172 = vunpack.c.l.b16 %v1143
      %v1173 = vunpack.c.l.b16 %v1144
      %v1174 = vunpack.c.l.b16 %v1145
      %v1175 = vpack.c.b16 %v1168, %v1167
      %v1176 = vpack.c.b16 %v1170, %v1169
      %v1177 = vpack.c.b16 %v1172, %v1171
      %v1178 = vpack.c.b16 %v1174, %v1173
      %v1184 = vsel %vm484, %v1158, 0
      %v1187 = vsel %vm484, %v1157, 0
      %1189 = vmatpush.bf16.msra.mxu0 0
      %1190 = vmatpush.bf16.msra.mxu0 0
      %1191 = vmatpush.bf16.msra.mxu0 0
      %1192 = vmatpush.bf16.msra.mxu0 0
      %1193 = vmatpush.bf16.msra.mxu0 %v1178
      %1194 = vmatpush.bf16.msra.mxu0 %v1177
      %1195 = vmatpush.bf16.msra.mxu0 %v1176
      %1196 = vmatpush.bf16.msra.mxu0 %v1175
      %1197 = vmatmul.bf16.gmra.mxu0 %v1184
      %v1198 = vpop.f32.mrf.mxu0
      %v1199 = vadd.f32 0.0, %v1198
      %v1200 = vpop.f32.mrf.mxu0
      %v1201 = vadd.f32 0.0, %v1200
      %1202 = vmatmul.bf16.gmra.mxu0 %v1187
      %v1203 = vpop.f32.mrf.mxu0
      %v1204 = vadd.f32 0.0, %v1203
      %v1205 = vpop.f32.mrf.mxu0
      %1206 = vdwg.mxu0
      %v1207 = vld [vmem:[#allocation3] sm:$0xff]
      %v1208 = vld [vmem:[#allocation3 + $0x8] sm:$0xff]
      %v1209 = vld [vmem:[#allocation3 + $0x10] sm:$0xff]
      %v1210 = vadd.f32 %v1207, %v1199
      %v1211 = vadd.f32 %v1208, %v1201
      %v1212 = vadd.f32 %v1209, %v1204
      %1213 = vst [vmem:[#allocation3] sm:$0xff] %v1210
      %1214 = vst [vmem:[#allocation3 + $0x8] sm:$0xff] %v1211
      %1215 = vst [vmem:[#allocation3 + $0x10] sm:$0xff] %v1212
      %v1216 = vld [vmem:[#allocation3] sm:$0xff]
      %v1217 = vld [vmem:[#allocation3 + $0x8] sm:$0xff]
      %v1218 = vld [vmem:[#allocation3 + $0x10] sm:$0xff]
      %v1219 = vld [vmem:[%s3] sm:$0x1]
      %v1221 = vperm.slane %v1219, 0
      %v1223 = vadd.f32 %v1216, %v1221
      %v1224 = vadd.f32 %v1217, %v1221
      %v1225 = vadd.f32 %v1218, %v1221
      %v1226 = vpack.c.bf16 %v1223, %v1223
      %v1227 = vpack.c.bf16 %v1224, %v1224
      %v1228 = vpack.c.bf16 %v1225, %v1225
      %1229 = vst [vmem:[%s343] sm:$0xf] %v1226
      %1230 = vst [vmem:[%s343 + $0x4] sm:$0xf] %v1227
      %1231 = vst [vmem:[%s343 + $0x8] sm:$0xf] %v1228
      %v1232 = vld [vmem:[%s6] sm:$0xff]
      %v1233 = vld [vmem:[%s6 + $0x8] sm:$0xff]
      %v1234 = vld [vmem:[%s6 + $0x10] sm:$0xff]
      %1236 = vset.pattern.permute.xlu0 0
      %1237 = vperm.xlu0 %1236, %v1232
      %v1238 = vpop.permute.xlu0 %1237
      %1241 = vset.pattern.permute.xlu0 0
      %1242 = vperm.xlu0 %1241, %v1233
      %v1243 = vpop.permute.xlu0 %1242
      %1246 = vset.pattern.permute.xlu0 0
      %1247 = vperm.xlu0 %1246, %v1234
      %v1248 = vpop.permute.xlu0 %1247
      %v1250 = vmul.f32 %v1223, %v1238
      %v1251 = vmul.f32 %v1224, %v1243
      %v1252 = vmul.f32 %v1225, %v1248
      %v1253 = vadd.f32 %v1250, %v1251
      %v1254 = vadd.f32 %v1253, %v1252
      %v1255 = vrot.slane %v1254, 4
      %v1256 = vadd.f32 %v1254, %v1255
      %v1257 = vrot.slane %v1256, 2
      %v1258 = vadd.f32 %v1256, %v1257
      %v1259 = vrot.slane %v1258, 1
      %v1260 = vadd.f32 %v1258, %v1259
      %1261 = vst [vmem:[%s346] sm:$0x1] %v1260
      %v1262 = vmul.f32 %v1250, %v1250
      %v1263 = vmul.f32 %v1251, %v1251
      %v1264 = vmul.f32 %v1252, %v1252
      %v1265 = vadd.f32 %v1262, %v1263
      %v1266 = vadd.f32 %v1265, %v1264
      %v1267 = vrot.slane %v1266, 4
      %v1268 = vadd.f32 %v1266, %v1267
      %v1269 = vrot.slane %v1268, 2
      %v1270 = vadd.f32 %v1268, %v1269
      %v1271 = vrot.slane %v1270, 1
      %v1272 = vadd.f32 %v1270, %v1271
      %1273 = vst [vmem:[%s349] sm:$0x1] %v1272
      %p1274 = scmp.lt.s32.totalorder %s21, 1
      %s1275 = scalar_select %p1274, %s21, 1
      %s1276 = smul.addr %s1275, 3
      %s1277 = smul.addr %s1276, 4
      %s1278 = scalar_lea.vmem %s7, %s1277
      %p1279 = scmp.lt.s32.totalorder %s21, 1
      %s1280 = scalar_select %p1279, %s21, 1
      %s1281 = scalar_lea.vmem %s8, %s1280
      %p1282 = scmp.lt.s32.totalorder %s21, 1
      %s1283 = scalar_select %p1282, %s21, 1
      %s1284 = scalar_lea.vmem %s9, %s1283
      // Predicated region
      $region49: #{center_speed_forward.6} parent=47 // pred_check
        %p1285 = pneg %p191
      $region50: #{center_speed_forward.6} parent=47 // pred_check_branch
        %1287 = sbr.rel (%p1285) target = $region52
      $region51: #{center_speed_forward.6} parent=47 // pred_region
        _
      $region52: #{center_speed_forward.6} parent=47 // pred_fallthru
        _
      // Predicated region
      $region53: #{center_speed_forward.6} parent=47 // pred_check
        %p1288 = pneg %p217
      $region54: #{center_speed_forward.6} parent=47 // pred_check_branch
        %1290 = sbr.rel (%p1288) target = $region56
      $region55: #{center_speed_forward.6} parent=47 // pred_region
        _
      $region56: #{center_speed_forward.6} parent=47 // pred_fallthru
        _
      // Predicated region
      $region57: #{center_speed_forward.6} parent=47 // pred_check
        %p1291 = pneg %p243
      $region58: #{center_speed_forward.6} parent=47 // pred_check_branch
        %1293 = sbr.rel (%p1291) target = $region60
      $region59: #{center_speed_forward.6} parent=47 // pred_region
        _
      $region60: #{center_speed_forward.6} parent=47 // pred_fallthru
        _
    $region48: #{center_speed_forward.6} parent=5 // pred_fallthru
      _
    %p1294 = scmp.le.s32.totalorder 2, %s16
    // Predicated region
    $region61: #{center_speed_forward.6} parent=5 // pred_check
      %p1295 = pneg %p1294
    $region62: #{center_speed_forward.6} parent=5 // pred_check_branch
      %1297 = sbr.rel (%p1295) target = $region64
    $region63: #{center_speed_forward.6} parent=5 // pred_region
      %s1298 = ssub.s32 %s16, 2
      // Predicated region
      $region65: #{center_speed_forward.6} parent=63 // pred_check
        %p1299 = pneg %p197
      $region66: #{center_speed_forward.6} parent=63 // pred_check_branch
        %1301 = sbr.rel (%p1299) target = $region68
      $region67: #{center_speed_forward.6} parent=63 // pred_region
        %p1302 = scmp.lt.s32.totalorder %s22, 1
        %s1303 = scalar_select %p1302, %s22, 1
        %s1304 = smul.addr %s1303, 3
        %s1305 = smul.addr %s1304, 4
        %s1306 = scalar_lea.vmem %s7, %s1305
      $region68: #{center_speed_forward.6} parent=63 // pred_fallthru
        _
      // Predicated region
      $region69: #{center_speed_forward.6} parent=63 // pred_check
        %p1307 = pneg %p223
      $region70: #{center_speed_forward.6} parent=63 // pred_check_branch
        %1309 = sbr.rel (%p1307) target = $region72
      $region71: #{center_speed_forward.6} parent=63 // pred_region
        %p1310 = scmp.lt.s32.totalorder %s22, 1
        %s1311 = scalar_select %p1310, %s22, 1
        %s1312 = scalar_lea.vmem %s8, %s1311
      $region72: #{center_speed_forward.6} parent=63 // pred_fallthru
        _
      // Predicated region
      $region73: #{center_speed_forward.6} parent=63 // pred_check
        %p1313 = pneg %p249
      $region74: #{center_speed_forward.6} parent=63 // pred_check_branch
        %1315 = sbr.rel (%p1313) target = $region76
      $region75: #{center_speed_forward.6} parent=63 // pred_region
        %p1316 = scmp.lt.s32.totalorder %s22, 1
        %s1317 = scalar_select %p1316, %s22, 1
        %s1318 = scalar_lea.vmem %s9, %s1317
      $region76: #{center_speed_forward.6} parent=63 // pred_fallthru
        _
    $region64: #{center_speed_forward.6} parent=5 // pred_fallthru
      _
  $region6: #{center_speed_forward.6} parent=0 // loop_footer
    %s20 = sadd.s32 1, %s16
  $region7: #{center_speed_forward.6} parent=0 // loop_footer_branch
    %15 = sbr.rel target = $region3
  $region8: #{center_speed_forward.6} parent=0 // loop_exit
    _

// kernel: center_speed_forward.7
$region0: #{center_speed_forward.7}
  #allocation0 [shape = 'u32[]', space=smem, size = 0x4, offset = 0x4, fixed_abs, tag = 'smem constant byte address 0x4 - core index']
  #allocation1 [shape = 'u32[72,128]{1,0:T(1,128)}', space=vmem, size = 0x9000, scoped, tag = 'internal scratch']
  #allocation2 [shape = 'bf16[102,32]{1,0:T(8,128)(2,1)}', space=vmem, size = 0x6800, scoped, tag = 'scratch operand']
  #allocation3 [shape = 'f32[80,16]{1,0:T(8,128)}', space=vmem, size = 0xa000, scoped, tag = 'scratch operand']
  %s0 = inlined_call_operand.vmem [shape: bf16[2,1,102,32], index: 0, kind: input, shape index: {}]
  %s1 = inlined_call_operand.vmem [shape: f32[1,102,1], index: 1, kind: input, shape index: {}]
  %s2 = inlined_call_operand.vmem [shape: bf16[9,32,16], index: 2, kind: input, shape index: {}]
  %s3 = inlined_call_operand.vmem [shape: f32[1,16], index: 3, kind: input, shape index: {}]
  %s4 = inlined_call_operand.vmem [shape: f32[1,32], index: 4, kind: input, shape index: {}]
  %s5 = inlined_call_operand.vmem [shape: f32[1,32], index: 5, kind: input, shape index: {}]
  %s6 = inlined_call_operand.vmem [shape: f32[1,16], index: 6, kind: input, shape index: {}]
  %s7 = inlined_call_operand.vmem [shape: f32[1,16], index: 7, kind: input, shape index: {}]
  %s8 = inlined_call_operand.vmem [shape: f32[2,80,16], index: 8, kind: output, shape index: {}]
  %s9 = sld [smem:[#allocation0]]
  $region65: #{center_speed_forward.7} parent=0
    _
  %s11 = ssub.s32 1, %s9
  %s12 = scalar_select 0, %s11, %s9
  loop: start=0, step=1, limit=4
  $region2: #{center_speed_forward.7} parent=0 // loop_pre_header
    _
  $region3: #{center_speed_forward.7} parent=0 // loop_header
    %s14 = sphi 0, %s18
    %p15 = scmp.ge.s32.totalorder %s14, 4
    %s24 = sphi 0, %s26
    %s27 = sphi 0, %s24
    %s28 = sphi 0, %s27
    %s44 = sphi 0, %s28
    %s48 = sphi 0, %s48
    %s50 = sphi 0, %s48
    %s51 = sphi 0, %s50
    %s65 = sphi 0, %s51
    %s69 = sphi 0, %s69
    %s71 = sphi 0, %s69
    %s72 = sphi 0, %s71
    %s86 = sphi 0, %s72
    %s90 = sphi 0, %s90
    %s92 = sphi 0, %s90
    %s93 = sphi 0, %s92
    %s107 = sphi 0, %s93
    %s111 = sphi 0, %s111
    %s113 = sphi 0, %s111
    %s114 = sphi 0, %s113
    %s128 = sphi 0, %s114
    %s132 = sphi 0, %s132
    %s134 = sphi 0, %s132
    %s135 = sphi 0, %s134
    %s149 = sphi 0, %s135
    %s153 = sphi 0, %s153
    %s155 = sphi 0, %s153
    %s156 = sphi 0, %s155
    %s170 = sphi 0, %s156
    %s174 = sphi 0, %s174
    %s176 = sphi 0, %s174
    %s177 = sphi 0, %s176
    %s191 = sphi 0, %s177
    %s197 = sphi 0, %s199
    %s200 = sphi 0, %s197
    %s201 = sphi 0, %s200
    %s217 = sphi 0, %s201
  $region4: #{center_speed_forward.7} parent=0 // loop_header_branch
    %17 = sbr.rel (%p15) target = $region8
  $region5: #{center_speed_forward.7} parent=0 // loop_body
    %s19 = ssub.s32 %s14, 1
    %s20 = ssub.s32 %s14, 2
    %s21 = sadd.s32 %s14, 1
    %s22 = ssub.s32 %s14, %s21
    %p23 = scmp.eq.s32.totalorder %s22, 0
    %s25 = sadd.s32 %s24, 1
    %s26 = scalar_select %p23, %s24, %s25
    %p29 = pneg %p23
    %p30 = scmp.eq.s32.totalorder %s14, 1
    %p31 = por %p29, %p30
    %p32 = scmp.ne.s32.totalorder %s24, %s27
    %p33 = scmp.eq.s32.totalorder %s14, 0
    %p34 = por %p32, %p33
    %p35 = scmp.ne.s32.totalorder %s24, %s27
    %p36 = scmp.eq.s32.totalorder %s19, 1
    %p37 = por %p35, %p36
    %p38 = scmp.ne.s32.totalorder %s27, %s28
    %p39 = scmp.eq.s32.totalorder %s19, 0
    %p40 = por %p38, %p39
    %p41 = scmp.ne.s32.totalorder %s27, %s28
    %p42 = scmp.eq.s32.totalorder %s20, 1
    %p43 = por %p41, %p42
    %p45 = scmp.ne.s32.totalorder %s28, %s44
    %p46 = scmp.eq.s32.totalorder %s20, 0
    %p47 = por %p45, %p46
    %s49 = sadd.s32 %s48, 1
    %p52 = scmp.eq.s32.totalorder %s14, 1
    %p53 = scmp.ne.s32.totalorder %s48, %s50
    %p54 = scmp.eq.s32.totalorder %s14, 0
    %p55 = por %p53, %p54
    %p56 = scmp.ne.s32.totalorder %s48, %s50
    %p57 = scmp.eq.s32.totalorder %s19, 1
    %p58 = por %p56, %p57
    %p59 = scmp.ne.s32.totalorder %s50, %s51
    %p60 = scmp.eq.s32.totalorder %s19, 0
    %p61 = por %p59, %p60
    %p62 = scmp.ne.s32.totalorder %s50, %s51
    %p63 = scmp.eq.s32.totalorder %s20, 1
    %p64 = por %p62, %p63
    %p66 = scmp.ne.s32.totalorder %s51, %s65
    %p67 = scmp.eq.s32.totalorder %s20, 0
    %p68 = por %p66, %p67
    %s70 = sadd.s32 %s69, 1
    %p73 = scmp.eq.s32.totalorder %s14, 1
    %p74 = scmp.ne.s32.totalorder %s69, %s71
    %p75 = scmp.eq.s32.totalorder %s14, 0
    %p76 = por %p74, %p75
    %p77 = scmp.ne.s32.totalorder %s69, %s71
    %p78 = scmp.eq.s32.totalorder %s19, 1
    %p79 = por %p77, %p78
    %p80 = scmp.ne.s32.totalorder %s71, %s72
    %p81 = scmp.eq.s32.totalorder %s19, 0
    %p82 = por %p80, %p81
    %p83 = scmp.ne.s32.totalorder %s71, %s72
    %p84 = scmp.eq.s32.totalorder %s20, 1
    %p85 = por %p83, %p84
    %p87 = scmp.ne.s32.totalorder %s72, %s86
    %p88 = scmp.eq.s32.totalorder %s20, 0
    %p89 = por %p87, %p88
    %s91 = sadd.s32 %s90, 1
    %p94 = scmp.eq.s32.totalorder %s14, 1
    %p95 = scmp.ne.s32.totalorder %s90, %s92
    %p96 = scmp.eq.s32.totalorder %s14, 0
    %p97 = por %p95, %p96
    %p98 = scmp.ne.s32.totalorder %s90, %s92
    %p99 = scmp.eq.s32.totalorder %s19, 1
    %p100 = por %p98, %p99
    %p101 = scmp.ne.s32.totalorder %s92, %s93
    %p102 = scmp.eq.s32.totalorder %s19, 0
    %p103 = por %p101, %p102
    %p104 = scmp.ne.s32.totalorder %s92, %s93
    %p105 = scmp.eq.s32.totalorder %s20, 1
    %p106 = por %p104, %p105
    %p108 = scmp.ne.s32.totalorder %s93, %s107
    %p109 = scmp.eq.s32.totalorder %s20, 0
    %p110 = por %p108, %p109
    %s112 = sadd.s32 %s111, 1
    %p115 = scmp.eq.s32.totalorder %s14, 1
    %p116 = scmp.ne.s32.totalorder %s111, %s113
    %p117 = scmp.eq.s32.totalorder %s14, 0
    %p118 = por %p116, %p117
    %p119 = scmp.ne.s32.totalorder %s111, %s113
    %p120 = scmp.eq.s32.totalorder %s19, 1
    %p121 = por %p119, %p120
    %p122 = scmp.ne.s32.totalorder %s113, %s114
    %p123 = scmp.eq.s32.totalorder %s19, 0
    %p124 = por %p122, %p123
    %p125 = scmp.ne.s32.totalorder %s113, %s114
    %p126 = scmp.eq.s32.totalorder %s20, 1
    %p127 = por %p125, %p126
    %p129 = scmp.ne.s32.totalorder %s114, %s128
    %p130 = scmp.eq.s32.totalorder %s20, 0
    %p131 = por %p129, %p130
    %s133 = sadd.s32 %s132, 1
    %p136 = scmp.eq.s32.totalorder %s14, 1
    %p137 = scmp.ne.s32.totalorder %s132, %s134
    %p138 = scmp.eq.s32.totalorder %s14, 0
    %p139 = por %p137, %p138
    %p140 = scmp.ne.s32.totalorder %s132, %s134
    %p141 = scmp.eq.s32.totalorder %s19, 1
    %p142 = por %p140, %p141
    %p143 = scmp.ne.s32.totalorder %s134, %s135
    %p144 = scmp.eq.s32.totalorder %s19, 0
    %p145 = por %p143, %p144
    %p146 = scmp.ne.s32.totalorder %s134, %s135
    %p147 = scmp.eq.s32.totalorder %s20, 1
    %p148 = por %p146, %p147
    %p150 = scmp.ne.s32.totalorder %s135, %s149
    %p151 = scmp.eq.s32.totalorder %s20, 0
    %p152 = por %p150, %p151
    %s154 = sadd.s32 %s153, 1
    %p157 = scmp.eq.s32.totalorder %s14, 1
    %p158 = scmp.ne.s32.totalorder %s153, %s155
    %p159 = scmp.eq.s32.totalorder %s14, 0
    %p160 = por %p158, %p159
    %p161 = scmp.ne.s32.totalorder %s153, %s155
    %p162 = scmp.eq.s32.totalorder %s19, 1
    %p163 = por %p161, %p162
    %p164 = scmp.ne.s32.totalorder %s155, %s156
    %p165 = scmp.eq.s32.totalorder %s19, 0
    %p166 = por %p164, %p165
    %p167 = scmp.ne.s32.totalorder %s155, %s156
    %p168 = scmp.eq.s32.totalorder %s20, 1
    %p169 = por %p167, %p168
    %p171 = scmp.ne.s32.totalorder %s156, %s170
    %p172 = scmp.eq.s32.totalorder %s20, 0
    %p173 = por %p171, %p172
    %s175 = sadd.s32 %s174, 1
    %p178 = scmp.eq.s32.totalorder %s14, 1
    %p179 = scmp.ne.s32.totalorder %s174, %s176
    %p180 = scmp.eq.s32.totalorder %s14, 0
    %p181 = por %p179, %p180
    %p182 = scmp.ne.s32.totalorder %s174, %s176
    %p183 = scmp.eq.s32.totalorder %s19, 1
    %p184 = por %p182, %p183
    %p185 = scmp.ne.s32.totalorder %s176, %s177
    %p186 = scmp.eq.s32.totalorder %s19, 0
    %p187 = por %p185, %p186
    %p188 = scmp.ne.s32.totalorder %s176, %s177
    %p189 = scmp.eq.s32.totalorder %s20, 1
    %p190 = por %p188, %p189
    %p192 = scmp.ne.s32.totalorder %s177, %s191
    %p193 = scmp.eq.s32.totalorder %s20, 0
    %p194 = por %p192, %p193
    %s195 = ssub.s32 %s14, %s21
    %p196 = scmp.eq.s32.totalorder %s195, 0
    %s198 = sadd.s32 %s197, 1
    %s199 = scalar_select %p196, %s197, %s198
    %p202 = pneg %p196
    %p203 = scmp.eq.s32.totalorder %s14, 1
    %p204 = por %p202, %p203
    %p205 = scmp.ne.s32.totalorder %s197, %s200
    %p206 = scmp.eq.s32.totalorder %s14, 0
    %p207 = por %p205, %p206
    %p208 = scmp.ne.s32.totalorder %s197, %s200
    %p209 = scmp.eq.s32.totalorder %s19, 1
    %p210 = por %p208, %p209
    %p211 = scmp.ne.s32.totalorder %s200, %s201
    %p212 = scmp.eq.s32.totalorder %s19, 0
    %p213 = por %p211, %p212
    %p214 = scmp.ne.s32.totalorder %s200, %s201
    %p215 = scmp.eq.s32.totalorder %s20, 1
    %p216 = por %p214, %p215
    %p218 = scmp.ne.s32.totalorder %s201, %s217
    %p219 = scmp.eq.s32.totalorder %s20, 0
    %p220 = por %p218, %p219
    %p221 = scmp.le.s32.totalorder 1, %s14
    %p222 = scmp.lt.s32.totalorder %s14, 3
    %p223 = pnand %p221, %p222
    %p224 = pneg %p223
    // Predicated region
    $region9: #{center_speed_forward.7} parent=5 // pred_check
      _
    $region10: #{center_speed_forward.7} parent=5 // pred_check_branch
      %226 = sbr.rel (%p223) target = $region12
    $region11: #{center_speed_forward.7} parent=5 // pred_region
      %s227 = ssub.s32 %s14, 1
      // Predicated region
      $region13: #{center_speed_forward.7} parent=11 // pred_check
        %p228 = pneg %p61
      $region14: #{center_speed_forward.7} parent=11 // pred_check_branch
        %230 = sbr.rel (%p228) target = $region16
      $region15: #{center_speed_forward.7} parent=11 // pred_region
        _
      $region16: #{center_speed_forward.7} parent=11 // pred_fallthru
        _
      // Predicated region
      $region17: #{center_speed_forward.7} parent=11 // pred_check
        %p231 = pneg %p82
      $region18: #{center_speed_forward.7} parent=11 // pred_check_branch
        %233 = sbr.rel (%p231) target = $region20
      $region19: #{center_speed_forward.7} parent=11 // pred_region
        _
      $region20: #{center_speed_forward.7} parent=11 // pred_fallthru
        _
      // Predicated region
      $region21: #{center_speed_forward.7} parent=11 // pred_check
        %p234 = pneg %p103
      $region22: #{center_speed_forward.7} parent=11 // pred_check_branch
        %236 = sbr.rel (%p234) target = $region24
      $region23: #{center_speed_forward.7} parent=11 // pred_region
        _
      $region24: #{center_speed_forward.7} parent=11 // pred_fallthru
        _
      // Predicated region
      $region25: #{center_speed_forward.7} parent=11 // pred_check
        %p237 = pneg %p124
      $region26: #{center_speed_forward.7} parent=11 // pred_check_branch
        %239 = sbr.rel (%p237) target = $region28
      $region27: #{center_speed_forward.7} parent=11 // pred_region
        _
      $region28: #{center_speed_forward.7} parent=11 // pred_fallthru
        _
      // Predicated region
      $region29: #{center_speed_forward.7} parent=11 // pred_check
        %p240 = pneg %p145
      $region30: #{center_speed_forward.7} parent=11 // pred_check_branch
        %242 = sbr.rel (%p240) target = $region32
      $region31: #{center_speed_forward.7} parent=11 // pred_region
        _
      $region32: #{center_speed_forward.7} parent=11 // pred_fallthru
        _
      // Predicated region
      $region33: #{center_speed_forward.7} parent=11 // pred_check
        %p243 = pneg %p166
      $region34: #{center_speed_forward.7} parent=11 // pred_check_branch
        %245 = sbr.rel (%p243) target = $region36
      $region35: #{center_speed_forward.7} parent=11 // pred_region
        _
      $region36: #{center_speed_forward.7} parent=11 // pred_fallthru
        _
      // Predicated region
      $region37: #{center_speed_forward.7} parent=11 // pred_check
        %p246 = pneg %p187
      $region38: #{center_speed_forward.7} parent=11 // pred_check_branch
        %248 = sbr.rel (%p246) target = $region40
      $region39: #{center_speed_forward.7} parent=11 // pred_region
        _
      $region40: #{center_speed_forward.7} parent=11 // pred_fallthru
        _
    $region12: #{center_speed_forward.7} parent=5 // pred_fallthru
      _
    %p249 = scmp.lt.s32.totalorder %s14, 2
    // Predicated region
    $region41: #{center_speed_forward.7} parent=5 // pred_check
      %p250 = pneg %p249
    $region42: #{center_speed_forward.7} parent=5 // pred_check_branch
      %252 = sbr.rel (%p250) target = $region44
    $region43: #{center_speed_forward.7} parent=5 // pred_region
      // Predicated region
      $region45: #{center_speed_forward.7} parent=43 // pred_check
        %p253 = pneg %p34
      $region46: #{center_speed_forward.7} parent=43 // pred_check_branch
        %255 = sbr.rel (%p253) target = $region48
      $region47: #{center_speed_forward.7} parent=43 // pred_region
        %p256 = scmp.lt.s32.totalorder %s14, 1
        %s257 = scalar_select %p256, %s14, 1
        %s258 = smul.addr %s257, 13
        %s259 = smul.addr %s258, 4
        %s260 = scalar_lea.vmem %s0, %s259
      $region48: #{center_speed_forward.7} parent=43 // pred_fallthru
        _
    $region44: #{center_speed_forward.7} parent=5 // pred_fallthru
      _
    %p261 = scmp.le.s32.totalorder 1, %s14
    %p262 = scmp.lt.s32.totalorder %s14, 3
    %p263 = pnand %p261, %p262
    %p264 = pneg %p263
    // Predicated region
    $region49: #{center_speed_forward.7} parent=5 // pred_check
      _
    $region50: #{center_speed_forward.7} parent=5 // pred_check_branch
      %266 = sbr.rel (%p263) target = $region52
    $region51: #{center_speed_forward.7} parent=5 // pred_region
      %s267 = ssub.s32 %s14, 1
      %p268 = scmp.lt.s32.totalorder %s19, 1
      %s269 = scalar_select %p268, %s19, 1
      %s270 = smul.addr %s269, 13
      %s271 = smul.addr %s270, 4
      %s272 = scalar_lea.vmem %s0, %s271
      %p273 = pneg %p40
      %p274 = pneg %p37
      %p275 = pneg %p61
      %p276 = pneg %p58
      %p277 = pneg %p82
      %p278 = pneg %p79
      %p279 = pneg %p103
      %p280 = pneg %p100
      %p281 = pneg %p124
      %p282 = pneg %p121
      %p283 = pneg %p145
      %p284 = pneg %p142
      %p285 = pneg %p166
      %p286 = pneg %p163
      %p287 = pneg %p187
      %p288 = pneg %p184
      %p289 = pneg %p213
      %p290 = pneg %p210
      %p291 = scmp.lt.s32.totalorder %s19, 1
      %s292 = scalar_select %p291, %s19, 1
      %s293 = smul.addr %s292, 10
      %s294 = smul.addr %s293, 8
      %s295 = scalar_lea.vmem %s8, %s294
      %p296 = scmp.lt.s32.totalorder %s19, 1
      %s297 = scalar_select %p296, %s19, 1
      %s298 = smul.addr %s297, 13
      %s299 = smul.addr %s298, 4
      %s300 = scalar_lea.vmem %s0, %s299
      %p301 = scmp.lt.s32.totalorder %s19, 1
      %s302 = scalar_select %p301, %s19, 1
      %s303 = smul.addr %s302, 10
      %s304 = smul.addr %s303, 8
      %s305 = scalar_lea.vmem %s8, %s304
      %v307 = vld [vmem:[%s4] sm:$0x1]
      %v308 = vld [vmem:[%s5] sm:$0x1]
      %v309 = vld [vmem:[%s300] sm:$0xf]
      %v310 = vld [vmem:[%s300 + $0x4] sm:$0xf]
      %v311 = vld [vmem:[%s300 + $0x8] sm:$0xf]
      %v312 = vld [vmem:[%s300 + $0xc] sm:$0xf]
      %v313 = vld [vmem:[%s300 + $0x10] sm:$0xf]
      %v314 = vld [vmem:[%s300 + $0x14] sm:$0xf]
      %v315 = vld [vmem:[%s300 + $0x18] sm:$0xf]
      %v316 = vld [vmem:[%s300 + $0x1c] sm:$0xf]
      %v317 = vld [vmem:[%s300 + $0x20] sm:$0xf]
      %v318 = vld [vmem:[%s300 + $0x24] sm:$0xf]
      %v319 = vld [vmem:[%s300 + $0x28] sm:$0xf]
      %v320 = vld [vmem:[%s300 + $0x2c] sm:$0xf]
      %v321 = vld [vmem:[%s300 + $0x30] sm:$0x7]
      %v322 = vunpack.c.l.bf16 %v309
      %v323 = vunpack.c.l.bf16 %v310
      %v324 = vunpack.c.l.bf16 %v311
      %v325 = vunpack.c.l.bf16 %v312
      %v326 = vunpack.c.l.bf16 %v313
      %v327 = vunpack.c.l.bf16 %v314
      %v328 = vunpack.c.l.bf16 %v315
      %v329 = vunpack.c.l.bf16 %v316
      %v330 = vunpack.c.l.bf16 %v317
      %v331 = vunpack.c.l.bf16 %v318
      %v332 = vunpack.c.l.bf16 %v319
      %v333 = vunpack.c.l.bf16 %v320
      %v334 = vunpack.c.l.bf16 %v321
      %v336 = vperm.slane %v307, 0
      %v338 = vmul.f32 %v322, %v336
      %v339 = vmul.f32 %v323, %v336
      %v340 = vmul.f32 %v324, %v336
      %v341 = vmul.f32 %v325, %v336
      %v342 = vmul.f32 %v326, %v336
      %v343 = vmul.f32 %v327, %v336
      %v344 = vmul.f32 %v328, %v336
      %v345 = vmul.f32 %v329, %v336
      %v346 = vmul.f32 %v330, %v336
      %v347 = vmul.f32 %v331, %v336
      %v348 = vmul.f32 %v332, %v336
      %v349 = vmul.f32 %v333, %v336
      %v350 = vmul.f32 %v334, %v336
      %v352 = vperm.slane %v308, 0
      %v354 = vadd.f32 %v338, %v352
      %v355 = vadd.f32 %v339, %v352
      %v356 = vadd.f32 %v340, %v352
      %v357 = vadd.f32 %v341, %v352
      %v358 = vadd.f32 %v342, %v352
      %v359 = vadd.f32 %v343, %v352
      %v360 = vadd.f32 %v344, %v352
      %v361 = vadd.f32 %v345, %v352
      %v362 = vadd.f32 %v346, %v352
      %v363 = vadd.f32 %v347, %v352
      %v364 = vadd.f32 %v348, %v352
      %v365 = vadd.f32 %v349, %v352
      %v366 = vadd.f32 %v350, %v352
      %vm367 = vcmp.gt.f32.partialorder %v354, 0.0
      %vm368 = vcmp.gt.f32.partialorder %v355, 0.0
      %vm369 = vcmp.gt.f32.partialorder %v356, 0.0
      %vm370 = vcmp.gt.f32.partialorder %v357, 0.0
      %vm371 = vcmp.gt.f32.partialorder %v358, 0.0
      %vm372 = vcmp.gt.f32.partialorder %v359, 0.0
      %vm373 = vcmp.gt.f32.partialorder %v360, 0.0
      %vm374 = vcmp.gt.f32.partialorder %v361, 0.0
      %vm375 = vcmp.gt.f32.partialorder %v362, 0.0
      %vm376 = vcmp.gt.f32.partialorder %v363, 0.0
      %vm377 = vcmp.gt.f32.partialorder %v364, 0.0
      %vm378 = vcmp.gt.f32.partialorder %v365, 0.0
      %vm379 = vcmp.gt.f32.partialorder %v366, 0.0
      %v380 = vmul.f32 %v354, 0.01
      %v381 = vmul.f32 %v355, 0.01
      %v382 = vmul.f32 %v356, 0.01
      %v383 = vmul.f32 %v357, 0.01
      %v384 = vmul.f32 %v358, 0.01
      %v385 = vmul.f32 %v359, 0.01
      %v386 = vmul.f32 %v360, 0.01
      %v387 = vmul.f32 %v361, 0.01
      %v388 = vmul.f32 %v362, 0.01
      %v389 = vmul.f32 %v363, 0.01
      %v390 = vmul.f32 %v364, 0.01
      %v391 = vmul.f32 %v365, 0.01
      %v392 = vmul.f32 %v366, 0.01
      %v393 = vsel %vm367, %v354, %v380
      %v394 = vsel %vm368, %v355, %v381
      %v395 = vsel %vm369, %v356, %v382
      %v396 = vsel %vm370, %v357, %v383
      %v397 = vsel %vm371, %v358, %v384
      %v398 = vsel %vm372, %v359, %v385
      %v399 = vsel %vm373, %v360, %v386
      %v400 = vsel %vm374, %v361, %v387
      %v401 = vsel %vm375, %v362, %v388
      %v402 = vsel %vm376, %v363, %v389
      %v403 = vsel %vm377, %v364, %v390
      %v404 = vsel %vm378, %v365, %v391
      %v405 = vsel %vm379, %v366, %v392
      %v406 = vld [vmem:[%s1] sm:$0xff]
      %v407 = vld [vmem:[%s1 + $0x8] sm:$0xff]
      %v408 = vld [vmem:[%s1 + $0x10] sm:$0xff]
      %v409 = vld [vmem:[%s1 + $0x18] sm:$0xff]
      %v410 = vld [vmem:[%s1 + $0x20] sm:$0xff]
      %v411 = vld [vmem:[%s1 + $0x28] sm:$0xff]
      %v412 = vld [vmem:[%s1 + $0x30] sm:$0xff]
      %v413 = vld [vmem:[%s1 + $0x38] sm:$0xff]
      %v414 = vld [vmem:[%s1 + $0x40] sm:$0xff]
      %v415 = vld [vmem:[%s1 + $0x48] sm:$0xff]
      %v416 = vld [vmem:[%s1 + $0x50] sm:$0xff]
      %v417 = vld [vmem:[%s1 + $0x58] sm:$0xff]
      %v418 = vld [vmem:[%s1 + $0x60] sm:$0x3f]
      %420 = vset.pattern.permute.xlu0 0
      %421 = vperm.xlu0 %420, %v406
      %v422 = vpop.permute.xlu0 %421
      %425 = vset.pattern.permute.xlu0 0
      %426 = vperm.xlu0 %425, %v407
      %v427 = vpop.permute.xlu0 %426
      %430 = vset.pattern.permute.xlu0 0
      %431 = vperm.xlu0 %430, %v408
      %v432 = vpop.permute.xlu0 %431
      %435 = vset.pattern.permute.xlu0 0
      %436 = vperm.xlu0 %435, %v409
      %v437 = vpop.permute.xlu0 %436
      %440 = vset.pattern.permute.xlu0 0
      %441 = vperm.xlu0 %440, %v410
      %v442 = vpop.permute.xlu0 %441
      %445 = vset.pattern.permute.xlu0 0
      %446 = vperm.xlu0 %445, %v411
      %v447 = vpop.permute.xlu0 %446
      %450 = vset.pattern.permute.xlu0 0
      %451 = vperm.xlu0 %450, %v412
      %v452 = vpop.permute.xlu0 %451
      %455 = vset.pattern.permute.xlu0 0
      %456 = vperm.xlu0 %455, %v413
      %v457 = vpop.permute.xlu0 %456
      %460 = vset.pattern.permute.xlu0 0
      %461 = vperm.xlu0 %460, %v414
      %v462 = vpop.permute.xlu0 %461
      %465 = vset.pattern.permute.xlu0 0
      %466 = vperm.xlu0 %465, %v415
      %v467 = vpop.permute.xlu0 %466
      %470 = vset.pattern.permute.xlu0 0
      %471 = vperm.xlu0 %470, %v416
      %v472 = vpop.permute.xlu0 %471
      %475 = vset.pattern.permute.xlu0 0
      %476 = vperm.xlu0 %475, %v417
      %v477 = vpop.permute.xlu0 %476
      %480 = vset.pattern.permute.xlu0 0
      %481 = vperm.xlu0 %480, %v418
      %v482 = vpop.permute.xlu0 %481
      %v484 = vmul.f32 %v393, %v422
      %v485 = vmul.f32 %v394, %v427
      %v486 = vmul.f32 %v395, %v432
      %v487 = vmul.f32 %v396, %v437
      %v488 = vmul.f32 %v397, %v442
      %v489 = vmul.f32 %v398, %v447
      %v490 = vmul.f32 %v399, %v452
      %v491 = vmul.f32 %v400, %v457
      %v492 = vmul.f32 %v401, %v462
      %v493 = vmul.f32 %v402, %v467
      %v494 = vmul.f32 %v403, %v472
      %v495 = vmul.f32 %v404, %v477
      %v496 = vmul.f32 %v405, %v482
      %v497 = vpack.c.bf16 %v484, %v484
      %v498 = vpack.c.bf16 %v485, %v485
      %v499 = vpack.c.bf16 %v486, %v486
      %v500 = vpack.c.bf16 %v487, %v487
      %v501 = vpack.c.bf16 %v488, %v488
      %v502 = vpack.c.bf16 %v489, %v489
      %v503 = vpack.c.bf16 %v490, %v490
      %v504 = vpack.c.bf16 %v491, %v491
      %v505 = vpack.c.bf16 %v492, %v492
      %v506 = vpack.c.bf16 %v493, %v493
      %v507 = vpack.c.bf16 %v494, %v494
      %v508 = vpack.c.bf16 %v495, %v495
      %v509 = vpack.c.bf16 %v496, %v496
      %vm510 = vcmask 257024
      %511 = vst.msk [vmem:[#allocation2] sm:$0xf] %vm510, %v497
      %512 = vst.msk [vmem:[#allocation2 + $0x4] sm:$0xf] %vm510, %v498
      %513 = vst.msk [vmem:[#allocation2 + $0x8] sm:$0xf] %vm510, %v499
      %514 = vst.msk [vmem:[#allocation2 + $0xc] sm:$0xf] %vm510, %v500
      %515 = vst.msk [vmem:[#allocation2 + $0x10] sm:$0xf] %vm510, %v501
      %516 = vst.msk [vmem:[#allocation2 + $0x14] sm:$0xf] %vm510, %v502
      %517 = vst.msk [vmem:[#allocation2 + $0x18] sm:$0xf] %vm510, %v503
      %518 = vst.msk [vmem:[#allocation2 + $0x1c] sm:$0xf] %vm510, %v504
      %519 = vst.msk [vmem:[#allocation2 + $0x20] sm:$0xf] %vm510, %v505
      %520 = vst.msk [vmem:[#allocation2 + $0x24] sm:$0xf] %vm510, %v506
      %521 = vst.msk [vmem:[#allocation2 + $0x28] sm:$0xf] %vm510, %v507
      %522 = vst.msk [vmem:[#allocation2 + $0x2c] sm:$0xf] %vm510, %v508
      %vm523 = vcmask 256000
      %524 = vst.msk [vmem:[#allocation2 + $0x30] sm:$0x7] %vm523, %v509
      %v525 = vld [vmem:[#allocation2] sm:$0xf]
      %v526 = vld [vmem:[#allocation2 + $0x4] sm:$0xf]
      %v527 = vld [vmem:[#allocation2 + $0x8] sm:$0xf]
      %v528 = vld [vmem:[#allocation2 + $0xc] sm:$0xf]
      %v529 = vld [vmem:[#allocation2 + $0x10] sm:$0xf]
      %v530 = vld [vmem:[#allocation2 + $0x14] sm:$0xf]
      %v531 = vld [vmem:[#allocation2 + $0x18] sm:$0xf]
      %v532 = vld [vmem:[#allocation2 + $0x1c] sm:$0xf]
      %v533 = vld [vmem:[#allocation2 + $0x20] sm:$0xf]
      %v534 = vld [vmem:[#allocation2 + $0x24] sm:$0xf]
      %v535 = vld [vmem:[%s2] sm:$0xf]
      %v536 = vld [vmem:[%s2 + $0x4] sm:$0xf]
      %v537 = vld [vmem:[%s2 + $0x8] sm:$0xf]
      %v538 = vld [vmem:[%s2 + $0xc] sm:$0xf]
      %v549 = vunpack.c.l.b16 %v525
      %v550 = vunpack.c.l.b16 %v526
      %v551 = vunpack.c.l.b16 %v527
      %v552 = vunpack.c.l.b16 %v528
      %v553 = vunpack.c.l.b16 %v529
      %v554 = vunpack.c.l.b16 %v530
      %v555 = vunpack.c.l.b16 %v531
      %v556 = vunpack.c.l.b16 %v532
      %v557 = vunpack.c.l.b16 %v533
      %v558 = vunpack.c.l.b16 %v534
      %v559 = vpack.c.b16 %v550, %v549
      %v560 = vpack.c.b16 %v552, %v551
      %v561 = vpack.c.b16 %v554, %v553
      %v562 = vpack.c.b16 %v556, %v555
      %v563 = vpack.c.b16 %v558, %v557
      %v568 = vunpack.c.l.b16 %v535
      %v569 = vunpack.c.l.b16 %v536
      %v570 = vunpack.c.l.b16 %v537
      %v571 = vunpack.c.l.b16 %v538
      %v572 = vpack.c.b16 %v569, %v568
      %v573 = vpack.c.b16 %v571, %v570
      %vm576 = vcmask 261120
      %v578 = vsel %vm576, %v559, 0
      %v581 = vsel %vm576, %v560, 0
      %v584 = vsel %vm576, %v561, 0
      %v587 = vsel %vm576, %v562, 0
      %v590 = vsel %vm576, %v563, 0
      %592 = vmatpush.bf16.msra.mxu0 0
      %593 = vmatpush.bf16.msra.mxu0 0
      %594 = vmatpush.bf16.msra.mxu0 0
      %595 = vmatpush.bf16.msra.mxu0 0
      %596 = vmatpush.bf16.msra.mxu0 0
      %597 = vmatpush.bf16.msra.mxu0 0
      %598 = vmatpush.bf16.msra.mxu0 %v573
      %599 = vmatpush.bf16.msra.mxu0 %v572
      %600 = vmatmul.bf16.gmra.mxu0 %v578
      %v601 = vpop.f32.mrf.mxu0
      %v602 = vadd.f32 0.0, %v601
      %v603 = vpop.f32.mrf.mxu0
      %v604 = vadd.f32 0.0, %v603
      %605 = vmatmul.bf16.gmra.mxu0 %v581
      %v606 = vpop.f32.mrf.mxu0
      %v607 = vadd.f32 0.0, %v606
      %v608 = vpop.f32.mrf.mxu0
      %v609 = vadd.f32 0.0, %v608
      %610 = vmatmul.bf16.gmra.mxu0 %v584
      %v611 = vpop.f32.mrf.mxu0
      %v612 = vadd.f32 0.0, %v611
      %v613 = vpop.f32.mrf.mxu0
      %v614 = vadd.f32 0.0, %v613
      %615 = vmatmul.bf16.gmra.mxu0 %v587
      %v616 = vpop.f32.mrf.mxu0
      %v617 = vadd.f32 0.0, %v616
      %v618 = vpop.f32.mrf.mxu0
      %v619 = vadd.f32 0.0, %v618
      %620 = vmatmul.bf16.gmra.mxu0 %v590
      %v621 = vpop.f32.mrf.mxu0
      %v622 = vadd.f32 0.0, %v621
      %v623 = vpop.f32.mrf.mxu0
      %v624 = vadd.f32 0.0, %v623
      %625 = vdwg.mxu0
      %vm626 = vcmask 130048
      %627 = vst.msk [vmem:[#allocation3] sm:$0xff] %vm626, %v602
      %628 = vst.msk [vmem:[#allocation3 + $0x8] sm:$0xff] %vm626, %v604
      %629 = vst.msk [vmem:[#allocation3 + $0x10] sm:$0xff] %vm626, %v607
      %630 = vst.msk [vmem:[#allocation3 + $0x18] sm:$0xff] %vm626, %v609
      %631 = vst.msk [vmem:[#allocation3 + $0x20] sm:$0xff] %vm626, %v612
      %632 = vst.msk [vmem:[#allocation3 + $0x28] sm:$0xff] %vm626, %v614
      %633 = vst.msk [vmem:[#allocation3 + $0x30] sm:$0xff] %vm626, %v617
      %634 = vst.msk [vmem:[#allocation3 + $0x38] sm:$0xff] %vm626, %v619
      %635 = vst.msk [vmem:[#allocation3 + $0x40] sm:$0xff] %vm626, %v622
      %636 = vst.msk [vmem:[#allocation3 + $0x48] sm:$0xff] %vm626, %v624
      %v637 = vld [vmem:[#allocation2] sm:$0xf]
      %v638 = vld [vmem:[#allocation2 + $0x4] sm:$0xf]
      %v639 = vld [vmem:[#allocation2 + $0x8] sm:$0xf]
      %v640 = vld [vmem:[#allocation2 + $0xc] sm:$0xf]
      %v641 = vld [vmem:[#allocation2 + $0x10] sm:$0xf]
      %v642 = vld [vmem:[#allocation2 + $0x14] sm:$0xf]
      %v643 = vld [vmem:[#allocation2 + $0x18] sm:$0xf]
      %v644 = vld [vmem:[#allocation2 + $0x1c] sm:$0xf]
      %v645 = vld [vmem:[#allocation2 + $0x20] sm:$0xf]
      %v646 = vld [vmem:[#allocation2 + $0x24] sm:$0xf]
      %v647 = vld [vmem:[#allocation2 + $0x28] sm:$0x1]
      %s648 = scalar_lea.vmem %s2, 16
      %v649 = vld [vmem:[%s648] sm:$0xf]
      %v650 = vld [vmem:[%s648 + $0x4] sm:$0xf]
      %v651 = vld [vmem:[%s648 + $0x8] sm:$0xf]
      %v652 = vld [vmem:[%s648 + $0xc] sm:$0xf]
      %v664 = vunpack.c.l.b16 %v637
      %v665 = vunpack.c.l.b16 %v638
      %v666 = vunpack.c.l.b16 %v639
      %v667 = vunpack.c.l.b16 %v640
      %v668 = vunpack.c.l.b16 %v641
      %v669 = vunpack.c.l.b16 %v642
      %v670 = vunpack.c.l.b16 %v643
      %v671 = vunpack.c.l.b16 %v644
      %v672 = vunpack.c.l.b16 %v645
      %v673 = vunpack.c.l.b16 %v646
      %v674 = vunpack.c.l.b16 %v647
      %v675 = vpack.c.b16 %v665, %v664
      %v676 = vpack.c.b16 %v667, %v666
      %v677 = vpack.c.b16 %v669, %v668
      %v678 = vpack.c.b16 %v671, %v670
      %v679 = vpack.c.b16 %v673, %v672
      %v680 = vpack.c.b16 %v674, %v674
      %vm681 = vsmask.f32 7424
      %v683 = vshrl.u32 %v675, 16
      %v685 = vshll.u32 %v675, 16
      %v687 = vrot.slane %v685, 1
      %v688 = vor.u32 %v683, %v687
      %v690 = vshll.u32 %v676, 16
      %v692 = vrot.slane %v690, 1
      %v693 = vsel %vm681, %v688, %v692
      %v694 = vshrl.u32 %v676, 16
      %v696 = vor.u32 %v694, %v692
      %v698 = vshll.u32 %v677, 16
      %v700 = vrot.slane %v698, 1
      %v701 = vsel %vm681, %v696, %v700
      %v702 = vshrl.u32 %v677, 16
      %v704 = vor.u32 %v702, %v700
      %v706 = vshll.u32 %v678, 16
      %v708 = vrot.slane %v706, 1
      %v709 = vsel %vm681, %v704, %v708
      %v710 = vshrl.u32 %v678, 16
      %v712 = vor.u32 %v710, %v708
      %v714 = vshll.u32 %v679, 16
      %v716 = vrot.slane %v714, 1
      %v717 = vsel %vm681, %v712, %v716
      %v718 = vshrl.u32 %v679, 16
      %v720 = vor.u32 %v718, %v716
      %v722 = vshll.u32 %v680, 16
      %v724 = vrot.slane %v722, 1
      %v725 = vsel %vm681, %v720, %v724
      %v730 = vunpack.c.l.b16 %v649
      %v731 = vunpack.c.l.b16 %v650
      %v732 = vunpack.c.l.b16 %v651
      %v733 = vunpack.c.l.b16 %v652
      %v734 = vpack.c.b16 %v731, %v730
      %v735 = vpack.c.b16 %v733, %v732
      %v739 = vsel %vm576, %v693, 0
      %v742 = vsel %vm576, %v701, 0
      %v745 = vsel %vm576, %v709, 0
      %v748 = vsel %vm576, %v717, 0
      %v751 = vsel %vm576, %v725, 0
      %753 = vmatpush.bf16.msra.mxu0 0
      %754 = vmatpush.bf16.msra.mxu0 0
      %755 = vmatpush.bf16.msra.mxu0 0
      %756 = vmatpush.bf16.msra.mxu0 0
      %757 = vmatpush.bf16.msra.mxu0 0
      %758 = vmatpush.bf16.msra.mxu0 0
      %759 = vmatpush.bf16.msra.mxu0 %v735
      %760 = vmatpush.bf16.msra.mxu0 %v734
      %761 = vmatmul.bf16.gmra.mxu0 %v739
      %v762 = vpop.f32.mrf.mxu0
      %v763 = vadd.f32 0.0, %v762
      %v764 = vpop.f32.mrf.mxu0
      %v765 = vadd.f32 0.0, %v764
      %766 = vmatmul.bf16.gmra.mxu0 %v742
      %v767 = vpop.f32.mrf.mxu0
      %v768 = vadd.f32 0.0, %v767
      %v769 = vpop.f32.mrf.mxu0
      %v770 = vadd.f32 0.0, %v769
      %771 = vmatmul.bf16.gmra.mxu0 %v745
      %v772 = vpop.f32.mrf.mxu0
      %v773 = vadd.f32 0.0, %v772
      %v774 = vpop.f32.mrf.mxu0
      %v775 = vadd.f32 0.0, %v774
      %776 = vmatmul.bf16.gmra.mxu0 %v748
      %v777 = vpop.f32.mrf.mxu0
      %v778 = vadd.f32 0.0, %v777
      %v779 = vpop.f32.mrf.mxu0
      %v780 = vadd.f32 0.0, %v779
      %781 = vmatmul.bf16.gmra.mxu0 %v751
      %v782 = vpop.f32.mrf.mxu0
      %v783 = vadd.f32 0.0, %v782
      %v784 = vpop.f32.mrf.mxu0
      %v785 = vadd.f32 0.0, %v784
      %786 = vdwg.mxu0
      %v787 = vld [vmem:[#allocation3] sm:$0xff]
      %v788 = vld [vmem:[#allocation3 + $0x8] sm:$0xff]
      %v789 = vld [vmem:[#allocation3 + $0x10] sm:$0xff]
      %v790 = vld [vmem:[#allocation3 + $0x18] sm:$0xff]
      %v791 = vld [vmem:[#allocation3 + $0x20] sm:$0xff]
      %v792 = vld [vmem:[#allocation3 + $0x28] sm:$0xff]
      %v793 = vld [vmem:[#allocation3 + $0x30] sm:$0xff]
      %v794 = vld [vmem:[#allocation3 + $0x38] sm:$0xff]
      %v795 = vld [vmem:[#allocation3 + $0x40] sm:$0xff]
      %v796 = vld [vmem:[#allocation3 + $0x48] sm:$0xff]
      %v797 = vadd.f32 %v787, %v763
      %v798 = vadd.f32 %v788, %v765
      %v799 = vadd.f32 %v789, %v768
      %v800 = vadd.f32 %v790, %v770
      %v801 = vadd.f32 %v791, %v773
      %v802 = vadd.f32 %v792, %v775
      %v803 = vadd.f32 %v793, %v778
      %v804 = vadd.f32 %v794, %v780
      %v805 = vadd.f32 %v795, %v783
      %v806 = vadd.f32 %v796, %v785
      %807 = vst.msk [vmem:[#allocation3] sm:$0xff] %vm626, %v797
      %808 = vst.msk [vmem:[#allocation3 + $0x8] sm:$0xff] %vm626, %v798
      %809 = vst.msk [vmem:[#allocation3 + $0x10] sm:$0xff] %vm626, %v799
      %810 = vst.msk [vmem:[#allocation3 + $0x18] sm:$0xff] %vm626, %v800
      %811 = vst.msk [vmem:[#allocation3 + $0x20] sm:$0xff] %vm626, %v801
      %812 = vst.msk [vmem:[#allocation3 + $0x28] sm:$0xff] %vm626, %v802
      %813 = vst.msk [vmem:[#allocation3 + $0x30] sm:$0xff] %vm626, %v803
      %814 = vst.msk [vmem:[#allocation3 + $0x38] sm:$0xff] %vm626, %v804
      %815 = vst.msk [vmem:[#allocation3 + $0x40] sm:$0xff] %vm626, %v805
      %816 = vst.msk [vmem:[#allocation3 + $0x48] sm:$0xff] %vm626, %v806
      %v817 = vld [vmem:[#allocation2] sm:$0xe]
      %v818 = vld [vmem:[#allocation2 + $0x4] sm:$0xf]
      %v819 = vld [vmem:[#allocation2 + $0x8] sm:$0xf]
      %v820 = vld [vmem:[#allocation2 + $0xc] sm:$0xf]
      %v821 = vld [vmem:[#allocation2 + $0x10] sm:$0xf]
      %v822 = vld [vmem:[#allocation2 + $0x14] sm:$0xf]
      %v823 = vld [vmem:[#allocation2 + $0x18] sm:$0xf]
      %v824 = vld [vmem:[#allocation2 + $0x1c] sm:$0xf]
      %v825 = vld [vmem:[#allocation2 + $0x20] sm:$0xf]
      %v826 = vld [vmem:[#allocation2 + $0x24] sm:$0xf]
      %v827 = vld [vmem:[#allocation2 + $0x28] sm:$0x1]
      %s828 = scalar_lea.vmem %s2, 32
      %v829 = vld [vmem:[%s828] sm:$0xf]
      %v830 = vld [vmem:[%s828 + $0x4] sm:$0xf]
      %v831 = vld [vmem:[%s828 + $0x8] sm:$0xf]
      %v832 = vld [vmem:[%s828 + $0xc] sm:$0xf]
      %v844 = vunpack.c.l.b16 %v817
      %v845 = vunpack.c.l.b16 %v818
      %v846 = vunpack.c.l.b16 %v819
      %v847 = vunpack.c.l.b16 %v820
      %v848 = vunpack.c.l.b16 %v821
      %v849 = vunpack.c.l.b16 %v822
      %v850 = vunpack.c.l.b16 %v823
      %v851 = vunpack.c.l.b16 %v824
      %v852 = vunpack.c.l.b16 %v825
      %v853 = vunpack.c.l.b16 %v826
      %v854 = vunpack.c.l.b16 %v827
      %v855 = vpack.c.b16 %v845, %v844
      %v856 = vpack.c.b16 %v847, %v846
      %v857 = vpack.c.b16 %v849, %v848
      %v858 = vpack.c.b16 %v851, %v850
      %v859 = vpack.c.b16 %v853, %v852
      %v860 = vpack.c.b16 %v854, %v854
      %vm861 = vcmask 1046528
      %v862 = vrot.slane %v855, 1
      %v863 = vrot.slane %v856, 1
      %v864 = vsel %vm861, %v862, %v863
      %v865 = vrot.slane %v857, 1
      %v866 = vsel %vm861, %v863, %v865
      %v867 = vrot.slane %v858, 1
      %v868 = vsel %vm861, %v865, %v867
      %v869 = vrot.slane %v859, 1
      %v870 = vsel %vm861, %v867, %v869
      %v871 = vrot.slane %v860, 1
      %v872 = vsel %vm861, %v869, %v871
      %v877 = vunpack.c.l.b16 %v829
      %v878 = vunpack.c.l.b16 %v830
      %v879 = vunpack.c.l.b16 %v831
      %v880 = vunpack.c.l.b16 %v832
      %v881 = vpack.c.b16 %v878, %v877
      %v882 = vpack.c.b16 %v880, %v879
      %v886 = vsel %vm576, %v864, 0
      %v889 = vsel %vm576, %v866, 0
      %v892 = vsel %vm576, %v868, 0
      %v895 = vsel %vm576, %v870, 0
      %v898 = vsel %vm576, %v872, 0
      %900 = vmatpush.bf16.msra.mxu0 0
      %901 = vmatpush.bf16.msra.mxu0 0
      %902 = vmatpush.bf16.msra.mxu0 0
      %903 = vmatpush.bf16.msra.mxu0 0
      %904 = vmatpush.bf16.msra.mxu0 0
      %905 = vmatpush.bf16.msra.mxu0 0
      %906 = vmatpush.bf16.msra.mxu0 %v882
      %907 = vmatpush.bf16.msra.mxu0 %v881
      %908 = vmatmul.bf16.gmra.mxu0 %v886
      %v909 = vpop.f32.mrf.mxu0
      %v910 = vadd.f32 0.0, %v909
      %v911 = vpop.f32.mrf.mxu0
      %v912 = vadd.f32 0.0, %v911
      %913 = vmatmul.bf16.gmra.mxu0 %v889
      %v914 = vpop.f32.mrf.mxu0
      %v915 = vadd.f32 0.0, %v914
      %v916 = vpop.f32.mrf.mxu0
      %v917 = vadd.f32 0.0, %v916
      %918 = vmatmul.bf16.gmra.mxu0 %v892
      %v919 = vpop.f32.mrf.mxu0
      %v920 = vadd.f32 0.0, %v919
      %v921 = vpop.f32.mrf.mxu0
      %v922 = vadd.f32 0.0, %v921
      %923 = vmatmul.bf16.gmra.mxu0 %v895
      %v924 = vpop.f32.mrf.mxu0
      %v925 = vadd.f32 0.0, %v924
      %v926 = vpop.f32.mrf.mxu0
      %v927 = vadd.f32 0.0, %v926
      %928 = vmatmul.bf16.gmra.mxu0 %v898
      %v929 = vpop.f32.mrf.mxu0
      %v930 = vadd.f32 0.0, %v929
      %v931 = vpop.f32.mrf.mxu0
      %v932 = vadd.f32 0.0, %v931
      %933 = vdwg.mxu0
      %v934 = vld [vmem:[#allocation3] sm:$0xff]
      %v935 = vld [vmem:[#allocation3 + $0x8] sm:$0xff]
      %v936 = vld [vmem:[#allocation3 + $0x10] sm:$0xff]
      %v937 = vld [vmem:[#allocation3 + $0x18] sm:$0xff]
      %v938 = vld [vmem:[#allocation3 + $0x20] sm:$0xff]
      %v939 = vld [vmem:[#allocation3 + $0x28] sm:$0xff]
      %v940 = vld [vmem:[#allocation3 + $0x30] sm:$0xff]
      %v941 = vld [vmem:[#allocation3 + $0x38] sm:$0xff]
      %v942 = vld [vmem:[#allocation3 + $0x40] sm:$0xff]
      %v943 = vld [vmem:[#allocation3 + $0x48] sm:$0xff]
      %v944 = vadd.f32 %v934, %v910
      %v945 = vadd.f32 %v935, %v912
      %v946 = vadd.f32 %v936, %v915
      %v947 = vadd.f32 %v937, %v917
      %v948 = vadd.f32 %v938, %v920
      %v949 = vadd.f32 %v939, %v922
      %v950 = vadd.f32 %v940, %v925
      %v951 = vadd.f32 %v941, %v927
      %v952 = vadd.f32 %v942, %v930
      %v953 = vadd.f32 %v943, %v932
      %954 = vst.msk [vmem:[#allocation3] sm:$0xff] %vm626, %v944
      %955 = vst.msk [vmem:[#allocation3 + $0x8] sm:$0xff] %vm626, %v945
      %956 = vst.msk [vmem:[#allocation3 + $0x10] sm:$0xff] %vm626, %v946
      %957 = vst.msk [vmem:[#allocation3 + $0x18] sm:$0xff] %vm626, %v947
      %958 = vst.msk [vmem:[#allocation3 + $0x20] sm:$0xff] %vm626, %v948
      %959 = vst.msk [vmem:[#allocation3 + $0x28] sm:$0xff] %vm626, %v949
      %960 = vst.msk [vmem:[#allocation3 + $0x30] sm:$0xff] %vm626, %v950
      %961 = vst.msk [vmem:[#allocation3 + $0x38] sm:$0xff] %vm626, %v951
      %962 = vst.msk [vmem:[#allocation3 + $0x40] sm:$0xff] %vm626, %v952
      %963 = vst.msk [vmem:[#allocation3 + $0x48] sm:$0xff] %vm626, %v953
      %v964 = vld [vmem:[#allocation2 + $0x4] sm:$0xe]
      %v965 = vld [vmem:[#allocation2 + $0x8] sm:$0xf]
      %v966 = vld [vmem:[#allocation2 + $0xc] sm:$0xf]
      %v967 = vld [vmem:[#allocation2 + $0x10] sm:$0xf]
      %v968 = vld [vmem:[#allocation2 + $0x14] sm:$0xf]
      %v969 = vld [vmem:[#allocation2 + $0x18] sm:$0xf]
      %v970 = vld [vmem:[#allocation2 + $0x1c] sm:$0xf]
      %v971 = vld [vmem:[#allocation2 + $0x20] sm:$0xf]
      %v972 = vld [vmem:[#allocation2 + $0x24] sm:$0xf]
      %v973 = vld [vmem:[#allocation2 + $0x28] sm:$0xf]
      %v974 = vld [vmem:[#allocation2 + $0x2c] sm:$0x1]
      %s975 = scalar_lea.vmem %s2, 48
      %v976 = vld [vmem:[%s975] sm:$0xf]
      %v977 = vld [vmem:[%s975 + $0x4] sm:$0xf]
      %v978 = vld [vmem:[%s975 + $0x8] sm:$0xf]
      %v979 = vld [vmem:[%s975 + $0xc] sm:$0xf]
      %v991 = vunpack.c.l.b16 %v964
      %v992 = vunpack.c.l.b16 %v965
      %v993 = vunpack.c.l.b16 %v966
      %v994 = vunpack.c.l.b16 %v967
      %v995 = vunpack.c.l.b16 %v968
      %v996 = vunpack.c.l.b16 %v969
      %v997 = vunpack.c.l.b16 %v970
      %v998 = vunpack.c.l.b16 %v971
      %v999 = vunpack.c.l.b16 %v972
      %v1000 = vunpack.c.l.b16 %v973
      %v1001 = vunpack.c.l.b16 %v974
      %v1002 = vpack.c.b16 %v992, %v991
      %v1003 = vpack.c.b16 %v994, %v993
      %v1004 = vpack.c.b16 %v996, %v995
      %v1005 = vpack.c.b16 %v998, %v997
      %v1006 = vpack.c.b16 %v1000, %v999
      %v1007 = vpack.c.b16 %v1001, %v1001
      %v1008 = vrot.slane %v1002, 1
      %v1009 = vrot.slane %v1003, 1
      %v1010 = vsel %vm861, %v1008, %v1009
      %v1011 = vrot.slane %v1004, 1
      %v1012 = vsel %vm861, %v1009, %v1011
      %v1013 = vrot.slane %v1005, 1
      %v1014 = vsel %vm861, %v1011, %v1013
      %v1015 = vrot.slane %v1006, 1
      %v1016 = vsel %vm861, %v1013, %v1015
      %v1017 = vrot.slane %v1007, 1
      %v1018 = vsel %vm861, %v1015, %v1017
      %v1023 = vunpack.c.l.b16 %v976
      %v1024 = vunpack.c.l.b16 %v977
      %v1025 = vunpack.c.l.b16 %v978
      %v1026 = vunpack.c.l.b16 %v979
      %v1027 = vpack.c.b16 %v1024, %v1023
      %v1028 = vpack.c.b16 %v1026, %v1025
      %v1032 = vsel %vm576, %v1010, 0
      %v1035 = vsel %vm576, %v1012, 0
      %v1038 = vsel %vm576, %v1014, 0
      %v1041 = vsel %vm576, %v1016, 0
      %v1044 = vsel %vm576, %v1018, 0
      %1046 = vmatpush.bf16.msra.mxu0 0
      %1047 = vmatpush.bf16.msra.mxu0 0
      %1048 = vmatpush.bf16.msra.mxu0 0
      %1049 = vmatpush.bf16.msra.mxu0 0
      %1050 = vmatpush.bf16.msra.mxu0 0
      %1051 = vmatpush.bf16.msra.mxu0 0
      %1052 = vmatpush.bf16.msra.mxu0 %v1028
      %1053 = vmatpush.bf16.msra.mxu0 %v1027
      %1054 = vmatmul.bf16.gmra.mxu0 %v1032
      %v1055 = vpop.f32.mrf.mxu0
      %v1056 = vadd.f32 0.0, %v1055
      %v1057 = vpop.f32.mrf.mxu0
      %v1058 = vadd.f32 0.0, %v1057
      %1059 = vmatmul.bf16.gmra.mxu0 %v1035
      %v1060 = vpop.f32.mrf.mxu0
      %v1061 = vadd.f32 0.0, %v1060
      %v1062 = vpop.f32.mrf.mxu0
      %v1063 = vadd.f32 0.0, %v1062
      %1064 = vmatmul.bf16.gmra.mxu0 %v1038
      %v1065 = vpop.f32.mrf.mxu0
      %v1066 = vadd.f32 0.0, %v1065
      %v1067 = vpop.f32.mrf.mxu0
      %v1068 = vadd.f32 0.0, %v1067
      %1069 = vmatmul.bf16.gmra.mxu0 %v1041
      %v1070 = vpop.f32.mrf.mxu0
      %v1071 = vadd.f32 0.0, %v1070
      %v1072 = vpop.f32.mrf.mxu0
      %v1073 = vadd.f32 0.0, %v1072
      %1074 = vmatmul.bf16.gmra.mxu0 %v1044
      %v1075 = vpop.f32.mrf.mxu0
      %v1076 = vadd.f32 0.0, %v1075
      %v1077 = vpop.f32.mrf.mxu0
      %v1078 = vadd.f32 0.0, %v1077
      %1079 = vdwg.mxu0
      %v1080 = vld [vmem:[#allocation3] sm:$0xff]
      %v1081 = vld [vmem:[#allocation3 + $0x8] sm:$0xff]
      %v1082 = vld [vmem:[#allocation3 + $0x10] sm:$0xff]
      %v1083 = vld [vmem:[#allocation3 + $0x18] sm:$0xff]
      %v1084 = vld [vmem:[#allocation3 + $0x20] sm:$0xff]
      %v1085 = vld [vmem:[#allocation3 + $0x28] sm:$0xff]
      %v1086 = vld [vmem:[#allocation3 + $0x30] sm:$0xff]
      %v1087 = vld [vmem:[#allocation3 + $0x38] sm:$0xff]
      %v1088 = vld [vmem:[#allocation3 + $0x40] sm:$0xff]
      %v1089 = vld [vmem:[#allocation3 + $0x48] sm:$0xff]
      %v1090 = vadd.f32 %v1080, %v1056
      %v1091 = vadd.f32 %v1081, %v1058
      %v1092 = vadd.f32 %v1082, %v1061
      %v1093 = vadd.f32 %v1083, %v1063
      %v1094 = vadd.f32 %v1084, %v1066
      %v1095 = vadd.f32 %v1085, %v1068
      %v1096 = vadd.f32 %v1086, %v1071
      %v1097 = vadd.f32 %v1087, %v1073
      %v1098 = vadd.f32 %v1088, %v1076
      %v1099 = vadd.f32 %v1089, %v1078
      %1100 = vst.msk [vmem:[#allocation3] sm:$0xff] %vm626, %v1090
      %1101 = vst.msk [vmem:[#allocation3 + $0x8] sm:$0xff] %vm626, %v1091
      %1102 = vst.msk [vmem:[#allocation3 + $0x10] sm:$0xff] %vm626, %v1092
      %1103 = vst.msk [vmem:[#allocation3 + $0x18] sm:$0xff] %vm626, %v1093
      %1104 = vst.msk [vmem:[#allocation3 + $0x20] sm:$0xff] %vm626, %v1094
      %1105 = vst.msk [vmem:[#allocation3 + $0x28] sm:$0xff] %vm626, %v1095
      %1106 = vst.msk [vmem:[#allocation3 + $0x30] sm:$0xff] %vm626, %v1096
      %1107 = vst.msk [vmem:[#allocation3 + $0x38] sm:$0xff] %vm626, %v1097
      %1108 = vst.msk [vmem:[#allocation3 + $0x40] sm:$0xff] %vm626, %v1098
      %1109 = vst.msk [vmem:[#allocation3 + $0x48] sm:$0xff] %vm626, %v1099
      %v1110 = vld [vmem:[#allocation2 + $0x4] sm:$0xe]
      %v1111 = vld [vmem:[#allocation2 + $0x8] sm:$0xf]
      %v1112 = vld [vmem:[#allocation2 + $0xc] sm:$0xf]
      %v1113 = vld [vmem:[#allocation2 + $0x10] sm:$0xf]
      %v1114 = vld [vmem:[#allocation2 + $0x14] sm:$0xf]
      %v1115 = vld [vmem:[#allocation2 + $0x18] sm:$0xf]
      %v1116 = vld [vmem:[#allocation2 + $0x1c] sm:$0xf]
      %v1117 = vld [vmem:[#allocation2 + $0x20] sm:$0xf]
      %v1118 = vld [vmem:[#allocation2 + $0x24] sm:$0xf]
      %v1119 = vld [vmem:[#allocation2 + $0x28] sm:$0xf]
      %v1120 = vld [vmem:[#allocation2 + $0x2c] sm:$0x3]
      %s1121 = scalar_lea.vmem %s2, 64
      %v1122 = vld [vmem:[%s1121] sm:$0xf]
      %v1123 = vld [vmem:[%s1121 + $0x4] sm:$0xf]
      %v1124 = vld [vmem:[%s1121 + $0x8] sm:$0xf]
      %v1125 = vld [vmem:[%s1121 + $0xc] sm:$0xf]
      %v1137 = vunpack.c.l.b16 %v1110
      %v1138 = vunpack.c.l.b16 %v1111
      %v1139 = vunpack.c.l.b16 %v1112
      %v1140 = vunpack.c.l.b16 %v1113
      %v1141 = vunpack.c.l.b16 %v1114
      %v1142 = vunpack.c.l.b16 %v1115
      %v1143 = vunpack.c.l.b16 %v1116
      %v1144 = vunpack.c.l.b16 %v1117
      %v1145 = vunpack.c.l.b16 %v1118
      %v1146 = vunpack.c.l.b16 %v1119
      %v1147 = vunpack.c.l.b16 %v1120
      %v1148 = vpack.c.b16 %v1138, %v1137
      %v1149 = vpack.c.b16 %v1140, %v1139
      %v1150 = vpack.c.b16 %v1142, %v1141
      %v1151 = vpack.c.b16 %v1144, %v1143
      %v1152 = vpack.c.b16 %v1146, %v1145
      %v1153 = vpack.c.b16 %v1147, %v1147
      %vm1154 = vsmask.f32 6400
      %v1156 = vshrl.u32 %v1148, 16
      %v1158 = vrot.slane %v1156, 1
      %v1159 = vshll.u32 %v1148, 16
      %v1161 = vrot.slane %v1159, 2
      %v1162 = vor.u32 %v1158, %v1161
      %v1164 = vshrl.u32 %v1149, 16
      %v1166 = vrot.slane %v1164, 1
      %v1167 = vshll.u32 %v1149, 16
      %v1169 = vrot.slane %v1167, 2
      %v1170 = vor.u32 %v1166, %v1169
      %v1171 = vsel %vm1154, %v1162, %v1170
      %v1173 = vshrl.u32 %v1150, 16
      %v1175 = vrot.slane %v1173, 1
      %v1176 = vshll.u32 %v1150, 16
      %v1178 = vrot.slane %v1176, 2
      %v1179 = vor.u32 %v1175, %v1178
      %v1180 = vsel %vm1154, %v1170, %v1179
      %v1182 = vshrl.u32 %v1151, 16
      %v1184 = vrot.slane %v1182, 1
      %v1185 = vshll.u32 %v1151, 16
      %v1187 = vrot.slane %v1185, 2
      %v1188 = vor.u32 %v1184, %v1187
      %v1189 = vsel %vm1154, %v1179, %v1188
      %v1191 = vshrl.u32 %v1152, 16
      %v1193 = vrot.slane %v1191, 1
      %v1194 = vshll.u32 %v1152, 16
      %v1196 = vrot.slane %v1194, 2
      %v1197 = vor.u32 %v1193, %v1196
      %v1198 = vsel %vm1154, %v1188, %v1197
      %v1200 = vshrl.u32 %v1153, 16
      %v1202 = vrot.slane %v1200, 1
      %v1203 = vshll.u32 %v1153, 16
      %v1205 = vrot.slane %v1203, 2
      %v1206 = vor.u32 %v1202, %v1205
      %v1207 = vsel %vm1154, %v1197, %v1206
      %v1212 = vunpack.c.l.b16 %v1122
      %v1213 = vunpack.c.l.b16 %v1123
      %v1214 = vunpack.c.l.b16 %v1124
      %v1215 = vunpack.c.l.b16 %v1125
      %v1216 = vpack.c.b16 %v1213, %v1212
      %v1217 = vpack.c.b16 %v1215, %v1214
      %v1221 = vsel %vm576, %v1171, 0
      %v1224 = vsel %vm576, %v1180, 0
      %v1227 = vsel %vm576, %v1189, 0
      %v1230 = vsel %vm576, %v1198, 0
      %v1233 = vsel %vm576, %v1207, 0
      %1235 = vmatpush.bf16.msra.mxu0 0
      %1236 = vmatpush.bf16.msra.mxu0 0
      %1237 = vmatpush.bf16.msra.mxu0 0
      %1238 = vmatpush.bf16.msra.mxu0 0
      %1239 = vmatpush.bf16.msra.mxu0 0
      %1240 = vmatpush.bf16.msra.mxu0 0
      %1241 = vmatpush.bf16.msra.mxu0 %v1217
      %1242 = vmatpush.bf16.msra.mxu0 %v1216
      %1243 = vmatmul.bf16.gmra.mxu0 %v1221
      %v1244 = vpop.f32.mrf.mxu0
      %v1245 = vadd.f32 0.0, %v1244
      %v1246 = vpop.f32.mrf.mxu0
      %v1247 = vadd.f32 0.0, %v1246
      %1248 = vmatmul.bf16.gmra.mxu0 %v1224
      %v1249 = vpop.f32.mrf.mxu0
      %v1250 = vadd.f32 0.0, %v1249
      %v1251 = vpop.f32.mrf.mxu0
      %v1252 = vadd.f32 0.0, %v1251
      %1253 = vmatmul.bf16.gmra.mxu0 %v1227
      %v1254 = vpop.f32.mrf.mxu0
      %v1255 = vadd.f32 0.0, %v1254
      %v1256 = vpop.f32.mrf.mxu0
      %v1257 = vadd.f32 0.0, %v1256
      %1258 = vmatmul.bf16.gmra.mxu0 %v1230
      %v1259 = vpop.f32.mrf.mxu0
      %v1260 = vadd.f32 0.0, %v1259
      %v1261 = vpop.f32.mrf.mxu0
      %v1262 = vadd.f32 0.0, %v1261
      %1263 = vmatmul.bf16.gmra.mxu0 %v1233
      %v1264 = vpop.f32.mrf.mxu0
      %v1265 = vadd.f32 0.0, %v1264
      %v1266 = vpop.f32.mrf.mxu0
      %v1267 = vadd.f32 0.0, %v1266
      %1268 = vdwg.mxu0
      %v1269 = vld [vmem:[#allocation3] sm:$0xff]
      %v1270 = vld [vmem:[#allocation3 + $0x8] sm:$0xff]
      %v1271 = vld [vmem:[#allocation3 + $0x10] sm:$0xff]
      %v1272 = vld [vmem:[#allocation3 + $0x18] sm:$0xff]
      %v1273 = vld [vmem:[#allocation3 + $0x20] sm:$0xff]
      %v1274 = vld [vmem:[#allocation3 + $0x28] sm:$0xff]
      %v1275 = vld [vmem:[#allocation3 + $0x30] sm:$0xff]
      %v1276 = vld [vmem:[#allocation3 + $0x38] sm:$0xff]
      %v1277 = vld [vmem:[#allocation3 + $0x40] sm:$0xff]
      %v1278 = vld [vmem:[#allocation3 + $0x48] sm:$0xff]
      %v1279 = vadd.f32 %v1269, %v1245
      %v1280 = vadd.f32 %v1270, %v1247
      %v1281 = vadd.f32 %v1271, %v1250
      %v1282 = vadd.f32 %v1272, %v1252
      %v1283 = vadd.f32 %v1273, %v1255
      %v1284 = vadd.f32 %v1274, %v1257
      %v1285 = vadd.f32 %v1275, %v1260
      %v1286 = vadd.f32 %v1276, %v1262
      %v1287 = vadd.f32 %v1277, %v1265
      %v1288 = vadd.f32 %v1278, %v1267
      %1289 = vst.msk [vmem:[#allocation3] sm:$0xff] %vm626, %v1279
      %1290 = vst.msk [vmem:[#allocation3 + $0x8] sm:$0xff] %vm626, %v1280
      %1291 = vst.msk [vmem:[#allocation3 + $0x10] sm:$0xff] %vm626, %v1281
      %1292 = vst.msk [vmem:[#allocation3 + $0x18] sm:$0xff] %vm626, %v1282
      %1293 = vst.msk [vmem:[#allocation3 + $0x20] sm:$0xff] %vm626, %v1283
      %1294 = vst.msk [vmem:[#allocation3 + $0x28] sm:$0xff] %vm626, %v1284
      %1295 = vst.msk [vmem:[#allocation3 + $0x30] sm:$0xff] %vm626, %v1285
      %1296 = vst.msk [vmem:[#allocation3 + $0x38] sm:$0xff] %vm626, %v1286
      %1297 = vst.msk [vmem:[#allocation3 + $0x40] sm:$0xff] %vm626, %v1287
      %1298 = vst.msk [vmem:[#allocation3 + $0x48] sm:$0xff] %vm626, %v1288
      %v1299 = vld [vmem:[#allocation2 + $0x4] sm:$0xc]
      %v1300 = vld [vmem:[#allocation2 + $0x8] sm:$0xf]
      %v1301 = vld [vmem:[#allocation2 + $0xc] sm:$0xf]
      %v1302 = vld [vmem:[#allocation2 + $0x10] sm:$0xf]
      %v1303 = vld [vmem:[#allocation2 + $0x14] sm:$0xf]
      %v1304 = vld [vmem:[#allocation2 + $0x18] sm:$0xf]
      %v1305 = vld [vmem:[#allocation2 + $0x1c] sm:$0xf]
      %v1306 = vld [vmem:[#allocation2 + $0x20] sm:$0xf]
      %v1307 = vld [vmem:[#allocation2 + $0x24] sm:$0xf]
      %v1308 = vld [vmem:[#allocation2 + $0x28] sm:$0xf]
      %v1309 = vld [vmem:[#allocation2 + $0x2c] sm:$0x3]
      %s1310 = scalar_lea.vmem %s2, 80
      %v1311 = vld [vmem:[%s1310] sm:$0xf]
      %v1312 = vld [vmem:[%s1310 + $0x4] sm:$0xf]
      %v1313 = vld [vmem:[%s1310 + $0x8] sm:$0xf]
      %v1314 = vld [vmem:[%s1310 + $0xc] sm:$0xf]
      %v1326 = vunpack.c.l.b16 %v1299
      %v1327 = vunpack.c.l.b16 %v1300
      %v1328 = vunpack.c.l.b16 %v1301
      %v1329 = vunpack.c.l.b16 %v1302
      %v1330 = vunpack.c.l.b16 %v1303
      %v1331 = vunpack.c.l.b16 %v1304
      %v1332 = vunpack.c.l.b16 %v1305
      %v1333 = vunpack.c.l.b16 %v1306
      %v1334 = vunpack.c.l.b16 %v1307
      %v1335 = vunpack.c.l.b16 %v1308
      %v1336 = vunpack.c.l.b16 %v1309
      %v1337 = vpack.c.b16 %v1327, %v1326
      %v1338 = vpack.c.b16 %v1329, %v1328
      %v1339 = vpack.c.b16 %v1331, %v1330
      %v1340 = vpack.c.b16 %v1333, %v1332
      %v1341 = vpack.c.b16 %v1335, %v1334
      %v1342 = vpack.c.b16 %v1336, %v1336
      %vm1343 = vcmask 1045504
      %v1344 = vrot.slane %v1337, 2
      %v1345 = vrot.slane %v1338, 2
      %v1346 = vsel %vm1343, %v1344, %v1345
      %v1347 = vrot.slane %v1339, 2
      %v1348 = vsel %vm1343, %v1345, %v1347
      %v1349 = vrot.slane %v1340, 2
      %v1350 = vsel %vm1343, %v1347, %v1349
      %v1351 = vrot.slane %v1341, 2
      %v1352 = vsel %vm1343, %v1349, %v1351
      %v1353 = vrot.slane %v1342, 2
      %v1354 = vsel %vm1343, %v1351, %v1353
      %v1359 = vunpack.c.l.b16 %v1311
      %v1360 = vunpack.c.l.b16 %v1312
      %v1361 = vunpack.c.l.b16 %v1313
      %v1362 = vunpack.c.l.b16 %v1314
      %v1363 = vpack.c.b16 %v1360, %v1359
      %v1364 = vpack.c.b16 %v1362, %v1361
      %v1368 = vsel %vm576, %v1346, 0
      %v1371 = vsel %vm576, %v1348, 0
      %v1374 = vsel %vm576, %v1350, 0
      %v1377 = vsel %vm576, %v1352, 0
      %v1380 = vsel %vm576, %v1354, 0
      %1382 = vmatpush.bf16.msra.mxu0 0
      %1383 = vmatpush.bf16.msra.mxu0 0
      %1384 = vmatpush.bf16.msra.mxu0 0
      %1385 = vmatpush.bf16.msra.mxu0 0
      %1386 = vmatpush.bf16.msra.mxu0 0
      %1387 = vmatpush.bf16.msra.mxu0 0
      %1388 = vmatpush.bf16.msra.mxu0 %v1364
      %1389 = vmatpush.bf16.msra.mxu0 %v1363
      %1390 = vmatmul.bf16.gmra.mxu0 %v1368
      %v1391 = vpop.f32.mrf.mxu0
      %v1392 = vadd.f32 0.0, %v1391
      %v1393 = vpop.f32.mrf.mxu0
      %v1394 = vadd.f32 0.0, %v1393
      %1395 = vmatmul.bf16.gmra.mxu0 %v1371
      %v1396 = vpop.f32.mrf.mxu0
      %v1397 = vadd.f32 0.0, %v1396
      %v1398 = vpop.f32.mrf.mxu0
      %v1399 = vadd.f32 0.0, %v1398
      %1400 = vmatmul.bf16.gmra.mxu0 %v1374
      %v1401 = vpop.f32.mrf.mxu0
      %v1402 = vadd.f32 0.0, %v1401
      %v1403 = vpop.f32.mrf.mxu0
      %v1404 = vadd.f32 0.0, %v1403
      %1405 = vmatmul.bf16.gmra.mxu0 %v1377
      %v1406 = vpop.f32.mrf.mxu0
      %v1407 = vadd.f32 0.0, %v1406
      %v1408 = vpop.f32.mrf.mxu0
      %v1409 = vadd.f32 0.0, %v1408
      %1410 = vmatmul.bf16.gmra.mxu0 %v1380
      %v1411 = vpop.f32.mrf.mxu0
      %v1412 = vadd.f32 0.0, %v1411
      %v1413 = vpop.f32.mrf.mxu0
      %v1414 = vadd.f32 0.0, %v1413
      %1415 = vdwg.mxu0
      %v1416 = vld [vmem:[#allocation3] sm:$0xff]
      %v1417 = vld [vmem:[#allocation3 + $0x8] sm:$0xff]
      %v1418 = vld [vmem:[#allocation3 + $0x10] sm:$0xff]
      %v1419 = vld [vmem:[#allocation3 + $0x18] sm:$0xff]
      %v1420 = vld [vmem:[#allocation3 + $0x20] sm:$0xff]
      %v1421 = vld [vmem:[#allocation3 + $0x28] sm:$0xff]
      %v1422 = vld [vmem:[#allocation3 + $0x30] sm:$0xff]
      %v1423 = vld [vmem:[#allocation3 + $0x38] sm:$0xff]
      %v1424 = vld [vmem:[#allocation3 + $0x40] sm:$0xff]
      %v1425 = vld [vmem:[#allocation3 + $0x48] sm:$0xff]
      %v1426 = vadd.f32 %v1416, %v1392
      %v1427 = vadd.f32 %v1417, %v1394
      %v1428 = vadd.f32 %v1418, %v1397
      %v1429 = vadd.f32 %v1419, %v1399
      %v1430 = vadd.f32 %v1420, %v1402
      %v1431 = vadd.f32 %v1421, %v1404
      %v1432 = vadd.f32 %v1422, %v1407
      %v1433 = vadd.f32 %v1423, %v1409
      %v1434 = vadd.f32 %v1424, %v1412
      %v1435 = vadd.f32 %v1425, %v1414
      %1436 = vst.msk [vmem:[#allocation3] sm:$0xff] %vm626, %v1426
      %1437 = vst.msk [vmem:[#allocation3 + $0x8] sm:$0xff] %vm626, %v1427
      %1438 = vst.msk [vmem:[#allocation3 + $0x10] sm:$0xff] %vm626, %v1428
      %1439 = vst.msk [vmem:[#allocation3 + $0x18] sm:$0xff] %vm626, %v1429
      %1440 = vst.msk [vmem:[#allocation3 + $0x20] sm:$0xff] %vm626, %v1430
      %1441 = vst.msk [vmem:[#allocation3 + $0x28] sm:$0xff] %vm626, %v1431
      %1442 = vst.msk [vmem:[#allocation3 + $0x30] sm:$0xff] %vm626, %v1432
      %1443 = vst.msk [vmem:[#allocation3 + $0x38] sm:$0xff] %vm626, %v1433
      %1444 = vst.msk [vmem:[#allocation3 + $0x40] sm:$0xff] %vm626, %v1434
      %1445 = vst.msk [vmem:[#allocation3 + $0x48] sm:$0xff] %vm626, %v1435
      %v1446 = vld [vmem:[#allocation2 + $0x8] sm:$0xc]
      %v1447 = vld [vmem:[#allocation2 + $0xc] sm:$0xf]
      %v1448 = vld [vmem:[#allocation2 + $0x10] sm:$0xf]
      %v1449 = vld [vmem:[#allocation2 + $0x14] sm:$0xf]
      %v1450 = vld [vmem:[#allocation2 + $0x18] sm:$0xf]
      %v1451 = vld [vmem:[#allocation2 + $0x1c] sm:$0xf]
      %v1452 = vld [vmem:[#allocation2 + $0x20] sm:$0xf]
      %v1453 = vld [vmem:[#allocation2 + $0x24] sm:$0xf]
      %v1454 = vld [vmem:[#allocation2 + $0x28] sm:$0xf]
      %v1455 = vld [vmem:[#allocation2 + $0x2c] sm:$0xf]
      %v1456 = vld [vmem:[#allocation2 + $0x30] sm:$0x3]
      %s1457 = scalar_lea.vmem %s2, 96
      %v1458 = vld [vmem:[%s1457] sm:$0xf]
      %v1459 = vld [vmem:[%s1457 + $0x4] sm:$0xf]
      %v1460 = vld [vmem:[%s1457 + $0x8] sm:$0xf]
      %v1461 = vld [vmem:[%s1457 + $0xc] sm:$0xf]
      %v1473 = vunpack.c.l.b16 %v1446
      %v1474 = vunpack.c.l.b16 %v1447
      %v1475 = vunpack.c.l.b16 %v1448
      %v1476 = vunpack.c.l.b16 %v1449
      %v1477 = vunpack.c.l.b16 %v1450
      %v1478 = vunpack.c.l.b16 %v1451
      %v1479 = vunpack.c.l.b16 %v1452
      %v1480 = vunpack.c.l.b16 %v1453
      %v1481 = vunpack.c.l.b16 %v1454
      %v1482 = vunpack.c.l.b16 %v1455
      %v1483 = vunpack.c.l.b16 %v1456
      %v1484 = vpack.c.b16 %v1474, %v1473
      %v1485 = vpack.c.b16 %v1476, %v1475
      %v1486 = vpack.c.b16 %v1478, %v1477
      %v1487 = vpack.c.b16 %v1480, %v1479
      %v1488 = vpack.c.b16 %v1482, %v1481
      %v1489 = vpack.c.b16 %v1483, %v1483
      %v1490 = vrot.slane %v1484, 2
      %v1491 = vrot.slane %v1485, 2
      %v1492 = vsel %vm1343, %v1490, %v1491
      %v1493 = vrot.slane %v1486, 2
      %v1494 = vsel %vm1343, %v1491, %v1493
      %v1495 = vrot.slane %v1487, 2
      %v1496 = vsel %vm1343, %v1493, %v1495
      %v1497 = vrot.slane %v1488, 2
      %v1498 = vsel %vm1343, %v1495, %v1497
      %v1499 = vrot.slane %v1489, 2
      %v1500 = vsel %vm1343, %v1497, %v1499
      %v1505 = vunpack.c.l.b16 %v1458
      %v1506 = vunpack.c.l.b16 %v1459
      %v1507 = vunpack.c.l.b16 %v1460
      %v1508 = vunpack.c.l.b16 %v1461
      %v1509 = vpack.c.b16 %v1506, %v1505
      %v1510 = vpack.c.b16 %v1508, %v1507
      %v1514 = vsel %vm576, %v1492, 0
      %v1517 = vsel %vm576, %v1494, 0
      %v1520 = vsel %vm576, %v1496, 0
      %v1523 = vsel %vm576, %v1498, 0
      %v1526 = vsel %vm576, %v1500, 0
      %1528 = vmatpush.bf16.msra.mxu0 0
      %1529 = vmatpush.bf16.msra.mxu0 0
      %1530 = vmatpush.bf16.msra.mxu0 0
      %1531 = vmatpush.bf16.msra.mxu0 0
      %1532 = vmatpush.bf16.msra.mxu0 0
      %1533 = vmatpush.bf16.msra.mxu0 0
      %1534 = vmatpush.bf16.msra.mxu0 %v1510
      %1535 = vmatpush.bf16.msra.mxu0 %v1509
      %1536 = vmatmul.bf16.gmra.mxu0 %v1514
      %v1537 = vpop.f32.mrf.mxu0
      %v1538 = vadd.f32 0.0, %v1537
      %v1539 = vpop.f32.mrf.mxu0
      %v1540 = vadd.f32 0.0, %v1539
      %1541 = vmatmul.bf16.gmra.mxu0 %v1517
      %v1542 = vpop.f32.mrf.mxu0
      %v1543 = vadd.f32 0.0, %v1542
      %v1544 = vpop.f32.mrf.mxu0
      %v1545 = vadd.f32 0.0, %v1544
      %1546 = vmatmul.bf16.gmra.mxu0 %v1520
      %v1547 = vpop.f32.mrf.mxu0
      %v1548 = vadd.f32 0.0, %v1547
      %v1549 = vpop.f32.mrf.mxu0
      %v1550 = vadd.f32 0.0, %v1549
      %1551 = vmatmul.bf16.gmra.mxu0 %v1523
      %v1552 = vpop.f32.mrf.mxu0
      %v1553 = vadd.f32 0.0, %v1552
      %v1554 = vpop.f32.mrf.mxu0
      %v1555 = vadd.f32 0.0, %v1554
      %1556 = vmatmul.bf16.gmra.mxu0 %v1526
      %v1557 = vpop.f32.mrf.mxu0
      %v1558 = vadd.f32 0.0, %v1557
      %v1559 = vpop.f32.mrf.mxu0
      %v1560 = vadd.f32 0.0, %v1559
      %1561 = vdwg.mxu0
      %v1562 = vld [vmem:[#allocation3] sm:$0xff]
      %v1563 = vld [vmem:[#allocation3 + $0x8] sm:$0xff]
      %v1564 = vld [vmem:[#allocation3 + $0x10] sm:$0xff]
      %v1565 = vld [vmem:[#allocation3 + $0x18] sm:$0xff]
      %v1566 = vld [vmem:[#allocation3 + $0x20] sm:$0xff]
      %v1567 = vld [vmem:[#allocation3 + $0x28] sm:$0xff]
      %v1568 = vld [vmem:[#allocation3 + $0x30] sm:$0xff]
      %v1569 = vld [vmem:[#allocation3 + $0x38] sm:$0xff]
      %v1570 = vld [vmem:[#allocation3 + $0x40] sm:$0xff]
      %v1571 = vld [vmem:[#allocation3 + $0x48] sm:$0xff]
      %v1572 = vadd.f32 %v1562, %v1538
      %v1573 = vadd.f32 %v1563, %v1540
      %v1574 = vadd.f32 %v1564, %v1543
      %v1575 = vadd.f32 %v1565, %v1545
      %v1576 = vadd.f32 %v1566, %v1548
      %v1577 = vadd.f32 %v1567, %v1550
      %v1578 = vadd.f32 %v1568, %v1553
      %v1579 = vadd.f32 %v1569, %v1555
      %v1580 = vadd.f32 %v1570, %v1558
      %v1581 = vadd.f32 %v1571, %v1560
      %1582 = vst.msk [vmem:[#allocation3] sm:$0xff] %vm626, %v1572
      %1583 = vst.msk [vmem:[#allocation3 + $0x8] sm:$0xff] %vm626, %v1573
      %1584 = vst.msk [vmem:[#allocation3 + $0x10] sm:$0xff] %vm626, %v1574
      %1585 = vst.msk [vmem:[#allocation3 + $0x18] sm:$0xff] %vm626, %v1575
      %1586 = vst.msk [vmem:[#allocation3 + $0x20] sm:$0xff] %vm626, %v1576
      %1587 = vst.msk [vmem:[#allocation3 + $0x28] sm:$0xff] %vm626, %v1577
      %1588 = vst.msk [vmem:[#allocation3 + $0x30] sm:$0xff] %vm626, %v1578
      %1589 = vst.msk [vmem:[#allocation3 + $0x38] sm:$0xff] %vm626, %v1579
      %1590 = vst.msk [vmem:[#allocation3 + $0x40] sm:$0xff] %vm626, %v1580
      %1591 = vst.msk [vmem:[#allocation3 + $0x48] sm:$0xff] %vm626, %v1581
      %v1592 = vld [vmem:[#allocation2 + $0x8] sm:$0xc]
      %v1593 = vld [vmem:[#allocation2 + $0xc] sm:$0xf]
      %v1594 = vld [vmem:[#allocation2 + $0x10] sm:$0xf]
      %v1595 = vld [vmem:[#allocation2 + $0x14] sm:$0xf]
      %v1596 = vld [vmem:[#allocation2 + $0x18] sm:$0xf]
      %v1597 = vld [vmem:[#allocation2 + $0x1c] sm:$0xf]
      %v1598 = vld [vmem:[#allocation2 + $0x20] sm:$0xf]
      %v1599 = vld [vmem:[#allocation2 + $0x24] sm:$0xf]
      %v1600 = vld [vmem:[#allocation2 + $0x28] sm:$0xf]
      %v1601 = vld [vmem:[#allocation2 + $0x2c] sm:$0xf]
      %v1602 = vld [vmem:[#allocation2 + $0x30] sm:$0x7]
      %s1603 = scalar_lea.vmem %s2, 112
      %v1604 = vld [vmem:[%s1603] sm:$0xf]
      %v1605 = vld [vmem:[%s1603 + $0x4] sm:$0xf]
      %v1606 = vld [vmem:[%s1603 + $0x8] sm:$0xf]
      %v1607 = vld [vmem:[%s1603 + $0xc] sm:$0xf]
      %v1619 = vunpack.c.l.b16 %v1592
      %v1620 = vunpack.c.l.b16 %v1593
      %v1621 = vunpack.c.l.b16 %v1594
      %v1622 = vunpack.c.l.b16 %v1595
      %v1623 = vunpack.c.l.b16 %v1596
      %v1624 = vunpack.c.l.b16 %v1597
      %v1625 = vunpack.c.l.b16 %v1598
      %v1626 = vunpack.c.l.b16 %v1599
      %v1627 = vunpack.c.l.b16 %v1600
      %v1628 = vunpack.c.l.b16 %v1601
      %v1629 = vunpack.c.l.b16 %v1602
      %v1630 = vpack.c.b16 %v1620, %v1619
      %v1631 = vpack.c.b16 %v1622, %v1621
      %v1632 = vpack.c.b16 %v1624, %v1623
      %v1633 = vpack.c.b16 %v1626, %v1625
      %v1634 = vpack.c.b16 %v1628, %v1627
      %v1635 = vpack.c.b16 %v1629, %v1629
      %vm1636 = vsmask.f32 5376
      %v1638 = vshrl.u32 %v1630, 16
      %v1640 = vrot.slane %v1638, 2
      %v1641 = vshll.u32 %v1630, 16
      %v1643 = vrot.slane %v1641, 3
      %v1644 = vor.u32 %v1640, %v1643
      %v1646 = vshrl.u32 %v1631, 16
      %v1648 = vrot.slane %v1646, 2
      %v1649 = vshll.u32 %v1631, 16
      %v1651 = vrot.slane %v1649, 3
      %v1652 = vor.u32 %v1648, %v1651
      %v1653 = vsel %vm1636, %v1644, %v1652
      %v1655 = vshrl.u32 %v1632, 16
      %v1657 = vrot.slane %v1655, 2
      %v1658 = vshll.u32 %v1632, 16
      %v1660 = vrot.slane %v1658, 3
      %v1661 = vor.u32 %v1657, %v1660
      %v1662 = vsel %vm1636, %v1652, %v1661
      %v1664 = vshrl.u32 %v1633, 16
      %v1666 = vrot.slane %v1664, 2
      %v1667 = vshll.u32 %v1633, 16
      %v1669 = vrot.slane %v1667, 3
      %v1670 = vor.u32 %v1666, %v1669
      %v1671 = vsel %vm1636, %v1661, %v1670
      %v1673 = vshrl.u32 %v1634, 16
      %v1675 = vrot.slane %v1673, 2
      %v1676 = vshll.u32 %v1634, 16
      %v1678 = vrot.slane %v1676, 3
      %v1679 = vor.u32 %v1675, %v1678
      %v1680 = vsel %vm1636, %v1670, %v1679
      %v1682 = vshrl.u32 %v1635, 16
      %v1684 = vrot.slane %v1682, 2
      %v1685 = vshll.u32 %v1635, 16
      %v1687 = vrot.slane %v1685, 3
      %v1688 = vor.u32 %v1684, %v1687
      %v1689 = vsel %vm1636, %v1679, %v1688
      %v1694 = vunpack.c.l.b16 %v1604
      %v1695 = vunpack.c.l.b16 %v1605
      %v1696 = vunpack.c.l.b16 %v1606
      %v1697 = vunpack.c.l.b16 %v1607
      %v1698 = vpack.c.b16 %v1695, %v1694
      %v1699 = vpack.c.b16 %v1697, %v1696
      %v1703 = vsel %vm576, %v1653, 0
      %v1706 = vsel %vm576, %v1662, 0
      %v1709 = vsel %vm576, %v1671, 0
      %v1712 = vsel %vm576, %v1680, 0
      %v1715 = vsel %vm576, %v1689, 0
      %1717 = vmatpush.bf16.msra.mxu0 0
      %1718 = vmatpush.bf16.msra.mxu0 0
      %1719 = vmatpush.bf16.msra.mxu0 0
      %1720 = vmatpush.bf16.msra.mxu0 0
      %1721 = vmatpush.bf16.msra.mxu0 0
      %1722 = vmatpush.bf16.msra.mxu0 0
      %1723 = vmatpush.bf16.msra.mxu0 %v1699
      %1724 = vmatpush.bf16.msra.mxu0 %v1698
      %1725 = vmatmul.bf16.gmra.mxu0 %v1703
      %v1726 = vpop.f32.mrf.mxu0
      %v1727 = vadd.f32 0.0, %v1726
      %v1728 = vpop.f32.mrf.mxu0
      %v1729 = vadd.f32 0.0, %v1728
      %1730 = vmatmul.bf16.gmra.mxu0 %v1706
      %v1731 = vpop.f32.mrf.mxu0
      %v1732 = vadd.f32 0.0, %v1731
      %v1733 = vpop.f32.mrf.mxu0
      %v1734 = vadd.f32 0.0, %v1733
      %1735 = vmatmul.bf16.gmra.mxu0 %v1709
      %v1736 = vpop.f32.mrf.mxu0
      %v1737 = vadd.f32 0.0, %v1736
      %v1738 = vpop.f32.mrf.mxu0
      %v1739 = vadd.f32 0.0, %v1738
      %1740 = vmatmul.bf16.gmra.mxu0 %v1712
      %v1741 = vpop.f32.mrf.mxu0
      %v1742 = vadd.f32 0.0, %v1741
      %v1743 = vpop.f32.mrf.mxu0
      %v1744 = vadd.f32 0.0, %v1743
      %1745 = vmatmul.bf16.gmra.mxu0 %v1715
      %v1746 = vpop.f32.mrf.mxu0
      %v1747 = vadd.f32 0.0, %v1746
      %v1748 = vpop.f32.mrf.mxu0
      %v1749 = vadd.f32 0.0, %v1748
      %1750 = vdwg.mxu0
      %v1751 = vld [vmem:[#allocation3] sm:$0xff]
      %v1752 = vld [vmem:[#allocation3 + $0x8] sm:$0xff]
      %v1753 = vld [vmem:[#allocation3 + $0x10] sm:$0xff]
      %v1754 = vld [vmem:[#allocation3 + $0x18] sm:$0xff]
      %v1755 = vld [vmem:[#allocation3 + $0x20] sm:$0xff]
      %v1756 = vld [vmem:[#allocation3 + $0x28] sm:$0xff]
      %v1757 = vld [vmem:[#allocation3 + $0x30] sm:$0xff]
      %v1758 = vld [vmem:[#allocation3 + $0x38] sm:$0xff]
      %v1759 = vld [vmem:[#allocation3 + $0x40] sm:$0xff]
      %v1760 = vld [vmem:[#allocation3 + $0x48] sm:$0xff]
      %v1761 = vadd.f32 %v1751, %v1727
      %v1762 = vadd.f32 %v1752, %v1729
      %v1763 = vadd.f32 %v1753, %v1732
      %v1764 = vadd.f32 %v1754, %v1734
      %v1765 = vadd.f32 %v1755, %v1737
      %v1766 = vadd.f32 %v1756, %v1739
      %v1767 = vadd.f32 %v1757, %v1742
      %v1768 = vadd.f32 %v1758, %v1744
      %v1769 = vadd.f32 %v1759, %v1747
      %v1770 = vadd.f32 %v1760, %v1749
      %1771 = vst.msk [vmem:[#allocation3] sm:$0xff] %vm626, %v1761
      %1772 = vst.msk [vmem:[#allocation3 + $0x8] sm:$0xff] %vm626, %v1762
      %1773 = vst.msk [vmem:[#allocation3 + $0x10] sm:$0xff] %vm626, %v1763
      %1774 = vst.msk [vmem:[#allocation3 + $0x18] sm:$0xff] %vm626, %v1764
      %1775 = vst.msk [vmem:[#allocation3 + $0x20] sm:$0xff] %vm626, %v1765
      %1776 = vst.msk [vmem:[#allocation3 + $0x28] sm:$0xff] %vm626, %v1766
      %1777 = vst.msk [vmem:[#allocation3 + $0x30] sm:$0xff] %vm626, %v1767
      %1778 = vst.msk [vmem:[#allocation3 + $0x38] sm:$0xff] %vm626, %v1768
      %1779 = vst.msk [vmem:[#allocation3 + $0x40] sm:$0xff] %vm626, %v1769
      %1780 = vst.msk [vmem:[#allocation3 + $0x48] sm:$0xff] %vm626, %v1770
      %v1781 = vld [vmem:[#allocation2 + $0x8] sm:$0x8]
      %v1782 = vld [vmem:[#allocation2 + $0xc] sm:$0xf]
      %v1783 = vld [vmem:[#allocation2 + $0x10] sm:$0xf]
      %v1784 = vld [vmem:[#allocation2 + $0x14] sm:$0xf]
      %v1785 = vld [vmem:[#allocation2 + $0x18] sm:$0xf]
      %v1786 = vld [vmem:[#allocation2 + $0x1c] sm:$0xf]
      %v1787 = vld [vmem:[#allocation2 + $0x20] sm:$0xf]
      %v1788 = vld [vmem:[#allocation2 + $0x24] sm:$0xf]
      %v1789 = vld [vmem:[#allocation2 + $0x28] sm:$0xf]
      %v1790 = vld [vmem:[#allocation2 + $0x2c] sm:$0xf]
      %v1791 = vld [vmem:[#allocation2 + $0x30] sm:$0x7]
      %s1792 = scalar_lea.vmem %s2, 128
      %v1793 = vld [vmem:[%s1792] sm:$0xf]
      %v1794 = vld [vmem:[%s1792 + $0x4] sm:$0xf]
      %v1795 = vld [vmem:[%s1792 + $0x8] sm:$0xf]
      %v1796 = vld [vmem:[%s1792 + $0xc] sm:$0xf]
      %v1808 = vunpack.c.l.b16 %v1781
      %v1809 = vunpack.c.l.b16 %v1782
      %v1810 = vunpack.c.l.b16 %v1783
      %v1811 = vunpack.c.l.b16 %v1784
      %v1812 = vunpack.c.l.b16 %v1785
      %v1813 = vunpack.c.l.b16 %v1786
      %v1814 = vunpack.c.l.b16 %v1787
      %v1815 = vunpack.c.l.b16 %v1788
      %v1816 = vunpack.c.l.b16 %v1789
      %v1817 = vunpack.c.l.b16 %v1790
      %v1818 = vunpack.c.l.b16 %v1791
      %v1819 = vpack.c.b16 %v1809, %v1808
      %v1820 = vpack.c.b16 %v1811, %v1810
      %v1821 = vpack.c.b16 %v1813, %v1812
      %v1822 = vpack.c.b16 %v1815, %v1814
      %v1823 = vpack.c.b16 %v1817, %v1816
      %v1824 = vpack.c.b16 %v1818, %v1818
      %vm1825 = vcmask 1044480
      %v1826 = vrot.slane %v1819, 3
      %v1827 = vrot.slane %v1820, 3
      %v1828 = vsel %vm1825, %v1826, %v1827
      %v1829 = vrot.slane %v1821, 3
      %v1830 = vsel %vm1825, %v1827, %v1829
      %v1831 = vrot.slane %v1822, 3
      %v1832 = vsel %vm1825, %v1829, %v1831
      %v1833 = vrot.slane %v1823, 3
      %v1834 = vsel %vm1825, %v1831, %v1833
      %v1835 = vrot.slane %v1824, 3
      %v1836 = vsel %vm1825, %v1833, %v1835
      %v1841 = vunpack.c.l.b16 %v1793
      %v1842 = vunpack.c.l.b16 %v1794
      %v1843 = vunpack.c.l.b16 %v1795
      %v1844 = vunpack.c.l.b16 %v1796
      %v1845 = vpack.c.b16 %v1842, %v1841
      %v1846 = vpack.c.b16 %v1844, %v1843
      %v1850 = vsel %vm576, %v1828, 0
      %v1853 = vsel %vm576, %v1830, 0
      %v1856 = vsel %vm576, %v1832, 0
      %v1859 = vsel %vm576, %v1834, 0
      %v1862 = vsel %vm576, %v1836, 0
      %1864 = vmatpush.bf16.msra.mxu0 0
      %1865 = vmatpush.bf16.msra.mxu0 0
      %1866 = vmatpush.bf16.msra.mxu0 0
      %1867 = vmatpush.bf16.msra.mxu0 0
      %1868 = vmatpush.bf16.msra.mxu0 0
      %1869 = vmatpush.bf16.msra.mxu0 0
      %1870 = vmatpush.bf16.msra.mxu0 %v1846
      %1871 = vmatpush.bf16.msra.mxu0 %v1845
      %1872 = vmatmul.bf16.gmra.mxu0 %v1850
      %v1873 = vpop.f32.mrf.mxu0
      %v1874 = vadd.f32 0.0, %v1873
      %v1875 = vpop.f32.mrf.mxu0
      %v1876 = vadd.f32 0.0, %v1875
      %1877 = vmatmul.bf16.gmra.mxu0 %v1853
      %v1878 = vpop.f32.mrf.mxu0
      %v1879 = vadd.f32 0.0, %v1878
      %v1880 = vpop.f32.mrf.mxu0
      %v1881 = vadd.f32 0.0, %v1880
      %1882 = vmatmul.bf16.gmra.mxu0 %v1856
      %v1883 = vpop.f32.mrf.mxu0
      %v1884 = vadd.f32 0.0, %v1883
      %v1885 = vpop.f32.mrf.mxu0
      %v1886 = vadd.f32 0.0, %v1885
      %1887 = vmatmul.bf16.gmra.mxu0 %v1859
      %v1888 = vpop.f32.mrf.mxu0
      %v1889 = vadd.f32 0.0, %v1888
      %v1890 = vpop.f32.mrf.mxu0
      %v1891 = vadd.f32 0.0, %v1890
      %1892 = vmatmul.bf16.gmra.mxu0 %v1862
      %v1893 = vpop.f32.mrf.mxu0
      %v1894 = vadd.f32 0.0, %v1893
      %v1895 = vpop.f32.mrf.mxu0
      %v1896 = vadd.f32 0.0, %v1895
      %1897 = vdwg.mxu0
      %v1898 = vld [vmem:[#allocation3] sm:$0xff]
      %v1899 = vld [vmem:[#allocation3 + $0x8] sm:$0xff]
      %v1900 = vld [vmem:[#allocation3 + $0x10] sm:$0xff]
      %v1901 = vld [vmem:[#allocation3 + $0x18] sm:$0xff]
      %v1902 = vld [vmem:[#allocation3 + $0x20] sm:$0xff]
      %v1903 = vld [vmem:[#allocation3 + $0x28] sm:$0xff]
      %v1904 = vld [vmem:[#allocation3 + $0x30] sm:$0xff]
      %v1905 = vld [vmem:[#allocation3 + $0x38] sm:$0xff]
      %v1906 = vld [vmem:[#allocation3 + $0x40] sm:$0xff]
      %v1907 = vld [vmem:[#allocation3 + $0x48] sm:$0xff]
      %v1908 = vadd.f32 %v1898, %v1874
      %v1909 = vadd.f32 %v1899, %v1876
      %v1910 = vadd.f32 %v1900, %v1879
      %v1911 = vadd.f32 %v1901, %v1881
      %v1912 = vadd.f32 %v1902, %v1884
      %v1913 = vadd.f32 %v1903, %v1886
      %v1914 = vadd.f32 %v1904, %v1889
      %v1915 = vadd.f32 %v1905, %v1891
      %v1916 = vadd.f32 %v1906, %v1894
      %v1917 = vadd.f32 %v1907, %v1896
      %1918 = vst.msk [vmem:[#allocation3] sm:$0xff] %vm626, %v1908
      %1919 = vst.msk [vmem:[#allocation3 + $0x8] sm:$0xff] %vm626, %v1909
      %1920 = vst.msk [vmem:[#allocation3 + $0x10] sm:$0xff] %vm626, %v1910
      %1921 = vst.msk [vmem:[#allocation3 + $0x18] sm:$0xff] %vm626, %v1911
      %1922 = vst.msk [vmem:[#allocation3 + $0x20] sm:$0xff] %vm626, %v1912
      %1923 = vst.msk [vmem:[#allocation3 + $0x28] sm:$0xff] %vm626, %v1913
      %1924 = vst.msk [vmem:[#allocation3 + $0x30] sm:$0xff] %vm626, %v1914
      %1925 = vst.msk [vmem:[#allocation3 + $0x38] sm:$0xff] %vm626, %v1915
      %1926 = vst.msk [vmem:[#allocation3 + $0x40] sm:$0xff] %vm626, %v1916
      %1927 = vst.msk [vmem:[#allocation3 + $0x48] sm:$0xff] %vm626, %v1917
      %v1928 = vld [vmem:[#allocation3] sm:$0xff]
      %v1929 = vld [vmem:[#allocation3 + $0x8] sm:$0xff]
      %v1930 = vld [vmem:[#allocation3 + $0x10] sm:$0xff]
      %v1931 = vld [vmem:[#allocation3 + $0x18] sm:$0xff]
      %v1932 = vld [vmem:[#allocation3 + $0x20] sm:$0xff]
      %v1933 = vld [vmem:[#allocation3 + $0x28] sm:$0xff]
      %v1934 = vld [vmem:[#allocation3 + $0x30] sm:$0xff]
      %v1935 = vld [vmem:[#allocation3 + $0x38] sm:$0xff]
      %v1936 = vld [vmem:[#allocation3 + $0x40] sm:$0xff]
      %v1937 = vld [vmem:[#allocation3 + $0x48] sm:$0xff]
      %v1938 = vld [vmem:[%s3] sm:$0x1]
      %v1940 = vperm.slane %v1938, 0
      %v1942 = vadd.f32 %v1928, %v1940
      %v1943 = vadd.f32 %v1929, %v1940
      %v1944 = vadd.f32 %v1930, %v1940
      %v1945 = vadd.f32 %v1931, %v1940
      %v1946 = vadd.f32 %v1932, %v1940
      %v1947 = vadd.f32 %v1933, %v1940
      %v1948 = vadd.f32 %v1934, %v1940
      %v1949 = vadd.f32 %v1935, %v1940
      %v1950 = vadd.f32 %v1936, %v1940
      %v1951 = vadd.f32 %v1937, %v1940
      %v1952 = vld [vmem:[%s6] sm:$0x1]
      %v1953 = vld [vmem:[%s7] sm:$0x1]
      %v1954 = vmul.f32 %v1952, 0.5
      %v1955 = vsub.f32 1.0, %v1954
      %v1957 = vperm.slane %v1955, 0
      %v1959 = vmul.f32 %v1942, %v1957
      %v1960 = vmul.f32 %v1943, %v1957
      %v1961 = vmul.f32 %v1944, %v1957
      %v1962 = vmul.f32 %v1945, %v1957
      %v1963 = vmul.f32 %v1946, %v1957
      %v1964 = vmul.f32 %v1947, %v1957
      %v1965 = vmul.f32 %v1948, %v1957
      %v1966 = vmul.f32 %v1949, %v1957
      %v1967 = vmul.f32 %v1950, %v1957
      %v1968 = vmul.f32 %v1951, %v1957
      %v1969 = vtanh.pop %v1959
      %v1970 = vtanh.pop %v1960
      %v1971 = vtanh.pop %v1961
      %v1972 = vtanh.pop %v1962
      %v1973 = vtanh.pop %v1963
      %v1974 = vtanh.pop %v1964
      %v1975 = vtanh.pop %v1965
      %v1976 = vtanh.pop %v1966
      %v1977 = vtanh.pop %v1967
      %v1978 = vtanh.pop %v1968
      %v1979 = vadd.f32 %v1969, 1.0
      %v1980 = vadd.f32 %v1970, 1.0
      %v1981 = vadd.f32 %v1971, 1.0
      %v1982 = vadd.f32 %v1972, 1.0
      %v1983 = vadd.f32 %v1973, 1.0
      %v1984 = vadd.f32 %v1974, 1.0
      %v1985 = vadd.f32 %v1975, 1.0
      %v1986 = vadd.f32 %v1976, 1.0
      %v1987 = vadd.f32 %v1977, 1.0
      %v1988 = vadd.f32 %v1978, 1.0
      %v1989 = vmul.f32 %v1979, 0.5
      %v1990 = vmul.f32 %v1980, 0.5
      %v1991 = vmul.f32 %v1981, 0.5
      %v1992 = vmul.f32 %v1982, 0.5
      %v1993 = vmul.f32 %v1983, 0.5
      %v1994 = vmul.f32 %v1984, 0.5
      %v1995 = vmul.f32 %v1985, 0.5
      %v1996 = vmul.f32 %v1986, 0.5
      %v1997 = vmul.f32 %v1987, 0.5
      %v1998 = vmul.f32 %v1988, 0.5
      %v2000 = vperm.slane %v1952, 0
      %v2002 = vmul.f32 %v2000, %v1989
      %v2003 = vmul.f32 %v2000, %v1990
      %v2004 = vmul.f32 %v2000, %v1991
      %v2005 = vmul.f32 %v2000, %v1992
      %v2006 = vmul.f32 %v2000, %v1993
      %v2007 = vmul.f32 %v2000, %v1994
      %v2008 = vmul.f32 %v2000, %v1995
      %v2009 = vmul.f32 %v2000, %v1996
      %v2010 = vmul.f32 %v2000, %v1997
      %v2011 = vmul.f32 %v2000, %v1998
      %v2012 = vsub.f32 1.0, %v1952
      %v2014 = vperm.slane %v1953, 0
      %v2016 = vmul.f32 %v2014, %v1969
      %v2017 = vmul.f32 %v2014, %v1970
      %v2018 = vmul.f32 %v2014, %v1971
      %v2019 = vmul.f32 %v2014, %v1972
      %v2020 = vmul.f32 %v2014, %v1973
      %v2021 = vmul.f32 %v2014, %v1974
      %v2022 = vmul.f32 %v2014, %v1975
      %v2023 = vmul.f32 %v2014, %v1976
      %v2024 = vmul.f32 %v2014, %v1977
      %v2025 = vmul.f32 %v2014, %v1978
      %v2027 = vperm.slane %v2012, 0
      %v2029 = vmul.f32 %v2027, %v2016
      %v2030 = vmul.f32 %v2027, %v2017
      %v2031 = vmul.f32 %v2027, %v2018
      %v2032 = vmul.f32 %v2027, %v2019
      %v2033 = vmul.f32 %v2027, %v2020
      %v2034 = vmul.f32 %v2027, %v2021
      %v2035 = vmul.f32 %v2027, %v2022
      %v2036 = vmul.f32 %v2027, %v2023
      %v2037 = vmul.f32 %v2027, %v2024
      %v2038 = vmul.f32 %v2027, %v2025
      %v2039 = vadd.f32 %v2002, %v2029
      %v2040 = vadd.f32 %v2003, %v2030
      %v2041 = vadd.f32 %v2004, %v2031
      %v2042 = vadd.f32 %v2005, %v2032
      %v2043 = vadd.f32 %v2006, %v2033
      %v2044 = vadd.f32 %v2007, %v2034
      %v2045 = vadd.f32 %v2008, %v2035
      %v2046 = vadd.f32 %v2009, %v2036
      %v2047 = vadd.f32 %v2010, %v2037
      %v2048 = vadd.f32 %v2011, %v2038
      %2049 = vst.msk [vmem:[%s305] sm:$0xff] %vm626, %v2039
      %2050 = vst.msk [vmem:[%s305 + $0x8] sm:$0xff] %vm626, %v2040
      %2051 = vst.msk [vmem:[%s305 + $0x10] sm:$0xff] %vm626, %v2041
      %2052 = vst.msk [vmem:[%s305 + $0x18] sm:$0xff] %vm626, %v2042
      %2053 = vst.msk [vmem:[%s305 + $0x20] sm:$0xff] %vm626, %v2043
      %2054 = vst.msk [vmem:[%s305 + $0x28] sm:$0xff] %vm626, %v2044
      %2055 = vst.msk [vmem:[%s305 + $0x30] sm:$0xff] %vm626, %v2045
      %2056 = vst.msk [vmem:[%s305 + $0x38] sm:$0xff] %vm626, %v2046
      %2057 = vst.msk [vmem:[%s305 + $0x40] sm:$0xff] %vm626, %v2047
      %2058 = vst.msk [vmem:[%s305 + $0x48] sm:$0xff] %vm626, %v2048
      %p2059 = scmp.lt.s32.totalorder %s19, 1
      %s2060 = scalar_select %p2059, %s19, 1
      %s2061 = smul.addr %s2060, 10
      %s2062 = smul.addr %s2061, 8
      %s2063 = scalar_lea.vmem %s8, %s2062
      // Predicated region
      $region53: #{center_speed_forward.7} parent=51 // pred_check
        %p2064 = pneg %p210
      $region54: #{center_speed_forward.7} parent=51 // pred_check_branch
        %2066 = sbr.rel (%p2064) target = $region56
      $region55: #{center_speed_forward.7} parent=51 // pred_region
        _
      $region56: #{center_speed_forward.7} parent=51 // pred_fallthru
        _
    $region52: #{center_speed_forward.7} parent=5 // pred_fallthru
      _
    %p2067 = scmp.le.s32.totalorder 2, %s14
    // Predicated region
    $region57: #{center_speed_forward.7} parent=5 // pred_check
      %p2068 = pneg %p2067
    $region58: #{center_speed_forward.7} parent=5 // pred_check_branch
      %2070 = sbr.rel (%p2068) target = $region60
    $region59: #{center_speed_forward.7} parent=5 // pred_region
      %s2071 = ssub.s32 %s14, 2
      // Predicated region
      $region61: #{center_speed_forward.7} parent=59 // pred_check
        %p2072 = pneg %p216
      $region62: #{center_speed_forward.7} parent=59 // pred_check_branch
        %2074 = sbr.rel (%p2072) target = $region64
      $region63: #{center_speed_forward.7} parent=59 // pred_region
        %p2075 = scmp.lt.s32.totalorder %s20, 1
        %s2076 = scalar_select %p2075, %s20, 1
        %s2077 = smul.addr %s2076, 10
        %s2078 = smul.addr %s2077, 8
        %s2079 = scalar_lea.vmem %s8, %s2078
      $region64: #{center_speed_forward.7} parent=59 // pred_fallthru
        _
    $region60: #{center_speed_forward.7} parent=5 // pred_fallthru
      _
  $region6: #{center_speed_forward.7} parent=0 // loop_footer
    %s18 = sadd.s32 1, %s14
  $region7: #{center_speed_forward.7} parent=0 // loop_footer_branch
    %13 = sbr.rel target = $region3
  $region8: #{center_speed_forward.7} parent=0 // loop_exit
    _

</llo_original>
